<compile_context>
chip_gen: v6e
topology: v6e:2x2x1
jax: 0.10.0
libtpu: 0.0.40
codegen_flags: <defaults>
</compile_context>

<pallas_src>
import jax
import jax.numpy as jnp
from jax.experimental import pallas as pl
from jax.experimental.pallas import tpu as pltpu  # noqa: F401  (TPU backend)

jax.config.update("jax_default_matmul_precision", "float32")

# ----------------------------- model hyper-params ---------------------------
B = 2            # batch
M = 8            # number of variables (data.m)
WIN = 8          # args.window
P_LIST = (16, 16)
NL = len(P_LIST)
P_LAST = P_LIST[-1]
R = 4            # args.lowrank
COMPRESS = (8,)
C_LAST = COMPRESS[-1]
Y_DIM = 8        # args.y_dim
PRE_WIN = 2      # args.pre_win
EPS = 1e-5

# The fused kernel below is specialized to this configuration.
# TODO(synk): generalize the argument packing for other chain / compress depths.
assert NL == 2 and len(COMPRESS) == 1
assert all(p == P_LIST[0] for p in P_LIST) and P_LIST[0] >= WIN
assert Y_DIM <= M


def _selu(x):
    alpha = 1.6732632423543772
    scale = 1.0507009873554805
    return scale * jnp.where(x > 0.0, x, alpha * (jnp.exp(x) - 1.0))


# =============================== fused kernel ================================
def _fused_kernel(xpad_ref, w0_ref, b0_ref, w1_ref, b1_ref,
                  wa_ref, wc_ref, bn_ref, sv_ref,
                  cw_ref, cb_ref, fwf_ref, fwb_ref, fb_ref, o_ref):
    # xpad: (2*B*M, P0) rows ordered (direction, batch, m); cols = padded window
    xpad = xpad_ref[...]
    x0 = xpad[:, :WIN]

    # ---- input linear chain (both directions & all batches in one matmul) ---
    x1 = jnp.maximum(
        jnp.dot(x0, w0_ref[...], preferred_element_type=jnp.float32)
        + b0_ref[...] + xpad, 0.0)
    x2 = jnp.maximum(
        jnp.dot(x1, w1_ref[...], preferred_element_type=jnp.float32)
        + b1_ref[...] + x1, 0.0)
    # Transposed chain activations: (P, 2*B*M), cols ordered (dir, batch, m).
    xts = (x1.T, x2.T)

    bn = bn_ref[...]        # (P, 4*3*2)  packed BN scale/shift
    sv = sv_ref[...]        # (NL, B*R)   SV diag, tiled over batch
    cw = cw_ref[...]        # (NL*P, 2*C) compress weights [fw | bw] on lanes
    cb = cb_ref[...]        # (1, 2*C)

    z_dirs = []
    for d in range(2):                       # 0 = forward, 1 = backward
        acc = jnp.zeros((B * M, C_LAST), jnp.float32)
        for li in range(NL):
            bi = d * NL + li
            col = bi * 6
            xs = xts[li][:, d * B * M:(d + 1) * B * M]        # (P, B*M)
            # BD matmul, batched over B via block-diagonal weight
            h = jnp.dot(xs, wa_ref[bi],
                        preferred_element_type=jnp.float32)   # (P, B*R)
            h = h * bn[:, col + 0:col + 1] + bn[:, col + 1:col + 2]
            h = jnp.tanh(h / 5.0)
            h = h * sv[li:li + 1, :]                          # SV diag scale
            h = h * bn[:, col + 2:col + 3] + bn[:, col + 3:col + 4]
            y = jnp.dot(h, wc_ref[bi],
                        preferred_element_type=jnp.float32)   # (P, B*M)
            y = y * bn[:, col + 4:col + 5] + bn[:, col + 5:col + 6]
            y = _selu(y)
            # Fold the transpose-back + concat + compress matmul into one
            # transposed dot accumulated over layers: (B*M, P) @ (P, C).
            acc = acc + jnp.dot(
                y.T, cw[li * P_LAST:(li + 1) * P_LAST,
                        d * C_LAST:(d + 1) * C_LAST],
                preferred_element_type=jnp.float32)           # (B*M, C)
        z = jnp.tanh((acc + cb[:, d * C_LAST:(d + 1) * C_LAST]) / 5.0)
        z_dirs.append(z)                                       # rows (b, m)

    # ---- final row-wise (FR) map: out[b,y,k] = sum_c z[b,y,c]*W[y,c,k]+b ----
    fwf = fwf_ref[...]      # (Y, C, K)  fw half of FR weight
    fwb = fwb_ref[...]      # (Y, C, K)  bw half
    fb = fb_ref[...]        # (Y, K)
    for b in range(B):
        zf = z_dirs[0][b * M:b * M + Y_DIM, :]                # (Y, C)
        zb = z_dirs[1][b * M:b * M + Y_DIM, :]
        out_b = (jnp.sum(zf[:, :, None] * fwf, axis=1)
                 + jnp.sum(zb[:, :, None] * fwb, axis=1) + fb)  # (Y, K)
        o_ref[b] = out_b


# ============================ param preparation ==============================
def fold_params(params):
    """One-time packing of parameters for the fused kernel."""
    eye_b = jnp.eye(B, dtype=jnp.float32)
    folded = {
        'w0': params['in_w'][0], 'b0': params['in_b'][0],
        'w1': params['in_w'][1], 'b1': params['in_b'][1],
    }
    wa_list, wc_list, bn_cols = [], [], []
    for d in range(2):
        for li in range(NL):
            lp = params['layers'][li]
            if d == 0:   # forward branch: BD(m,r) fwd then BD(r,m) fwd
                wa, wc = lp['bd1_w'].T, lp['bd2_w'].T
                stages = ('bn1', 'bn4', 'bn7')
            else:        # backward branch: BD(r,m) bwd then BD(m,r) bwd
                wa, wc = lp['bd2_w'], lp['bd1_w']
                stages = ('bn8', 'bn5', 'bn2')
            wa_list.append(jnp.kron(eye_b, wa))      # (B*M, B*R) block-diag
            wc_list.append(jnp.kron(eye_b, wc))      # (B*R, B*M) block-diag
            for st in stages:
                s, sh = lp[st]                       # each (P, 1)
                bn_cols += [s, sh]
    folded['wa'] = jnp.stack(wa_list)                # (4, B*M, B*R)
    folded['wc'] = jnp.stack(wc_list)                # (4, B*R, B*M)
    folded['bn'] = jnp.concatenate(bn_cols, axis=1)  # (P, 24)
    folded['sv'] = jnp.stack(
        [jnp.tile(params['layers'][li]['sv'], B) for li in range(NL)])  # (NL, B*R)
    folded['cw'] = jnp.concatenate(
        [params['comp_fw_w'][0], params['comp_bw_w'][0]], axis=1)       # (2P, 2C)
    folded['cb'] = jnp.concatenate(
        [params['comp_fw_b'][0], params['comp_bw_b'][0]], axis=1)       # (1, 2C)
    folded['fwf'] = params['fr_w'][:, :C_LAST, :]    # (Y, C, K)
    folded['fwb'] = params['fr_w'][:, C_LAST:, :]    # (Y, C, K)
    folded['fb'] = params['fr_b']                    # (Y, K)
    return folded


def forward_pallas(folded, x_fw, x_bw):
    """x_fw / x_bw: (B, WIN, M) as in the PyTorch model (after list unwrap)."""
    def to_rows(x):   # (B, WIN, M) -> (B*M, WIN), rows ordered (batch, m)
        return jnp.transpose(x, (0, 2, 1)).reshape(B * M, WIN)
    x_rows = jnp.concatenate([to_rows(x_fw), to_rows(x_bw)], axis=0)  # (2BM, WIN)
    x_pad = jnp.pad(x_rows, ((0, 0), (0, P_LIST[0] - WIN)))           # (2BM, P0)

    args = (x_pad, folded['w0'], folded['b0'], folded['w1'], folded['b1'],
            folded['wa'], folded['wc'], folded['bn'], folded['sv'],
            folded['cw'], folded['cb'], folded['fwf'], folded['fwb'],
            folded['fb'])
    # No grid / no BlockSpecs: every operand is a whole-array VMEM block
    # (total footprint is a few KB), one kernel invocation for the full batch.
    return pl.pallas_call(
        _fused_kernel,
        out_shape=jax.ShapeDtypeStruct((B, Y_DIM, PRE_WIN), jnp.float32),
    )(*args)


# ============================ pure-JAX reference =============================
def forward_ref(params, x_fw_list, x_bw_list):
    x_fw = jnp.transpose(x_fw_list[0], (0, 2, 1))    # (B, M, WIN)
    x_bw = jnp.transpose(x_bw_list[0], (0, 2, 1))
    pad = P_LIST[0] - WIN

    def chain(x):
        x0n = jnp.pad(x, ((0, 0), (0, 0), (0, pad)))
        x0 = x
        outs = []
        for li in range(NL):
            xi = jnp.maximum(
                jnp.einsum('bmd,dp->bmp', x0, params['in_w'][li])
                + params['in_b'][li] + x0n, 0.0)
            x0n = xi
            x0 = xi
            outs.append(xi)
        return outs

    fw_p = chain(x_fw)
    bw_p = chain(x_bw)

    def branch(x, wa, wc, sv, bnA, bnB, bnC):
        xs = jnp.transpose(x, (0, 2, 1))             # (B, P, M)
        h = jnp.einsum('bpm,mr->bpr', xs, wa)
        h = h * bnA[0][None] + bnA[1][None]
        h = jnp.tanh(h / 5.0)
        h = h * sv[None, None, :]
        h = h * bnB[0][None] + bnB[1][None]
        y = jnp.einsum('bpr,rm->bpm', h, wc)
        y = y * bnC[0][None] + bnC[1][None]
        return jnp.transpose(_selu(y), (0, 2, 1))    # (B, M, P)

    fw_parts, bw_parts = [], []
    for li in range(NL):
        lp = params['layers'][li]
        fw_parts.append(branch(fw_p[li], lp['bd1_w'].T, lp['bd2_w'].T, lp['sv'],
                               lp['bn1'], lp['bn4'], lp['bn7']))
        bw_parts.append(branch(bw_p[li], lp['bd2_w'], lp['bd1_w'], lp['sv'],
                               lp['bn8'], lp['bn5'], lp['bn2']))

    def compress(x, ws, bs):
        for w, b in zip(ws, bs):
            x = jnp.tanh((jnp.einsum('byc,ce->bye', x, w) + b) / 5.0)
        return x

    zf = compress(jnp.concatenate(fw_parts, axis=2)[:, :Y_DIM, :],
                  params['comp_fw_w'], params['comp_fw_b'])
    zb = compress(jnp.concatenate(bw_parts, axis=2)[:, :Y_DIM, :],
                  params['comp_bw_w'], params['comp_bw_b'])
    z = jnp.concatenate([zf, zb], axis=2)
    return jnp.einsum('byc,yck->byk', z, params['fr_w']) + params['fr_b'][None]


# =============================== param setup =================================
def make_params(key):
    keys = list(jax.random.split(key, 256))
    ctr = [0]

    def nrm(shape, scale=0.1):
        k = keys[ctr[0]]
        ctr[0] += 1
        return scale * jax.random.normal(k, shape, dtype=jnp.float32)

    def bn(p):
        gamma = 1.0 + nrm((p,))
        beta = nrm((p,))
        mean = nrm((p,))
        var = 1.0 + jnp.abs(nrm((p,)))
        scale = gamma / jnp.sqrt(var + EPS)
        shift = beta - mean * scale
        return scale.reshape(p, 1), shift.reshape(p, 1)

    params = {}
    in_w, in_b = [], []
    prev = WIN
    for p in P_LIST:
        in_w.append(nrm((prev, p)))          # stored as (in, out)
        in_b.append(nrm((1, p)))
        prev = p
    params['in_w'] = in_w
    params['in_b'] = in_b

    layers = []
    for _ in range(NL):
        lp = {
            'bd1_w': nrm((R, M)),            # BD_Model(m, lowrank).weight (out, in)
            'bd2_w': nrm((M, R)),            # BD_Model(lowrank, m).weight (out, in)
            'sv': nrm((R,), scale=1.0),      # SV_Model diagonal weights
        }
        for name in ('bn1', 'bn2', 'bn4', 'bn5', 'bn7', 'bn8'):
            lp[name] = bn(P_LAST)
        layers.append(lp)
    params['layers'] = layers

    p_allsum = sum(P_LIST)
    for tag in ('comp_fw', 'comp_bw'):
        ws, bs = [], []
        prev = p_allsum
        for c in COMPRESS:
            ws.append(nrm((prev, c)))
            bs.append(nrm((1, c)))
            prev = c
        params[tag + '_w'] = ws
        params[tag + '_b'] = bs

    params['fr_w'] = nrm((Y_DIM, 2 * C_LAST, PRE_WIN))
    params['fr_b'] = nrm((Y_DIM, PRE_WIN))
    return params


# =================================== main ====================================
if __name__ == "__main__":
    root = jax.random.PRNGKey(0)
    kp, kf, kb = jax.random.split(root, 3)
    params = make_params(kp)
    x_fw = jax.random.normal(kf, (B, WIN, M), dtype=jnp.float32)
    x_bw = jax.random.normal(kb, (B, WIN, M), dtype=jnp.float32)

    folded = fold_params(params)          # one-time parameter packing
    run = jax.jit(forward_pallas)
    out = jax.block_until_ready(run(folded, x_fw, x_bw))

    ref = jax.block_until_ready(jax.jit(forward_ref)(params, [x_fw], [x_bw]))

    assert out.shape == (B, Y_DIM, PRE_WIN), out.shape
    assert bool(jnp.all(jnp.isfinite(out)))
    max_err = float(jnp.max(jnp.abs(out - ref)))
    assert bool(jnp.allclose(out, ref, atol=1e-2, rtol=1e-2)), max_err
    print("KERNEL_OK")
</pallas_src>

<mosaic_0001>
module attributes {stable_mosaic.version = 11 : i64} {
  func.func @_fused_kernel(%arg0: memref<32x16xf32, #tpu.memory_space<vmem>>, %arg1: memref<8x16xf32, #tpu.memory_space<vmem>>, %arg2: memref<1x16xf32, #tpu.memory_space<vmem>>, %arg3: memref<16x16xf32, #tpu.memory_space<vmem>>, %arg4: memref<1x16xf32, #tpu.memory_space<vmem>>, %arg5: memref<4x16x8xf32, #tpu.memory_space<vmem>>, %arg6: memref<4x8x16xf32, #tpu.memory_space<vmem>>, %arg7: memref<16x24xf32, #tpu.memory_space<vmem>>, %arg8: memref<2x8xf32, #tpu.memory_space<vmem>>, %arg9: memref<32x16xf32, #tpu.memory_space<vmem>>, %arg10: memref<1x16xf32, #tpu.memory_space<vmem>>, %arg11: memref<8x8x2xf32, #tpu.memory_space<vmem>>, %arg12: memref<8x8x2xf32, #tpu.memory_space<vmem>>, %arg13: memref<8x2xf32, #tpu.memory_space<vmem>>, %arg14: memref<2x8x2xf32, #tpu.memory_space<vmem>>) attributes {dimension_semantics = [], scalar_prefetch = 0 : i64, scratch_operands = 0 : i64, tpu.core_type = #tpu.core_type<tc>} {
    %c0 = arith.constant 0 : index
    %c0_0 = arith.constant 0 : index
    %0 = vector.load %arg0[%c0, %c0_0] : memref<32x16xf32, #tpu.memory_space<vmem>>, vector<32x16xf32>
    %1 = vector.extract_strided_slice %0 {offsets = [0, 0], sizes = [32, 8], strides = [1, 1]} : vector<32x16xf32> to vector<32x8xf32>
    %c0_1 = arith.constant 0 : index
    %c0_2 = arith.constant 0 : index
    %2 = vector.load %arg1[%c0_1, %c0_2] : memref<8x16xf32, #tpu.memory_space<vmem>>, vector<8x16xf32>
    %cst = arith.constant dense<0.000000e+00> : vector<32x16xf32>
    %3 = tpu.matmul %1, %2, %cst {dimension_numbers = #tpu.dot_dimension_numbers<[1], [0], [0], [1], [0, 0, 1, 1], [], []>, precision = #tpu.contract_precision<fp32>} : vector<32x8xf32>, vector<8x16xf32>, vector<32x16xf32> -> vector<32x16xf32>
    %c0_3 = arith.constant 0 : index
    %c0_4 = arith.constant 0 : index
    %4 = vector.load %arg2[%c0_3, %c0_4] : memref<1x16xf32, #tpu.memory_space<vmem>>, vector<1x16xf32>
    %5 = vector.broadcast %4 : vector<1x16xf32> to vector<32x16xf32>
    %6 = arith.addf %3, %5 : vector<32x16xf32>
    %7 = arith.addf %6, %0 : vector<32x16xf32>
    %cst_5 = arith.constant 0.000000e+00 : f32
    %8 = vector.broadcast %cst_5 : f32 to vector<32x16xf32>
    %9 = arith.maximumf %7, %8 : vector<32x16xf32>
    %c0_6 = arith.constant 0 : index
    %c0_7 = arith.constant 0 : index
    %10 = vector.load %arg3[%c0_6, %c0_7] : memref<16x16xf32, #tpu.memory_space<vmem>>, vector<16x16xf32>
    %cst_8 = arith.constant dense<0.000000e+00> : vector<32x16xf32>
    %11 = tpu.matmul %9, %10, %cst_8 {dimension_numbers = #tpu.dot_dimension_numbers<[1], [0], [0], [1], [0, 0, 1, 1], [], []>, precision = #tpu.contract_precision<fp32>} : vector<32x16xf32>, vector<16x16xf32>, vector<32x16xf32> -> vector<32x16xf32>
    %c0_9 = arith.constant 0 : index
    %c0_10 = arith.constant 0 : index
    %12 = vector.load %arg4[%c0_9, %c0_10] : memref<1x16xf32, #tpu.memory_space<vmem>>, vector<1x16xf32>
    %13 = vector.broadcast %12 : vector<1x16xf32> to vector<32x16xf32>
    %14 = arith.addf %11, %13 : vector<32x16xf32>
    %15 = arith.addf %14, %9 : vector<32x16xf32>
    %cst_11 = arith.constant 0.000000e+00 : f32
    %16 = vector.broadcast %cst_11 : f32 to vector<32x16xf32>
    %17 = arith.maximumf %15, %16 : vector<32x16xf32>
    %18 = tpu.transpose %9, [1, 0] : vector<32x16xf32> -> vector<16x32xf32>
    %19 = tpu.transpose %17, [1, 0] : vector<32x16xf32> -> vector<16x32xf32>
    %c0_12 = arith.constant 0 : index
    %c0_13 = arith.constant 0 : index
    %20 = vector.load %arg7[%c0_12, %c0_13] : memref<16x24xf32, #tpu.memory_space<vmem>>, vector<16x24xf32>
    %c0_14 = arith.constant 0 : index
    %c0_15 = arith.constant 0 : index
    %21 = vector.load %arg8[%c0_14, %c0_15] : memref<2x8xf32, #tpu.memory_space<vmem>>, vector<2x8xf32>
    %c0_16 = arith.constant 0 : index
    %c0_17 = arith.constant 0 : index
    %22 = vector.load %arg9[%c0_16, %c0_17] : memref<32x16xf32, #tpu.memory_space<vmem>>, vector<32x16xf32>
    %c0_18 = arith.constant 0 : index
    %c0_19 = arith.constant 0 : index
    %23 = vector.load %arg10[%c0_18, %c0_19] : memref<1x16xf32, #tpu.memory_space<vmem>>, vector<1x16xf32>
    %cst_20 = arith.constant 0.000000e+00 : f32
    %24 = vector.broadcast %cst_20 : f32 to vector<16x8xf32>
    %25 = vector.extract_strided_slice %18 {offsets = [0, 0], sizes = [16, 16], strides = [1, 1]} : vector<16x32xf32> to vector<16x16xf32>
    %c0_21 = arith.constant 0 : index
    %c0_22 = arith.constant 0 : index
    %c0_23 = arith.constant 0 : index
    %26 = vector.load %arg5[%c0_21, %c0_22, %c0_23] : memref<4x16x8xf32, #tpu.memory_space<vmem>>, vector<1x16x8xf32>
    %27 = vector.shape_cast %26 : vector<1x16x8xf32> to vector<16x8xf32>
    %cst_24 = arith.constant dense<0.000000e+00> : vector<16x8xf32>
    %28 = tpu.matmul %25, %27, %cst_24 {dimension_numbers = #tpu.dot_dimension_numbers<[1], [0], [0], [1], [0, 0, 1, 1], [], []>, precision = #tpu.contract_precision<fp32>} : vector<16x16xf32>, vector<16x8xf32>, vector<16x8xf32> -> vector<16x8xf32>
    %29 = vector.extract_strided_slice %20 {offsets = [0, 0], sizes = [16, 1], strides = [1, 1]} : vector<16x24xf32> to vector<16x1xf32>
    %30 = vector.broadcast %29 : vector<16x1xf32> to vector<16x8xf32>
    %31 = arith.mulf %28, %30 : vector<16x8xf32>
    %32 = vector.extract_strided_slice %20 {offsets = [0, 1], sizes = [16, 1], strides = [1, 1]} : vector<16x24xf32> to vector<16x1xf32>
    %33 = vector.broadcast %32 : vector<16x1xf32> to vector<16x8xf32>
    %34 = arith.addf %31, %33 : vector<16x8xf32>
    %cst_25 = arith.constant 5.000000e+00 : f32
    %35 = vector.broadcast %cst_25 : f32 to vector<16x8xf32>
    %36 = arith.divf %34, %35 : vector<16x8xf32>
    %37 = math.tanh %36 : vector<16x8xf32>
    %38 = vector.extract_strided_slice %21 {offsets = [0, 0], sizes = [1, 8], strides = [1, 1]} : vector<2x8xf32> to vector<1x8xf32>
    %39 = vector.broadcast %38 : vector<1x8xf32> to vector<16x8xf32>
    %40 = arith.mulf %37, %39 : vector<16x8xf32>
    %41 = vector.extract_strided_slice %20 {offsets = [0, 2], sizes = [16, 1], strides = [1, 1]} : vector<16x24xf32> to vector<16x1xf32>
    %42 = vector.broadcast %41 : vector<16x1xf32> to vector<16x8xf32>
    %43 = arith.mulf %40, %42 : vector<16x8xf32>
    %44 = vector.extract_strided_slice %20 {offsets = [0, 3], sizes = [16, 1], strides = [1, 1]} : vector<16x24xf32> to vector<16x1xf32>
    %45 = vector.broadcast %44 : vector<16x1xf32> to vector<16x8xf32>
    %46 = arith.addf %43, %45 : vector<16x8xf32>
    %c0_26 = arith.constant 0 : index
    %c0_27 = arith.constant 0 : index
    %c0_28 = arith.constant 0 : index
    %47 = vector.load %arg6[%c0_26, %c0_27, %c0_28] : memref<4x8x16xf32, #tpu.memory_space<vmem>>, vector<1x8x16xf32>
    %48 = vector.shape_cast %47 : vector<1x8x16xf32> to vector<8x16xf32>
    %cst_29 = arith.constant dense<0.000000e+00> : vector<16x16xf32>
    %49 = tpu.matmul %46, %48, %cst_29 {dimension_numbers = #tpu.dot_dimension_numbers<[1], [0], [0], [1], [0, 0, 1, 1], [], []>, precision = #tpu.contract_precision<fp32>} : vector<16x8xf32>, vector<8x16xf32>, vector<16x16xf32> -> vector<16x16xf32>
    %50 = vector.extract_strided_slice %20 {offsets = [0, 4], sizes = [16, 1], strides = [1, 1]} : vector<16x24xf32> to vector<16x1xf32>
    %51 = vector.broadcast %50 : vector<16x1xf32> to vector<16x16xf32>
    %52 = arith.mulf %49, %51 : vector<16x16xf32>
    %53 = vector.extract_strided_slice %20 {offsets = [0, 5], sizes = [16, 1], strides = [1, 1]} : vector<16x24xf32> to vector<16x1xf32>
    %54 = vector.broadcast %53 : vector<16x1xf32> to vector<16x16xf32>
    %55 = arith.addf %52, %54 : vector<16x16xf32>
    %cst_30 = arith.constant 0.000000e+00 : f32
    %56 = vector.broadcast %cst_30 : f32 to vector<16x16xf32>
    %57 = arith.cmpf ogt, %55, %56 : vector<16x16xf32>
    %58 = math.exp %55 : vector<16x16xf32>
    %cst_31 = arith.constant 1.000000e+00 : f32
    %59 = vector.broadcast %cst_31 : f32 to vector<16x16xf32>
    %60 = arith.subf %58, %59 : vector<16x16xf32>
    %cst_32 = arith.constant 1.67326319 : f32
    %61 = vector.broadcast %cst_32 : f32 to vector<16x16xf32>
    %62 = arith.mulf %61, %60 : vector<16x16xf32>
    %63 = arith.select %57, %55, %62 : vector<16x16xi1>, vector<16x16xf32>
    %cst_33 = arith.constant 1.05070102 : f32
    %64 = vector.broadcast %cst_33 : f32 to vector<16x16xf32>
    %65 = arith.mulf %64, %63 : vector<16x16xf32>
    %66 = tpu.transpose %65, [1, 0] : vector<16x16xf32> -> vector<16x16xf32>
    %67 = vector.extract_strided_slice %22 {offsets = [0, 0], sizes = [16, 8], strides = [1, 1]} : vector<32x16xf32> to vector<16x8xf32>
    %cst_34 = arith.constant dense<0.000000e+00> : vector<16x8xf32>
    %68 = tpu.matmul %66, %67, %cst_34 {dimension_numbers = #tpu.dot_dimension_numbers<[1], [0], [0], [1], [0, 0, 1, 1], [], []>, precision = #tpu.contract_precision<fp32>} : vector<16x16xf32>, vector<16x8xf32>, vector<16x8xf32> -> vector<16x8xf32>
    %69 = arith.addf %24, %68 : vector<16x8xf32>
    %70 = vector.extract_strided_slice %19 {offsets = [0, 0], sizes = [16, 16], strides = [1, 1]} : vector<16x32xf32> to vector<16x16xf32>
    %c1 = arith.constant 1 : index
    %c0_35 = arith.constant 0 : index
    %c0_36 = arith.constant 0 : index
    %71 = vector.load %arg5[%c1, %c0_35, %c0_36] : memref<4x16x8xf32, #tpu.memory_space<vmem>>, vector<1x16x8xf32>
    %72 = vector.shape_cast %71 : vector<1x16x8xf32> to vector<16x8xf32>
    %cst_37 = arith.constant dense<0.000000e+00> : vector<16x8xf32>
    %73 = tpu.matmul %70, %72, %cst_37 {dimension_numbers = #tpu.dot_dimension_numbers<[1], [0], [0], [1], [0, 0, 1, 1], [], []>, precision = #tpu.contract_precision<fp32>} : vector<16x16xf32>, vector<16x8xf32>, vector<16x8xf32> -> vector<16x8xf32>
    %74 = vector.extract_strided_slice %20 {offsets = [0, 6], sizes = [16, 1], strides = [1, 1]} : vector<16x24xf32> to vector<16x1xf32>
    %75 = vector.broadcast %74 : vector<16x1xf32> to vector<16x8xf32>
    %76 = arith.mulf %73, %75 : vector<16x8xf32>
    %77 = vector.extract_strided_slice %20 {offsets = [0, 7], sizes = [16, 1], strides = [1, 1]} : vector<16x24xf32> to vector<16x1xf32>
    %78 = vector.broadcast %77 : vector<16x1xf32> to vector<16x8xf32>
    %79 = arith.addf %76, %78 : vector<16x8xf32>
    %cst_38 = arith.constant 5.000000e+00 : f32
    %80 = vector.broadcast %cst_38 : f32 to vector<16x8xf32>
    %81 = arith.divf %79, %80 : vector<16x8xf32>
    %82 = math.tanh %81 : vector<16x8xf32>
    %83 = vector.extract_strided_slice %21 {offsets = [1, 0], sizes = [1, 8], strides = [1, 1]} : vector<2x8xf32> to vector<1x8xf32>
    %84 = vector.broadcast %83 : vector<1x8xf32> to vector<16x8xf32>
    %85 = arith.mulf %82, %84 : vector<16x8xf32>
    %86 = vector.extract_strided_slice %20 {offsets = [0, 8], sizes = [16, 1], strides = [1, 1]} : vector<16x24xf32> to vector<16x1xf32>
    %87 = vector.broadcast %86 : vector<16x1xf32> to vector<16x8xf32>
    %88 = arith.mulf %85, %87 : vector<16x8xf32>
    %89 = vector.extract_strided_slice %20 {offsets = [0, 9], sizes = [16, 1], strides = [1, 1]} : vector<16x24xf32> to vector<16x1xf32>
    %90 = vector.broadcast %89 : vector<16x1xf32> to vector<16x8xf32>
    %91 = arith.addf %88, %90 : vector<16x8xf32>
    %c1_39 = arith.constant 1 : index
    %c0_40 = arith.constant 0 : index
    %c0_41 = arith.constant 0 : index
    %92 = vector.load %arg6[%c1_39, %c0_40, %c0_41] : memref<4x8x16xf32, #tpu.memory_space<vmem>>, vector<1x8x16xf32>
    %93 = vector.shape_cast %92 : vector<1x8x16xf32> to vector<8x16xf32>
    %cst_42 = arith.constant dense<0.000000e+00> : vector<16x16xf32>
    %94 = tpu.matmul %91, %93, %cst_42 {dimension_numbers = #tpu.dot_dimension_numbers<[1], [0], [0], [1], [0, 0, 1, 1], [], []>, precision = #tpu.contract_precision<fp32>} : vector<16x8xf32>, vector<8x16xf32>, vector<16x16xf32> -> vector<16x16xf32>
    %95 = vector.extract_strided_slice %20 {offsets = [0, 10], sizes = [16, 1], strides = [1, 1]} : vector<16x24xf32> to vector<16x1xf32>
    %96 = vector.broadcast %95 : vector<16x1xf32> to vector<16x16xf32>
    %97 = arith.mulf %94, %96 : vector<16x16xf32>
    %98 = vector.extract_strided_slice %20 {offsets = [0, 11], sizes = [16, 1], strides = [1, 1]} : vector<16x24xf32> to vector<16x1xf32>
    %99 = vector.broadcast %98 : vector<16x1xf32> to vector<16x16xf32>
    %100 = arith.addf %97, %99 : vector<16x16xf32>
    %cst_43 = arith.constant 0.000000e+00 : f32
    %101 = vector.broadcast %cst_43 : f32 to vector<16x16xf32>
    %102 = arith.cmpf ogt, %100, %101 : vector<16x16xf32>
    %103 = math.exp %100 : vector<16x16xf32>
    %cst_44 = arith.constant 1.000000e+00 : f32
    %104 = vector.broadcast %cst_44 : f32 to vector<16x16xf32>
    %105 = arith.subf %103, %104 : vector<16x16xf32>
    %cst_45 = arith.constant 1.67326319 : f32
    %106 = vector.broadcast %cst_45 : f32 to vector<16x16xf32>
    %107 = arith.mulf %106, %105 : vector<16x16xf32>
    %108 = arith.select %102, %100, %107 : vector<16x16xi1>, vector<16x16xf32>
    %cst_46 = arith.constant 1.05070102 : f32
    %109 = vector.broadcast %cst_46 : f32 to vector<16x16xf32>
    %110 = arith.mulf %109, %108 : vector<16x16xf32>
    %111 = tpu.transpose %110, [1, 0] : vector<16x16xf32> -> vector<16x16xf32>
    %112 = vector.extract_strided_slice %22 {offsets = [16, 0], sizes = [16, 8], strides = [1, 1]} : vector<32x16xf32> to vector<16x8xf32>
    %cst_47 = arith.constant dense<0.000000e+00> : vector<16x8xf32>
    %113 = tpu.matmul %111, %112, %cst_47 {dimension_numbers = #tpu.dot_dimension_numbers<[1], [0], [0], [1], [0, 0, 1, 1], [], []>, precision = #tpu.contract_precision<fp32>} : vector<16x16xf32>, vector<16x8xf32>, vector<16x8xf32> -> vector<16x8xf32>
    %114 = arith.addf %69, %113 : vector<16x8xf32>
    %115 = vector.extract_strided_slice %23 {offsets = [0, 0], sizes = [1, 8], strides = [1, 1]} : vector<1x16xf32> to vector<1x8xf32>
    %116 = vector.broadcast %115 : vector<1x8xf32> to vector<16x8xf32>
    %117 = arith.addf %114, %116 : vector<16x8xf32>
    %cst_48 = arith.constant 5.000000e+00 : f32
    %118 = vector.broadcast %cst_48 : f32 to vector<16x8xf32>
    %119 = arith.divf %117, %118 : vector<16x8xf32>
    %120 = math.tanh %119 : vector<16x8xf32>
    %cst_49 = arith.constant 0.000000e+00 : f32
    %121 = vector.broadcast %cst_49 : f32 to vector<16x8xf32>
    %122 = vector.extract_strided_slice %18 {offsets = [0, 16], sizes = [16, 16], strides = [1, 1]} : vector<16x32xf32> to vector<16x16xf32>
    %c2 = arith.constant 2 : index
    %c0_50 = arith.constant 0 : index
    %c0_51 = arith.constant 0 : index
    %123 = vector.load %arg5[%c2, %c0_50, %c0_51] : memref<4x16x8xf32, #tpu.memory_space<vmem>>, vector<1x16x8xf32>
    %124 = vector.shape_cast %123 : vector<1x16x8xf32> to vector<16x8xf32>
    %cst_52 = arith.constant dense<0.000000e+00> : vector<16x8xf32>
    %125 = tpu.matmul %122, %124, %cst_52 {dimension_numbers = #tpu.dot_dimension_numbers<[1], [0], [0], [1], [0, 0, 1, 1], [], []>, precision = #tpu.contract_precision<fp32>} : vector<16x16xf32>, vector<16x8xf32>, vector<16x8xf32> -> vector<16x8xf32>
    %126 = vector.extract_strided_slice %20 {offsets = [0, 12], sizes = [16, 1], strides = [1, 1]} : vector<16x24xf32> to vector<16x1xf32>
    %127 = vector.broadcast %126 : vector<16x1xf32> to vector<16x8xf32>
    %128 = arith.mulf %125, %127 : vector<16x8xf32>
    %129 = vector.extract_strided_slice %20 {offsets = [0, 13], sizes = [16, 1], strides = [1, 1]} : vector<16x24xf32> to vector<16x1xf32>
    %130 = vector.broadcast %129 : vector<16x1xf32> to vector<16x8xf32>
    %131 = arith.addf %128, %130 : vector<16x8xf32>
    %cst_53 = arith.constant 5.000000e+00 : f32
    %132 = vector.broadcast %cst_53 : f32 to vector<16x8xf32>
    %133 = arith.divf %131, %132 : vector<16x8xf32>
    %134 = math.tanh %133 : vector<16x8xf32>
    %135 = vector.extract_strided_slice %21 {offsets = [0, 0], sizes = [1, 8], strides = [1, 1]} : vector<2x8xf32> to vector<1x8xf32>
    %136 = vector.broadcast %135 : vector<1x8xf32> to vector<16x8xf32>
    %137 = arith.mulf %134, %136 : vector<16x8xf32>
    %138 = vector.extract_strided_slice %20 {offsets = [0, 14], sizes = [16, 1], strides = [1, 1]} : vector<16x24xf32> to vector<16x1xf32>
    %139 = vector.broadcast %138 : vector<16x1xf32> to vector<16x8xf32>
    %140 = arith.mulf %137, %139 : vector<16x8xf32>
    %141 = vector.extract_strided_slice %20 {offsets = [0, 15], sizes = [16, 1], strides = [1, 1]} : vector<16x24xf32> to vector<16x1xf32>
    %142 = vector.broadcast %141 : vector<16x1xf32> to vector<16x8xf32>
    %143 = arith.addf %140, %142 : vector<16x8xf32>
    %c2_54 = arith.constant 2 : index
    %c0_55 = arith.constant 0 : index
    %c0_56 = arith.constant 0 : index
    %144 = vector.load %arg6[%c2_54, %c0_55, %c0_56] : memref<4x8x16xf32, #tpu.memory_space<vmem>>, vector<1x8x16xf32>
    %145 = vector.shape_cast %144 : vector<1x8x16xf32> to vector<8x16xf32>
    %cst_57 = arith.constant dense<0.000000e+00> : vector<16x16xf32>
    %146 = tpu.matmul %143, %145, %cst_57 {dimension_numbers = #tpu.dot_dimension_numbers<[1], [0], [0], [1], [0, 0, 1, 1], [], []>, precision = #tpu.contract_precision<fp32>} : vector<16x8xf32>, vector<8x16xf32>, vector<16x16xf32> -> vector<16x16xf32>
    %147 = vector.extract_strided_slice %20 {offsets = [0, 16], sizes = [16, 1], strides = [1, 1]} : vector<16x24xf32> to vector<16x1xf32>
    %148 = vector.broadcast %147 : vector<16x1xf32> to vector<16x16xf32>
    %149 = arith.mulf %146, %148 : vector<16x16xf32>
    %150 = vector.extract_strided_slice %20 {offsets = [0, 17], sizes = [16, 1], strides = [1, 1]} : vector<16x24xf32> to vector<16x1xf32>
    %151 = vector.broadcast %150 : vector<16x1xf32> to vector<16x16xf32>
    %152 = arith.addf %149, %151 : vector<16x16xf32>
    %cst_58 = arith.constant 0.000000e+00 : f32
    %153 = vector.broadcast %cst_58 : f32 to vector<16x16xf32>
    %154 = arith.cmpf ogt, %152, %153 : vector<16x16xf32>
    %155 = math.exp %152 : vector<16x16xf32>
    %cst_59 = arith.constant 1.000000e+00 : f32
    %156 = vector.broadcast %cst_59 : f32 to vector<16x16xf32>
    %157 = arith.subf %155, %156 : vector<16x16xf32>
    %cst_60 = arith.constant 1.67326319 : f32
    %158 = vector.broadcast %cst_60 : f32 to vector<16x16xf32>
    %159 = arith.mulf %158, %157 : vector<16x16xf32>
    %160 = arith.select %154, %152, %159 : vector<16x16xi1>, vector<16x16xf32>
    %cst_61 = arith.constant 1.05070102 : f32
    %161 = vector.broadcast %cst_61 : f32 to vector<16x16xf32>
    %162 = arith.mulf %161, %160 : vector<16x16xf32>
    %163 = tpu.transpose %162, [1, 0] : vector<16x16xf32> -> vector<16x16xf32>
    %164 = vector.extract_strided_slice %22 {offsets = [0, 8], sizes = [16, 8], strides = [1, 1]} : vector<32x16xf32> to vector<16x8xf32>
    %cst_62 = arith.constant dense<0.000000e+00> : vector<16x8xf32>
    %165 = tpu.matmul %163, %164, %cst_62 {dimension_numbers = #tpu.dot_dimension_numbers<[1], [0], [0], [1], [0, 0, 1, 1], [], []>, precision = #tpu.contract_precision<fp32>} : vector<16x16xf32>, vector<16x8xf32>, vector<16x8xf32> -> vector<16x8xf32>
    %166 = arith.addf %121, %165 : vector<16x8xf32>
    %167 = vector.extract_strided_slice %19 {offsets = [0, 16], sizes = [16, 16], strides = [1, 1]} : vector<16x32xf32> to vector<16x16xf32>
    %c3 = arith.constant 3 : index
    %c0_63 = arith.constant 0 : index
    %c0_64 = arith.constant 0 : index
    %168 = vector.load %arg5[%c3, %c0_63, %c0_64] : memref<4x16x8xf32, #tpu.memory_space<vmem>>, vector<1x16x8xf32>
    %169 = vector.shape_cast %168 : vector<1x16x8xf32> to vector<16x8xf32>
    %cst_65 = arith.constant dense<0.000000e+00> : vector<16x8xf32>
    %170 = tpu.matmul %167, %169, %cst_65 {dimension_numbers = #tpu.dot_dimension_numbers<[1], [0], [0], [1], [0, 0, 1, 1], [], []>, precision = #tpu.contract_precision<fp32>} : vector<16x16xf32>, vector<16x8xf32>, vector<16x8xf32> -> vector<16x8xf32>
    %171 = vector.extract_strided_slice %20 {offsets = [0, 18], sizes = [16, 1], strides = [1, 1]} : vector<16x24xf32> to vector<16x1xf32>
    %172 = vector.broadcast %171 : vector<16x1xf32> to vector<16x8xf32>
    %173 = arith.mulf %170, %172 : vector<16x8xf32>
    %174 = vector.extract_strided_slice %20 {offsets = [0, 19], sizes = [16, 1], strides = [1, 1]} : vector<16x24xf32> to vector<16x1xf32>
    %175 = vector.broadcast %174 : vector<16x1xf32> to vector<16x8xf32>
    %176 = arith.addf %173, %175 : vector<16x8xf32>
    %cst_66 = arith.constant 5.000000e+00 : f32
    %177 = vector.broadcast %cst_66 : f32 to vector<16x8xf32>
    %178 = arith.divf %176, %177 : vector<16x8xf32>
    %179 = math.tanh %178 : vector<16x8xf32>
    %180 = vector.extract_strided_slice %21 {offsets = [1, 0], sizes = [1, 8], strides = [1, 1]} : vector<2x8xf32> to vector<1x8xf32>
    %181 = vector.broadcast %180 : vector<1x8xf32> to vector<16x8xf32>
    %182 = arith.mulf %179, %181 : vector<16x8xf32>
    %183 = vector.extract_strided_slice %20 {offsets = [0, 20], sizes = [16, 1], strides = [1, 1]} : vector<16x24xf32> to vector<16x1xf32>
    %184 = vector.broadcast %183 : vector<16x1xf32> to vector<16x8xf32>
    %185 = arith.mulf %182, %184 : vector<16x8xf32>
    %186 = vector.extract_strided_slice %20 {offsets = [0, 21], sizes = [16, 1], strides = [1, 1]} : vector<16x24xf32> to vector<16x1xf32>
    %187 = vector.broadcast %186 : vector<16x1xf32> to vector<16x8xf32>
    %188 = arith.addf %185, %187 : vector<16x8xf32>
    %c3_67 = arith.constant 3 : index
    %c0_68 = arith.constant 0 : index
    %c0_69 = arith.constant 0 : index
    %189 = vector.load %arg6[%c3_67, %c0_68, %c0_69] : memref<4x8x16xf32, #tpu.memory_space<vmem>>, vector<1x8x16xf32>
    %190 = vector.shape_cast %189 : vector<1x8x16xf32> to vector<8x16xf32>
    %cst_70 = arith.constant dense<0.000000e+00> : vector<16x16xf32>
    %191 = tpu.matmul %188, %190, %cst_70 {dimension_numbers = #tpu.dot_dimension_numbers<[1], [0], [0], [1], [0, 0, 1, 1], [], []>, precision = #tpu.contract_precision<fp32>} : vector<16x8xf32>, vector<8x16xf32>, vector<16x16xf32> -> vector<16x16xf32>
    %192 = vector.extract_strided_slice %20 {offsets = [0, 22], sizes = [16, 1], strides = [1, 1]} : vector<16x24xf32> to vector<16x1xf32>
    %193 = vector.broadcast %192 : vector<16x1xf32> to vector<16x16xf32>
    %194 = arith.mulf %191, %193 : vector<16x16xf32>
    %195 = vector.extract_strided_slice %20 {offsets = [0, 23], sizes = [16, 1], strides = [1, 1]} : vector<16x24xf32> to vector<16x1xf32>
    %196 = vector.broadcast %195 : vector<16x1xf32> to vector<16x16xf32>
    %197 = arith.addf %194, %196 : vector<16x16xf32>
    %cst_71 = arith.constant 0.000000e+00 : f32
    %198 = vector.broadcast %cst_71 : f32 to vector<16x16xf32>
    %199 = arith.cmpf ogt, %197, %198 : vector<16x16xf32>
    %200 = math.exp %197 : vector<16x16xf32>
    %cst_72 = arith.constant 1.000000e+00 : f32
    %201 = vector.broadcast %cst_72 : f32 to vector<16x16xf32>
    %202 = arith.subf %200, %201 : vector<16x16xf32>
    %cst_73 = arith.constant 1.67326319 : f32
    %203 = vector.broadcast %cst_73 : f32 to vector<16x16xf32>
    %204 = arith.mulf %203, %202 : vector<16x16xf32>
    %205 = arith.select %199, %197, %204 : vector<16x16xi1>, vector<16x16xf32>
    %cst_74 = arith.constant 1.05070102 : f32
    %206 = vector.broadcast %cst_74 : f32 to vector<16x16xf32>
    %207 = arith.mulf %206, %205 : vector<16x16xf32>
    %208 = tpu.transpose %207, [1, 0] : vector<16x16xf32> -> vector<16x16xf32>
    %209 = vector.extract_strided_slice %22 {offsets = [16, 8], sizes = [16, 8], strides = [1, 1]} : vector<32x16xf32> to vector<16x8xf32>
    %cst_75 = arith.constant dense<0.000000e+00> : vector<16x8xf32>
    %210 = tpu.matmul %208, %209, %cst_75 {dimension_numbers = #tpu.dot_dimension_numbers<[1], [0], [0], [1], [0, 0, 1, 1], [], []>, precision = #tpu.contract_precision<fp32>} : vector<16x16xf32>, vector<16x8xf32>, vector<16x8xf32> -> vector<16x8xf32>
    %211 = arith.addf %166, %210 : vector<16x8xf32>
    %212 = vector.extract_strided_slice %23 {offsets = [0, 8], sizes = [1, 8], strides = [1, 1]} : vector<1x16xf32> to vector<1x8xf32>
    %213 = vector.broadcast %212 : vector<1x8xf32> to vector<16x8xf32>
    %214 = arith.addf %211, %213 : vector<16x8xf32>
    %cst_76 = arith.constant 5.000000e+00 : f32
    %215 = vector.broadcast %cst_76 : f32 to vector<16x8xf32>
    %216 = arith.divf %214, %215 : vector<16x8xf32>
    %217 = math.tanh %216 : vector<16x8xf32>
    %c0_77 = arith.constant 0 : index
    %c0_78 = arith.constant 0 : index
    %c0_79 = arith.constant 0 : index
    %218 = vector.load %arg11[%c0_77, %c0_78, %c0_79] : memref<8x8x2xf32, #tpu.memory_space<vmem>>, vector<8x8x2xf32>
    %c0_80 = arith.constant 0 : index
    %c0_81 = arith.constant 0 : index
    %c0_82 = arith.constant 0 : index
    %219 = vector.load %arg12[%c0_80, %c0_81, %c0_82] : memref<8x8x2xf32, #tpu.memory_space<vmem>>, vector<8x8x2xf32>
    %c0_83 = arith.constant 0 : index
    %c0_84 = arith.constant 0 : index
    %220 = vector.load %arg13[%c0_83, %c0_84] : memref<8x2xf32, #tpu.memory_space<vmem>>, vector<8x2xf32>
    %221 = vector.extract_strided_slice %120 {offsets = [0, 0], sizes = [8, 8], strides = [1, 1]} : vector<16x8xf32> to vector<8x8xf32>
    %222 = vector.extract_strided_slice %217 {offsets = [0, 0], sizes = [8, 8], strides = [1, 1]} : vector<16x8xf32> to vector<8x8xf32>
    %223 = vector.shape_cast %221 : vector<8x8xf32> to vector<8x8x1xf32>
    %224 = vector.broadcast %223 : vector<8x8x1xf32> to vector<8x8x2xf32>
    %225 = arith.mulf %224, %218 : vector<8x8x2xf32>
    %cst_85 = arith.constant dense<0.000000e+00> : vector<8x2xf32>
    %226 = vector.multi_reduction <add>, %225, %cst_85 [1] : vector<8x8x2xf32> to vector<8x2xf32>
    %227 = vector.shape_cast %222 : vector<8x8xf32> to vector<8x8x1xf32>
    %228 = vector.broadcast %227 : vector<8x8x1xf32> to vector<8x8x2xf32>
    %229 = arith.mulf %228, %219 : vector<8x8x2xf32>
    %cst_86 = arith.constant dense<0.000000e+00> : vector<8x2xf32>
    %230 = vector.multi_reduction <add>, %229, %cst_86 [1] : vector<8x8x2xf32> to vector<8x2xf32>
    %231 = arith.addf %226, %230 : vector<8x2xf32>
    %232 = arith.addf %231, %220 : vector<8x2xf32>
    %c0_87 = arith.constant 0 : index
    %c0_88 = arith.constant 0 : index
    %c0_89 = arith.constant 0 : index
    %233 = vector.load %arg14[%c0_87, %c0_88, %c0_89] : memref<2x8x2xf32, #tpu.memory_space<vmem>>, vector<1x8x2xf32>
    %234 = vector.shape_cast %233 : vector<1x8x2xf32> to vector<8x2xf32>
    %235 = vector.shape_cast %232 : vector<8x2xf32> to vector<1x8x2xf32>
    tpu.vector_store %arg14[%c0_87, %c0_88, %c0_89], %235 {strides = array<i32>} : memref<2x8x2xf32, #tpu.memory_space<vmem>>, vector<1x8x2xf32>,
    %236 = vector.extract_strided_slice %120 {offsets = [8, 0], sizes = [8, 8], strides = [1, 1]} : vector<16x8xf32> to vector<8x8xf32>
    %237 = vector.extract_strided_slice %217 {offsets = [8, 0], sizes = [8, 8], strides = [1, 1]} : vector<16x8xf32> to vector<8x8xf32>
    %238 = vector.shape_cast %236 : vector<8x8xf32> to vector<8x8x1xf32>
    %239 = vector.broadcast %238 : vector<8x8x1xf32> to vector<8x8x2xf32>
    %240 = arith.mulf %239, %218 : vector<8x8x2xf32>
    %cst_90 = arith.constant dense<0.000000e+00> : vector<8x2xf32>
    %241 = vector.multi_reduction <add>, %240, %cst_90 [1] : vector<8x8x2xf32> to vector<8x2xf32>
    %242 = vector.shape_cast %237 : vector<8x8xf32> to vector<8x8x1xf32>
    %243 = vector.broadcast %242 : vector<8x8x1xf32> to vector<8x8x2xf32>
    %244 = arith.mulf %243, %219 : vector<8x8x2xf32>
    %cst_91 = arith.constant dense<0.000000e+00> : vector<8x2xf32>
    %245 = vector.multi_reduction <add>, %244, %cst_91 [1] : vector<8x8x2xf32> to vector<8x2xf32>
    %246 = arith.addf %241, %245 : vector<8x2xf32>
    %247 = arith.addf %246, %220 : vector<8x2xf32>
    %c1_92 = arith.constant 1 : index
    %c0_93 = arith.constant 0 : index
    %c0_94 = arith.constant 0 : index
    %248 = vector.load %arg14[%c1_92, %c0_93, %c0_94] : memref<2x8x2xf32, #tpu.memory_space<vmem>>, vector<1x8x2xf32>
    %249 = vector.shape_cast %248 : vector<1x8x2xf32> to vector<8x2xf32>
    %250 = vector.shape_cast %247 : vector<8x2xf32> to vector<1x8x2xf32>
    tpu.vector_store %arg14[%c1_92, %c0_93, %c0_94], %250 {strides = array<i32>} : memref<2x8x2xf32, #tpu.memory_space<vmem>>, vector<1x8x2xf32>,
    return
  }
}

</mosaic_0001>

<llo_original>
// kernel: forward_pallas.1
$region0: #{forward_pallas.1}
  #allocation0 [shape = 'u32[]', space=smem, size = 0x4, offset = 0x4, fixed_abs, tag = 'smem constant byte address 0x4 - core index']
  #allocation1 [shape = 'u32[144,128]{1,0:T(1,128)}', space=vmem, size = 0x12000, scoped, tag = 'internal scratch']
  %s0 = inlined_call_operand.vmem [shape: f32[32,16], index: 0, kind: input, shape index: {}]
  %s1 = inlined_call_operand.vmem [shape: f32[8,16], index: 1, kind: input, shape index: {}]
  %s2 = inlined_call_operand.vmem [shape: f32[1,16], index: 2, kind: input, shape index: {}]
  %s3 = inlined_call_operand.vmem [shape: f32[16,16], index: 3, kind: input, shape index: {}]
  %s4 = inlined_call_operand.vmem [shape: f32[1,16], index: 4, kind: input, shape index: {}]
  %s5 = inlined_call_operand.vmem [shape: f32[4,16,8], index: 5, kind: input, shape index: {}]
  %s6 = inlined_call_operand.vmem [shape: f32[4,8,16], index: 6, kind: input, shape index: {}]
  %s7 = inlined_call_operand.vmem [shape: f32[16,24], index: 7, kind: input, shape index: {}]
  %s8 = inlined_call_operand.vmem [shape: f32[2,8], index: 8, kind: input, shape index: {}]
  %s9 = inlined_call_operand.vmem [shape: f32[32,16], index: 9, kind: input, shape index: {}]
  %s10 = inlined_call_operand.vmem [shape: f32[1,16], index: 10, kind: input, shape index: {}]
  %s11 = inlined_call_operand.vmem [shape: f32[8,8,2], index: 11, kind: input, shape index: {}]
  %s12 = inlined_call_operand.vmem [shape: f32[8,8,2], index: 12, kind: input, shape index: {}]
  %s13 = inlined_call_operand.vmem [shape: f32[8,2], index: 13, kind: input, shape index: {}]
  %s14 = inlined_call_operand.vmem [shape: f32[2,8,2], index: 14, kind: output, shape index: {}]
  %s15 = sld [smem:[#allocation0]]
  $region66: #{forward_pallas.1} parent=0
    _
  %s17 = ssub.s32 1, %s15
  %s18 = scalar_select 0, %s17, %s15
  // Predicated region
  $region2: #{forward_pallas.1} parent=0 // pred_check
    _
  $region3: #{forward_pallas.1} parent=0 // pred_check_branch
    %20 = sbr.rel (0) target = $region5
  $region4: #{forward_pallas.1} parent=0 // pred_region
    _
  $region5: #{forward_pallas.1} parent=0 // pred_fallthru
    _
  // Predicated region
  $region6: #{forward_pallas.1} parent=0 // pred_check
    _
  $region7: #{forward_pallas.1} parent=0 // pred_check_branch
    %22 = sbr.rel (0) target = $region9
  $region8: #{forward_pallas.1} parent=0 // pred_region
    _
  $region9: #{forward_pallas.1} parent=0 // pred_fallthru
    _
  // Predicated region
  $region10: #{forward_pallas.1} parent=0 // pred_check
    _
  $region11: #{forward_pallas.1} parent=0 // pred_check_branch
    %24 = sbr.rel (0) target = $region13
  $region12: #{forward_pallas.1} parent=0 // pred_region
    _
  $region13: #{forward_pallas.1} parent=0 // pred_fallthru
    _
  // Predicated region
  $region14: #{forward_pallas.1} parent=0 // pred_check
    _
  $region15: #{forward_pallas.1} parent=0 // pred_check_branch
    %26 = sbr.rel (0) target = $region17
  $region16: #{forward_pallas.1} parent=0 // pred_region
    _
  $region17: #{forward_pallas.1} parent=0 // pred_fallthru
    _
  // Predicated region
  $region18: #{forward_pallas.1} parent=0 // pred_check
    _
  $region19: #{forward_pallas.1} parent=0 // pred_check_branch
    %28 = sbr.rel (0) target = $region21
  $region20: #{forward_pallas.1} parent=0 // pred_region
    _
  $region21: #{forward_pallas.1} parent=0 // pred_fallthru
    _
  // Predicated region
  $region22: #{forward_pallas.1} parent=0 // pred_check
    _
  $region23: #{forward_pallas.1} parent=0 // pred_check_branch
    %30 = sbr.rel (0) target = $region25
  $region24: #{forward_pallas.1} parent=0 // pred_region
    _
  $region25: #{forward_pallas.1} parent=0 // pred_fallthru
    _
  // Predicated region
  $region26: #{forward_pallas.1} parent=0 // pred_check
    _
  $region27: #{forward_pallas.1} parent=0 // pred_check_branch
    %32 = sbr.rel (0) target = $region29
  $region28: #{forward_pallas.1} parent=0 // pred_region
    _
  $region29: #{forward_pallas.1} parent=0 // pred_fallthru
    _
  // Predicated region
  $region30: #{forward_pallas.1} parent=0 // pred_check
    _
  $region31: #{forward_pallas.1} parent=0 // pred_check_branch
    %34 = sbr.rel (0) target = $region33
  $region32: #{forward_pallas.1} parent=0 // pred_region
    _
  $region33: #{forward_pallas.1} parent=0 // pred_fallthru
    _
  // Predicated region
  $region34: #{forward_pallas.1} parent=0 // pred_check
    _
  $region35: #{forward_pallas.1} parent=0 // pred_check_branch
    %36 = sbr.rel (0) target = $region37
  $region36: #{forward_pallas.1} parent=0 // pred_region
    _
  $region37: #{forward_pallas.1} parent=0 // pred_fallthru
    _
  // Predicated region
  $region38: #{forward_pallas.1} parent=0 // pred_check
    _
  $region39: #{forward_pallas.1} parent=0 // pred_check_branch
    %38 = sbr.rel (0) target = $region41
  $region40: #{forward_pallas.1} parent=0 // pred_region
    _
  $region41: #{forward_pallas.1} parent=0 // pred_fallthru
    _
  // Predicated region
  $region42: #{forward_pallas.1} parent=0 // pred_check
    _
  $region43: #{forward_pallas.1} parent=0 // pred_check_branch
    %40 = sbr.rel (0) target = $region45
  $region44: #{forward_pallas.1} parent=0 // pred_region
    _
  $region45: #{forward_pallas.1} parent=0 // pred_fallthru
    _
  // Predicated region
  $region46: #{forward_pallas.1} parent=0 // pred_check
    _
  $region47: #{forward_pallas.1} parent=0 // pred_check_branch
    %42 = sbr.rel (0) target = $region49
  $region48: #{forward_pallas.1} parent=0 // pred_region
    _
  $region49: #{forward_pallas.1} parent=0 // pred_fallthru
    _
  // Predicated region
  $region50: #{forward_pallas.1} parent=0 // pred_check
    _
  $region51: #{forward_pallas.1} parent=0 // pred_check_branch
    %44 = sbr.rel (0) target = $region53
  $region52: #{forward_pallas.1} parent=0 // pred_region
    _
  $region53: #{forward_pallas.1} parent=0 // pred_fallthru
    _
  // Predicated region
  $region54: #{forward_pallas.1} parent=0 // pred_check
    _
  $region55: #{forward_pallas.1} parent=0 // pred_check_branch
    %46 = sbr.rel (0) target = $region57
  $region56: #{forward_pallas.1} parent=0 // pred_region
    _
  $region57: #{forward_pallas.1} parent=0 // pred_fallthru
    _
  %v47 = vld [vmem:[%s0] sm:$0xff]
  %v48 = vld [vmem:[%s0 + $0x8] sm:$0xff]
  %v49 = vld [vmem:[%s0 + $0x10] sm:$0xff]
  %v50 = vld [vmem:[%s0 + $0x18] sm:$0xff]
  %v51 = vld [vmem:[%s1] sm:$0xff]
  %v52 = vld [vmem:[%s2] sm:$0x1]
  %v54 = vlaneseq
  %v55 = vshrl.u32 %v54, 7
  %v56 = vsub.s32 0, %v55
  %v57 = vrot.slane %v52, %v56
  %vm59 = vcmask 64512
  %v61 = vsel %vm59, %v47, 0
  %v64 = vsel %vm59, %v48, 0
  %v67 = vsel %vm59, %v49, 0
  %v70 = vsel %vm59, %v50, 0
  %72 = vmatprep.subr.mxu0 0.0
  %73 = vmatpush1.msra.mxu0 0.0
  %74 = vmatprep.subr.mxu0 0.0
  %75 = vmatpush1.msra.mxu0 0.0
  %76 = vmatprep.subr.mxu0 0.0
  %77 = vmatpush1.msra.mxu0 0.0
  %78 = vmatprep.subr.mxu0 0.0
  %79 = vmatpush1.msra.mxu0 0.0
  %80 = vmatprep.subr.mxu0 0.0
  %81 = vmatpush1.msra.mxu0 0.0
  %82 = vmatprep.subr.mxu0 0.0
  %83 = vmatpush1.msra.mxu0 0.0
  %84 = vmatprep.subr.mxu0 0.0
  %85 = vmatpush1.msra.mxu0 0.0
  %86 = vmatprep.subr.mxu0 0.0
  %87 = vmatpush1.msra.mxu0 0.0
  %88 = vmatprep.subr.mxu0 0.0
  %89 = vmatpush1.msra.mxu0 0.0
  %90 = vmatprep.subr.mxu0 0.0
  %91 = vmatpush1.msra.mxu0 0.0
  %92 = vmatprep.subr.mxu0 0.0
  %93 = vmatpush1.msra.mxu0 0.0
  %94 = vmatprep.subr.mxu0 0.0
  %95 = vmatpush1.msra.mxu0 0.0
  %96 = vmatprep.subr.mxu0 0.0
  %97 = vmatpush1.msra.mxu0 0.0
  %98 = vmatprep.subr.mxu0 0.0
  %99 = vmatpush1.msra.mxu0 0.0
  %100 = vmatprep.subr.mxu0 0.0
  %101 = vmatpush1.msra.mxu0 0.0
  %102 = vmatprep.subr.mxu0 0.0
  %v103 = vand.u32 %v51, 4294901760
  %104 = vmatpush1.msra.mxu0 %v103
  %105 = vmatprep.subr.mxu0 0.0
  %106 = vmatpush2.msra.mxu0 0.0
  %107 = vmatprep.subr.mxu0 0.0
  %108 = vmatpush2.msra.mxu0 0.0
  %109 = vmatprep.subr.mxu0 0.0
  %110 = vmatpush2.msra.mxu0 0.0
  %111 = vmatprep.subr.mxu0 0.0
  %112 = vmatpush2.msra.mxu0 0.0
  %113 = vmatprep.subr.mxu0 0.0
  %114 = vmatpush2.msra.mxu0 0.0
  %115 = vmatprep.subr.mxu0 0.0
  %116 = vmatpush2.msra.mxu0 0.0
  %117 = vmatprep.subr.mxu0 0.0
  %118 = vmatpush2.msra.mxu0 0.0
  %119 = vmatprep.subr.mxu0 0.0
  %120 = vmatpush2.msra.mxu0 0.0
  %121 = vmatprep.subr.mxu0 0.0
  %122 = vmatpush2.msra.mxu0 0.0
  %123 = vmatprep.subr.mxu0 0.0
  %124 = vmatpush2.msra.mxu0 0.0
  %125 = vmatprep.subr.mxu0 0.0
  %126 = vmatpush2.msra.mxu0 0.0
  %127 = vmatprep.subr.mxu0 0.0
  %128 = vmatpush2.msra.mxu0 0.0
  %129 = vmatprep.subr.mxu0 0.0
  %130 = vmatpush2.msra.mxu0 0.0
  %131 = vmatprep.subr.mxu0 0.0
  %132 = vmatpush2.msra.mxu0 0.0
  %133 = vmatprep.subr.mxu0 0.0
  %134 = vmatpush2.msra.mxu0 0.0
  %135 = vmatprep.subr.mxu0 0.0
  %136 = vmatpush2.msra.mxu0 0.0
  %137 = vmatprep.mubr.f32.mxu0 0.0
  %v138 = vand.u32 %v61, 4294901760
  %v139 = vsub.f32 %v61, %v138
  %v140 = vand.u32 %v139, 4294901760
  %v141 = vsub.f32 %v139, %v140
  %v142 = vand.u32 %v141, 4294901760
  %143 = vmatmul.mubr.f32.gmra.mxu0 %v142
  %v144 = vpop.f32.mrf.mxu0
  %v145 = vadd.f32 %v57, %v144
  %v146 = vpop.f32.mrf.mxu0
  %147 = vmatprep.mubr.f32.mxu0 0.0
  %v148 = vand.u32 %v64, 4294901760
  %v149 = vsub.f32 %v64, %v148
  %v150 = vand.u32 %v149, 4294901760
  %v151 = vsub.f32 %v149, %v150
  %v152 = vand.u32 %v151, 4294901760
  %153 = vmatmul.mubr.f32.gmra.mxu0 %v152
  %v154 = vpop.f32.mrf.mxu0
  %v155 = vadd.f32 %v57, %v154
  %v156 = vpop.f32.mrf.mxu0
  %157 = vmatprep.mubr.f32.mxu0 0.0
  %v158 = vand.u32 %v67, 4294901760
  %v159 = vsub.f32 %v67, %v158
  %v160 = vand.u32 %v159, 4294901760
  %v161 = vsub.f32 %v159, %v160
  %v162 = vand.u32 %v161, 4294901760
  %163 = vmatmul.mubr.f32.gmra.mxu0 %v162
  %v164 = vpop.f32.mrf.mxu0
  %v165 = vadd.f32 %v57, %v164
  %v166 = vpop.f32.mrf.mxu0
  %167 = vmatprep.mubr.f32.mxu0 0.0
  %v168 = vand.u32 %v70, 4294901760
  %v169 = vsub.f32 %v70, %v168
  %v170 = vand.u32 %v169, 4294901760
  %v171 = vsub.f32 %v169, %v170
  %v172 = vand.u32 %v171, 4294901760
  %173 = vmatmul.mubr.f32.gmra.mxu0 %v172
  %v174 = vpop.f32.mrf.mxu0
  %v175 = vadd.f32 %v57, %v174
  %v176 = vpop.f32.mrf.mxu0
  %177 = vdwg.mxu0
  %178 = vmatprep.subr.mxu0 0.0
  %179 = vmatpush1.msra.mxu0 0.0
  %180 = vmatprep.subr.mxu0 0.0
  %181 = vmatpush1.msra.mxu0 0.0
  %182 = vmatprep.subr.mxu0 0.0
  %183 = vmatpush1.msra.mxu0 0.0
  %184 = vmatprep.subr.mxu0 0.0
  %185 = vmatpush1.msra.mxu0 0.0
  %186 = vmatprep.subr.mxu0 0.0
  %187 = vmatpush1.msra.mxu0 0.0
  %188 = vmatprep.subr.mxu0 0.0
  %189 = vmatpush1.msra.mxu0 0.0
  %190 = vmatprep.subr.mxu0 0.0
  %191 = vmatpush1.msra.mxu0 0.0
  %192 = vmatprep.subr.mxu0 0.0
  %193 = vmatpush1.msra.mxu0 0.0
  %194 = vmatprep.subr.mxu0 0.0
  %195 = vmatpush1.msra.mxu0 0.0
  %196 = vmatprep.subr.mxu0 0.0
  %197 = vmatpush1.msra.mxu0 0.0
  %198 = vmatprep.subr.mxu0 0.0
  %199 = vmatpush1.msra.mxu0 0.0
  %200 = vmatprep.subr.mxu0 0.0
  %201 = vmatpush1.msra.mxu0 0.0
  %202 = vmatprep.subr.mxu0 0.0
  %203 = vmatpush1.msra.mxu0 0.0
  %204 = vmatprep.subr.mxu0 0.0
  %205 = vmatpush1.msra.mxu0 0.0
  %206 = vmatprep.subr.mxu0 0.0
  %207 = vmatpush1.msra.mxu0 0.0
  %208 = vmatprep.subr.mxu0 0.0
  %v209 = vand.u32 %v51, 4294901760
  %v210 = vsub.f32 %v51, %v209
  %v211 = vand.u32 %v210, 4294901760
  %v212 = vsub.f32 %v210, %v211
  %v213 = vand.u32 %v212, 4294901760
  %214 = vmatpush1.msra.mxu0 %v213
  %215 = vmatprep.subr.mxu0 0.0
  %216 = vmatpush2.msra.mxu0 0.0
  %217 = vmatprep.subr.mxu0 0.0
  %218 = vmatpush2.msra.mxu0 0.0
  %219 = vmatprep.subr.mxu0 0.0
  %220 = vmatpush2.msra.mxu0 0.0
  %221 = vmatprep.subr.mxu0 0.0
  %222 = vmatpush2.msra.mxu0 0.0
  %223 = vmatprep.subr.mxu0 0.0
  %224 = vmatpush2.msra.mxu0 0.0
  %225 = vmatprep.subr.mxu0 0.0
  %226 = vmatpush2.msra.mxu0 0.0
  %227 = vmatprep.subr.mxu0 0.0
  %228 = vmatpush2.msra.mxu0 0.0
  %229 = vmatprep.subr.mxu0 0.0
  %230 = vmatpush2.msra.mxu0 0.0
  %231 = vmatprep.subr.mxu0 0.0
  %232 = vmatpush2.msra.mxu0 0.0
  %233 = vmatprep.subr.mxu0 0.0
  %234 = vmatpush2.msra.mxu0 0.0
  %235 = vmatprep.subr.mxu0 0.0
  %236 = vmatpush2.msra.mxu0 0.0
  %237 = vmatprep.subr.mxu0 0.0
  %238 = vmatpush2.msra.mxu0 0.0
  %239 = vmatprep.subr.mxu0 0.0
  %240 = vmatpush2.msra.mxu0 0.0
  %241 = vmatprep.subr.mxu0 0.0
  %242 = vmatpush2.msra.mxu0 0.0
  %243 = vmatprep.subr.mxu0 0.0
  %244 = vmatpush2.msra.mxu0 0.0
  %245 = vmatprep.subr.mxu0 0.0
  %246 = vmatpush2.msra.mxu0 0.0
  %247 = vmatprep.mubr.f32.mxu0 0.0
  %v248 = vand.u32 %v61, 4294901760
  %249 = vmatmul.mubr.f32.gmra.mxu0 %v248
  %v250 = vpop.f32.mrf.mxu0
  %v251 = vadd.f32 %v145, %v250
  %v252 = vpop.f32.mrf.mxu0
  %253 = vmatprep.mubr.f32.mxu0 0.0
  %v254 = vand.u32 %v64, 4294901760
  %255 = vmatmul.mubr.f32.gmra.mxu0 %v254
  %v256 = vpop.f32.mrf.mxu0
  %v257 = vadd.f32 %v155, %v256
  %v258 = vpop.f32.mrf.mxu0
  %259 = vmatprep.mubr.f32.mxu0 0.0
  %v260 = vand.u32 %v67, 4294901760
  %261 = vmatmul.mubr.f32.gmra.mxu0 %v260
  %v262 = vpop.f32.mrf.mxu0
  %v263 = vadd.f32 %v165, %v262
  %v264 = vpop.f32.mrf.mxu0
  %265 = vmatprep.mubr.f32.mxu0 0.0
  %v266 = vand.u32 %v70, 4294901760
  %267 = vmatmul.mubr.f32.gmra.mxu0 %v266
  %v268 = vpop.f32.mrf.mxu0
  %v269 = vadd.f32 %v175, %v268
  %v270 = vpop.f32.mrf.mxu0
  %271 = vdwg.mxu0
  %272 = vmatprep.subr.mxu0 0.0
  %273 = vmatpush1.msra.mxu0 0.0
  %274 = vmatprep.subr.mxu0 0.0
  %275 = vmatpush1.msra.mxu0 0.0
  %276 = vmatprep.subr.mxu0 0.0
  %277 = vmatpush1.msra.mxu0 0.0
  %278 = vmatprep.subr.mxu0 0.0
  %279 = vmatpush1.msra.mxu0 0.0
  %280 = vmatprep.subr.mxu0 0.0
  %281 = vmatpush1.msra.mxu0 0.0
  %282 = vmatprep.subr.mxu0 0.0
  %283 = vmatpush1.msra.mxu0 0.0
  %284 = vmatprep.subr.mxu0 0.0
  %285 = vmatpush1.msra.mxu0 0.0
  %286 = vmatprep.subr.mxu0 0.0
  %287 = vmatpush1.msra.mxu0 0.0
  %288 = vmatprep.subr.mxu0 0.0
  %289 = vmatpush1.msra.mxu0 0.0
  %290 = vmatprep.subr.mxu0 0.0
  %291 = vmatpush1.msra.mxu0 0.0
  %292 = vmatprep.subr.mxu0 0.0
  %293 = vmatpush1.msra.mxu0 0.0
  %294 = vmatprep.subr.mxu0 0.0
  %295 = vmatpush1.msra.mxu0 0.0
  %296 = vmatprep.subr.mxu0 0.0
  %297 = vmatpush1.msra.mxu0 0.0
  %298 = vmatprep.subr.mxu0 0.0
  %299 = vmatpush1.msra.mxu0 0.0
  %300 = vmatprep.subr.mxu0 0.0
  %301 = vmatpush1.msra.mxu0 0.0
  %302 = vmatprep.subr.mxu0 0.0
  %v303 = vand.u32 %v51, 4294901760
  %v304 = vsub.f32 %v51, %v303
  %305 = vmatpush1.msra.mxu0 %v304
  %306 = vmatprep.subr.mxu0 0.0
  %307 = vmatpush2.msra.mxu0 0.0
  %308 = vmatprep.subr.mxu0 0.0
  %309 = vmatpush2.msra.mxu0 0.0
  %310 = vmatprep.subr.mxu0 0.0
  %311 = vmatpush2.msra.mxu0 0.0
  %312 = vmatprep.subr.mxu0 0.0
  %313 = vmatpush2.msra.mxu0 0.0
  %314 = vmatprep.subr.mxu0 0.0
  %315 = vmatpush2.msra.mxu0 0.0
  %316 = vmatprep.subr.mxu0 0.0
  %317 = vmatpush2.msra.mxu0 0.0
  %318 = vmatprep.subr.mxu0 0.0
  %319 = vmatpush2.msra.mxu0 0.0
  %320 = vmatprep.subr.mxu0 0.0
  %321 = vmatpush2.msra.mxu0 0.0
  %322 = vmatprep.subr.mxu0 0.0
  %323 = vmatpush2.msra.mxu0 0.0
  %324 = vmatprep.subr.mxu0 0.0
  %325 = vmatpush2.msra.mxu0 0.0
  %326 = vmatprep.subr.mxu0 0.0
  %327 = vmatpush2.msra.mxu0 0.0
  %328 = vmatprep.subr.mxu0 0.0
  %329 = vmatpush2.msra.mxu0 0.0
  %330 = vmatprep.subr.mxu0 0.0
  %331 = vmatpush2.msra.mxu0 0.0
  %332 = vmatprep.subr.mxu0 0.0
  %333 = vmatpush2.msra.mxu0 0.0
  %334 = vmatprep.subr.mxu0 0.0
  %335 = vmatpush2.msra.mxu0 0.0
  %336 = vmatprep.subr.mxu0 0.0
  %337 = vmatpush2.msra.mxu0 0.0
  %338 = vmatprep.mubr.f32.mxu0 0.0
  %v339 = vand.u32 %v61, 4294901760
  %v340 = vsub.f32 %v61, %v339
  %341 = vmatmul.mubr.f32.gmra.mxu0 %v340
  %v342 = vpop.f32.mrf.mxu0
  %v343 = vadd.f32 %v251, %v342
  %v344 = vpop.f32.mrf.mxu0
  %345 = vmatprep.mubr.f32.mxu0 0.0
  %v346 = vand.u32 %v64, 4294901760
  %v347 = vsub.f32 %v64, %v346
  %348 = vmatmul.mubr.f32.gmra.mxu0 %v347
  %v349 = vpop.f32.mrf.mxu0
  %v350 = vadd.f32 %v257, %v349
  %v351 = vpop.f32.mrf.mxu0
  %352 = vmatprep.mubr.f32.mxu0 0.0
  %v353 = vand.u32 %v67, 4294901760
  %v354 = vsub.f32 %v67, %v353
  %355 = vmatmul.mubr.f32.gmra.mxu0 %v354
  %v356 = vpop.f32.mrf.mxu0
  %v357 = vadd.f32 %v263, %v356
  %v358 = vpop.f32.mrf.mxu0
  %359 = vmatprep.mubr.f32.mxu0 0.0
  %v360 = vand.u32 %v70, 4294901760
  %v361 = vsub.f32 %v70, %v360
  %362 = vmatmul.mubr.f32.gmra.mxu0 %v361
  %v363 = vpop.f32.mrf.mxu0
  %v364 = vadd.f32 %v269, %v363
  %v365 = vpop.f32.mrf.mxu0
  %366 = vdwg.mxu0
  %367 = vmatprep.subr.mxu0 0.0
  %368 = vmatpush1.msra.mxu0 0.0
  %369 = vmatprep.subr.mxu0 0.0
  %370 = vmatpush1.msra.mxu0 0.0
  %371 = vmatprep.subr.mxu0 0.0
  %372 = vmatpush1.msra.mxu0 0.0
  %373 = vmatprep.subr.mxu0 0.0
  %374 = vmatpush1.msra.mxu0 0.0
  %375 = vmatprep.subr.mxu0 0.0
  %376 = vmatpush1.msra.mxu0 0.0
  %377 = vmatprep.subr.mxu0 0.0
  %378 = vmatpush1.msra.mxu0 0.0
  %379 = vmatprep.subr.mxu0 0.0
  %380 = vmatpush1.msra.mxu0 0.0
  %381 = vmatprep.subr.mxu0 0.0
  %382 = vmatpush1.msra.mxu0 0.0
  %383 = vmatprep.subr.mxu0 0.0
  %384 = vmatpush1.msra.mxu0 0.0
  %385 = vmatprep.subr.mxu0 0.0
  %386 = vmatpush1.msra.mxu0 0.0
  %387 = vmatprep.subr.mxu0 0.0
  %388 = vmatpush1.msra.mxu0 0.0
  %389 = vmatprep.subr.mxu0 0.0
  %390 = vmatpush1.msra.mxu0 0.0
  %391 = vmatprep.subr.mxu0 0.0
  %392 = vmatpush1.msra.mxu0 0.0
  %393 = vmatprep.subr.mxu0 0.0
  %394 = vmatpush1.msra.mxu0 0.0
  %395 = vmatprep.subr.mxu0 0.0
  %396 = vmatpush1.msra.mxu0 0.0
  %397 = vmatprep.subr.mxu0 0.0
  %v398 = vand.u32 %v51, 4294901760
  %399 = vmatpush1.msra.mxu0 %v398
  %400 = vmatprep.subr.mxu0 0.0
  %401 = vmatpush2.msra.mxu0 0.0
  %402 = vmatprep.subr.mxu0 0.0
  %403 = vmatpush2.msra.mxu0 0.0
  %404 = vmatprep.subr.mxu0 0.0
  %405 = vmatpush2.msra.mxu0 0.0
  %406 = vmatprep.subr.mxu0 0.0
  %407 = vmatpush2.msra.mxu0 0.0
  %408 = vmatprep.subr.mxu0 0.0
  %409 = vmatpush2.msra.mxu0 0.0
  %410 = vmatprep.subr.mxu0 0.0
  %411 = vmatpush2.msra.mxu0 0.0
  %412 = vmatprep.subr.mxu0 0.0
  %413 = vmatpush2.msra.mxu0 0.0
  %414 = vmatprep.subr.mxu0 0.0
  %415 = vmatpush2.msra.mxu0 0.0
  %416 = vmatprep.subr.mxu0 0.0
  %417 = vmatpush2.msra.mxu0 0.0
  %418 = vmatprep.subr.mxu0 0.0
  %419 = vmatpush2.msra.mxu0 0.0
  %420 = vmatprep.subr.mxu0 0.0
  %421 = vmatpush2.msra.mxu0 0.0
  %422 = vmatprep.subr.mxu0 0.0
  %423 = vmatpush2.msra.mxu0 0.0
  %424 = vmatprep.subr.mxu0 0.0
  %425 = vmatpush2.msra.mxu0 0.0
  %426 = vmatprep.subr.mxu0 0.0
  %427 = vmatpush2.msra.mxu0 0.0
  %428 = vmatprep.subr.mxu0 0.0
  %429 = vmatpush2.msra.mxu0 0.0
  %430 = vmatprep.subr.mxu0 0.0
  %431 = vmatpush2.msra.mxu0 0.0
  %432 = vmatprep.mubr.f32.mxu0 0.0
  %v433 = vand.u32 %v61, 4294901760
  %v434 = vsub.f32 %v61, %v433
  %v435 = vand.u32 %v434, 4294901760
  %436 = vmatmul.mubr.f32.gmra.mxu0 %v435
  %v437 = vpop.f32.mrf.mxu0
  %v438 = vadd.f32 %v343, %v437
  %v439 = vpop.f32.mrf.mxu0
  %440 = vmatprep.mubr.f32.mxu0 0.0
  %v441 = vand.u32 %v64, 4294901760
  %v442 = vsub.f32 %v64, %v441
  %v443 = vand.u32 %v442, 4294901760
  %444 = vmatmul.mubr.f32.gmra.mxu0 %v443
  %v445 = vpop.f32.mrf.mxu0
  %v446 = vadd.f32 %v350, %v445
  %v447 = vpop.f32.mrf.mxu0
  %448 = vmatprep.mubr.f32.mxu0 0.0
  %v449 = vand.u32 %v67, 4294901760
  %v450 = vsub.f32 %v67, %v449
  %v451 = vand.u32 %v450, 4294901760
  %452 = vmatmul.mubr.f32.gmra.mxu0 %v451
  %v453 = vpop.f32.mrf.mxu0
  %v454 = vadd.f32 %v357, %v453
  %v455 = vpop.f32.mrf.mxu0
  %456 = vmatprep.mubr.f32.mxu0 0.0
  %v457 = vand.u32 %v70, 4294901760
  %v458 = vsub.f32 %v70, %v457
  %v459 = vand.u32 %v458, 4294901760
  %460 = vmatmul.mubr.f32.gmra.mxu0 %v459
  %v461 = vpop.f32.mrf.mxu0
  %v462 = vadd.f32 %v364, %v461
  %v463 = vpop.f32.mrf.mxu0
  %464 = vdwg.mxu0
  %465 = vmatprep.subr.mxu0 0.0
  %466 = vmatpush1.msra.mxu0 0.0
  %467 = vmatprep.subr.mxu0 0.0
  %468 = vmatpush1.msra.mxu0 0.0
  %469 = vmatprep.subr.mxu0 0.0
  %470 = vmatpush1.msra.mxu0 0.0
  %471 = vmatprep.subr.mxu0 0.0
  %472 = vmatpush1.msra.mxu0 0.0
  %473 = vmatprep.subr.mxu0 0.0
  %474 = vmatpush1.msra.mxu0 0.0
  %475 = vmatprep.subr.mxu0 0.0
  %476 = vmatpush1.msra.mxu0 0.0
  %477 = vmatprep.subr.mxu0 0.0
  %478 = vmatpush1.msra.mxu0 0.0
  %479 = vmatprep.subr.mxu0 0.0
  %480 = vmatpush1.msra.mxu0 0.0
  %481 = vmatprep.subr.mxu0 0.0
  %482 = vmatpush1.msra.mxu0 0.0
  %483 = vmatprep.subr.mxu0 0.0
  %484 = vmatpush1.msra.mxu0 0.0
  %485 = vmatprep.subr.mxu0 0.0
  %486 = vmatpush1.msra.mxu0 0.0
  %487 = vmatprep.subr.mxu0 0.0
  %488 = vmatpush1.msra.mxu0 0.0
  %489 = vmatprep.subr.mxu0 0.0
  %490 = vmatpush1.msra.mxu0 0.0
  %491 = vmatprep.subr.mxu0 0.0
  %492 = vmatpush1.msra.mxu0 0.0
  %493 = vmatprep.subr.mxu0 0.0
  %494 = vmatpush1.msra.mxu0 0.0
  %495 = vmatprep.subr.mxu0 0.0
  %v496 = vand.u32 %v51, 4294901760
  %v497 = vsub.f32 %v51, %v496
  %v498 = vand.u32 %v497, 4294901760
  %499 = vmatpush1.msra.mxu0 %v498
  %500 = vmatprep.subr.mxu0 0.0
  %501 = vmatpush2.msra.mxu0 0.0
  %502 = vmatprep.subr.mxu0 0.0
  %503 = vmatpush2.msra.mxu0 0.0
  %504 = vmatprep.subr.mxu0 0.0
  %505 = vmatpush2.msra.mxu0 0.0
  %506 = vmatprep.subr.mxu0 0.0
  %507 = vmatpush2.msra.mxu0 0.0
  %508 = vmatprep.subr.mxu0 0.0
  %509 = vmatpush2.msra.mxu0 0.0
  %510 = vmatprep.subr.mxu0 0.0
  %511 = vmatpush2.msra.mxu0 0.0
  %512 = vmatprep.subr.mxu0 0.0
  %513 = vmatpush2.msra.mxu0 0.0
  %514 = vmatprep.subr.mxu0 0.0
  %515 = vmatpush2.msra.mxu0 0.0
  %516 = vmatprep.subr.mxu0 0.0
  %517 = vmatpush2.msra.mxu0 0.0
  %518 = vmatprep.subr.mxu0 0.0
  %519 = vmatpush2.msra.mxu0 0.0
  %520 = vmatprep.subr.mxu0 0.0
  %521 = vmatpush2.msra.mxu0 0.0
  %522 = vmatprep.subr.mxu0 0.0
  %523 = vmatpush2.msra.mxu0 0.0
  %524 = vmatprep.subr.mxu0 0.0
  %525 = vmatpush2.msra.mxu0 0.0
  %526 = vmatprep.subr.mxu0 0.0
  %527 = vmatpush2.msra.mxu0 0.0
  %528 = vmatprep.subr.mxu0 0.0
  %529 = vmatpush2.msra.mxu0 0.0
  %530 = vmatprep.subr.mxu0 0.0
  %531 = vmatpush2.msra.mxu0 0.0
  %532 = vmatprep.mubr.f32.mxu0 0.0
  %v533 = vand.u32 %v61, 4294901760
  %534 = vmatmul.mubr.f32.gmra.mxu0 %v533
  %v535 = vpop.f32.mrf.mxu0
  %v536 = vadd.f32 %v438, %v535
  %v537 = vpop.f32.mrf.mxu0
  %538 = vmatprep.mubr.f32.mxu0 0.0
  %v539 = vand.u32 %v64, 4294901760
  %540 = vmatmul.mubr.f32.gmra.mxu0 %v539
  %v541 = vpop.f32.mrf.mxu0
  %v542 = vadd.f32 %v446, %v541
  %v543 = vpop.f32.mrf.mxu0
  %544 = vmatprep.mubr.f32.mxu0 0.0
  %v545 = vand.u32 %v67, 4294901760
  %546 = vmatmul.mubr.f32.gmra.mxu0 %v545
  %v547 = vpop.f32.mrf.mxu0
  %v548 = vadd.f32 %v454, %v547
  %v549 = vpop.f32.mrf.mxu0
  %550 = vmatprep.mubr.f32.mxu0 0.0
  %v551 = vand.u32 %v70, 4294901760
  %552 = vmatmul.mubr.f32.gmra.mxu0 %v551
  %v553 = vpop.f32.mrf.mxu0
  %v554 = vadd.f32 %v462, %v553
  %v555 = vpop.f32.mrf.mxu0
  %556 = vdwg.mxu0
  %557 = vmatprep.subr.mxu0 0.0
  %558 = vmatpush1.msra.mxu0 0.0
  %559 = vmatprep.subr.mxu0 0.0
  %560 = vmatpush1.msra.mxu0 0.0
  %561 = vmatprep.subr.mxu0 0.0
  %562 = vmatpush1.msra.mxu0 0.0
  %563 = vmatprep.subr.mxu0 0.0
  %564 = vmatpush1.msra.mxu0 0.0
  %565 = vmatprep.subr.mxu0 0.0
  %566 = vmatpush1.msra.mxu0 0.0
  %567 = vmatprep.subr.mxu0 0.0
  %568 = vmatpush1.msra.mxu0 0.0
  %569 = vmatprep.subr.mxu0 0.0
  %570 = vmatpush1.msra.mxu0 0.0
  %571 = vmatprep.subr.mxu0 0.0
  %572 = vmatpush1.msra.mxu0 0.0
  %573 = vmatprep.subr.mxu0 0.0
  %574 = vmatpush1.msra.mxu0 0.0
  %575 = vmatprep.subr.mxu0 0.0
  %576 = vmatpush1.msra.mxu0 0.0
  %577 = vmatprep.subr.mxu0 0.0
  %578 = vmatpush1.msra.mxu0 0.0
  %579 = vmatprep.subr.mxu0 0.0
  %580 = vmatpush1.msra.mxu0 0.0
  %581 = vmatprep.subr.mxu0 0.0
  %582 = vmatpush1.msra.mxu0 0.0
  %583 = vmatprep.subr.mxu0 0.0
  %584 = vmatpush1.msra.mxu0 0.0
  %585 = vmatprep.subr.mxu0 0.0
  %586 = vmatpush1.msra.mxu0 0.0
  %587 = vmatprep.subr.mxu0 0.0
  %v588 = vand.u32 %v51, 4294901760
  %589 = vmatpush1.msra.mxu0 %v588
  %590 = vmatprep.subr.mxu0 0.0
  %591 = vmatpush2.msra.mxu0 0.0
  %592 = vmatprep.subr.mxu0 0.0
  %593 = vmatpush2.msra.mxu0 0.0
  %594 = vmatprep.subr.mxu0 0.0
  %595 = vmatpush2.msra.mxu0 0.0
  %596 = vmatprep.subr.mxu0 0.0
  %597 = vmatpush2.msra.mxu0 0.0
  %598 = vmatprep.subr.mxu0 0.0
  %599 = vmatpush2.msra.mxu0 0.0
  %600 = vmatprep.subr.mxu0 0.0
  %601 = vmatpush2.msra.mxu0 0.0
  %602 = vmatprep.subr.mxu0 0.0
  %603 = vmatpush2.msra.mxu0 0.0
  %604 = vmatprep.subr.mxu0 0.0
  %605 = vmatpush2.msra.mxu0 0.0
  %606 = vmatprep.subr.mxu0 0.0
  %607 = vmatpush2.msra.mxu0 0.0
  %608 = vmatprep.subr.mxu0 0.0
  %609 = vmatpush2.msra.mxu0 0.0
  %610 = vmatprep.subr.mxu0 0.0
  %611 = vmatpush2.msra.mxu0 0.0
  %612 = vmatprep.subr.mxu0 0.0
  %613 = vmatpush2.msra.mxu0 0.0
  %614 = vmatprep.subr.mxu0 0.0
  %615 = vmatpush2.msra.mxu0 0.0
  %616 = vmatprep.subr.mxu0 0.0
  %617 = vmatpush2.msra.mxu0 0.0
  %618 = vmatprep.subr.mxu0 0.0
  %619 = vmatpush2.msra.mxu0 0.0
  %620 = vmatprep.subr.mxu0 0.0
  %621 = vmatpush2.msra.mxu0 0.0
  %622 = vmatprep.mubr.f32.mxu0 0.0
  %v623 = vand.u32 %v61, 4294901760
  %624 = vmatmul.mubr.f32.gmra.mxu0 %v623
  %v625 = vpop.f32.mrf.mxu0
  %v626 = vadd.f32 %v536, %v625
  %v627 = vpop.f32.mrf.mxu0
  %628 = vmatprep.mubr.f32.mxu0 0.0
  %v629 = vand.u32 %v64, 4294901760
  %630 = vmatmul.mubr.f32.gmra.mxu0 %v629
  %v631 = vpop.f32.mrf.mxu0
  %v632 = vadd.f32 %v542, %v631
  %v633 = vpop.f32.mrf.mxu0
  %634 = vmatprep.mubr.f32.mxu0 0.0
  %v635 = vand.u32 %v67, 4294901760
  %636 = vmatmul.mubr.f32.gmra.mxu0 %v635
  %v637 = vpop.f32.mrf.mxu0
  %v638 = vadd.f32 %v548, %v637
  %v639 = vpop.f32.mrf.mxu0
  %640 = vmatprep.mubr.f32.mxu0 0.0
  %v641 = vand.u32 %v70, 4294901760
  %642 = vmatmul.mubr.f32.gmra.mxu0 %v641
  %v643 = vpop.f32.mrf.mxu0
  %v644 = vadd.f32 %v554, %v643
  %v645 = vpop.f32.mrf.mxu0
  %646 = vdwg.mxu0
  %v647 = vadd.f32 %v626, %v47
  %v648 = vadd.f32 %v632, %v48
  %v649 = vadd.f32 %v638, %v49
  %v650 = vadd.f32 %v644, %v50
  %v651 = vmax.f32 %v647, 0.0
  %v652 = vmax.f32 %v648, 0.0
  %v653 = vmax.f32 %v649, 0.0
  %v654 = vmax.f32 %v650, 0.0
  %v655 = vld [vmem:[%s3] sm:$0xff]
  %v656 = vld [vmem:[%s3 + $0x8] sm:$0xff]
  %v657 = vld [vmem:[%s4] sm:$0x1]
  %v659 = vlaneseq
  %v660 = vshrl.u32 %v659, 7
  %v661 = vsub.s32 0, %v660
  %v662 = vrot.slane %v657, %v661
  %vm664 = vcmask 130048
  %v666 = vsel %vm664, %v651, 0
  %v669 = vsel %vm664, %v652, 0
  %v672 = vsel %vm664, %v653, 0
  %v675 = vsel %vm664, %v654, 0
  %677 = vmatprep.subr.mxu0 0.0
  %678 = vmatpush1.msra.mxu0 0.0
  %679 = vmatprep.subr.mxu0 0.0
  %680 = vmatpush1.msra.mxu0 0.0
  %681 = vmatprep.subr.mxu0 0.0
  %682 = vmatpush1.msra.mxu0 0.0
  %683 = vmatprep.subr.mxu0 0.0
  %684 = vmatpush1.msra.mxu0 0.0
  %685 = vmatprep.subr.mxu0 0.0
  %686 = vmatpush1.msra.mxu0 0.0
  %687 = vmatprep.subr.mxu0 0.0
  %688 = vmatpush1.msra.mxu0 0.0
  %689 = vmatprep.subr.mxu0 0.0
  %690 = vmatpush1.msra.mxu0 0.0
  %691 = vmatprep.subr.mxu0 0.0
  %692 = vmatpush1.msra.mxu0 0.0
  %693 = vmatprep.subr.mxu0 0.0
  %694 = vmatpush1.msra.mxu0 0.0
  %695 = vmatprep.subr.mxu0 0.0
  %696 = vmatpush1.msra.mxu0 0.0
  %697 = vmatprep.subr.mxu0 0.0
  %698 = vmatpush1.msra.mxu0 0.0
  %699 = vmatprep.subr.mxu0 0.0
  %700 = vmatpush1.msra.mxu0 0.0
  %701 = vmatprep.subr.mxu0 0.0
  %702 = vmatpush1.msra.mxu0 0.0
  %703 = vmatprep.subr.mxu0 0.0
  %704 = vmatpush1.msra.mxu0 0.0
  %705 = vmatprep.subr.mxu0 0.0
  %v706 = vand.u32 %v656, 4294901760
  %707 = vmatpush1.msra.mxu0 %v706
  %708 = vmatprep.subr.mxu0 0.0
  %v709 = vand.u32 %v655, 4294901760
  %710 = vmatpush1.msra.mxu0 %v709
  %711 = vmatprep.subr.mxu0 0.0
  %712 = vmatpush2.msra.mxu0 0.0
  %713 = vmatprep.subr.mxu0 0.0
  %714 = vmatpush2.msra.mxu0 0.0
  %715 = vmatprep.subr.mxu0 0.0
  %716 = vmatpush2.msra.mxu0 0.0
  %717 = vmatprep.subr.mxu0 0.0
  %718 = vmatpush2.msra.mxu0 0.0
  %719 = vmatprep.subr.mxu0 0.0
  %720 = vmatpush2.msra.mxu0 0.0
  %721 = vmatprep.subr.mxu0 0.0
  %722 = vmatpush2.msra.mxu0 0.0
  %723 = vmatprep.subr.mxu0 0.0
  %724 = vmatpush2.msra.mxu0 0.0
  %725 = vmatprep.subr.mxu0 0.0
  %726 = vmatpush2.msra.mxu0 0.0
  %727 = vmatprep.subr.mxu0 0.0
  %728 = vmatpush2.msra.mxu0 0.0
  %729 = vmatprep.subr.mxu0 0.0
  %730 = vmatpush2.msra.mxu0 0.0
  %731 = vmatprep.subr.mxu0 0.0
  %732 = vmatpush2.msra.mxu0 0.0
  %733 = vmatprep.subr.mxu0 0.0
  %734 = vmatpush2.msra.mxu0 0.0
  %735 = vmatprep.subr.mxu0 0.0
  %736 = vmatpush2.msra.mxu0 0.0
  %737 = vmatprep.subr.mxu0 0.0
  %738 = vmatpush2.msra.mxu0 0.0
  %739 = vmatprep.subr.mxu0 0.0
  %740 = vmatpush2.msra.mxu0 0.0
  %741 = vmatprep.subr.mxu0 0.0
  %742 = vmatpush2.msra.mxu0 0.0
  %743 = vmatprep.mubr.f32.mxu0 0.0
  %v744 = vand.u32 %v666, 4294901760
  %v745 = vsub.f32 %v666, %v744
  %v746 = vand.u32 %v745, 4294901760
  %v747 = vsub.f32 %v745, %v746
  %v748 = vand.u32 %v747, 4294901760
  %749 = vmatmul.mubr.f32.gmra.mxu0 %v748
  %v750 = vpop.f32.mrf.mxu0
  %v751 = vadd.f32 %v662, %v750
  %v752 = vpop.f32.mrf.mxu0
  %753 = vmatprep.mubr.f32.mxu0 0.0
  %v754 = vand.u32 %v669, 4294901760
  %v755 = vsub.f32 %v669, %v754
  %v756 = vand.u32 %v755, 4294901760
  %v757 = vsub.f32 %v755, %v756
  %v758 = vand.u32 %v757, 4294901760
  %759 = vmatmul.mubr.f32.gmra.mxu0 %v758
  %v760 = vpop.f32.mrf.mxu0
  %v761 = vadd.f32 %v662, %v760
  %v762 = vpop.f32.mrf.mxu0
  %763 = vmatprep.mubr.f32.mxu0 0.0
  %v764 = vand.u32 %v672, 4294901760
  %v765 = vsub.f32 %v672, %v764
  %v766 = vand.u32 %v765, 4294901760
  %v767 = vsub.f32 %v765, %v766
  %v768 = vand.u32 %v767, 4294901760
  %769 = vmatmul.mubr.f32.gmra.mxu0 %v768
  %v770 = vpop.f32.mrf.mxu0
  %v771 = vadd.f32 %v662, %v770
  %v772 = vpop.f32.mrf.mxu0
  %773 = vmatprep.mubr.f32.mxu0 0.0
  %v774 = vand.u32 %v675, 4294901760
  %v775 = vsub.f32 %v675, %v774
  %v776 = vand.u32 %v775, 4294901760
  %v777 = vsub.f32 %v775, %v776
  %v778 = vand.u32 %v777, 4294901760
  %779 = vmatmul.mubr.f32.gmra.mxu0 %v778
  %v780 = vpop.f32.mrf.mxu0
  %v781 = vadd.f32 %v662, %v780
  %v782 = vpop.f32.mrf.mxu0
  %783 = vdwg.mxu0
  %784 = vmatprep.subr.mxu0 0.0
  %785 = vmatpush1.msra.mxu0 0.0
  %786 = vmatprep.subr.mxu0 0.0
  %787 = vmatpush1.msra.mxu0 0.0
  %788 = vmatprep.subr.mxu0 0.0
  %789 = vmatpush1.msra.mxu0 0.0
  %790 = vmatprep.subr.mxu0 0.0
  %791 = vmatpush1.msra.mxu0 0.0
  %792 = vmatprep.subr.mxu0 0.0
  %793 = vmatpush1.msra.mxu0 0.0
  %794 = vmatprep.subr.mxu0 0.0
  %795 = vmatpush1.msra.mxu0 0.0
  %796 = vmatprep.subr.mxu0 0.0
  %797 = vmatpush1.msra.mxu0 0.0
  %798 = vmatprep.subr.mxu0 0.0
  %799 = vmatpush1.msra.mxu0 0.0
  %800 = vmatprep.subr.mxu0 0.0
  %801 = vmatpush1.msra.mxu0 0.0
  %802 = vmatprep.subr.mxu0 0.0
  %803 = vmatpush1.msra.mxu0 0.0
  %804 = vmatprep.subr.mxu0 0.0
  %805 = vmatpush1.msra.mxu0 0.0
  %806 = vmatprep.subr.mxu0 0.0
  %807 = vmatpush1.msra.mxu0 0.0
  %808 = vmatprep.subr.mxu0 0.0
  %809 = vmatpush1.msra.mxu0 0.0
  %810 = vmatprep.subr.mxu0 0.0
  %811 = vmatpush1.msra.mxu0 0.0
  %812 = vmatprep.subr.mxu0 0.0
  %v813 = vand.u32 %v656, 4294901760
  %v814 = vsub.f32 %v656, %v813
  %v815 = vand.u32 %v814, 4294901760
  %v816 = vsub.f32 %v814, %v815
  %v817 = vand.u32 %v816, 4294901760
  %818 = vmatpush1.msra.mxu0 %v817
  %819 = vmatprep.subr.mxu0 0.0
  %v820 = vand.u32 %v655, 4294901760
  %v821 = vsub.f32 %v655, %v820
  %v822 = vand.u32 %v821, 4294901760
  %v823 = vsub.f32 %v821, %v822
  %v824 = vand.u32 %v823, 4294901760
  %825 = vmatpush1.msra.mxu0 %v824
  %826 = vmatprep.subr.mxu0 0.0
  %827 = vmatpush2.msra.mxu0 0.0
  %828 = vmatprep.subr.mxu0 0.0
  %829 = vmatpush2.msra.mxu0 0.0
  %830 = vmatprep.subr.mxu0 0.0
  %831 = vmatpush2.msra.mxu0 0.0
  %832 = vmatprep.subr.mxu0 0.0
  %833 = vmatpush2.msra.mxu0 0.0
  %834 = vmatprep.subr.mxu0 0.0
  %835 = vmatpush2.msra.mxu0 0.0
  %836 = vmatprep.subr.mxu0 0.0
  %837 = vmatpush2.msra.mxu0 0.0
  %838 = vmatprep.subr.mxu0 0.0
  %839 = vmatpush2.msra.mxu0 0.0
  %840 = vmatprep.subr.mxu0 0.0
  %841 = vmatpush2.msra.mxu0 0.0
  %842 = vmatprep.subr.mxu0 0.0
  %843 = vmatpush2.msra.mxu0 0.0
  %844 = vmatprep.subr.mxu0 0.0
  %845 = vmatpush2.msra.mxu0 0.0
  %846 = vmatprep.subr.mxu0 0.0
  %847 = vmatpush2.msra.mxu0 0.0
  %848 = vmatprep.subr.mxu0 0.0
  %849 = vmatpush2.msra.mxu0 0.0
  %850 = vmatprep.subr.mxu0 0.0
  %851 = vmatpush2.msra.mxu0 0.0
  %852 = vmatprep.subr.mxu0 0.0
  %853 = vmatpush2.msra.mxu0 0.0
  %854 = vmatprep.subr.mxu0 0.0
  %855 = vmatpush2.msra.mxu0 0.0
  %856 = vmatprep.subr.mxu0 0.0
  %857 = vmatpush2.msra.mxu0 0.0
  %858 = vmatprep.mubr.f32.mxu0 0.0
  %v859 = vand.u32 %v666, 4294901760
  %860 = vmatmul.mubr.f32.gmra.mxu0 %v859
  %v861 = vpop.f32.mrf.mxu0
  %v862 = vadd.f32 %v751, %v861
  %v863 = vpop.f32.mrf.mxu0
  %864 = vmatprep.mubr.f32.mxu0 0.0
  %v865 = vand.u32 %v669, 4294901760
  %866 = vmatmul.mubr.f32.gmra.mxu0 %v865
  %v867 = vpop.f32.mrf.mxu0
  %v868 = vadd.f32 %v761, %v867
  %v869 = vpop.f32.mrf.mxu0
  %870 = vmatprep.mubr.f32.mxu0 0.0
  %v871 = vand.u32 %v672, 4294901760
  %872 = vmatmul.mubr.f32.gmra.mxu0 %v871
  %v873 = vpop.f32.mrf.mxu0
  %v874 = vadd.f32 %v771, %v873
  %v875 = vpop.f32.mrf.mxu0
  %876 = vmatprep.mubr.f32.mxu0 0.0
  %v877 = vand.u32 %v675, 4294901760
  %878 = vmatmul.mubr.f32.gmra.mxu0 %v877
  %v879 = vpop.f32.mrf.mxu0
  %v880 = vadd.f32 %v781, %v879
  %v881 = vpop.f32.mrf.mxu0
  %882 = vdwg.mxu0
  %883 = vmatprep.subr.mxu0 0.0
  %884 = vmatpush1.msra.mxu0 0.0
  %885 = vmatprep.subr.mxu0 0.0
  %886 = vmatpush1.msra.mxu0 0.0
  %887 = vmatprep.subr.mxu0 0.0
  %888 = vmatpush1.msra.mxu0 0.0
  %889 = vmatprep.subr.mxu0 0.0
  %890 = vmatpush1.msra.mxu0 0.0
  %891 = vmatprep.subr.mxu0 0.0
  %892 = vmatpush1.msra.mxu0 0.0
  %893 = vmatprep.subr.mxu0 0.0
  %894 = vmatpush1.msra.mxu0 0.0
  %895 = vmatprep.subr.mxu0 0.0
  %896 = vmatpush1.msra.mxu0 0.0
  %897 = vmatprep.subr.mxu0 0.0
  %898 = vmatpush1.msra.mxu0 0.0
  %899 = vmatprep.subr.mxu0 0.0
  %900 = vmatpush1.msra.mxu0 0.0
  %901 = vmatprep.subr.mxu0 0.0
  %902 = vmatpush1.msra.mxu0 0.0
  %903 = vmatprep.subr.mxu0 0.0
  %904 = vmatpush1.msra.mxu0 0.0
  %905 = vmatprep.subr.mxu0 0.0
  %906 = vmatpush1.msra.mxu0 0.0
  %907 = vmatprep.subr.mxu0 0.0
  %908 = vmatpush1.msra.mxu0 0.0
  %909 = vmatprep.subr.mxu0 0.0
  %910 = vmatpush1.msra.mxu0 0.0
  %911 = vmatprep.subr.mxu0 0.0
  %v912 = vand.u32 %v656, 4294901760
  %v913 = vsub.f32 %v656, %v912
  %914 = vmatpush1.msra.mxu0 %v913
  %915 = vmatprep.subr.mxu0 0.0
  %v916 = vand.u32 %v655, 4294901760
  %v917 = vsub.f32 %v655, %v916
  %918 = vmatpush1.msra.mxu0 %v917
  %919 = vmatprep.subr.mxu0 0.0
  %920 = vmatpush2.msra.mxu0 0.0
  %921 = vmatprep.subr.mxu0 0.0
  %922 = vmatpush2.msra.mxu0 0.0
  %923 = vmatprep.subr.mxu0 0.0
  %924 = vmatpush2.msra.mxu0 0.0
  %925 = vmatprep.subr.mxu0 0.0
  %926 = vmatpush2.msra.mxu0 0.0
  %927 = vmatprep.subr.mxu0 0.0
  %928 = vmatpush2.msra.mxu0 0.0
  %929 = vmatprep.subr.mxu0 0.0
  %930 = vmatpush2.msra.mxu0 0.0
  %931 = vmatprep.subr.mxu0 0.0
  %932 = vmatpush2.msra.mxu0 0.0
  %933 = vmatprep.subr.mxu0 0.0
  %934 = vmatpush2.msra.mxu0 0.0
  %935 = vmatprep.subr.mxu0 0.0
  %936 = vmatpush2.msra.mxu0 0.0
  %937 = vmatprep.subr.mxu0 0.0
  %938 = vmatpush2.msra.mxu0 0.0
  %939 = vmatprep.subr.mxu0 0.0
  %940 = vmatpush2.msra.mxu0 0.0
  %941 = vmatprep.subr.mxu0 0.0
  %942 = vmatpush2.msra.mxu0 0.0
  %943 = vmatprep.subr.mxu0 0.0
  %944 = vmatpush2.msra.mxu0 0.0
  %945 = vmatprep.subr.mxu0 0.0
  %946 = vmatpush2.msra.mxu0 0.0
  %947 = vmatprep.subr.mxu0 0.0
  %948 = vmatpush2.msra.mxu0 0.0
  %949 = vmatprep.subr.mxu0 0.0
  %950 = vmatpush2.msra.mxu0 0.0
  %951 = vmatprep.mubr.f32.mxu0 0.0
  %v952 = vand.u32 %v666, 4294901760
  %v953 = vsub.f32 %v666, %v952
  %954 = vmatmul.mubr.f32.gmra.mxu0 %v953
  %v955 = vpop.f32.mrf.mxu0
  %v956 = vadd.f32 %v862, %v955
  %v957 = vpop.f32.mrf.mxu0
  %958 = vmatprep.mubr.f32.mxu0 0.0
  %v959 = vand.u32 %v669, 4294901760
  %v960 = vsub.f32 %v669, %v959
  %961 = vmatmul.mubr.f32.gmra.mxu0 %v960
  %v962 = vpop.f32.mrf.mxu0
  %v963 = vadd.f32 %v868, %v962
  %v964 = vpop.f32.mrf.mxu0
  %965 = vmatprep.mubr.f32.mxu0 0.0
  %v966 = vand.u32 %v672, 4294901760
  %v967 = vsub.f32 %v672, %v966
  %968 = vmatmul.mubr.f32.gmra.mxu0 %v967
  %v969 = vpop.f32.mrf.mxu0
  %v970 = vadd.f32 %v874, %v969
  %v971 = vpop.f32.mrf.mxu0
  %972 = vmatprep.mubr.f32.mxu0 0.0
  %v973 = vand.u32 %v675, 4294901760
  %v974 = vsub.f32 %v675, %v973
  %975 = vmatmul.mubr.f32.gmra.mxu0 %v974
  %v976 = vpop.f32.mrf.mxu0
  %v977 = vadd.f32 %v880, %v976
  %v978 = vpop.f32.mrf.mxu0
  %979 = vdwg.mxu0
  %980 = vmatprep.subr.mxu0 0.0
  %981 = vmatpush1.msra.mxu0 0.0
  %982 = vmatprep.subr.mxu0 0.0
  %983 = vmatpush1.msra.mxu0 0.0
  %984 = vmatprep.subr.mxu0 0.0
  %985 = vmatpush1.msra.mxu0 0.0
  %986 = vmatprep.subr.mxu0 0.0
  %987 = vmatpush1.msra.mxu0 0.0
  %988 = vmatprep.subr.mxu0 0.0
  %989 = vmatpush1.msra.mxu0 0.0
  %990 = vmatprep.subr.mxu0 0.0
  %991 = vmatpush1.msra.mxu0 0.0
  %992 = vmatprep.subr.mxu0 0.0
  %993 = vmatpush1.msra.mxu0 0.0
  %994 = vmatprep.subr.mxu0 0.0
  %995 = vmatpush1.msra.mxu0 0.0
  %996 = vmatprep.subr.mxu0 0.0
  %997 = vmatpush1.msra.mxu0 0.0
  %998 = vmatprep.subr.mxu0 0.0
  %999 = vmatpush1.msra.mxu0 0.0
  %1000 = vmatprep.subr.mxu0 0.0
  %1001 = vmatpush1.msra.mxu0 0.0
  %1002 = vmatprep.subr.mxu0 0.0
  %1003 = vmatpush1.msra.mxu0 0.0
  %1004 = vmatprep.subr.mxu0 0.0
  %1005 = vmatpush1.msra.mxu0 0.0
  %1006 = vmatprep.subr.mxu0 0.0
  %1007 = vmatpush1.msra.mxu0 0.0
  %1008 = vmatprep.subr.mxu0 0.0
  %v1009 = vand.u32 %v656, 4294901760
  %1010 = vmatpush1.msra.mxu0 %v1009
  %1011 = vmatprep.subr.mxu0 0.0
  %v1012 = vand.u32 %v655, 4294901760
  %1013 = vmatpush1.msra.mxu0 %v1012
  %1014 = vmatprep.subr.mxu0 0.0
  %1015 = vmatpush2.msra.mxu0 0.0
  %1016 = vmatprep.subr.mxu0 0.0
  %1017 = vmatpush2.msra.mxu0 0.0
  %1018 = vmatprep.subr.mxu0 0.0
  %1019 = vmatpush2.msra.mxu0 0.0
  %1020 = vmatprep.subr.mxu0 0.0
  %1021 = vmatpush2.msra.mxu0 0.0
  %1022 = vmatprep.subr.mxu0 0.0
  %1023 = vmatpush2.msra.mxu0 0.0
  %1024 = vmatprep.subr.mxu0 0.0
  %1025 = vmatpush2.msra.mxu0 0.0
  %1026 = vmatprep.subr.mxu0 0.0
  %1027 = vmatpush2.msra.mxu0 0.0
  %1028 = vmatprep.subr.mxu0 0.0
  %1029 = vmatpush2.msra.mxu0 0.0
  %1030 = vmatprep.subr.mxu0 0.0
  %1031 = vmatpush2.msra.mxu0 0.0
  %1032 = vmatprep.subr.mxu0 0.0
  %1033 = vmatpush2.msra.mxu0 0.0
  %1034 = vmatprep.subr.mxu0 0.0
  %1035 = vmatpush2.msra.mxu0 0.0
  %1036 = vmatprep.subr.mxu0 0.0
  %1037 = vmatpush2.msra.mxu0 0.0
  %1038 = vmatprep.subr.mxu0 0.0
  %1039 = vmatpush2.msra.mxu0 0.0
  %1040 = vmatprep.subr.mxu0 0.0
  %1041 = vmatpush2.msra.mxu0 0.0
  %1042 = vmatprep.subr.mxu0 0.0
  %1043 = vmatpush2.msra.mxu0 0.0
  %1044 = vmatprep.subr.mxu0 0.0
  %1045 = vmatpush2.msra.mxu0 0.0
  %1046 = vmatprep.mubr.f32.mxu0 0.0
  %v1047 = vand.u32 %v666, 4294901760
  %v1048 = vsub.f32 %v666, %v1047
  %v1049 = vand.u32 %v1048, 4294901760
  %1050 = vmatmul.mubr.f32.gmra.mxu0 %v1049
  %v1051 = vpop.f32.mrf.mxu0
  %v1052 = vadd.f32 %v956, %v1051
  %v1053 = vpop.f32.mrf.mxu0
  %1054 = vmatprep.mubr.f32.mxu0 0.0
  %v1055 = vand.u32 %v669, 4294901760
  %v1056 = vsub.f32 %v669, %v1055
  %v1057 = vand.u32 %v1056, 4294901760
  %1058 = vmatmul.mubr.f32.gmra.mxu0 %v1057
  %v1059 = vpop.f32.mrf.mxu0
  %v1060 = vadd.f32 %v963, %v1059
  %v1061 = vpop.f32.mrf.mxu0
  %1062 = vmatprep.mubr.f32.mxu0 0.0
  %v1063 = vand.u32 %v672, 4294901760
  %v1064 = vsub.f32 %v672, %v1063
  %v1065 = vand.u32 %v1064, 4294901760
  %1066 = vmatmul.mubr.f32.gmra.mxu0 %v1065
  %v1067 = vpop.f32.mrf.mxu0
  %v1068 = vadd.f32 %v970, %v1067
  %v1069 = vpop.f32.mrf.mxu0
  %1070 = vmatprep.mubr.f32.mxu0 0.0
  %v1071 = vand.u32 %v675, 4294901760
  %v1072 = vsub.f32 %v675, %v1071
  %v1073 = vand.u32 %v1072, 4294901760
  %1074 = vmatmul.mubr.f32.gmra.mxu0 %v1073
  %v1075 = vpop.f32.mrf.mxu0
  %v1076 = vadd.f32 %v977, %v1075
  %v1077 = vpop.f32.mrf.mxu0
  %1078 = vdwg.mxu0
  %1079 = vmatprep.subr.mxu0 0.0
  %1080 = vmatpush1.msra.mxu0 0.0
  %1081 = vmatprep.subr.mxu0 0.0
  %1082 = vmatpush1.msra.mxu0 0.0
  %1083 = vmatprep.subr.mxu0 0.0
  %1084 = vmatpush1.msra.mxu0 0.0
  %1085 = vmatprep.subr.mxu0 0.0
  %1086 = vmatpush1.msra.mxu0 0.0
  %1087 = vmatprep.subr.mxu0 0.0
  %1088 = vmatpush1.msra.mxu0 0.0
  %1089 = vmatprep.subr.mxu0 0.0
  %1090 = vmatpush1.msra.mxu0 0.0
  %1091 = vmatprep.subr.mxu0 0.0
  %1092 = vmatpush1.msra.mxu0 0.0
  %1093 = vmatprep.subr.mxu0 0.0
  %1094 = vmatpush1.msra.mxu0 0.0
  %1095 = vmatprep.subr.mxu0 0.0
  %1096 = vmatpush1.msra.mxu0 0.0
  %1097 = vmatprep.subr.mxu0 0.0
  %1098 = vmatpush1.msra.mxu0 0.0
  %1099 = vmatprep.subr.mxu0 0.0
  %1100 = vmatpush1.msra.mxu0 0.0
  %1101 = vmatprep.subr.mxu0 0.0
  %1102 = vmatpush1.msra.mxu0 0.0
  %1103 = vmatprep.subr.mxu0 0.0
  %1104 = vmatpush1.msra.mxu0 0.0
  %1105 = vmatprep.subr.mxu0 0.0
  %1106 = vmatpush1.msra.mxu0 0.0
  %1107 = vmatprep.subr.mxu0 0.0
  %v1108 = vand.u32 %v656, 4294901760
  %v1109 = vsub.f32 %v656, %v1108
  %v1110 = vand.u32 %v1109, 4294901760
  %1111 = vmatpush1.msra.mxu0 %v1110
  %1112 = vmatprep.subr.mxu0 0.0
  %v1113 = vand.u32 %v655, 4294901760
  %v1114 = vsub.f32 %v655, %v1113
  %v1115 = vand.u32 %v1114, 4294901760
  %1116 = vmatpush1.msra.mxu0 %v1115
  %1117 = vmatprep.subr.mxu0 0.0
  %1118 = vmatpush2.msra.mxu0 0.0
  %1119 = vmatprep.subr.mxu0 0.0
  %1120 = vmatpush2.msra.mxu0 0.0
  %1121 = vmatprep.subr.mxu0 0.0
  %1122 = vmatpush2.msra.mxu0 0.0
  %1123 = vmatprep.subr.mxu0 0.0
  %1124 = vmatpush2.msra.mxu0 0.0
  %1125 = vmatprep.subr.mxu0 0.0
  %1126 = vmatpush2.msra.mxu0 0.0
  %1127 = vmatprep.subr.mxu0 0.0
  %1128 = vmatpush2.msra.mxu0 0.0
  %1129 = vmatprep.subr.mxu0 0.0
  %1130 = vmatpush2.msra.mxu0 0.0
  %1131 = vmatprep.subr.mxu0 0.0
  %1132 = vmatpush2.msra.mxu0 0.0
  %1133 = vmatprep.subr.mxu0 0.0
  %1134 = vmatpush2.msra.mxu0 0.0
  %1135 = vmatprep.subr.mxu0 0.0
  %1136 = vmatpush2.msra.mxu0 0.0
  %1137 = vmatprep.subr.mxu0 0.0
  %1138 = vmatpush2.msra.mxu0 0.0
  %1139 = vmatprep.subr.mxu0 0.0
  %1140 = vmatpush2.msra.mxu0 0.0
  %1141 = vmatprep.subr.mxu0 0.0
  %1142 = vmatpush2.msra.mxu0 0.0
  %1143 = vmatprep.subr.mxu0 0.0
  %1144 = vmatpush2.msra.mxu0 0.0
  %1145 = vmatprep.subr.mxu0 0.0
  %1146 = vmatpush2.msra.mxu0 0.0
  %1147 = vmatprep.subr.mxu0 0.0
  %1148 = vmatpush2.msra.mxu0 0.0
  %1149 = vmatprep.mubr.f32.mxu0 0.0
  %v1150 = vand.u32 %v666, 4294901760
  %1151 = vmatmul.mubr.f32.gmra.mxu0 %v1150
  %v1152 = vpop.f32.mrf.mxu0
  %v1153 = vadd.f32 %v1052, %v1152
  %v1154 = vpop.f32.mrf.mxu0
  %1155 = vmatprep.mubr.f32.mxu0 0.0
  %v1156 = vand.u32 %v669, 4294901760
  %1157 = vmatmul.mubr.f32.gmra.mxu0 %v1156
  %v1158 = vpop.f32.mrf.mxu0
  %v1159 = vadd.f32 %v1060, %v1158
  %v1160 = vpop.f32.mrf.mxu0
  %1161 = vmatprep.mubr.f32.mxu0 0.0
  %v1162 = vand.u32 %v672, 4294901760
  %1163 = vmatmul.mubr.f32.gmra.mxu0 %v1162
  %v1164 = vpop.f32.mrf.mxu0
  %v1165 = vadd.f32 %v1068, %v1164
  %v1166 = vpop.f32.mrf.mxu0
  %1167 = vmatprep.mubr.f32.mxu0 0.0
  %v1168 = vand.u32 %v675, 4294901760
  %1169 = vmatmul.mubr.f32.gmra.mxu0 %v1168
  %v1170 = vpop.f32.mrf.mxu0
  %v1171 = vadd.f32 %v1076, %v1170
  %v1172 = vpop.f32.mrf.mxu0
  %1173 = vdwg.mxu0
  %1174 = vmatprep.subr.mxu0 0.0
  %1175 = vmatpush1.msra.mxu0 0.0
  %1176 = vmatprep.subr.mxu0 0.0
  %1177 = vmatpush1.msra.mxu0 0.0
  %1178 = vmatprep.subr.mxu0 0.0
  %1179 = vmatpush1.msra.mxu0 0.0
  %1180 = vmatprep.subr.mxu0 0.0
  %1181 = vmatpush1.msra.mxu0 0.0
  %1182 = vmatprep.subr.mxu0 0.0
  %1183 = vmatpush1.msra.mxu0 0.0
  %1184 = vmatprep.subr.mxu0 0.0
  %1185 = vmatpush1.msra.mxu0 0.0
  %1186 = vmatprep.subr.mxu0 0.0
  %1187 = vmatpush1.msra.mxu0 0.0
  %1188 = vmatprep.subr.mxu0 0.0
  %1189 = vmatpush1.msra.mxu0 0.0
  %1190 = vmatprep.subr.mxu0 0.0
  %1191 = vmatpush1.msra.mxu0 0.0
  %1192 = vmatprep.subr.mxu0 0.0
  %1193 = vmatpush1.msra.mxu0 0.0
  %1194 = vmatprep.subr.mxu0 0.0
  %1195 = vmatpush1.msra.mxu0 0.0
  %1196 = vmatprep.subr.mxu0 0.0
  %1197 = vmatpush1.msra.mxu0 0.0
  %1198 = vmatprep.subr.mxu0 0.0
  %1199 = vmatpush1.msra.mxu0 0.0
  %1200 = vmatprep.subr.mxu0 0.0
  %1201 = vmatpush1.msra.mxu0 0.0
  %1202 = vmatprep.subr.mxu0 0.0
  %v1203 = vand.u32 %v656, 4294901760
  %1204 = vmatpush1.msra.mxu0 %v1203
  %1205 = vmatprep.subr.mxu0 0.0
  %v1206 = vand.u32 %v655, 4294901760
  %1207 = vmatpush1.msra.mxu0 %v1206
  %1208 = vmatprep.subr.mxu0 0.0
  %1209 = vmatpush2.msra.mxu0 0.0
  %1210 = vmatprep.subr.mxu0 0.0
  %1211 = vmatpush2.msra.mxu0 0.0
  %1212 = vmatprep.subr.mxu0 0.0
  %1213 = vmatpush2.msra.mxu0 0.0
  %1214 = vmatprep.subr.mxu0 0.0
  %1215 = vmatpush2.msra.mxu0 0.0
  %1216 = vmatprep.subr.mxu0 0.0
  %1217 = vmatpush2.msra.mxu0 0.0
  %1218 = vmatprep.subr.mxu0 0.0
  %1219 = vmatpush2.msra.mxu0 0.0
  %1220 = vmatprep.subr.mxu0 0.0
  %1221 = vmatpush2.msra.mxu0 0.0
  %1222 = vmatprep.subr.mxu0 0.0
  %1223 = vmatpush2.msra.mxu0 0.0
  %1224 = vmatprep.subr.mxu0 0.0
  %1225 = vmatpush2.msra.mxu0 0.0
  %1226 = vmatprep.subr.mxu0 0.0
  %1227 = vmatpush2.msra.mxu0 0.0
  %1228 = vmatprep.subr.mxu0 0.0
  %1229 = vmatpush2.msra.mxu0 0.0
  %1230 = vmatprep.subr.mxu0 0.0
  %1231 = vmatpush2.msra.mxu0 0.0
  %1232 = vmatprep.subr.mxu0 0.0
  %1233 = vmatpush2.msra.mxu0 0.0
  %1234 = vmatprep.subr.mxu0 0.0
  %1235 = vmatpush2.msra.mxu0 0.0
  %1236 = vmatprep.subr.mxu0 0.0
  %1237 = vmatpush2.msra.mxu0 0.0
  %1238 = vmatprep.subr.mxu0 0.0
  %1239 = vmatpush2.msra.mxu0 0.0
  %1240 = vmatprep.mubr.f32.mxu0 0.0
  %v1241 = vand.u32 %v666, 4294901760
  %1242 = vmatmul.mubr.f32.gmra.mxu0 %v1241
  %v1243 = vpop.f32.mrf.mxu0
  %v1244 = vadd.f32 %v1153, %v1243
  %v1245 = vpop.f32.mrf.mxu0
  %1246 = vmatprep.mubr.f32.mxu0 0.0
  %v1247 = vand.u32 %v669, 4294901760
  %1248 = vmatmul.mubr.f32.gmra.mxu0 %v1247
  %v1249 = vpop.f32.mrf.mxu0
  %v1250 = vadd.f32 %v1159, %v1249
  %v1251 = vpop.f32.mrf.mxu0
  %1252 = vmatprep.mubr.f32.mxu0 0.0
  %v1253 = vand.u32 %v672, 4294901760
  %1254 = vmatmul.mubr.f32.gmra.mxu0 %v1253
  %v1255 = vpop.f32.mrf.mxu0
  %v1256 = vadd.f32 %v1165, %v1255
  %v1257 = vpop.f32.mrf.mxu0
  %1258 = vmatprep.mubr.f32.mxu0 0.0
  %v1259 = vand.u32 %v675, 4294901760
  %1260 = vmatmul.mubr.f32.gmra.mxu0 %v1259
  %v1261 = vpop.f32.mrf.mxu0
  %v1262 = vadd.f32 %v1171, %v1261
  %v1263 = vpop.f32.mrf.mxu0
  %1264 = vdwg.mxu0
  %v1265 = vadd.f32 %v1244, %v651
  %v1266 = vadd.f32 %v1250, %v652
  %v1267 = vadd.f32 %v1256, %v653
  %v1268 = vadd.f32 %v1262, %v654
  %v1269 = vmax.f32 %v1265, 0.0
  %v1270 = vmax.f32 %v1266, 0.0
  %v1271 = vmax.f32 %v1267, 0.0
  %v1272 = vmax.f32 %v1268, 0.0
  %1273 = vxpose.xlu0.b32.start [1/16] %v651, 128
  %1274 = vxpose.xlu0.b32.cont [2/16] %v652, 128
  %1275 = vxpose.xlu0.b32.cont [3/16] %v653, 128
  %1276 = vxpose.xlu0.b32.cont [4/16] %v654, 128
  %1277 = vxpose.xlu0.b32.cont [5/16] 0.0, 128
  %1278 = vxpose.xlu0.b32.cont [6/16] 0.0, 128
  %1279 = vxpose.xlu0.b32.cont [7/16] 0.0, 128
  %1280 = vxpose.xlu0.b32.cont [8/16] 0.0, 128
  %1281 = vxpose.xlu0.b32.cont [9/16] 0.0, 128
  %1282 = vxpose.xlu0.b32.cont [10/16] 0.0, 128
  %1283 = vxpose.xlu0.b32.cont [11/16] 0.0, 128
  %1284 = vxpose.xlu0.b32.cont [12/16] 0.0, 128
  %1285 = vxpose.xlu0.b32.cont [13/16] 0.0, 128
  %1286 = vxpose.xlu0.b32.cont [14/16] 0.0, 128
  %1287 = vxpose.xlu0.b32.cont [15/16] 0.0, 128
  %1288 = vxpose.xlu0.b32.end [16/16] 0.0, 128
  %v1289 = vpop.trf.xlu0
  %v1290 = vpop.trf.xlu0
  %v1291 = vpop.trf.xlu0
  %v1292 = vpop.trf.xlu0
  %v1293 = vpop.trf.xlu0
  %v1294 = vpop.trf.xlu0
  %v1295 = vpop.trf.xlu0
  %v1296 = vpop.trf.xlu0
  %v1297 = vpop.trf.xlu0
  %v1298 = vpop.trf.xlu0
  %v1299 = vpop.trf.xlu0
  %v1300 = vpop.trf.xlu0
  %v1301 = vpop.trf.xlu0
  %v1302 = vpop.trf.xlu0
  %v1303 = vpop.trf.xlu0
  %v1304 = vpop.trf.xlu0
  %1305 = vxpose.xlu0.b32.start [1/16] %v1269, 128
  %1306 = vxpose.xlu0.b32.cont [2/16] %v1270, 128
  %1307 = vxpose.xlu0.b32.cont [3/16] %v1271, 128
  %1308 = vxpose.xlu0.b32.cont [4/16] %v1272, 128
  %1309 = vxpose.xlu0.b32.cont [5/16] 0.0, 128
  %1310 = vxpose.xlu0.b32.cont [6/16] 0.0, 128
  %1311 = vxpose.xlu0.b32.cont [7/16] 0.0, 128
  %1312 = vxpose.xlu0.b32.cont [8/16] 0.0, 128
  %1313 = vxpose.xlu0.b32.cont [9/16] 0.0, 128
  %1314 = vxpose.xlu0.b32.cont [10/16] 0.0, 128
  %1315 = vxpose.xlu0.b32.cont [11/16] 0.0, 128
  %1316 = vxpose.xlu0.b32.cont [12/16] 0.0, 128
  %1317 = vxpose.xlu0.b32.cont [13/16] 0.0, 128
  %1318 = vxpose.xlu0.b32.cont [14/16] 0.0, 128
  %1319 = vxpose.xlu0.b32.cont [15/16] 0.0, 128
  %1320 = vxpose.xlu0.b32.end [16/16] 0.0, 128
  %v1321 = vpop.trf.xlu0
  %v1322 = vpop.trf.xlu0
  %v1323 = vpop.trf.xlu0
  %v1324 = vpop.trf.xlu0
  %v1325 = vpop.trf.xlu0
  %v1326 = vpop.trf.xlu0
  %v1327 = vpop.trf.xlu0
  %v1328 = vpop.trf.xlu0
  %v1329 = vpop.trf.xlu0
  %v1330 = vpop.trf.xlu0
  %v1331 = vpop.trf.xlu0
  %v1332 = vpop.trf.xlu0
  %v1333 = vpop.trf.xlu0
  %v1334 = vpop.trf.xlu0
  %v1335 = vpop.trf.xlu0
  %v1336 = vpop.trf.xlu0
  %v1337 = vld [vmem:[%s7] sm:$0xff]
  %v1338 = vld [vmem:[%s7 + $0x8] sm:$0xff]
  %v1339 = vld [vmem:[%s8] sm:$0x3]
  %v1340 = vld [vmem:[%s9] sm:$0xff]
  %v1341 = vld [vmem:[%s9 + $0x8] sm:$0xff]
  %v1342 = vld [vmem:[%s9 + $0x10] sm:$0xff]
  %v1343 = vld [vmem:[%s9 + $0x18] sm:$0xff]
  %v1344 = vld [vmem:[%s10] sm:$0x1]
  %v1345 = vld [vmem:[%s5] sm:$0xff]
  %v1346 = vld [vmem:[%s5 + $0x8] sm:$0xff]
  %v1348 = vsel %vm664, %v1289, 0
  %v1351 = vsel %vm664, %v1290, 0
  %1353 = vmatprep.subr.mxu0 0.0
  %1354 = vmatpush1.msra.mxu0 0.0
  %1355 = vmatprep.subr.mxu0 0.0
  %1356 = vmatpush1.msra.mxu0 0.0
  %1357 = vmatprep.subr.mxu0 0.0
  %1358 = vmatpush1.msra.mxu0 0.0
  %1359 = vmatprep.subr.mxu0 0.0
  %1360 = vmatpush1.msra.mxu0 0.0
  %1361 = vmatprep.subr.mxu0 0.0
  %1362 = vmatpush1.msra.mxu0 0.0
  %1363 = vmatprep.subr.mxu0 0.0
  %1364 = vmatpush1.msra.mxu0 0.0
  %1365 = vmatprep.subr.mxu0 0.0
  %1366 = vmatpush1.msra.mxu0 0.0
  %1367 = vmatprep.subr.mxu0 0.0
  %1368 = vmatpush1.msra.mxu0 0.0
  %1369 = vmatprep.subr.mxu0 0.0
  %1370 = vmatpush1.msra.mxu0 0.0
  %1371 = vmatprep.subr.mxu0 0.0
  %1372 = vmatpush1.msra.mxu0 0.0
  %1373 = vmatprep.subr.mxu0 0.0
  %1374 = vmatpush1.msra.mxu0 0.0
  %1375 = vmatprep.subr.mxu0 0.0
  %1376 = vmatpush1.msra.mxu0 0.0
  %1377 = vmatprep.subr.mxu0 0.0
  %1378 = vmatpush1.msra.mxu0 0.0
  %1379 = vmatprep.subr.mxu0 0.0
  %1380 = vmatpush1.msra.mxu0 0.0
  %1381 = vmatprep.subr.mxu0 0.0
  %v1382 = vand.u32 %v1346, 4294901760
  %1383 = vmatpush1.msra.mxu0 %v1382
  %1384 = vmatprep.subr.mxu0 0.0
  %v1385 = vand.u32 %v1345, 4294901760
  %1386 = vmatpush1.msra.mxu0 %v1385
  %1387 = vmatprep.subr.mxu0 0.0
  %1388 = vmatpush2.msra.mxu0 0.0
  %1389 = vmatprep.subr.mxu0 0.0
  %1390 = vmatpush2.msra.mxu0 0.0
  %1391 = vmatprep.subr.mxu0 0.0
  %1392 = vmatpush2.msra.mxu0 0.0
  %1393 = vmatprep.subr.mxu0 0.0
  %1394 = vmatpush2.msra.mxu0 0.0
  %1395 = vmatprep.subr.mxu0 0.0
  %1396 = vmatpush2.msra.mxu0 0.0
  %1397 = vmatprep.subr.mxu0 0.0
  %1398 = vmatpush2.msra.mxu0 0.0
  %1399 = vmatprep.subr.mxu0 0.0
  %1400 = vmatpush2.msra.mxu0 0.0
  %1401 = vmatprep.subr.mxu0 0.0
  %1402 = vmatpush2.msra.mxu0 0.0
  %1403 = vmatprep.subr.mxu0 0.0
  %1404 = vmatpush2.msra.mxu0 0.0
  %1405 = vmatprep.subr.mxu0 0.0
  %1406 = vmatpush2.msra.mxu0 0.0
  %1407 = vmatprep.subr.mxu0 0.0
  %1408 = vmatpush2.msra.mxu0 0.0
  %1409 = vmatprep.subr.mxu0 0.0
  %1410 = vmatpush2.msra.mxu0 0.0
  %1411 = vmatprep.subr.mxu0 0.0
  %1412 = vmatpush2.msra.mxu0 0.0
  %1413 = vmatprep.subr.mxu0 0.0
  %1414 = vmatpush2.msra.mxu0 0.0
  %1415 = vmatprep.subr.mxu0 0.0
  %1416 = vmatpush2.msra.mxu0 0.0
  %1417 = vmatprep.subr.mxu0 0.0
  %1418 = vmatpush2.msra.mxu0 0.0
  %1419 = vmatprep.mubr.f32.mxu0 0.0
  %v1420 = vand.u32 %v1348, 4294901760
  %v1421 = vsub.f32 %v1348, %v1420
  %v1422 = vand.u32 %v1421, 4294901760
  %v1423 = vsub.f32 %v1421, %v1422
  %v1424 = vand.u32 %v1423, 4294901760
  %1425 = vmatmul.mubr.f32.gmra.mxu0 %v1424
  %v1426 = vpop.f32.mrf.mxu0
  %v1427 = vadd.f32 0.0, %v1426
  %v1428 = vpop.f32.mrf.mxu0
  %1429 = vmatprep.mubr.f32.mxu0 0.0
  %v1430 = vand.u32 %v1351, 4294901760
  %v1431 = vsub.f32 %v1351, %v1430
  %v1432 = vand.u32 %v1431, 4294901760
  %v1433 = vsub.f32 %v1431, %v1432
  %v1434 = vand.u32 %v1433, 4294901760
  %1435 = vmatmul.mubr.f32.gmra.mxu0 %v1434
  %v1436 = vpop.f32.mrf.mxu0
  %v1437 = vadd.f32 0.0, %v1436
  %v1438 = vpop.f32.mrf.mxu0
  %1439 = vdwg.mxu0
  %1440 = vmatprep.subr.mxu0 0.0
  %1441 = vmatpush1.msra.mxu0 0.0
  %1442 = vmatprep.subr.mxu0 0.0
  %1443 = vmatpush1.msra.mxu0 0.0
  %1444 = vmatprep.subr.mxu0 0.0
  %1445 = vmatpush1.msra.mxu0 0.0
  %1446 = vmatprep.subr.mxu0 0.0
  %1447 = vmatpush1.msra.mxu0 0.0
  %1448 = vmatprep.subr.mxu0 0.0
  %1449 = vmatpush1.msra.mxu0 0.0
  %1450 = vmatprep.subr.mxu0 0.0
  %1451 = vmatpush1.msra.mxu0 0.0
  %1452 = vmatprep.subr.mxu0 0.0
  %1453 = vmatpush1.msra.mxu0 0.0
  %1454 = vmatprep.subr.mxu0 0.0
  %1455 = vmatpush1.msra.mxu0 0.0
  %1456 = vmatprep.subr.mxu0 0.0
  %1457 = vmatpush1.msra.mxu0 0.0
  %1458 = vmatprep.subr.mxu0 0.0
  %1459 = vmatpush1.msra.mxu0 0.0
  %1460 = vmatprep.subr.mxu0 0.0
  %1461 = vmatpush1.msra.mxu0 0.0
  %1462 = vmatprep.subr.mxu0 0.0
  %1463 = vmatpush1.msra.mxu0 0.0
  %1464 = vmatprep.subr.mxu0 0.0
  %1465 = vmatpush1.msra.mxu0 0.0
  %1466 = vmatprep.subr.mxu0 0.0
  %1467 = vmatpush1.msra.mxu0 0.0
  %1468 = vmatprep.subr.mxu0 0.0
  %v1469 = vand.u32 %v1346, 4294901760
  %v1470 = vsub.f32 %v1346, %v1469
  %v1471 = vand.u32 %v1470, 4294901760
  %v1472 = vsub.f32 %v1470, %v1471
  %v1473 = vand.u32 %v1472, 4294901760
  %1474 = vmatpush1.msra.mxu0 %v1473
  %1475 = vmatprep.subr.mxu0 0.0
  %v1476 = vand.u32 %v1345, 4294901760
  %v1477 = vsub.f32 %v1345, %v1476
  %v1478 = vand.u32 %v1477, 4294901760
  %v1479 = vsub.f32 %v1477, %v1478
  %v1480 = vand.u32 %v1479, 4294901760
  %1481 = vmatpush1.msra.mxu0 %v1480
  %1482 = vmatprep.subr.mxu0 0.0
  %1483 = vmatpush2.msra.mxu0 0.0
  %1484 = vmatprep.subr.mxu0 0.0
  %1485 = vmatpush2.msra.mxu0 0.0
  %1486 = vmatprep.subr.mxu0 0.0
  %1487 = vmatpush2.msra.mxu0 0.0
  %1488 = vmatprep.subr.mxu0 0.0
  %1489 = vmatpush2.msra.mxu0 0.0
  %1490 = vmatprep.subr.mxu0 0.0
  %1491 = vmatpush2.msra.mxu0 0.0
  %1492 = vmatprep.subr.mxu0 0.0
  %1493 = vmatpush2.msra.mxu0 0.0
  %1494 = vmatprep.subr.mxu0 0.0
  %1495 = vmatpush2.msra.mxu0 0.0
  %1496 = vmatprep.subr.mxu0 0.0
  %1497 = vmatpush2.msra.mxu0 0.0
  %1498 = vmatprep.subr.mxu0 0.0
  %1499 = vmatpush2.msra.mxu0 0.0
  %1500 = vmatprep.subr.mxu0 0.0
  %1501 = vmatpush2.msra.mxu0 0.0
  %1502 = vmatprep.subr.mxu0 0.0
  %1503 = vmatpush2.msra.mxu0 0.0
  %1504 = vmatprep.subr.mxu0 0.0
  %1505 = vmatpush2.msra.mxu0 0.0
  %1506 = vmatprep.subr.mxu0 0.0
  %1507 = vmatpush2.msra.mxu0 0.0
  %1508 = vmatprep.subr.mxu0 0.0
  %1509 = vmatpush2.msra.mxu0 0.0
  %1510 = vmatprep.subr.mxu0 0.0
  %1511 = vmatpush2.msra.mxu0 0.0
  %1512 = vmatprep.subr.mxu0 0.0
  %1513 = vmatpush2.msra.mxu0 0.0
  %1514 = vmatprep.mubr.f32.mxu0 0.0
  %v1515 = vand.u32 %v1348, 4294901760
  %1516 = vmatmul.mubr.f32.gmra.mxu0 %v1515
  %v1517 = vpop.f32.mrf.mxu0
  %v1518 = vadd.f32 %v1427, %v1517
  %v1519 = vpop.f32.mrf.mxu0
  %1520 = vmatprep.mubr.f32.mxu0 0.0
  %v1521 = vand.u32 %v1351, 4294901760
  %1522 = vmatmul.mubr.f32.gmra.mxu0 %v1521
  %v1523 = vpop.f32.mrf.mxu0
  %v1524 = vadd.f32 %v1437, %v1523
  %v1525 = vpop.f32.mrf.mxu0
  %1526 = vdwg.mxu0
  %1527 = vmatprep.subr.mxu0 0.0
  %1528 = vmatpush1.msra.mxu0 0.0
  %1529 = vmatprep.subr.mxu0 0.0
  %1530 = vmatpush1.msra.mxu0 0.0
  %1531 = vmatprep.subr.mxu0 0.0
  %1532 = vmatpush1.msra.mxu0 0.0
  %1533 = vmatprep.subr.mxu0 0.0
  %1534 = vmatpush1.msra.mxu0 0.0
  %1535 = vmatprep.subr.mxu0 0.0
  %1536 = vmatpush1.msra.mxu0 0.0
  %1537 = vmatprep.subr.mxu0 0.0
  %1538 = vmatpush1.msra.mxu0 0.0
  %1539 = vmatprep.subr.mxu0 0.0
  %1540 = vmatpush1.msra.mxu0 0.0
  %1541 = vmatprep.subr.mxu0 0.0
  %1542 = vmatpush1.msra.mxu0 0.0
  %1543 = vmatprep.subr.mxu0 0.0
  %1544 = vmatpush1.msra.mxu0 0.0
  %1545 = vmatprep.subr.mxu0 0.0
  %1546 = vmatpush1.msra.mxu0 0.0
  %1547 = vmatprep.subr.mxu0 0.0
  %1548 = vmatpush1.msra.mxu0 0.0
  %1549 = vmatprep.subr.mxu0 0.0
  %1550 = vmatpush1.msra.mxu0 0.0
  %1551 = vmatprep.subr.mxu0 0.0
  %1552 = vmatpush1.msra.mxu0 0.0
  %1553 = vmatprep.subr.mxu0 0.0
  %1554 = vmatpush1.msra.mxu0 0.0
  %1555 = vmatprep.subr.mxu0 0.0
  %v1556 = vand.u32 %v1346, 4294901760
  %v1557 = vsub.f32 %v1346, %v1556
  %1558 = vmatpush1.msra.mxu0 %v1557
  %1559 = vmatprep.subr.mxu0 0.0
  %v1560 = vand.u32 %v1345, 4294901760
  %v1561 = vsub.f32 %v1345, %v1560
  %1562 = vmatpush1.msra.mxu0 %v1561
  %1563 = vmatprep.subr.mxu0 0.0
  %1564 = vmatpush2.msra.mxu0 0.0
  %1565 = vmatprep.subr.mxu0 0.0
  %1566 = vmatpush2.msra.mxu0 0.0
  %1567 = vmatprep.subr.mxu0 0.0
  %1568 = vmatpush2.msra.mxu0 0.0
  %1569 = vmatprep.subr.mxu0 0.0
  %1570 = vmatpush2.msra.mxu0 0.0
  %1571 = vmatprep.subr.mxu0 0.0
  %1572 = vmatpush2.msra.mxu0 0.0
  %1573 = vmatprep.subr.mxu0 0.0
  %1574 = vmatpush2.msra.mxu0 0.0
  %1575 = vmatprep.subr.mxu0 0.0
  %1576 = vmatpush2.msra.mxu0 0.0
  %1577 = vmatprep.subr.mxu0 0.0
  %1578 = vmatpush2.msra.mxu0 0.0
  %1579 = vmatprep.subr.mxu0 0.0
  %1580 = vmatpush2.msra.mxu0 0.0
  %1581 = vmatprep.subr.mxu0 0.0
  %1582 = vmatpush2.msra.mxu0 0.0
  %1583 = vmatprep.subr.mxu0 0.0
  %1584 = vmatpush2.msra.mxu0 0.0
  %1585 = vmatprep.subr.mxu0 0.0
  %1586 = vmatpush2.msra.mxu0 0.0
  %1587 = vmatprep.subr.mxu0 0.0
  %1588 = vmatpush2.msra.mxu0 0.0
  %1589 = vmatprep.subr.mxu0 0.0
  %1590 = vmatpush2.msra.mxu0 0.0
  %1591 = vmatprep.subr.mxu0 0.0
  %1592 = vmatpush2.msra.mxu0 0.0
  %1593 = vmatprep.subr.mxu0 0.0
  %1594 = vmatpush2.msra.mxu0 0.0
  %1595 = vmatprep.mubr.f32.mxu0 0.0
  %v1596 = vand.u32 %v1348, 4294901760
  %v1597 = vsub.f32 %v1348, %v1596
  %1598 = vmatmul.mubr.f32.gmra.mxu0 %v1597
  %v1599 = vpop.f32.mrf.mxu0
  %v1600 = vadd.f32 %v1518, %v1599
  %v1601 = vpop.f32.mrf.mxu0
  %1602 = vmatprep.mubr.f32.mxu0 0.0
  %v1603 = vand.u32 %v1351, 4294901760
  %v1604 = vsub.f32 %v1351, %v1603
  %1605 = vmatmul.mubr.f32.gmra.mxu0 %v1604
  %v1606 = vpop.f32.mrf.mxu0
  %v1607 = vadd.f32 %v1524, %v1606
  %v1608 = vpop.f32.mrf.mxu0
  %1609 = vdwg.mxu0
  %1610 = vmatprep.subr.mxu0 0.0
  %1611 = vmatpush1.msra.mxu0 0.0
  %1612 = vmatprep.subr.mxu0 0.0
  %1613 = vmatpush1.msra.mxu0 0.0
  %1614 = vmatprep.subr.mxu0 0.0
  %1615 = vmatpush1.msra.mxu0 0.0
  %1616 = vmatprep.subr.mxu0 0.0
  %1617 = vmatpush1.msra.mxu0 0.0
  %1618 = vmatprep.subr.mxu0 0.0
  %1619 = vmatpush1.msra.mxu0 0.0
  %1620 = vmatprep.subr.mxu0 0.0
  %1621 = vmatpush1.msra.mxu0 0.0
  %1622 = vmatprep.subr.mxu0 0.0
  %1623 = vmatpush1.msra.mxu0 0.0
  %1624 = vmatprep.subr.mxu0 0.0
  %1625 = vmatpush1.msra.mxu0 0.0
  %1626 = vmatprep.subr.mxu0 0.0
  %1627 = vmatpush1.msra.mxu0 0.0
  %1628 = vmatprep.subr.mxu0 0.0
  %1629 = vmatpush1.msra.mxu0 0.0
  %1630 = vmatprep.subr.mxu0 0.0
  %1631 = vmatpush1.msra.mxu0 0.0
  %1632 = vmatprep.subr.mxu0 0.0
  %1633 = vmatpush1.msra.mxu0 0.0
  %1634 = vmatprep.subr.mxu0 0.0
  %1635 = vmatpush1.msra.mxu0 0.0
  %1636 = vmatprep.subr.mxu0 0.0
  %1637 = vmatpush1.msra.mxu0 0.0
  %1638 = vmatprep.subr.mxu0 0.0
  %v1639 = vand.u32 %v1346, 4294901760
  %1640 = vmatpush1.msra.mxu0 %v1639
  %1641 = vmatprep.subr.mxu0 0.0
  %v1642 = vand.u32 %v1345, 4294901760
  %1643 = vmatpush1.msra.mxu0 %v1642
  %1644 = vmatprep.subr.mxu0 0.0
  %1645 = vmatpush2.msra.mxu0 0.0
  %1646 = vmatprep.subr.mxu0 0.0
  %1647 = vmatpush2.msra.mxu0 0.0
  %1648 = vmatprep.subr.mxu0 0.0
  %1649 = vmatpush2.msra.mxu0 0.0
  %1650 = vmatprep.subr.mxu0 0.0
  %1651 = vmatpush2.msra.mxu0 0.0
  %1652 = vmatprep.subr.mxu0 0.0
  %1653 = vmatpush2.msra.mxu0 0.0
  %1654 = vmatprep.subr.mxu0 0.0
  %1655 = vmatpush2.msra.mxu0 0.0
  %1656 = vmatprep.subr.mxu0 0.0
  %1657 = vmatpush2.msra.mxu0 0.0
  %1658 = vmatprep.subr.mxu0 0.0
  %1659 = vmatpush2.msra.mxu0 0.0
  %1660 = vmatprep.subr.mxu0 0.0
  %1661 = vmatpush2.msra.mxu0 0.0
  %1662 = vmatprep.subr.mxu0 0.0
  %1663 = vmatpush2.msra.mxu0 0.0
  %1664 = vmatprep.subr.mxu0 0.0
  %1665 = vmatpush2.msra.mxu0 0.0
  %1666 = vmatprep.subr.mxu0 0.0
  %1667 = vmatpush2.msra.mxu0 0.0
  %1668 = vmatprep.subr.mxu0 0.0
  %1669 = vmatpush2.msra.mxu0 0.0
  %1670 = vmatprep.subr.mxu0 0.0
  %1671 = vmatpush2.msra.mxu0 0.0
  %1672 = vmatprep.subr.mxu0 0.0
  %1673 = vmatpush2.msra.mxu0 0.0
  %1674 = vmatprep.subr.mxu0 0.0
  %1675 = vmatpush2.msra.mxu0 0.0
  %1676 = vmatprep.mubr.f32.mxu0 0.0
  %v1677 = vand.u32 %v1348, 4294901760
  %v1678 = vsub.f32 %v1348, %v1677
  %v1679 = vand.u32 %v1678, 4294901760
  %1680 = vmatmul.mubr.f32.gmra.mxu0 %v1679
  %v1681 = vpop.f32.mrf.mxu0
  %v1682 = vadd.f32 %v1600, %v1681
  %v1683 = vpop.f32.mrf.mxu0
  %1684 = vmatprep.mubr.f32.mxu0 0.0
  %v1685 = vand.u32 %v1351, 4294901760
  %v1686 = vsub.f32 %v1351, %v1685
  %v1687 = vand.u32 %v1686, 4294901760
  %1688 = vmatmul.mubr.f32.gmra.mxu0 %v1687
  %v1689 = vpop.f32.mrf.mxu0
  %v1690 = vadd.f32 %v1607, %v1689
  %v1691 = vpop.f32.mrf.mxu0
  %1692 = vdwg.mxu0
  %1693 = vmatprep.subr.mxu0 0.0
  %1694 = vmatpush1.msra.mxu0 0.0
  %1695 = vmatprep.subr.mxu0 0.0
  %1696 = vmatpush1.msra.mxu0 0.0
  %1697 = vmatprep.subr.mxu0 0.0
  %1698 = vmatpush1.msra.mxu0 0.0
  %1699 = vmatprep.subr.mxu0 0.0
  %1700 = vmatpush1.msra.mxu0 0.0
  %1701 = vmatprep.subr.mxu0 0.0
  %1702 = vmatpush1.msra.mxu0 0.0
  %1703 = vmatprep.subr.mxu0 0.0
  %1704 = vmatpush1.msra.mxu0 0.0
  %1705 = vmatprep.subr.mxu0 0.0
  %1706 = vmatpush1.msra.mxu0 0.0
  %1707 = vmatprep.subr.mxu0 0.0
  %1708 = vmatpush1.msra.mxu0 0.0
  %1709 = vmatprep.subr.mxu0 0.0
  %1710 = vmatpush1.msra.mxu0 0.0
  %1711 = vmatprep.subr.mxu0 0.0
  %1712 = vmatpush1.msra.mxu0 0.0
  %1713 = vmatprep.subr.mxu0 0.0
  %1714 = vmatpush1.msra.mxu0 0.0
  %1715 = vmatprep.subr.mxu0 0.0
  %1716 = vmatpush1.msra.mxu0 0.0
  %1717 = vmatprep.subr.mxu0 0.0
  %1718 = vmatpush1.msra.mxu0 0.0
  %1719 = vmatprep.subr.mxu0 0.0
  %1720 = vmatpush1.msra.mxu0 0.0
  %1721 = vmatprep.subr.mxu0 0.0
  %v1722 = vand.u32 %v1346, 4294901760
  %v1723 = vsub.f32 %v1346, %v1722
  %v1724 = vand.u32 %v1723, 4294901760
  %1725 = vmatpush1.msra.mxu0 %v1724
  %1726 = vmatprep.subr.mxu0 0.0
  %v1727 = vand.u32 %v1345, 4294901760
  %v1728 = vsub.f32 %v1345, %v1727
  %v1729 = vand.u32 %v1728, 4294901760
  %1730 = vmatpush1.msra.mxu0 %v1729
  %1731 = vmatprep.subr.mxu0 0.0
  %1732 = vmatpush2.msra.mxu0 0.0
  %1733 = vmatprep.subr.mxu0 0.0
  %1734 = vmatpush2.msra.mxu0 0.0
  %1735 = vmatprep.subr.mxu0 0.0
  %1736 = vmatpush2.msra.mxu0 0.0
  %1737 = vmatprep.subr.mxu0 0.0
  %1738 = vmatpush2.msra.mxu0 0.0
  %1739 = vmatprep.subr.mxu0 0.0
  %1740 = vmatpush2.msra.mxu0 0.0
  %1741 = vmatprep.subr.mxu0 0.0
  %1742 = vmatpush2.msra.mxu0 0.0
  %1743 = vmatprep.subr.mxu0 0.0
  %1744 = vmatpush2.msra.mxu0 0.0
  %1745 = vmatprep.subr.mxu0 0.0
  %1746 = vmatpush2.msra.mxu0 0.0
  %1747 = vmatprep.subr.mxu0 0.0
  %1748 = vmatpush2.msra.mxu0 0.0
  %1749 = vmatprep.subr.mxu0 0.0
  %1750 = vmatpush2.msra.mxu0 0.0
  %1751 = vmatprep.subr.mxu0 0.0
  %1752 = vmatpush2.msra.mxu0 0.0
  %1753 = vmatprep.subr.mxu0 0.0
  %1754 = vmatpush2.msra.mxu0 0.0
  %1755 = vmatprep.subr.mxu0 0.0
  %1756 = vmatpush2.msra.mxu0 0.0
  %1757 = vmatprep.subr.mxu0 0.0
  %1758 = vmatpush2.msra.mxu0 0.0
  %1759 = vmatprep.subr.mxu0 0.0
  %1760 = vmatpush2.msra.mxu0 0.0
  %1761 = vmatprep.subr.mxu0 0.0
  %1762 = vmatpush2.msra.mxu0 0.0
  %1763 = vmatprep.mubr.f32.mxu0 0.0
  %v1764 = vand.u32 %v1348, 4294901760
  %1765 = vmatmul.mubr.f32.gmra.mxu0 %v1764
  %v1766 = vpop.f32.mrf.mxu0
  %v1767 = vadd.f32 %v1682, %v1766
  %v1768 = vpop.f32.mrf.mxu0
  %1769 = vmatprep.mubr.f32.mxu0 0.0
  %v1770 = vand.u32 %v1351, 4294901760
  %1771 = vmatmul.mubr.f32.gmra.mxu0 %v1770
  %v1772 = vpop.f32.mrf.mxu0
  %v1773 = vadd.f32 %v1690, %v1772
  %v1774 = vpop.f32.mrf.mxu0
  %1775 = vdwg.mxu0
  %1776 = vmatprep.subr.mxu0 0.0
  %1777 = vmatpush1.msra.mxu0 0.0
  %1778 = vmatprep.subr.mxu0 0.0
  %1779 = vmatpush1.msra.mxu0 0.0
  %1780 = vmatprep.subr.mxu0 0.0
  %1781 = vmatpush1.msra.mxu0 0.0
  %1782 = vmatprep.subr.mxu0 0.0
  %1783 = vmatpush1.msra.mxu0 0.0
  %1784 = vmatprep.subr.mxu0 0.0
  %1785 = vmatpush1.msra.mxu0 0.0
  %1786 = vmatprep.subr.mxu0 0.0
  %1787 = vmatpush1.msra.mxu0 0.0
  %1788 = vmatprep.subr.mxu0 0.0
  %1789 = vmatpush1.msra.mxu0 0.0
  %1790 = vmatprep.subr.mxu0 0.0
  %1791 = vmatpush1.msra.mxu0 0.0
  %1792 = vmatprep.subr.mxu0 0.0
  %1793 = vmatpush1.msra.mxu0 0.0
  %1794 = vmatprep.subr.mxu0 0.0
  %1795 = vmatpush1.msra.mxu0 0.0
  %1796 = vmatprep.subr.mxu0 0.0
  %1797 = vmatpush1.msra.mxu0 0.0
  %1798 = vmatprep.subr.mxu0 0.0
  %1799 = vmatpush1.msra.mxu0 0.0
  %1800 = vmatprep.subr.mxu0 0.0
  %1801 = vmatpush1.msra.mxu0 0.0
  %1802 = vmatprep.subr.mxu0 0.0
  %1803 = vmatpush1.msra.mxu0 0.0
  %1804 = vmatprep.subr.mxu0 0.0
  %v1805 = vand.u32 %v1346, 4294901760
  %1806 = vmatpush1.msra.mxu0 %v1805
  %1807 = vmatprep.subr.mxu0 0.0
  %v1808 = vand.u32 %v1345, 4294901760
  %1809 = vmatpush1.msra.mxu0 %v1808
  %1810 = vmatprep.subr.mxu0 0.0
  %1811 = vmatpush2.msra.mxu0 0.0
  %1812 = vmatprep.subr.mxu0 0.0
  %1813 = vmatpush2.msra.mxu0 0.0
  %1814 = vmatprep.subr.mxu0 0.0
  %1815 = vmatpush2.msra.mxu0 0.0
  %1816 = vmatprep.subr.mxu0 0.0
  %1817 = vmatpush2.msra.mxu0 0.0
  %1818 = vmatprep.subr.mxu0 0.0
  %1819 = vmatpush2.msra.mxu0 0.0
  %1820 = vmatprep.subr.mxu0 0.0
  %1821 = vmatpush2.msra.mxu0 0.0
  %1822 = vmatprep.subr.mxu0 0.0
  %1823 = vmatpush2.msra.mxu0 0.0
  %1824 = vmatprep.subr.mxu0 0.0
  %1825 = vmatpush2.msra.mxu0 0.0
  %1826 = vmatprep.subr.mxu0 0.0
  %1827 = vmatpush2.msra.mxu0 0.0
  %1828 = vmatprep.subr.mxu0 0.0
  %1829 = vmatpush2.msra.mxu0 0.0
  %1830 = vmatprep.subr.mxu0 0.0
  %1831 = vmatpush2.msra.mxu0 0.0
  %1832 = vmatprep.subr.mxu0 0.0
  %1833 = vmatpush2.msra.mxu0 0.0
  %1834 = vmatprep.subr.mxu0 0.0
  %1835 = vmatpush2.msra.mxu0 0.0
  %1836 = vmatprep.subr.mxu0 0.0
  %1837 = vmatpush2.msra.mxu0 0.0
  %1838 = vmatprep.subr.mxu0 0.0
  %1839 = vmatpush2.msra.mxu0 0.0
  %1840 = vmatprep.subr.mxu0 0.0
  %1841 = vmatpush2.msra.mxu0 0.0
  %1842 = vmatprep.mubr.f32.mxu0 0.0
  %v1843 = vand.u32 %v1348, 4294901760
  %1844 = vmatmul.mubr.f32.gmra.mxu0 %v1843
  %v1845 = vpop.f32.mrf.mxu0
  %v1846 = vadd.f32 %v1767, %v1845
  %v1847 = vpop.f32.mrf.mxu0
  %1848 = vmatprep.mubr.f32.mxu0 0.0
  %v1849 = vand.u32 %v1351, 4294901760
  %1850 = vmatmul.mubr.f32.gmra.mxu0 %v1849
  %v1851 = vpop.f32.mrf.mxu0
  %v1852 = vadd.f32 %v1773, %v1851
  %v1853 = vpop.f32.mrf.mxu0
  %1854 = vdwg.mxu0
  %1856 = vset.pattern.permute.xlu0 0
  %1857 = vperm.xlu0 %1856, %v1337
  %v1858 = vpop.permute.xlu0 %1857
  %1861 = vset.pattern.permute.xlu0 0
  %1862 = vperm.xlu0 %1861, %v1338
  %v1863 = vpop.permute.xlu0 %1862
  %v1865 = vmul.f32 %v1846, %v1858
  %v1866 = vmul.f32 %v1852, %v1863
  %1867 = vset.pattern.permute.xlu0 1
  %1868 = vperm.xlu0 %1867, %v1337
  %v1869 = vpop.permute.xlu0 %1868
  %1871 = vset.pattern.permute.xlu0 1
  %1872 = vperm.xlu0 %1871, %v1338
  %v1873 = vpop.permute.xlu0 %1872
  %v1875 = vadd.f32 %v1865, %v1869
  %v1876 = vadd.f32 %v1866, %v1873
  %v1877 = vrcp.pop 5.0
  %v1878 = vmul.f32 %v1875, %v1877
  %v1879 = vmul.f32 %v1876, %v1877
  %v1880 = vtanh.pop %v1878
  %v1881 = vtanh.pop %v1879
  %v1882 = vlaneseq
  %v1883 = vshrl.u32 %v1882, 7
  %v1884 = vsub.s32 0, %v1883
  %v1885 = vrot.slane %v1339, %v1884
  %v1886 = vmul.f32 %v1880, %v1885
  %v1887 = vmul.f32 %v1881, %v1885
  %1888 = vset.pattern.permute.xlu0 2
  %1889 = vperm.xlu0 %1888, %v1337
  %v1890 = vpop.permute.xlu0 %1889
  %1892 = vset.pattern.permute.xlu0 2
  %1893 = vperm.xlu0 %1892, %v1338
  %v1894 = vpop.permute.xlu0 %1893
  %v1896 = vmul.f32 %v1886, %v1890
  %v1897 = vmul.f32 %v1887, %v1894
  %1898 = vset.pattern.permute.xlu0 3
  %1899 = vperm.xlu0 %1898, %v1337
  %v1900 = vpop.permute.xlu0 %1899
  %1902 = vset.pattern.permute.xlu0 3
  %1903 = vperm.xlu0 %1902, %v1338
  %v1904 = vpop.permute.xlu0 %1903
  %v1906 = vadd.f32 %v1896, %v1900
  %v1907 = vadd.f32 %v1897, %v1904
  %v1908 = vld [vmem:[%s6] sm:$0xff]
  %v1910 = vsel %vm59, %v1906, 0
  %v1913 = vsel %vm59, %v1907, 0
  %1915 = vmatprep.subr.mxu0 0.0
  %1916 = vmatpush1.msra.mxu0 0.0
  %1917 = vmatprep.subr.mxu0 0.0
  %1918 = vmatpush1.msra.mxu0 0.0
  %1919 = vmatprep.subr.mxu0 0.0
  %1920 = vmatpush1.msra.mxu0 0.0
  %1921 = vmatprep.subr.mxu0 0.0
  %1922 = vmatpush1.msra.mxu0 0.0
  %1923 = vmatprep.subr.mxu0 0.0
  %1924 = vmatpush1.msra.mxu0 0.0
  %1925 = vmatprep.subr.mxu0 0.0
  %1926 = vmatpush1.msra.mxu0 0.0
  %1927 = vmatprep.subr.mxu0 0.0
  %1928 = vmatpush1.msra.mxu0 0.0
  %1929 = vmatprep.subr.mxu0 0.0
  %1930 = vmatpush1.msra.mxu0 0.0
  %1931 = vmatprep.subr.mxu0 0.0
  %1932 = vmatpush1.msra.mxu0 0.0
  %1933 = vmatprep.subr.mxu0 0.0
  %1934 = vmatpush1.msra.mxu0 0.0
  %1935 = vmatprep.subr.mxu0 0.0
  %1936 = vmatpush1.msra.mxu0 0.0
  %1937 = vmatprep.subr.mxu0 0.0
  %1938 = vmatpush1.msra.mxu0 0.0
  %1939 = vmatprep.subr.mxu0 0.0
  %1940 = vmatpush1.msra.mxu0 0.0
  %1941 = vmatprep.subr.mxu0 0.0
  %1942 = vmatpush1.msra.mxu0 0.0
  %1943 = vmatprep.subr.mxu0 0.0
  %1944 = vmatpush1.msra.mxu0 0.0
  %1945 = vmatprep.subr.mxu0 0.0
  %v1946 = vand.u32 %v1908, 4294901760
  %1947 = vmatpush1.msra.mxu0 %v1946
  %1948 = vmatprep.subr.mxu0 0.0
  %1949 = vmatpush2.msra.mxu0 0.0
  %1950 = vmatprep.subr.mxu0 0.0
  %1951 = vmatpush2.msra.mxu0 0.0
  %1952 = vmatprep.subr.mxu0 0.0
  %1953 = vmatpush2.msra.mxu0 0.0
  %1954 = vmatprep.subr.mxu0 0.0
  %1955 = vmatpush2.msra.mxu0 0.0
  %1956 = vmatprep.subr.mxu0 0.0
  %1957 = vmatpush2.msra.mxu0 0.0
  %1958 = vmatprep.subr.mxu0 0.0
  %1959 = vmatpush2.msra.mxu0 0.0
  %1960 = vmatprep.subr.mxu0 0.0
  %1961 = vmatpush2.msra.mxu0 0.0
  %1962 = vmatprep.subr.mxu0 0.0
  %1963 = vmatpush2.msra.mxu0 0.0
  %1964 = vmatprep.subr.mxu0 0.0
  %1965 = vmatpush2.msra.mxu0 0.0
  %1966 = vmatprep.subr.mxu0 0.0
  %1967 = vmatpush2.msra.mxu0 0.0
  %1968 = vmatprep.subr.mxu0 0.0
  %1969 = vmatpush2.msra.mxu0 0.0
  %1970 = vmatprep.subr.mxu0 0.0
  %1971 = vmatpush2.msra.mxu0 0.0
  %1972 = vmatprep.subr.mxu0 0.0
  %1973 = vmatpush2.msra.mxu0 0.0
  %1974 = vmatprep.subr.mxu0 0.0
  %1975 = vmatpush2.msra.mxu0 0.0
  %1976 = vmatprep.subr.mxu0 0.0
  %1977 = vmatpush2.msra.mxu0 0.0
  %1978 = vmatprep.subr.mxu0 0.0
  %1979 = vmatpush2.msra.mxu0 0.0
  %1980 = vmatprep.mubr.f32.mxu0 0.0
  %v1981 = vand.u32 %v1910, 4294901760
  %v1982 = vsub.f32 %v1910, %v1981
  %v1983 = vand.u32 %v1982, 4294901760
  %v1984 = vsub.f32 %v1982, %v1983
  %v1985 = vand.u32 %v1984, 4294901760
  %1986 = vmatmul.mubr.f32.gmra.mxu0 %v1985
  %v1987 = vpop.f32.mrf.mxu0
  %v1988 = vadd.f32 0.0, %v1987
  %v1989 = vpop.f32.mrf.mxu0
  %1990 = vmatprep.mubr.f32.mxu0 0.0
  %v1991 = vand.u32 %v1913, 4294901760
  %v1992 = vsub.f32 %v1913, %v1991
  %v1993 = vand.u32 %v1992, 4294901760
  %v1994 = vsub.f32 %v1992, %v1993
  %v1995 = vand.u32 %v1994, 4294901760
  %1996 = vmatmul.mubr.f32.gmra.mxu0 %v1995
  %v1997 = vpop.f32.mrf.mxu0
  %v1998 = vadd.f32 0.0, %v1997
  %v1999 = vpop.f32.mrf.mxu0
  %2000 = vdwg.mxu0
  %2001 = vmatprep.subr.mxu0 0.0
  %2002 = vmatpush1.msra.mxu0 0.0
  %2003 = vmatprep.subr.mxu0 0.0
  %2004 = vmatpush1.msra.mxu0 0.0
  %2005 = vmatprep.subr.mxu0 0.0
  %2006 = vmatpush1.msra.mxu0 0.0
  %2007 = vmatprep.subr.mxu0 0.0
  %2008 = vmatpush1.msra.mxu0 0.0
  %2009 = vmatprep.subr.mxu0 0.0
  %2010 = vmatpush1.msra.mxu0 0.0
  %2011 = vmatprep.subr.mxu0 0.0
  %2012 = vmatpush1.msra.mxu0 0.0
  %2013 = vmatprep.subr.mxu0 0.0
  %2014 = vmatpush1.msra.mxu0 0.0
  %2015 = vmatprep.subr.mxu0 0.0
  %2016 = vmatpush1.msra.mxu0 0.0
  %2017 = vmatprep.subr.mxu0 0.0
  %2018 = vmatpush1.msra.mxu0 0.0
  %2019 = vmatprep.subr.mxu0 0.0
  %2020 = vmatpush1.msra.mxu0 0.0
  %2021 = vmatprep.subr.mxu0 0.0
  %2022 = vmatpush1.msra.mxu0 0.0
  %2023 = vmatprep.subr.mxu0 0.0
  %2024 = vmatpush1.msra.mxu0 0.0
  %2025 = vmatprep.subr.mxu0 0.0
  %2026 = vmatpush1.msra.mxu0 0.0
  %2027 = vmatprep.subr.mxu0 0.0
  %2028 = vmatpush1.msra.mxu0 0.0
  %2029 = vmatprep.subr.mxu0 0.0
  %2030 = vmatpush1.msra.mxu0 0.0
  %2031 = vmatprep.subr.mxu0 0.0
  %v2032 = vand.u32 %v1908, 4294901760
  %v2033 = vsub.f32 %v1908, %v2032
  %v2034 = vand.u32 %v2033, 4294901760
  %v2035 = vsub.f32 %v2033, %v2034
  %v2036 = vand.u32 %v2035, 4294901760
  %2037 = vmatpush1.msra.mxu0 %v2036
  %2038 = vmatprep.subr.mxu0 0.0
  %2039 = vmatpush2.msra.mxu0 0.0
  %2040 = vmatprep.subr.mxu0 0.0
  %2041 = vmatpush2.msra.mxu0 0.0
  %2042 = vmatprep.subr.mxu0 0.0
  %2043 = vmatpush2.msra.mxu0 0.0
  %2044 = vmatprep.subr.mxu0 0.0
  %2045 = vmatpush2.msra.mxu0 0.0
  %2046 = vmatprep.subr.mxu0 0.0
  %2047 = vmatpush2.msra.mxu0 0.0
  %2048 = vmatprep.subr.mxu0 0.0
  %2049 = vmatpush2.msra.mxu0 0.0
  %2050 = vmatprep.subr.mxu0 0.0
  %2051 = vmatpush2.msra.mxu0 0.0
  %2052 = vmatprep.subr.mxu0 0.0
  %2053 = vmatpush2.msra.mxu0 0.0
  %2054 = vmatprep.subr.mxu0 0.0
  %2055 = vmatpush2.msra.mxu0 0.0
  %2056 = vmatprep.subr.mxu0 0.0
  %2057 = vmatpush2.msra.mxu0 0.0
  %2058 = vmatprep.subr.mxu0 0.0
  %2059 = vmatpush2.msra.mxu0 0.0
  %2060 = vmatprep.subr.mxu0 0.0
  %2061 = vmatpush2.msra.mxu0 0.0
  %2062 = vmatprep.subr.mxu0 0.0
  %2063 = vmatpush2.msra.mxu0 0.0
  %2064 = vmatprep.subr.mxu0 0.0
  %2065 = vmatpush2.msra.mxu0 0.0
  %2066 = vmatprep.subr.mxu0 0.0
  %2067 = vmatpush2.msra.mxu0 0.0
  %2068 = vmatprep.subr.mxu0 0.0
  %2069 = vmatpush2.msra.mxu0 0.0
  %2070 = vmatprep.mubr.f32.mxu0 0.0
  %v2071 = vand.u32 %v1910, 4294901760
  %2072 = vmatmul.mubr.f32.gmra.mxu0 %v2071
  %v2073 = vpop.f32.mrf.mxu0
  %v2074 = vadd.f32 %v1988, %v2073
  %v2075 = vpop.f32.mrf.mxu0
  %2076 = vmatprep.mubr.f32.mxu0 0.0
  %v2077 = vand.u32 %v1913, 4294901760
  %2078 = vmatmul.mubr.f32.gmra.mxu0 %v2077
  %v2079 = vpop.f32.mrf.mxu0
  %v2080 = vadd.f32 %v1998, %v2079
  %v2081 = vpop.f32.mrf.mxu0
  %2082 = vdwg.mxu0
  %2083 = vmatprep.subr.mxu0 0.0
  %2084 = vmatpush1.msra.mxu0 0.0
  %2085 = vmatprep.subr.mxu0 0.0
  %2086 = vmatpush1.msra.mxu0 0.0
  %2087 = vmatprep.subr.mxu0 0.0
  %2088 = vmatpush1.msra.mxu0 0.0
  %2089 = vmatprep.subr.mxu0 0.0
  %2090 = vmatpush1.msra.mxu0 0.0
  %2091 = vmatprep.subr.mxu0 0.0
  %2092 = vmatpush1.msra.mxu0 0.0
  %2093 = vmatprep.subr.mxu0 0.0
  %2094 = vmatpush1.msra.mxu0 0.0
  %2095 = vmatprep.subr.mxu0 0.0
  %2096 = vmatpush1.msra.mxu0 0.0
  %2097 = vmatprep.subr.mxu0 0.0
  %2098 = vmatpush1.msra.mxu0 0.0
  %2099 = vmatprep.subr.mxu0 0.0
  %2100 = vmatpush1.msra.mxu0 0.0
  %2101 = vmatprep.subr.mxu0 0.0
  %2102 = vmatpush1.msra.mxu0 0.0
  %2103 = vmatprep.subr.mxu0 0.0
  %2104 = vmatpush1.msra.mxu0 0.0
  %2105 = vmatprep.subr.mxu0 0.0
  %2106 = vmatpush1.msra.mxu0 0.0
  %2107 = vmatprep.subr.mxu0 0.0
  %2108 = vmatpush1.msra.mxu0 0.0
  %2109 = vmatprep.subr.mxu0 0.0
  %2110 = vmatpush1.msra.mxu0 0.0
  %2111 = vmatprep.subr.mxu0 0.0
  %2112 = vmatpush1.msra.mxu0 0.0
  %2113 = vmatprep.subr.mxu0 0.0
  %v2114 = vand.u32 %v1908, 4294901760
  %v2115 = vsub.f32 %v1908, %v2114
  %2116 = vmatpush1.msra.mxu0 %v2115
  %2117 = vmatprep.subr.mxu0 0.0
  %2118 = vmatpush2.msra.mxu0 0.0
  %2119 = vmatprep.subr.mxu0 0.0
  %2120 = vmatpush2.msra.mxu0 0.0
  %2121 = vmatprep.subr.mxu0 0.0
  %2122 = vmatpush2.msra.mxu0 0.0
  %2123 = vmatprep.subr.mxu0 0.0
  %2124 = vmatpush2.msra.mxu0 0.0
  %2125 = vmatprep.subr.mxu0 0.0
  %2126 = vmatpush2.msra.mxu0 0.0
  %2127 = vmatprep.subr.mxu0 0.0
  %2128 = vmatpush2.msra.mxu0 0.0
  %2129 = vmatprep.subr.mxu0 0.0
  %2130 = vmatpush2.msra.mxu0 0.0
  %2131 = vmatprep.subr.mxu0 0.0
  %2132 = vmatpush2.msra.mxu0 0.0
  %2133 = vmatprep.subr.mxu0 0.0
  %2134 = vmatpush2.msra.mxu0 0.0
  %2135 = vmatprep.subr.mxu0 0.0
  %2136 = vmatpush2.msra.mxu0 0.0
  %2137 = vmatprep.subr.mxu0 0.0
  %2138 = vmatpush2.msra.mxu0 0.0
  %2139 = vmatprep.subr.mxu0 0.0
  %2140 = vmatpush2.msra.mxu0 0.0
  %2141 = vmatprep.subr.mxu0 0.0
  %2142 = vmatpush2.msra.mxu0 0.0
  %2143 = vmatprep.subr.mxu0 0.0
  %2144 = vmatpush2.msra.mxu0 0.0
  %2145 = vmatprep.subr.mxu0 0.0
  %2146 = vmatpush2.msra.mxu0 0.0
  %2147 = vmatprep.subr.mxu0 0.0
  %2148 = vmatpush2.msra.mxu0 0.0
  %2149 = vmatprep.mubr.f32.mxu0 0.0
  %v2150 = vand.u32 %v1910, 4294901760
  %v2151 = vsub.f32 %v1910, %v2150
  %2152 = vmatmul.mubr.f32.gmra.mxu0 %v2151
  %v2153 = vpop.f32.mrf.mxu0
  %v2154 = vadd.f32 %v2074, %v2153
  %v2155 = vpop.f32.mrf.mxu0
  %2156 = vmatprep.mubr.f32.mxu0 0.0
  %v2157 = vand.u32 %v1913, 4294901760
  %v2158 = vsub.f32 %v1913, %v2157
  %2159 = vmatmul.mubr.f32.gmra.mxu0 %v2158
  %v2160 = vpop.f32.mrf.mxu0
  %v2161 = vadd.f32 %v2080, %v2160
  %v2162 = vpop.f32.mrf.mxu0
  %2163 = vdwg.mxu0
  %2164 = vmatprep.subr.mxu0 0.0
  %2165 = vmatpush1.msra.mxu0 0.0
  %2166 = vmatprep.subr.mxu0 0.0
  %2167 = vmatpush1.msra.mxu0 0.0
  %2168 = vmatprep.subr.mxu0 0.0
  %2169 = vmatpush1.msra.mxu0 0.0
  %2170 = vmatprep.subr.mxu0 0.0
  %2171 = vmatpush1.msra.mxu0 0.0
  %2172 = vmatprep.subr.mxu0 0.0
  %2173 = vmatpush1.msra.mxu0 0.0
  %2174 = vmatprep.subr.mxu0 0.0
  %2175 = vmatpush1.msra.mxu0 0.0
  %2176 = vmatprep.subr.mxu0 0.0
  %2177 = vmatpush1.msra.mxu0 0.0
  %2178 = vmatprep.subr.mxu0 0.0
  %2179 = vmatpush1.msra.mxu0 0.0
  %2180 = vmatprep.subr.mxu0 0.0
  %2181 = vmatpush1.msra.mxu0 0.0
  %2182 = vmatprep.subr.mxu0 0.0
  %2183 = vmatpush1.msra.mxu0 0.0
  %2184 = vmatprep.subr.mxu0 0.0
  %2185 = vmatpush1.msra.mxu0 0.0
  %2186 = vmatprep.subr.mxu0 0.0
  %2187 = vmatpush1.msra.mxu0 0.0
  %2188 = vmatprep.subr.mxu0 0.0
  %2189 = vmatpush1.msra.mxu0 0.0
  %2190 = vmatprep.subr.mxu0 0.0
  %2191 = vmatpush1.msra.mxu0 0.0
  %2192 = vmatprep.subr.mxu0 0.0
  %2193 = vmatpush1.msra.mxu0 0.0
  %2194 = vmatprep.subr.mxu0 0.0
  %v2195 = vand.u32 %v1908, 4294901760
  %2196 = vmatpush1.msra.mxu0 %v2195
  %2197 = vmatprep.subr.mxu0 0.0
  %2198 = vmatpush2.msra.mxu0 0.0
  %2199 = vmatprep.subr.mxu0 0.0
  %2200 = vmatpush2.msra.mxu0 0.0
  %2201 = vmatprep.subr.mxu0 0.0
  %2202 = vmatpush2.msra.mxu0 0.0
  %2203 = vmatprep.subr.mxu0 0.0
  %2204 = vmatpush2.msra.mxu0 0.0
  %2205 = vmatprep.subr.mxu0 0.0
  %2206 = vmatpush2.msra.mxu0 0.0
  %2207 = vmatprep.subr.mxu0 0.0
  %2208 = vmatpush2.msra.mxu0 0.0
  %2209 = vmatprep.subr.mxu0 0.0
  %2210 = vmatpush2.msra.mxu0 0.0
  %2211 = vmatprep.subr.mxu0 0.0
  %2212 = vmatpush2.msra.mxu0 0.0
  %2213 = vmatprep.subr.mxu0 0.0
  %2214 = vmatpush2.msra.mxu0 0.0
  %2215 = vmatprep.subr.mxu0 0.0
  %2216 = vmatpush2.msra.mxu0 0.0
  %2217 = vmatprep.subr.mxu0 0.0
  %2218 = vmatpush2.msra.mxu0 0.0
  %2219 = vmatprep.subr.mxu0 0.0
  %2220 = vmatpush2.msra.mxu0 0.0
  %2221 = vmatprep.subr.mxu0 0.0
  %2222 = vmatpush2.msra.mxu0 0.0
  %2223 = vmatprep.subr.mxu0 0.0
  %2224 = vmatpush2.msra.mxu0 0.0
  %2225 = vmatprep.subr.mxu0 0.0
  %2226 = vmatpush2.msra.mxu0 0.0
  %2227 = vmatprep.subr.mxu0 0.0
  %2228 = vmatpush2.msra.mxu0 0.0
  %2229 = vmatprep.mubr.f32.mxu0 0.0
  %v2230 = vand.u32 %v1910, 4294901760
  %v2231 = vsub.f32 %v1910, %v2230
  %v2232 = vand.u32 %v2231, 4294901760
  %2233 = vmatmul.mubr.f32.gmra.mxu0 %v2232
  %v2234 = vpop.f32.mrf.mxu0
  %v2235 = vadd.f32 %v2154, %v2234
  %v2236 = vpop.f32.mrf.mxu0
  %2237 = vmatprep.mubr.f32.mxu0 0.0
  %v2238 = vand.u32 %v1913, 4294901760
  %v2239 = vsub.f32 %v1913, %v2238
  %v2240 = vand.u32 %v2239, 4294901760
  %2241 = vmatmul.mubr.f32.gmra.mxu0 %v2240
  %v2242 = vpop.f32.mrf.mxu0
  %v2243 = vadd.f32 %v2161, %v2242
  %v2244 = vpop.f32.mrf.mxu0
  %2245 = vdwg.mxu0
  %2246 = vmatprep.subr.mxu0 0.0
  %2247 = vmatpush1.msra.mxu0 0.0
  %2248 = vmatprep.subr.mxu0 0.0
  %2249 = vmatpush1.msra.mxu0 0.0
  %2250 = vmatprep.subr.mxu0 0.0
  %2251 = vmatpush1.msra.mxu0 0.0
  %2252 = vmatprep.subr.mxu0 0.0
  %2253 = vmatpush1.msra.mxu0 0.0
  %2254 = vmatprep.subr.mxu0 0.0
  %2255 = vmatpush1.msra.mxu0 0.0
  %2256 = vmatprep.subr.mxu0 0.0
  %2257 = vmatpush1.msra.mxu0 0.0
  %2258 = vmatprep.subr.mxu0 0.0
  %2259 = vmatpush1.msra.mxu0 0.0
  %2260 = vmatprep.subr.mxu0 0.0
  %2261 = vmatpush1.msra.mxu0 0.0
  %2262 = vmatprep.subr.mxu0 0.0
  %2263 = vmatpush1.msra.mxu0 0.0
  %2264 = vmatprep.subr.mxu0 0.0
  %2265 = vmatpush1.msra.mxu0 0.0
  %2266 = vmatprep.subr.mxu0 0.0
  %2267 = vmatpush1.msra.mxu0 0.0
  %2268 = vmatprep.subr.mxu0 0.0
  %2269 = vmatpush1.msra.mxu0 0.0
  %2270 = vmatprep.subr.mxu0 0.0
  %2271 = vmatpush1.msra.mxu0 0.0
  %2272 = vmatprep.subr.mxu0 0.0
  %2273 = vmatpush1.msra.mxu0 0.0
  %2274 = vmatprep.subr.mxu0 0.0
  %2275 = vmatpush1.msra.mxu0 0.0
  %2276 = vmatprep.subr.mxu0 0.0
  %v2277 = vand.u32 %v1908, 4294901760
  %v2278 = vsub.f32 %v1908, %v2277
  %v2279 = vand.u32 %v2278, 4294901760
  %2280 = vmatpush1.msra.mxu0 %v2279
  %2281 = vmatprep.subr.mxu0 0.0
  %2282 = vmatpush2.msra.mxu0 0.0
  %2283 = vmatprep.subr.mxu0 0.0
  %2284 = vmatpush2.msra.mxu0 0.0
  %2285 = vmatprep.subr.mxu0 0.0
  %2286 = vmatpush2.msra.mxu0 0.0
  %2287 = vmatprep.subr.mxu0 0.0
  %2288 = vmatpush2.msra.mxu0 0.0
  %2289 = vmatprep.subr.mxu0 0.0
  %2290 = vmatpush2.msra.mxu0 0.0
  %2291 = vmatprep.subr.mxu0 0.0
  %2292 = vmatpush2.msra.mxu0 0.0
  %2293 = vmatprep.subr.mxu0 0.0
  %2294 = vmatpush2.msra.mxu0 0.0
  %2295 = vmatprep.subr.mxu0 0.0
  %2296 = vmatpush2.msra.mxu0 0.0
  %2297 = vmatprep.subr.mxu0 0.0
  %2298 = vmatpush2.msra.mxu0 0.0
  %2299 = vmatprep.subr.mxu0 0.0
  %2300 = vmatpush2.msra.mxu0 0.0
  %2301 = vmatprep.subr.mxu0 0.0
  %2302 = vmatpush2.msra.mxu0 0.0
  %2303 = vmatprep.subr.mxu0 0.0
  %2304 = vmatpush2.msra.mxu0 0.0
  %2305 = vmatprep.subr.mxu0 0.0
  %2306 = vmatpush2.msra.mxu0 0.0
  %2307 = vmatprep.subr.mxu0 0.0
  %2308 = vmatpush2.msra.mxu0 0.0
  %2309 = vmatprep.subr.mxu0 0.0
  %2310 = vmatpush2.msra.mxu0 0.0
  %2311 = vmatprep.subr.mxu0 0.0
  %2312 = vmatpush2.msra.mxu0 0.0
  %2313 = vmatprep.mubr.f32.mxu0 0.0
  %v2314 = vand.u32 %v1910, 4294901760
  %2315 = vmatmul.mubr.f32.gmra.mxu0 %v2314
  %v2316 = vpop.f32.mrf.mxu0
  %v2317 = vadd.f32 %v2235, %v2316
  %v2318 = vpop.f32.mrf.mxu0
  %2319 = vmatprep.mubr.f32.mxu0 0.0
  %v2320 = vand.u32 %v1913, 4294901760
  %2321 = vmatmul.mubr.f32.gmra.mxu0 %v2320
  %v2322 = vpop.f32.mrf.mxu0
  %v2323 = vadd.f32 %v2243, %v2322
  %v2324 = vpop.f32.mrf.mxu0
  %2325 = vdwg.mxu0
  %2326 = vmatprep.subr.mxu0 0.0
  %2327 = vmatpush1.msra.mxu0 0.0
  %2328 = vmatprep.subr.mxu0 0.0
  %2329 = vmatpush1.msra.mxu0 0.0
  %2330 = vmatprep.subr.mxu0 0.0
  %2331 = vmatpush1.msra.mxu0 0.0
  %2332 = vmatprep.subr.mxu0 0.0
  %2333 = vmatpush1.msra.mxu0 0.0
  %2334 = vmatprep.subr.mxu0 0.0
  %2335 = vmatpush1.msra.mxu0 0.0
  %2336 = vmatprep.subr.mxu0 0.0
  %2337 = vmatpush1.msra.mxu0 0.0
  %2338 = vmatprep.subr.mxu0 0.0
  %2339 = vmatpush1.msra.mxu0 0.0
  %2340 = vmatprep.subr.mxu0 0.0
  %2341 = vmatpush1.msra.mxu0 0.0
  %2342 = vmatprep.subr.mxu0 0.0
  %2343 = vmatpush1.msra.mxu0 0.0
  %2344 = vmatprep.subr.mxu0 0.0
  %2345 = vmatpush1.msra.mxu0 0.0
  %2346 = vmatprep.subr.mxu0 0.0
  %2347 = vmatpush1.msra.mxu0 0.0
  %2348 = vmatprep.subr.mxu0 0.0
  %2349 = vmatpush1.msra.mxu0 0.0
  %2350 = vmatprep.subr.mxu0 0.0
  %2351 = vmatpush1.msra.mxu0 0.0
  %2352 = vmatprep.subr.mxu0 0.0
  %2353 = vmatpush1.msra.mxu0 0.0
  %2354 = vmatprep.subr.mxu0 0.0
  %2355 = vmatpush1.msra.mxu0 0.0
  %2356 = vmatprep.subr.mxu0 0.0
  %v2357 = vand.u32 %v1908, 4294901760
  %2358 = vmatpush1.msra.mxu0 %v2357
  %2359 = vmatprep.subr.mxu0 0.0
  %2360 = vmatpush2.msra.mxu0 0.0
  %2361 = vmatprep.subr.mxu0 0.0
  %2362 = vmatpush2.msra.mxu0 0.0
  %2363 = vmatprep.subr.mxu0 0.0
  %2364 = vmatpush2.msra.mxu0 0.0
  %2365 = vmatprep.subr.mxu0 0.0
  %2366 = vmatpush2.msra.mxu0 0.0
  %2367 = vmatprep.subr.mxu0 0.0
  %2368 = vmatpush2.msra.mxu0 0.0
  %2369 = vmatprep.subr.mxu0 0.0
  %2370 = vmatpush2.msra.mxu0 0.0
  %2371 = vmatprep.subr.mxu0 0.0
  %2372 = vmatpush2.msra.mxu0 0.0
  %2373 = vmatprep.subr.mxu0 0.0
  %2374 = vmatpush2.msra.mxu0 0.0
  %2375 = vmatprep.subr.mxu0 0.0
  %2376 = vmatpush2.msra.mxu0 0.0
  %2377 = vmatprep.subr.mxu0 0.0
  %2378 = vmatpush2.msra.mxu0 0.0
  %2379 = vmatprep.subr.mxu0 0.0
  %2380 = vmatpush2.msra.mxu0 0.0
  %2381 = vmatprep.subr.mxu0 0.0
  %2382 = vmatpush2.msra.mxu0 0.0
  %2383 = vmatprep.subr.mxu0 0.0
  %2384 = vmatpush2.msra.mxu0 0.0
  %2385 = vmatprep.subr.mxu0 0.0
  %2386 = vmatpush2.msra.mxu0 0.0
  %2387 = vmatprep.subr.mxu0 0.0
  %2388 = vmatpush2.msra.mxu0 0.0
  %2389 = vmatprep.subr.mxu0 0.0
  %2390 = vmatpush2.msra.mxu0 0.0
  %2391 = vmatprep.mubr.f32.mxu0 0.0
  %v2392 = vand.u32 %v1910, 4294901760
  %2393 = vmatmul.mubr.f32.gmra.mxu0 %v2392
  %v2394 = vpop.f32.mrf.mxu0
  %v2395 = vadd.f32 %v2317, %v2394
  %v2396 = vpop.f32.mrf.mxu0
  %2397 = vmatprep.mubr.f32.mxu0 0.0
  %v2398 = vand.u32 %v1913, 4294901760
  %2399 = vmatmul.mubr.f32.gmra.mxu0 %v2398
  %v2400 = vpop.f32.mrf.mxu0
  %v2401 = vadd.f32 %v2323, %v2400
  %v2402 = vpop.f32.mrf.mxu0
  %2403 = vdwg.mxu0
  %2404 = vset.pattern.permute.xlu0 4
  %2405 = vperm.xlu0 %2404, %v1337
  %v2406 = vpop.permute.xlu0 %2405
  %2408 = vset.pattern.permute.xlu0 4
  %2409 = vperm.xlu0 %2408, %v1338
  %v2410 = vpop.permute.xlu0 %2409
  %v2412 = vmul.f32 %v2395, %v2406
  %v2413 = vmul.f32 %v2401, %v2410
  %2414 = vset.pattern.permute.xlu0 5
  %2415 = vperm.xlu0 %2414, %v1337
  %v2416 = vpop.permute.xlu0 %2415
  %2418 = vset.pattern.permute.xlu0 5
  %2419 = vperm.xlu0 %2418, %v1338
  %v2420 = vpop.permute.xlu0 %2419
  %v2422 = vadd.f32 %v2412, %v2416
  %v2423 = vadd.f32 %v2413, %v2420
  %vm2424 = vcmp.gt.f32.partialorder %v2422, 0.0
  %vm2425 = vcmp.gt.f32.partialorder %v2423, 0.0
  %v2426 = vmul.f32 %v2422, 1.442695
  %v2427 = vpow.pop %v2426
  %v2428 = vmul.f32 %v2423, 1.442695
  %v2429 = vpow.pop %v2428
  %v2430 = vsub.f32 %v2427, 1.0
  %v2431 = vsub.f32 %v2429, 1.0
  %v2432 = vmul.f32 %v2430, 1.6732632
  %v2433 = vmul.f32 %v2431, 1.6732632
  %v2434 = vsel %vm2424, %v2422, %v2432
  %v2435 = vsel %vm2425, %v2423, %v2433
  %v2436 = vmul.f32 %v2434, 1.050701
  %v2437 = vmul.f32 %v2435, 1.050701
  %2438 = vxpose.xlu0.b32.start [1/16] %v2436, 128
  %2439 = vxpose.xlu0.b32.cont [2/16] %v2437, 128
  %2440 = vxpose.xlu0.b32.cont [3/16] 0.0, 128
  %2441 = vxpose.xlu0.b32.cont [4/16] 0.0, 128
  %2442 = vxpose.xlu0.b32.cont [5/16] 0.0, 128
  %2443 = vxpose.xlu0.b32.cont [6/16] 0.0, 128
  %2444 = vxpose.xlu0.b32.cont [7/16] 0.0, 128
  %2445 = vxpose.xlu0.b32.cont [8/16] 0.0, 128
  %2446 = vxpose.xlu0.b32.cont [9/16] 0.0, 128
  %2447 = vxpose.xlu0.b32.cont [10/16] 0.0, 128
  %2448 = vxpose.xlu0.b32.cont [11/16] 0.0, 128
  %2449 = vxpose.xlu0.b32.cont [12/16] 0.0, 128
  %2450 = vxpose.xlu0.b32.cont [13/16] 0.0, 128
  %2451 = vxpose.xlu0.b32.cont [14/16] 0.0, 128
  %2452 = vxpose.xlu0.b32.cont [15/16] 0.0, 128
  %2453 = vxpose.xlu0.b32.end [16/16] 0.0, 128
  %v2454 = vpop.trf.xlu0
  %v2455 = vpop.trf.xlu0
  %v2456 = vpop.trf.xlu0
  %v2457 = vpop.trf.xlu0
  %v2458 = vpop.trf.xlu0
  %v2459 = vpop.trf.xlu0
  %v2460 = vpop.trf.xlu0
  %v2461 = vpop.trf.xlu0
  %v2462 = vpop.trf.xlu0
  %v2463 = vpop.trf.xlu0
  %v2464 = vpop.trf.xlu0
  %v2465 = vpop.trf.xlu0
  %v2466 = vpop.trf.xlu0
  %v2467 = vpop.trf.xlu0
  %v2468 = vpop.trf.xlu0
  %v2469 = vpop.trf.xlu0
  %s2470 = scalar_lea.vmem %s5, 16
  %v2471 = vld [vmem:[%s2470] sm:$0xff]
  %v2472 = vld [vmem:[%s2470 + $0x8] sm:$0xff]
  %v2474 = vsel %vm664, %v1321, 0
  %v2477 = vsel %vm664, %v1322, 0
  %2479 = vmatprep.subr.mxu0 0.0
  %2480 = vmatpush1.msra.mxu0 0.0
  %2481 = vmatprep.subr.mxu0 0.0
  %2482 = vmatpush1.msra.mxu0 0.0
  %2483 = vmatprep.subr.mxu0 0.0
  %2484 = vmatpush1.msra.mxu0 0.0
  %2485 = vmatprep.subr.mxu0 0.0
  %2486 = vmatpush1.msra.mxu0 0.0
  %2487 = vmatprep.subr.mxu0 0.0
  %2488 = vmatpush1.msra.mxu0 0.0
  %2489 = vmatprep.subr.mxu0 0.0
  %2490 = vmatpush1.msra.mxu0 0.0
  %2491 = vmatprep.subr.mxu0 0.0
  %2492 = vmatpush1.msra.mxu0 0.0
  %2493 = vmatprep.subr.mxu0 0.0
  %2494 = vmatpush1.msra.mxu0 0.0
  %2495 = vmatprep.subr.mxu0 0.0
  %2496 = vmatpush1.msra.mxu0 0.0
  %2497 = vmatprep.subr.mxu0 0.0
  %2498 = vmatpush1.msra.mxu0 0.0
  %2499 = vmatprep.subr.mxu0 0.0
  %2500 = vmatpush1.msra.mxu0 0.0
  %2501 = vmatprep.subr.mxu0 0.0
  %2502 = vmatpush1.msra.mxu0 0.0
  %2503 = vmatprep.subr.mxu0 0.0
  %2504 = vmatpush1.msra.mxu0 0.0
  %2505 = vmatprep.subr.mxu0 0.0
  %2506 = vmatpush1.msra.mxu0 0.0
  %2507 = vmatprep.subr.mxu0 0.0
  %v2508 = vand.u32 %v2472, 4294901760
  %2509 = vmatpush1.msra.mxu0 %v2508
  %2510 = vmatprep.subr.mxu0 0.0
  %v2511 = vand.u32 %v2471, 4294901760
  %2512 = vmatpush1.msra.mxu0 %v2511
  %2513 = vmatprep.subr.mxu0 0.0
  %2514 = vmatpush2.msra.mxu0 0.0
  %2515 = vmatprep.subr.mxu0 0.0
  %2516 = vmatpush2.msra.mxu0 0.0
  %2517 = vmatprep.subr.mxu0 0.0
  %2518 = vmatpush2.msra.mxu0 0.0
  %2519 = vmatprep.subr.mxu0 0.0
  %2520 = vmatpush2.msra.mxu0 0.0
  %2521 = vmatprep.subr.mxu0 0.0
  %2522 = vmatpush2.msra.mxu0 0.0
  %2523 = vmatprep.subr.mxu0 0.0
  %2524 = vmatpush2.msra.mxu0 0.0
  %2525 = vmatprep.subr.mxu0 0.0
  %2526 = vmatpush2.msra.mxu0 0.0
  %2527 = vmatprep.subr.mxu0 0.0
  %2528 = vmatpush2.msra.mxu0 0.0
  %2529 = vmatprep.subr.mxu0 0.0
  %2530 = vmatpush2.msra.mxu0 0.0
  %2531 = vmatprep.subr.mxu0 0.0
  %2532 = vmatpush2.msra.mxu0 0.0
  %2533 = vmatprep.subr.mxu0 0.0
  %2534 = vmatpush2.msra.mxu0 0.0
  %2535 = vmatprep.subr.mxu0 0.0
  %2536 = vmatpush2.msra.mxu0 0.0
  %2537 = vmatprep.subr.mxu0 0.0
  %2538 = vmatpush2.msra.mxu0 0.0
  %2539 = vmatprep.subr.mxu0 0.0
  %2540 = vmatpush2.msra.mxu0 0.0
  %2541 = vmatprep.subr.mxu0 0.0
  %2542 = vmatpush2.msra.mxu0 0.0
  %2543 = vmatprep.subr.mxu0 0.0
  %2544 = vmatpush2.msra.mxu0 0.0
  %2545 = vmatprep.mubr.f32.mxu0 0.0
  %v2546 = vand.u32 %v2474, 4294901760
  %v2547 = vsub.f32 %v2474, %v2546
  %v2548 = vand.u32 %v2547, 4294901760
  %v2549 = vsub.f32 %v2547, %v2548
  %v2550 = vand.u32 %v2549, 4294901760
  %2551 = vmatmul.mubr.f32.gmra.mxu0 %v2550
  %v2552 = vpop.f32.mrf.mxu0
  %v2553 = vadd.f32 0.0, %v2552
  %v2554 = vpop.f32.mrf.mxu0
  %2555 = vmatprep.mubr.f32.mxu0 0.0
  %v2556 = vand.u32 %v2477, 4294901760
  %v2557 = vsub.f32 %v2477, %v2556
  %v2558 = vand.u32 %v2557, 4294901760
  %v2559 = vsub.f32 %v2557, %v2558
  %v2560 = vand.u32 %v2559, 4294901760
  %2561 = vmatmul.mubr.f32.gmra.mxu0 %v2560
  %v2562 = vpop.f32.mrf.mxu0
  %v2563 = vadd.f32 0.0, %v2562
  %v2564 = vpop.f32.mrf.mxu0
  %2565 = vdwg.mxu0
  %2566 = vmatprep.subr.mxu0 0.0
  %2567 = vmatpush1.msra.mxu0 0.0
  %2568 = vmatprep.subr.mxu0 0.0
  %2569 = vmatpush1.msra.mxu0 0.0
  %2570 = vmatprep.subr.mxu0 0.0
  %2571 = vmatpush1.msra.mxu0 0.0
  %2572 = vmatprep.subr.mxu0 0.0
  %2573 = vmatpush1.msra.mxu0 0.0
  %2574 = vmatprep.subr.mxu0 0.0
  %2575 = vmatpush1.msra.mxu0 0.0
  %2576 = vmatprep.subr.mxu0 0.0
  %2577 = vmatpush1.msra.mxu0 0.0
  %2578 = vmatprep.subr.mxu0 0.0
  %2579 = vmatpush1.msra.mxu0 0.0
  %2580 = vmatprep.subr.mxu0 0.0
  %2581 = vmatpush1.msra.mxu0 0.0
  %2582 = vmatprep.subr.mxu0 0.0
  %2583 = vmatpush1.msra.mxu0 0.0
  %2584 = vmatprep.subr.mxu0 0.0
  %2585 = vmatpush1.msra.mxu0 0.0
  %2586 = vmatprep.subr.mxu0 0.0
  %2587 = vmatpush1.msra.mxu0 0.0
  %2588 = vmatprep.subr.mxu0 0.0
  %2589 = vmatpush1.msra.mxu0 0.0
  %2590 = vmatprep.subr.mxu0 0.0
  %2591 = vmatpush1.msra.mxu0 0.0
  %2592 = vmatprep.subr.mxu0 0.0
  %2593 = vmatpush1.msra.mxu0 0.0
  %2594 = vmatprep.subr.mxu0 0.0
  %v2595 = vand.u32 %v2472, 4294901760
  %v2596 = vsub.f32 %v2472, %v2595
  %v2597 = vand.u32 %v2596, 4294901760
  %v2598 = vsub.f32 %v2596, %v2597
  %v2599 = vand.u32 %v2598, 4294901760
  %2600 = vmatpush1.msra.mxu0 %v2599
  %2601 = vmatprep.subr.mxu0 0.0
  %v2602 = vand.u32 %v2471, 4294901760
  %v2603 = vsub.f32 %v2471, %v2602
  %v2604 = vand.u32 %v2603, 4294901760
  %v2605 = vsub.f32 %v2603, %v2604
  %v2606 = vand.u32 %v2605, 4294901760
  %2607 = vmatpush1.msra.mxu0 %v2606
  %2608 = vmatprep.subr.mxu0 0.0
  %2609 = vmatpush2.msra.mxu0 0.0
  %2610 = vmatprep.subr.mxu0 0.0
  %2611 = vmatpush2.msra.mxu0 0.0
  %2612 = vmatprep.subr.mxu0 0.0
  %2613 = vmatpush2.msra.mxu0 0.0
  %2614 = vmatprep.subr.mxu0 0.0
  %2615 = vmatpush2.msra.mxu0 0.0
  %2616 = vmatprep.subr.mxu0 0.0
  %2617 = vmatpush2.msra.mxu0 0.0
  %2618 = vmatprep.subr.mxu0 0.0
  %2619 = vmatpush2.msra.mxu0 0.0
  %2620 = vmatprep.subr.mxu0 0.0
  %2621 = vmatpush2.msra.mxu0 0.0
  %2622 = vmatprep.subr.mxu0 0.0
  %2623 = vmatpush2.msra.mxu0 0.0
  %2624 = vmatprep.subr.mxu0 0.0
  %2625 = vmatpush2.msra.mxu0 0.0
  %2626 = vmatprep.subr.mxu0 0.0
  %2627 = vmatpush2.msra.mxu0 0.0
  %2628 = vmatprep.subr.mxu0 0.0
  %2629 = vmatpush2.msra.mxu0 0.0
  %2630 = vmatprep.subr.mxu0 0.0
  %2631 = vmatpush2.msra.mxu0 0.0
  %2632 = vmatprep.subr.mxu0 0.0
  %2633 = vmatpush2.msra.mxu0 0.0
  %2634 = vmatprep.subr.mxu0 0.0
  %2635 = vmatpush2.msra.mxu0 0.0
  %2636 = vmatprep.subr.mxu0 0.0
  %2637 = vmatpush2.msra.mxu0 0.0
  %2638 = vmatprep.subr.mxu0 0.0
  %2639 = vmatpush2.msra.mxu0 0.0
  %2640 = vmatprep.mubr.f32.mxu0 0.0
  %v2641 = vand.u32 %v2474, 4294901760
  %2642 = vmatmul.mubr.f32.gmra.mxu0 %v2641
  %v2643 = vpop.f32.mrf.mxu0
  %v2644 = vadd.f32 %v2553, %v2643
  %v2645 = vpop.f32.mrf.mxu0
  %2646 = vmatprep.mubr.f32.mxu0 0.0
  %v2647 = vand.u32 %v2477, 4294901760
  %2648 = vmatmul.mubr.f32.gmra.mxu0 %v2647
  %v2649 = vpop.f32.mrf.mxu0
  %v2650 = vadd.f32 %v2563, %v2649
  %v2651 = vpop.f32.mrf.mxu0
  %2652 = vdwg.mxu0
  %2653 = vmatprep.subr.mxu0 0.0
  %2654 = vmatpush1.msra.mxu0 0.0
  %2655 = vmatprep.subr.mxu0 0.0
  %2656 = vmatpush1.msra.mxu0 0.0
  %2657 = vmatprep.subr.mxu0 0.0
  %2658 = vmatpush1.msra.mxu0 0.0
  %2659 = vmatprep.subr.mxu0 0.0
  %2660 = vmatpush1.msra.mxu0 0.0
  %2661 = vmatprep.subr.mxu0 0.0
  %2662 = vmatpush1.msra.mxu0 0.0
  %2663 = vmatprep.subr.mxu0 0.0
  %2664 = vmatpush1.msra.mxu0 0.0
  %2665 = vmatprep.subr.mxu0 0.0
  %2666 = vmatpush1.msra.mxu0 0.0
  %2667 = vmatprep.subr.mxu0 0.0
  %2668 = vmatpush1.msra.mxu0 0.0
  %2669 = vmatprep.subr.mxu0 0.0
  %2670 = vmatpush1.msra.mxu0 0.0
  %2671 = vmatprep.subr.mxu0 0.0
  %2672 = vmatpush1.msra.mxu0 0.0
  %2673 = vmatprep.subr.mxu0 0.0
  %2674 = vmatpush1.msra.mxu0 0.0
  %2675 = vmatprep.subr.mxu0 0.0
  %2676 = vmatpush1.msra.mxu0 0.0
  %2677 = vmatprep.subr.mxu0 0.0
  %2678 = vmatpush1.msra.mxu0 0.0
  %2679 = vmatprep.subr.mxu0 0.0
  %2680 = vmatpush1.msra.mxu0 0.0
  %2681 = vmatprep.subr.mxu0 0.0
  %v2682 = vand.u32 %v2472, 4294901760
  %v2683 = vsub.f32 %v2472, %v2682
  %2684 = vmatpush1.msra.mxu0 %v2683
  %2685 = vmatprep.subr.mxu0 0.0
  %v2686 = vand.u32 %v2471, 4294901760
  %v2687 = vsub.f32 %v2471, %v2686
  %2688 = vmatpush1.msra.mxu0 %v2687
  %2689 = vmatprep.subr.mxu0 0.0
  %2690 = vmatpush2.msra.mxu0 0.0
  %2691 = vmatprep.subr.mxu0 0.0
  %2692 = vmatpush2.msra.mxu0 0.0
  %2693 = vmatprep.subr.mxu0 0.0
  %2694 = vmatpush2.msra.mxu0 0.0
  %2695 = vmatprep.subr.mxu0 0.0
  %2696 = vmatpush2.msra.mxu0 0.0
  %2697 = vmatprep.subr.mxu0 0.0
  %2698 = vmatpush2.msra.mxu0 0.0
  %2699 = vmatprep.subr.mxu0 0.0
  %2700 = vmatpush2.msra.mxu0 0.0
  %2701 = vmatprep.subr.mxu0 0.0
  %2702 = vmatpush2.msra.mxu0 0.0
  %2703 = vmatprep.subr.mxu0 0.0
  %2704 = vmatpush2.msra.mxu0 0.0
  %2705 = vmatprep.subr.mxu0 0.0
  %2706 = vmatpush2.msra.mxu0 0.0
  %2707 = vmatprep.subr.mxu0 0.0
  %2708 = vmatpush2.msra.mxu0 0.0
  %2709 = vmatprep.subr.mxu0 0.0
  %2710 = vmatpush2.msra.mxu0 0.0
  %2711 = vmatprep.subr.mxu0 0.0
  %2712 = vmatpush2.msra.mxu0 0.0
  %2713 = vmatprep.subr.mxu0 0.0
  %2714 = vmatpush2.msra.mxu0 0.0
  %2715 = vmatprep.subr.mxu0 0.0
  %2716 = vmatpush2.msra.mxu0 0.0
  %2717 = vmatprep.subr.mxu0 0.0
  %2718 = vmatpush2.msra.mxu0 0.0
  %2719 = vmatprep.subr.mxu0 0.0
  %2720 = vmatpush2.msra.mxu0 0.0
  %2721 = vmatprep.mubr.f32.mxu0 0.0
  %v2722 = vand.u32 %v2474, 4294901760
  %v2723 = vsub.f32 %v2474, %v2722
  %2724 = vmatmul.mubr.f32.gmra.mxu0 %v2723
  %v2725 = vpop.f32.mrf.mxu0
  %v2726 = vadd.f32 %v2644, %v2725
  %v2727 = vpop.f32.mrf.mxu0
  %2728 = vmatprep.mubr.f32.mxu0 0.0
  %v2729 = vand.u32 %v2477, 4294901760
  %v2730 = vsub.f32 %v2477, %v2729
  %2731 = vmatmul.mubr.f32.gmra.mxu0 %v2730
  %v2732 = vpop.f32.mrf.mxu0
  %v2733 = vadd.f32 %v2650, %v2732
  %v2734 = vpop.f32.mrf.mxu0
  %2735 = vdwg.mxu0
  %2736 = vmatprep.subr.mxu0 0.0
  %2737 = vmatpush1.msra.mxu0 0.0
  %2738 = vmatprep.subr.mxu0 0.0
  %2739 = vmatpush1.msra.mxu0 0.0
  %2740 = vmatprep.subr.mxu0 0.0
  %2741 = vmatpush1.msra.mxu0 0.0
  %2742 = vmatprep.subr.mxu0 0.0
  %2743 = vmatpush1.msra.mxu0 0.0
  %2744 = vmatprep.subr.mxu0 0.0
  %2745 = vmatpush1.msra.mxu0 0.0
  %2746 = vmatprep.subr.mxu0 0.0
  %2747 = vmatpush1.msra.mxu0 0.0
  %2748 = vmatprep.subr.mxu0 0.0
  %2749 = vmatpush1.msra.mxu0 0.0
  %2750 = vmatprep.subr.mxu0 0.0
  %2751 = vmatpush1.msra.mxu0 0.0
  %2752 = vmatprep.subr.mxu0 0.0
  %2753 = vmatpush1.msra.mxu0 0.0
  %2754 = vmatprep.subr.mxu0 0.0
  %2755 = vmatpush1.msra.mxu0 0.0
  %2756 = vmatprep.subr.mxu0 0.0
  %2757 = vmatpush1.msra.mxu0 0.0
  %2758 = vmatprep.subr.mxu0 0.0
  %2759 = vmatpush1.msra.mxu0 0.0
  %2760 = vmatprep.subr.mxu0 0.0
  %2761 = vmatpush1.msra.mxu0 0.0
  %2762 = vmatprep.subr.mxu0 0.0
  %2763 = vmatpush1.msra.mxu0 0.0
  %2764 = vmatprep.subr.mxu0 0.0
  %v2765 = vand.u32 %v2472, 4294901760
  %2766 = vmatpush1.msra.mxu0 %v2765
  %2767 = vmatprep.subr.mxu0 0.0
  %v2768 = vand.u32 %v2471, 4294901760
  %2769 = vmatpush1.msra.mxu0 %v2768
  %2770 = vmatprep.subr.mxu0 0.0
  %2771 = vmatpush2.msra.mxu0 0.0
  %2772 = vmatprep.subr.mxu0 0.0
  %2773 = vmatpush2.msra.mxu0 0.0
  %2774 = vmatprep.subr.mxu0 0.0
  %2775 = vmatpush2.msra.mxu0 0.0
  %2776 = vmatprep.subr.mxu0 0.0
  %2777 = vmatpush2.msra.mxu0 0.0
  %2778 = vmatprep.subr.mxu0 0.0
  %2779 = vmatpush2.msra.mxu0 0.0
  %2780 = vmatprep.subr.mxu0 0.0
  %2781 = vmatpush2.msra.mxu0 0.0
  %2782 = vmatprep.subr.mxu0 0.0
  %2783 = vmatpush2.msra.mxu0 0.0
  %2784 = vmatprep.subr.mxu0 0.0
  %2785 = vmatpush2.msra.mxu0 0.0
  %2786 = vmatprep.subr.mxu0 0.0
  %2787 = vmatpush2.msra.mxu0 0.0
  %2788 = vmatprep.subr.mxu0 0.0
  %2789 = vmatpush2.msra.mxu0 0.0
  %2790 = vmatprep.subr.mxu0 0.0
  %2791 = vmatpush2.msra.mxu0 0.0
  %2792 = vmatprep.subr.mxu0 0.0
  %2793 = vmatpush2.msra.mxu0 0.0
  %2794 = vmatprep.subr.mxu0 0.0
  %2795 = vmatpush2.msra.mxu0 0.0
  %2796 = vmatprep.subr.mxu0 0.0
  %2797 = vmatpush2.msra.mxu0 0.0
  %2798 = vmatprep.subr.mxu0 0.0
  %2799 = vmatpush2.msra.mxu0 0.0
  %2800 = vmatprep.subr.mxu0 0.0
  %2801 = vmatpush2.msra.mxu0 0.0
  %2802 = vmatprep.mubr.f32.mxu0 0.0
  %v2803 = vand.u32 %v2474, 4294901760
  %v2804 = vsub.f32 %v2474, %v2803
  %v2805 = vand.u32 %v2804, 4294901760
  %2806 = vmatmul.mubr.f32.gmra.mxu0 %v2805
  %v2807 = vpop.f32.mrf.mxu0
  %v2808 = vadd.f32 %v2726, %v2807
  %v2809 = vpop.f32.mrf.mxu0
  %2810 = vmatprep.mubr.f32.mxu0 0.0
  %v2811 = vand.u32 %v2477, 4294901760
  %v2812 = vsub.f32 %v2477, %v2811
  %v2813 = vand.u32 %v2812, 4294901760
  %2814 = vmatmul.mubr.f32.gmra.mxu0 %v2813
  %v2815 = vpop.f32.mrf.mxu0
  %v2816 = vadd.f32 %v2733, %v2815
  %v2817 = vpop.f32.mrf.mxu0
  %2818 = vdwg.mxu0
  %2819 = vmatprep.subr.mxu0 0.0
  %2820 = vmatpush1.msra.mxu0 0.0
  %2821 = vmatprep.subr.mxu0 0.0
  %2822 = vmatpush1.msra.mxu0 0.0
  %2823 = vmatprep.subr.mxu0 0.0
  %2824 = vmatpush1.msra.mxu0 0.0
  %2825 = vmatprep.subr.mxu0 0.0
  %2826 = vmatpush1.msra.mxu0 0.0
  %2827 = vmatprep.subr.mxu0 0.0
  %2828 = vmatpush1.msra.mxu0 0.0
  %2829 = vmatprep.subr.mxu0 0.0
  %2830 = vmatpush1.msra.mxu0 0.0
  %2831 = vmatprep.subr.mxu0 0.0
  %2832 = vmatpush1.msra.mxu0 0.0
  %2833 = vmatprep.subr.mxu0 0.0
  %2834 = vmatpush1.msra.mxu0 0.0
  %2835 = vmatprep.subr.mxu0 0.0
  %2836 = vmatpush1.msra.mxu0 0.0
  %2837 = vmatprep.subr.mxu0 0.0
  %2838 = vmatpush1.msra.mxu0 0.0
  %2839 = vmatprep.subr.mxu0 0.0
  %2840 = vmatpush1.msra.mxu0 0.0
  %2841 = vmatprep.subr.mxu0 0.0
  %2842 = vmatpush1.msra.mxu0 0.0
  %2843 = vmatprep.subr.mxu0 0.0
  %2844 = vmatpush1.msra.mxu0 0.0
  %2845 = vmatprep.subr.mxu0 0.0
  %2846 = vmatpush1.msra.mxu0 0.0
  %2847 = vmatprep.subr.mxu0 0.0
  %v2848 = vand.u32 %v2472, 4294901760
  %v2849 = vsub.f32 %v2472, %v2848
  %v2850 = vand.u32 %v2849, 4294901760
  %2851 = vmatpush1.msra.mxu0 %v2850
  %2852 = vmatprep.subr.mxu0 0.0
  %v2853 = vand.u32 %v2471, 4294901760
  %v2854 = vsub.f32 %v2471, %v2853
  %v2855 = vand.u32 %v2854, 4294901760
  %2856 = vmatpush1.msra.mxu0 %v2855
  %2857 = vmatprep.subr.mxu0 0.0
  %2858 = vmatpush2.msra.mxu0 0.0
  %2859 = vmatprep.subr.mxu0 0.0
  %2860 = vmatpush2.msra.mxu0 0.0
  %2861 = vmatprep.subr.mxu0 0.0
  %2862 = vmatpush2.msra.mxu0 0.0
  %2863 = vmatprep.subr.mxu0 0.0
  %2864 = vmatpush2.msra.mxu0 0.0
  %2865 = vmatprep.subr.mxu0 0.0
  %2866 = vmatpush2.msra.mxu0 0.0
  %2867 = vmatprep.subr.mxu0 0.0
  %2868 = vmatpush2.msra.mxu0 0.0
  %2869 = vmatprep.subr.mxu0 0.0
  %2870 = vmatpush2.msra.mxu0 0.0
  %2871 = vmatprep.subr.mxu0 0.0
  %2872 = vmatpush2.msra.mxu0 0.0
  %2873 = vmatprep.subr.mxu0 0.0
  %2874 = vmatpush2.msra.mxu0 0.0
  %2875 = vmatprep.subr.mxu0 0.0
  %2876 = vmatpush2.msra.mxu0 0.0
  %2877 = vmatprep.subr.mxu0 0.0
  %2878 = vmatpush2.msra.mxu0 0.0
  %2879 = vmatprep.subr.mxu0 0.0
  %2880 = vmatpush2.msra.mxu0 0.0
  %2881 = vmatprep.subr.mxu0 0.0
  %2882 = vmatpush2.msra.mxu0 0.0
  %2883 = vmatprep.subr.mxu0 0.0
  %2884 = vmatpush2.msra.mxu0 0.0
  %2885 = vmatprep.subr.mxu0 0.0
  %2886 = vmatpush2.msra.mxu0 0.0
  %2887 = vmatprep.subr.mxu0 0.0
  %2888 = vmatpush2.msra.mxu0 0.0
  %2889 = vmatprep.mubr.f32.mxu0 0.0
  %v2890 = vand.u32 %v2474, 4294901760
  %2891 = vmatmul.mubr.f32.gmra.mxu0 %v2890
  %v2892 = vpop.f32.mrf.mxu0
  %v2893 = vadd.f32 %v2808, %v2892
  %v2894 = vpop.f32.mrf.mxu0
  %2895 = vmatprep.mubr.f32.mxu0 0.0
  %v2896 = vand.u32 %v2477, 4294901760
  %2897 = vmatmul.mubr.f32.gmra.mxu0 %v2896
  %v2898 = vpop.f32.mrf.mxu0
  %v2899 = vadd.f32 %v2816, %v2898
  %v2900 = vpop.f32.mrf.mxu0
  %2901 = vdwg.mxu0
  %2902 = vmatprep.subr.mxu0 0.0
  %2903 = vmatpush1.msra.mxu0 0.0
  %2904 = vmatprep.subr.mxu0 0.0
  %2905 = vmatpush1.msra.mxu0 0.0
  %2906 = vmatprep.subr.mxu0 0.0
  %2907 = vmatpush1.msra.mxu0 0.0
  %2908 = vmatprep.subr.mxu0 0.0
  %2909 = vmatpush1.msra.mxu0 0.0
  %2910 = vmatprep.subr.mxu0 0.0
  %2911 = vmatpush1.msra.mxu0 0.0
  %2912 = vmatprep.subr.mxu0 0.0
  %2913 = vmatpush1.msra.mxu0 0.0
  %2914 = vmatprep.subr.mxu0 0.0
  %2915 = vmatpush1.msra.mxu0 0.0
  %2916 = vmatprep.subr.mxu0 0.0
  %2917 = vmatpush1.msra.mxu0 0.0
  %2918 = vmatprep.subr.mxu0 0.0
  %2919 = vmatpush1.msra.mxu0 0.0
  %2920 = vmatprep.subr.mxu0 0.0
  %2921 = vmatpush1.msra.mxu0 0.0
  %2922 = vmatprep.subr.mxu0 0.0
  %2923 = vmatpush1.msra.mxu0 0.0
  %2924 = vmatprep.subr.mxu0 0.0
  %2925 = vmatpush1.msra.mxu0 0.0
  %2926 = vmatprep.subr.mxu0 0.0
  %2927 = vmatpush1.msra.mxu0 0.0
  %2928 = vmatprep.subr.mxu0 0.0
  %2929 = vmatpush1.msra.mxu0 0.0
  %2930 = vmatprep.subr.mxu0 0.0
  %v2931 = vand.u32 %v2472, 4294901760
  %2932 = vmatpush1.msra.mxu0 %v2931
  %2933 = vmatprep.subr.mxu0 0.0
  %v2934 = vand.u32 %v2471, 4294901760
  %2935 = vmatpush1.msra.mxu0 %v2934
  %2936 = vmatprep.subr.mxu0 0.0
  %2937 = vmatpush2.msra.mxu0 0.0
  %2938 = vmatprep.subr.mxu0 0.0
  %2939 = vmatpush2.msra.mxu0 0.0
  %2940 = vmatprep.subr.mxu0 0.0
  %2941 = vmatpush2.msra.mxu0 0.0
  %2942 = vmatprep.subr.mxu0 0.0
  %2943 = vmatpush2.msra.mxu0 0.0
  %2944 = vmatprep.subr.mxu0 0.0
  %2945 = vmatpush2.msra.mxu0 0.0
  %2946 = vmatprep.subr.mxu0 0.0
  %2947 = vmatpush2.msra.mxu0 0.0
  %2948 = vmatprep.subr.mxu0 0.0
  %2949 = vmatpush2.msra.mxu0 0.0
  %2950 = vmatprep.subr.mxu0 0.0
  %2951 = vmatpush2.msra.mxu0 0.0
  %2952 = vmatprep.subr.mxu0 0.0
  %2953 = vmatpush2.msra.mxu0 0.0
  %2954 = vmatprep.subr.mxu0 0.0
  %2955 = vmatpush2.msra.mxu0 0.0
  %2956 = vmatprep.subr.mxu0 0.0
  %2957 = vmatpush2.msra.mxu0 0.0
  %2958 = vmatprep.subr.mxu0 0.0
  %2959 = vmatpush2.msra.mxu0 0.0
  %2960 = vmatprep.subr.mxu0 0.0
  %2961 = vmatpush2.msra.mxu0 0.0
  %2962 = vmatprep.subr.mxu0 0.0
  %2963 = vmatpush2.msra.mxu0 0.0
  %2964 = vmatprep.subr.mxu0 0.0
  %2965 = vmatpush2.msra.mxu0 0.0
  %2966 = vmatprep.subr.mxu0 0.0
  %2967 = vmatpush2.msra.mxu0 0.0
  %2968 = vmatprep.mubr.f32.mxu0 0.0
  %v2969 = vand.u32 %v2474, 4294901760
  %2970 = vmatmul.mubr.f32.gmra.mxu0 %v2969
  %v2971 = vpop.f32.mrf.mxu0
  %v2972 = vadd.f32 %v2893, %v2971
  %v2973 = vpop.f32.mrf.mxu0
  %2974 = vmatprep.mubr.f32.mxu0 0.0
  %v2975 = vand.u32 %v2477, 4294901760
  %2976 = vmatmul.mubr.f32.gmra.mxu0 %v2975
  %v2977 = vpop.f32.mrf.mxu0
  %v2978 = vadd.f32 %v2899, %v2977
  %v2979 = vpop.f32.mrf.mxu0
  %2980 = vdwg.mxu0
  %2981 = vset.pattern.permute.xlu0 6
  %2982 = vperm.xlu0 %2981, %v1337
  %v2983 = vpop.permute.xlu0 %2982
  %2985 = vset.pattern.permute.xlu0 6
  %2986 = vperm.xlu0 %2985, %v1338
  %v2987 = vpop.permute.xlu0 %2986
  %v2989 = vmul.f32 %v2972, %v2983
  %v2990 = vmul.f32 %v2978, %v2987
  %2991 = vset.pattern.permute.xlu0 7
  %2992 = vperm.xlu0 %2991, %v1337
  %v2993 = vpop.permute.xlu0 %2992
  %2995 = vset.pattern.permute.xlu0 7
  %2996 = vperm.xlu0 %2995, %v1338
  %v2997 = vpop.permute.xlu0 %2996
  %v2999 = vadd.f32 %v2989, %v2993
  %v3000 = vadd.f32 %v2990, %v2997
  %v3001 = vmul.f32 %v2999, %v1877
  %v3002 = vmul.f32 %v3000, %v1877
  %v3003 = vtanh.pop %v3001
  %v3004 = vtanh.pop %v3002
  %v3005 = vlaneseq
  %v3006 = vshrl.u32 %v3005, 7
  %v3007 = vsub.s32 1, %v3006
  %v3008 = vrot.slane %v1339, %v3007
  %v3009 = vmul.f32 %v3003, %v3008
  %v3010 = vmul.f32 %v3004, %v3008
  %3011 = vset.pattern.permute.xlu0 8
  %3012 = vperm.xlu0 %3011, %v1337
  %v3013 = vpop.permute.xlu0 %3012
  %3015 = vset.pattern.permute.xlu0 8
  %3016 = vperm.xlu0 %3015, %v1338
  %v3017 = vpop.permute.xlu0 %3016
  %v3019 = vmul.f32 %v3009, %v3013
  %v3020 = vmul.f32 %v3010, %v3017
  %3021 = vset.pattern.permute.xlu0 9
  %3022 = vperm.xlu0 %3021, %v1337
  %v3023 = vpop.permute.xlu0 %3022
  %3025 = vset.pattern.permute.xlu0 9
  %3026 = vperm.xlu0 %3025, %v1338
  %v3027 = vpop.permute.xlu0 %3026
  %v3029 = vadd.f32 %v3019, %v3023
  %v3030 = vadd.f32 %v3020, %v3027
  %s3031 = scalar_lea.vmem %s6, 8
  %v3032 = vld [vmem:[%s3031] sm:$0xff]
  %v3034 = vsel %vm59, %v3029, 0
  %v3037 = vsel %vm59, %v3030, 0
  %3039 = vmatprep.subr.mxu0 0.0
  %3040 = vmatpush1.msra.mxu0 0.0
  %3041 = vmatprep.subr.mxu0 0.0
  %3042 = vmatpush1.msra.mxu0 0.0
  %3043 = vmatprep.subr.mxu0 0.0
  %3044 = vmatpush1.msra.mxu0 0.0
  %3045 = vmatprep.subr.mxu0 0.0
  %3046 = vmatpush1.msra.mxu0 0.0
  %3047 = vmatprep.subr.mxu0 0.0
  %3048 = vmatpush1.msra.mxu0 0.0
  %3049 = vmatprep.subr.mxu0 0.0
  %3050 = vmatpush1.msra.mxu0 0.0
  %3051 = vmatprep.subr.mxu0 0.0
  %3052 = vmatpush1.msra.mxu0 0.0
  %3053 = vmatprep.subr.mxu0 0.0
  %3054 = vmatpush1.msra.mxu0 0.0
  %3055 = vmatprep.subr.mxu0 0.0
  %3056 = vmatpush1.msra.mxu0 0.0
  %3057 = vmatprep.subr.mxu0 0.0
  %3058 = vmatpush1.msra.mxu0 0.0
  %3059 = vmatprep.subr.mxu0 0.0
  %3060 = vmatpush1.msra.mxu0 0.0
  %3061 = vmatprep.subr.mxu0 0.0
  %3062 = vmatpush1.msra.mxu0 0.0
  %3063 = vmatprep.subr.mxu0 0.0
  %3064 = vmatpush1.msra.mxu0 0.0
  %3065 = vmatprep.subr.mxu0 0.0
  %3066 = vmatpush1.msra.mxu0 0.0
  %3067 = vmatprep.subr.mxu0 0.0
  %3068 = vmatpush1.msra.mxu0 0.0
  %3069 = vmatprep.subr.mxu0 0.0
  %v3070 = vand.u32 %v3032, 4294901760
  %3071 = vmatpush1.msra.mxu0 %v3070
  %3072 = vmatprep.subr.mxu0 0.0
  %3073 = vmatpush2.msra.mxu0 0.0
  %3074 = vmatprep.subr.mxu0 0.0
  %3075 = vmatpush2.msra.mxu0 0.0
  %3076 = vmatprep.subr.mxu0 0.0
  %3077 = vmatpush2.msra.mxu0 0.0
  %3078 = vmatprep.subr.mxu0 0.0
  %3079 = vmatpush2.msra.mxu0 0.0
  %3080 = vmatprep.subr.mxu0 0.0
  %3081 = vmatpush2.msra.mxu0 0.0
  %3082 = vmatprep.subr.mxu0 0.0
  %3083 = vmatpush2.msra.mxu0 0.0
  %3084 = vmatprep.subr.mxu0 0.0
  %3085 = vmatpush2.msra.mxu0 0.0
  %3086 = vmatprep.subr.mxu0 0.0
  %3087 = vmatpush2.msra.mxu0 0.0
  %3088 = vmatprep.subr.mxu0 0.0
  %3089 = vmatpush2.msra.mxu0 0.0
  %3090 = vmatprep.subr.mxu0 0.0
  %3091 = vmatpush2.msra.mxu0 0.0
  %3092 = vmatprep.subr.mxu0 0.0
  %3093 = vmatpush2.msra.mxu0 0.0
  %3094 = vmatprep.subr.mxu0 0.0
  %3095 = vmatpush2.msra.mxu0 0.0
  %3096 = vmatprep.subr.mxu0 0.0
  %3097 = vmatpush2.msra.mxu0 0.0
  %3098 = vmatprep.subr.mxu0 0.0
  %3099 = vmatpush2.msra.mxu0 0.0
  %3100 = vmatprep.subr.mxu0 0.0
  %3101 = vmatpush2.msra.mxu0 0.0
  %3102 = vmatprep.subr.mxu0 0.0
  %3103 = vmatpush2.msra.mxu0 0.0
  %3104 = vmatprep.mubr.f32.mxu0 0.0
  %v3105 = vand.u32 %v3034, 4294901760
  %v3106 = vsub.f32 %v3034, %v3105
  %v3107 = vand.u32 %v3106, 4294901760
  %v3108 = vsub.f32 %v3106, %v3107
  %v3109 = vand.u32 %v3108, 4294901760
  %3110 = vmatmul.mubr.f32.gmra.mxu0 %v3109
  %v3111 = vpop.f32.mrf.mxu0
  %v3112 = vadd.f32 0.0, %v3111
  %v3113 = vpop.f32.mrf.mxu0
  %3114 = vmatprep.mubr.f32.mxu0 0.0
  %v3115 = vand.u32 %v3037, 4294901760
  %v3116 = vsub.f32 %v3037, %v3115
  %v3117 = vand.u32 %v3116, 4294901760
  %v3118 = vsub.f32 %v3116, %v3117
  %v3119 = vand.u32 %v3118, 4294901760
  %3120 = vmatmul.mubr.f32.gmra.mxu0 %v3119
  %v3121 = vpop.f32.mrf.mxu0
  %v3122 = vadd.f32 0.0, %v3121
  %v3123 = vpop.f32.mrf.mxu0
  %3124 = vdwg.mxu0
  %3125 = vmatprep.subr.mxu0 0.0
  %3126 = vmatpush1.msra.mxu0 0.0
  %3127 = vmatprep.subr.mxu0 0.0
  %3128 = vmatpush1.msra.mxu0 0.0
  %3129 = vmatprep.subr.mxu0 0.0
  %3130 = vmatpush1.msra.mxu0 0.0
  %3131 = vmatprep.subr.mxu0 0.0
  %3132 = vmatpush1.msra.mxu0 0.0
  %3133 = vmatprep.subr.mxu0 0.0
  %3134 = vmatpush1.msra.mxu0 0.0
  %3135 = vmatprep.subr.mxu0 0.0
  %3136 = vmatpush1.msra.mxu0 0.0
  %3137 = vmatprep.subr.mxu0 0.0
  %3138 = vmatpush1.msra.mxu0 0.0
  %3139 = vmatprep.subr.mxu0 0.0
  %3140 = vmatpush1.msra.mxu0 0.0
  %3141 = vmatprep.subr.mxu0 0.0
  %3142 = vmatpush1.msra.mxu0 0.0
  %3143 = vmatprep.subr.mxu0 0.0
  %3144 = vmatpush1.msra.mxu0 0.0
  %3145 = vmatprep.subr.mxu0 0.0
  %3146 = vmatpush1.msra.mxu0 0.0
  %3147 = vmatprep.subr.mxu0 0.0
  %3148 = vmatpush1.msra.mxu0 0.0
  %3149 = vmatprep.subr.mxu0 0.0
  %3150 = vmatpush1.msra.mxu0 0.0
  %3151 = vmatprep.subr.mxu0 0.0
  %3152 = vmatpush1.msra.mxu0 0.0
  %3153 = vmatprep.subr.mxu0 0.0
  %3154 = vmatpush1.msra.mxu0 0.0
  %3155 = vmatprep.subr.mxu0 0.0
  %v3156 = vand.u32 %v3032, 4294901760
  %v3157 = vsub.f32 %v3032, %v3156
  %v3158 = vand.u32 %v3157, 4294901760
  %v3159 = vsub.f32 %v3157, %v3158
  %v3160 = vand.u32 %v3159, 4294901760
  %3161 = vmatpush1.msra.mxu0 %v3160
  %3162 = vmatprep.subr.mxu0 0.0
  %3163 = vmatpush2.msra.mxu0 0.0
  %3164 = vmatprep.subr.mxu0 0.0
  %3165 = vmatpush2.msra.mxu0 0.0
  %3166 = vmatprep.subr.mxu0 0.0
  %3167 = vmatpush2.msra.mxu0 0.0
  %3168 = vmatprep.subr.mxu0 0.0
  %3169 = vmatpush2.msra.mxu0 0.0
  %3170 = vmatprep.subr.mxu0 0.0
  %3171 = vmatpush2.msra.mxu0 0.0
  %3172 = vmatprep.subr.mxu0 0.0
  %3173 = vmatpush2.msra.mxu0 0.0
  %3174 = vmatprep.subr.mxu0 0.0
  %3175 = vmatpush2.msra.mxu0 0.0
  %3176 = vmatprep.subr.mxu0 0.0
  %3177 = vmatpush2.msra.mxu0 0.0
  %3178 = vmatprep.subr.mxu0 0.0
  %3179 = vmatpush2.msra.mxu0 0.0
  %3180 = vmatprep.subr.mxu0 0.0
  %3181 = vmatpush2.msra.mxu0 0.0
  %3182 = vmatprep.subr.mxu0 0.0
  %3183 = vmatpush2.msra.mxu0 0.0
  %3184 = vmatprep.subr.mxu0 0.0
  %3185 = vmatpush2.msra.mxu0 0.0
  %3186 = vmatprep.subr.mxu0 0.0
  %3187 = vmatpush2.msra.mxu0 0.0
  %3188 = vmatprep.subr.mxu0 0.0
  %3189 = vmatpush2.msra.mxu0 0.0
  %3190 = vmatprep.subr.mxu0 0.0
  %3191 = vmatpush2.msra.mxu0 0.0
  %3192 = vmatprep.subr.mxu0 0.0
  %3193 = vmatpush2.msra.mxu0 0.0
  %3194 = vmatprep.mubr.f32.mxu0 0.0
  %v3195 = vand.u32 %v3034, 4294901760
  %3196 = vmatmul.mubr.f32.gmra.mxu0 %v3195
  %v3197 = vpop.f32.mrf.mxu0
  %v3198 = vadd.f32 %v3112, %v3197
  %v3199 = vpop.f32.mrf.mxu0
  %3200 = vmatprep.mubr.f32.mxu0 0.0
  %v3201 = vand.u32 %v3037, 4294901760
  %3202 = vmatmul.mubr.f32.gmra.mxu0 %v3201
  %v3203 = vpop.f32.mrf.mxu0
  %v3204 = vadd.f32 %v3122, %v3203
  %v3205 = vpop.f32.mrf.mxu0
  %3206 = vdwg.mxu0
  %3207 = vmatprep.subr.mxu0 0.0
  %3208 = vmatpush1.msra.mxu0 0.0
  %3209 = vmatprep.subr.mxu0 0.0
  %3210 = vmatpush1.msra.mxu0 0.0
  %3211 = vmatprep.subr.mxu0 0.0
  %3212 = vmatpush1.msra.mxu0 0.0
  %3213 = vmatprep.subr.mxu0 0.0
  %3214 = vmatpush1.msra.mxu0 0.0
  %3215 = vmatprep.subr.mxu0 0.0
  %3216 = vmatpush1.msra.mxu0 0.0
  %3217 = vmatprep.subr.mxu0 0.0
  %3218 = vmatpush1.msra.mxu0 0.0
  %3219 = vmatprep.subr.mxu0 0.0
  %3220 = vmatpush1.msra.mxu0 0.0
  %3221 = vmatprep.subr.mxu0 0.0
  %3222 = vmatpush1.msra.mxu0 0.0
  %3223 = vmatprep.subr.mxu0 0.0
  %3224 = vmatpush1.msra.mxu0 0.0
  %3225 = vmatprep.subr.mxu0 0.0
  %3226 = vmatpush1.msra.mxu0 0.0
  %3227 = vmatprep.subr.mxu0 0.0
  %3228 = vmatpush1.msra.mxu0 0.0
  %3229 = vmatprep.subr.mxu0 0.0
  %3230 = vmatpush1.msra.mxu0 0.0
  %3231 = vmatprep.subr.mxu0 0.0
  %3232 = vmatpush1.msra.mxu0 0.0
  %3233 = vmatprep.subr.mxu0 0.0
  %3234 = vmatpush1.msra.mxu0 0.0
  %3235 = vmatprep.subr.mxu0 0.0
  %3236 = vmatpush1.msra.mxu0 0.0
  %3237 = vmatprep.subr.mxu0 0.0
  %v3238 = vand.u32 %v3032, 4294901760
  %v3239 = vsub.f32 %v3032, %v3238
  %3240 = vmatpush1.msra.mxu0 %v3239
  %3241 = vmatprep.subr.mxu0 0.0
  %3242 = vmatpush2.msra.mxu0 0.0
  %3243 = vmatprep.subr.mxu0 0.0
  %3244 = vmatpush2.msra.mxu0 0.0
  %3245 = vmatprep.subr.mxu0 0.0
  %3246 = vmatpush2.msra.mxu0 0.0
  %3247 = vmatprep.subr.mxu0 0.0
  %3248 = vmatpush2.msra.mxu0 0.0
  %3249 = vmatprep.subr.mxu0 0.0
  %3250 = vmatpush2.msra.mxu0 0.0
  %3251 = vmatprep.subr.mxu0 0.0
  %3252 = vmatpush2.msra.mxu0 0.0
  %3253 = vmatprep.subr.mxu0 0.0
  %3254 = vmatpush2.msra.mxu0 0.0
  %3255 = vmatprep.subr.mxu0 0.0
  %3256 = vmatpush2.msra.mxu0 0.0
  %3257 = vmatprep.subr.mxu0 0.0
  %3258 = vmatpush2.msra.mxu0 0.0
  %3259 = vmatprep.subr.mxu0 0.0
  %3260 = vmatpush2.msra.mxu0 0.0
  %3261 = vmatprep.subr.mxu0 0.0
  %3262 = vmatpush2.msra.mxu0 0.0
  %3263 = vmatprep.subr.mxu0 0.0
  %3264 = vmatpush2.msra.mxu0 0.0
  %3265 = vmatprep.subr.mxu0 0.0
  %3266 = vmatpush2.msra.mxu0 0.0
  %3267 = vmatprep.subr.mxu0 0.0
  %3268 = vmatpush2.msra.mxu0 0.0
  %3269 = vmatprep.subr.mxu0 0.0
  %3270 = vmatpush2.msra.mxu0 0.0
  %3271 = vmatprep.subr.mxu0 0.0
  %3272 = vmatpush2.msra.mxu0 0.0
  %3273 = vmatprep.mubr.f32.mxu0 0.0
  %v3274 = vand.u32 %v3034, 4294901760
  %v3275 = vsub.f32 %v3034, %v3274
  %3276 = vmatmul.mubr.f32.gmra.mxu0 %v3275
  %v3277 = vpop.f32.mrf.mxu0
  %v3278 = vadd.f32 %v3198, %v3277
  %v3279 = vpop.f32.mrf.mxu0
  %3280 = vmatprep.mubr.f32.mxu0 0.0
  %v3281 = vand.u32 %v3037, 4294901760
  %v3282 = vsub.f32 %v3037, %v3281
  %3283 = vmatmul.mubr.f32.gmra.mxu0 %v3282
  %v3284 = vpop.f32.mrf.mxu0
  %v3285 = vadd.f32 %v3204, %v3284
  %v3286 = vpop.f32.mrf.mxu0
  %3287 = vdwg.mxu0
  %3288 = vmatprep.subr.mxu0 0.0
  %3289 = vmatpush1.msra.mxu0 0.0
  %3290 = vmatprep.subr.mxu0 0.0
  %3291 = vmatpush1.msra.mxu0 0.0
  %3292 = vmatprep.subr.mxu0 0.0
  %3293 = vmatpush1.msra.mxu0 0.0
  %3294 = vmatprep.subr.mxu0 0.0
  %3295 = vmatpush1.msra.mxu0 0.0
  %3296 = vmatprep.subr.mxu0 0.0
  %3297 = vmatpush1.msra.mxu0 0.0
  %3298 = vmatprep.subr.mxu0 0.0
  %3299 = vmatpush1.msra.mxu0 0.0
  %3300 = vmatprep.subr.mxu0 0.0
  %3301 = vmatpush1.msra.mxu0 0.0
  %3302 = vmatprep.subr.mxu0 0.0
  %3303 = vmatpush1.msra.mxu0 0.0
  %3304 = vmatprep.subr.mxu0 0.0
  %3305 = vmatpush1.msra.mxu0 0.0
  %3306 = vmatprep.subr.mxu0 0.0
  %3307 = vmatpush1.msra.mxu0 0.0
  %3308 = vmatprep.subr.mxu0 0.0
  %3309 = vmatpush1.msra.mxu0 0.0
  %3310 = vmatprep.subr.mxu0 0.0
  %3311 = vmatpush1.msra.mxu0 0.0
  %3312 = vmatprep.subr.mxu0 0.0
  %3313 = vmatpush1.msra.mxu0 0.0
  %3314 = vmatprep.subr.mxu0 0.0
  %3315 = vmatpush1.msra.mxu0 0.0
  %3316 = vmatprep.subr.mxu0 0.0
  %3317 = vmatpush1.msra.mxu0 0.0
  %3318 = vmatprep.subr.mxu0 0.0
  %v3319 = vand.u32 %v3032, 4294901760
  %3320 = vmatpush1.msra.mxu0 %v3319
  %3321 = vmatprep.subr.mxu0 0.0
  %3322 = vmatpush2.msra.mxu0 0.0
  %3323 = vmatprep.subr.mxu0 0.0
  %3324 = vmatpush2.msra.mxu0 0.0
  %3325 = vmatprep.subr.mxu0 0.0
  %3326 = vmatpush2.msra.mxu0 0.0
  %3327 = vmatprep.subr.mxu0 0.0
  %3328 = vmatpush2.msra.mxu0 0.0
  %3329 = vmatprep.subr.mxu0 0.0
  %3330 = vmatpush2.msra.mxu0 0.0
  %3331 = vmatprep.subr.mxu0 0.0
  %3332 = vmatpush2.msra.mxu0 0.0
  %3333 = vmatprep.subr.mxu0 0.0
  %3334 = vmatpush2.msra.mxu0 0.0
  %3335 = vmatprep.subr.mxu0 0.0
  %3336 = vmatpush2.msra.mxu0 0.0
  %3337 = vmatprep.subr.mxu0 0.0
  %3338 = vmatpush2.msra.mxu0 0.0
  %3339 = vmatprep.subr.mxu0 0.0
  %3340 = vmatpush2.msra.mxu0 0.0
  %3341 = vmatprep.subr.mxu0 0.0
  %3342 = vmatpush2.msra.mxu0 0.0
  %3343 = vmatprep.subr.mxu0 0.0
  %3344 = vmatpush2.msra.mxu0 0.0
  %3345 = vmatprep.subr.mxu0 0.0
  %3346 = vmatpush2.msra.mxu0 0.0
  %3347 = vmatprep.subr.mxu0 0.0
  %3348 = vmatpush2.msra.mxu0 0.0
  %3349 = vmatprep.subr.mxu0 0.0
  %3350 = vmatpush2.msra.mxu0 0.0
  %3351 = vmatprep.subr.mxu0 0.0
  %3352 = vmatpush2.msra.mxu0 0.0
  %3353 = vmatprep.mubr.f32.mxu0 0.0
  %v3354 = vand.u32 %v3034, 4294901760
  %v3355 = vsub.f32 %v3034, %v3354
  %v3356 = vand.u32 %v3355, 4294901760
  %3357 = vmatmul.mubr.f32.gmra.mxu0 %v3356
  %v3358 = vpop.f32.mrf.mxu0
  %v3359 = vadd.f32 %v3278, %v3358
  %v3360 = vpop.f32.mrf.mxu0
  %3361 = vmatprep.mubr.f32.mxu0 0.0
  %v3362 = vand.u32 %v3037, 4294901760
  %v3363 = vsub.f32 %v3037, %v3362
  %v3364 = vand.u32 %v3363, 4294901760
  %3365 = vmatmul.mubr.f32.gmra.mxu0 %v3364
  %v3366 = vpop.f32.mrf.mxu0
  %v3367 = vadd.f32 %v3285, %v3366
  %v3368 = vpop.f32.mrf.mxu0
  %3369 = vdwg.mxu0
  %3370 = vmatprep.subr.mxu0 0.0
  %3371 = vmatpush1.msra.mxu0 0.0
  %3372 = vmatprep.subr.mxu0 0.0
  %3373 = vmatpush1.msra.mxu0 0.0
  %3374 = vmatprep.subr.mxu0 0.0
  %3375 = vmatpush1.msra.mxu0 0.0
  %3376 = vmatprep.subr.mxu0 0.0
  %3377 = vmatpush1.msra.mxu0 0.0
  %3378 = vmatprep.subr.mxu0 0.0
  %3379 = vmatpush1.msra.mxu0 0.0
  %3380 = vmatprep.subr.mxu0 0.0
  %3381 = vmatpush1.msra.mxu0 0.0
  %3382 = vmatprep.subr.mxu0 0.0
  %3383 = vmatpush1.msra.mxu0 0.0
  %3384 = vmatprep.subr.mxu0 0.0
  %3385 = vmatpush1.msra.mxu0 0.0
  %3386 = vmatprep.subr.mxu0 0.0
  %3387 = vmatpush1.msra.mxu0 0.0
  %3388 = vmatprep.subr.mxu0 0.0
  %3389 = vmatpush1.msra.mxu0 0.0
  %3390 = vmatprep.subr.mxu0 0.0
  %3391 = vmatpush1.msra.mxu0 0.0
  %3392 = vmatprep.subr.mxu0 0.0
  %3393 = vmatpush1.msra.mxu0 0.0
  %3394 = vmatprep.subr.mxu0 0.0
  %3395 = vmatpush1.msra.mxu0 0.0
  %3396 = vmatprep.subr.mxu0 0.0
  %3397 = vmatpush1.msra.mxu0 0.0
  %3398 = vmatprep.subr.mxu0 0.0
  %3399 = vmatpush1.msra.mxu0 0.0
  %3400 = vmatprep.subr.mxu0 0.0
  %v3401 = vand.u32 %v3032, 4294901760
  %v3402 = vsub.f32 %v3032, %v3401
  %v3403 = vand.u32 %v3402, 4294901760
  %3404 = vmatpush1.msra.mxu0 %v3403
  %3405 = vmatprep.subr.mxu0 0.0
  %3406 = vmatpush2.msra.mxu0 0.0
  %3407 = vmatprep.subr.mxu0 0.0
  %3408 = vmatpush2.msra.mxu0 0.0
  %3409 = vmatprep.subr.mxu0 0.0
  %3410 = vmatpush2.msra.mxu0 0.0
  %3411 = vmatprep.subr.mxu0 0.0
  %3412 = vmatpush2.msra.mxu0 0.0
  %3413 = vmatprep.subr.mxu0 0.0
  %3414 = vmatpush2.msra.mxu0 0.0
  %3415 = vmatprep.subr.mxu0 0.0
  %3416 = vmatpush2.msra.mxu0 0.0
  %3417 = vmatprep.subr.mxu0 0.0
  %3418 = vmatpush2.msra.mxu0 0.0
  %3419 = vmatprep.subr.mxu0 0.0
  %3420 = vmatpush2.msra.mxu0 0.0
  %3421 = vmatprep.subr.mxu0 0.0
  %3422 = vmatpush2.msra.mxu0 0.0
  %3423 = vmatprep.subr.mxu0 0.0
  %3424 = vmatpush2.msra.mxu0 0.0
  %3425 = vmatprep.subr.mxu0 0.0
  %3426 = vmatpush2.msra.mxu0 0.0
  %3427 = vmatprep.subr.mxu0 0.0
  %3428 = vmatpush2.msra.mxu0 0.0
  %3429 = vmatprep.subr.mxu0 0.0
  %3430 = vmatpush2.msra.mxu0 0.0
  %3431 = vmatprep.subr.mxu0 0.0
  %3432 = vmatpush2.msra.mxu0 0.0
  %3433 = vmatprep.subr.mxu0 0.0
  %3434 = vmatpush2.msra.mxu0 0.0
  %3435 = vmatprep.subr.mxu0 0.0
  %3436 = vmatpush2.msra.mxu0 0.0
  %3437 = vmatprep.mubr.f32.mxu0 0.0
  %v3438 = vand.u32 %v3034, 4294901760
  %3439 = vmatmul.mubr.f32.gmra.mxu0 %v3438
  %v3440 = vpop.f32.mrf.mxu0
  %v3441 = vadd.f32 %v3359, %v3440
  %v3442 = vpop.f32.mrf.mxu0
  %3443 = vmatprep.mubr.f32.mxu0 0.0
  %v3444 = vand.u32 %v3037, 4294901760
  %3445 = vmatmul.mubr.f32.gmra.mxu0 %v3444
  %v3446 = vpop.f32.mrf.mxu0
  %v3447 = vadd.f32 %v3367, %v3446
  %v3448 = vpop.f32.mrf.mxu0
  %3449 = vdwg.mxu0
  %3450 = vmatprep.subr.mxu0 0.0
  %3451 = vmatpush1.msra.mxu0 0.0
  %3452 = vmatprep.subr.mxu0 0.0
  %3453 = vmatpush1.msra.mxu0 0.0
  %3454 = vmatprep.subr.mxu0 0.0
  %3455 = vmatpush1.msra.mxu0 0.0
  %3456 = vmatprep.subr.mxu0 0.0
  %3457 = vmatpush1.msra.mxu0 0.0
  %3458 = vmatprep.subr.mxu0 0.0
  %3459 = vmatpush1.msra.mxu0 0.0
  %3460 = vmatprep.subr.mxu0 0.0
  %3461 = vmatpush1.msra.mxu0 0.0
  %3462 = vmatprep.subr.mxu0 0.0
  %3463 = vmatpush1.msra.mxu0 0.0
  %3464 = vmatprep.subr.mxu0 0.0
  %3465 = vmatpush1.msra.mxu0 0.0
  %3466 = vmatprep.subr.mxu0 0.0
  %3467 = vmatpush1.msra.mxu0 0.0
  %3468 = vmatprep.subr.mxu0 0.0
  %3469 = vmatpush1.msra.mxu0 0.0
  %3470 = vmatprep.subr.mxu0 0.0
  %3471 = vmatpush1.msra.mxu0 0.0
  %3472 = vmatprep.subr.mxu0 0.0
  %3473 = vmatpush1.msra.mxu0 0.0
  %3474 = vmatprep.subr.mxu0 0.0
  %3475 = vmatpush1.msra.mxu0 0.0
  %3476 = vmatprep.subr.mxu0 0.0
  %3477 = vmatpush1.msra.mxu0 0.0
  %3478 = vmatprep.subr.mxu0 0.0
  %3479 = vmatpush1.msra.mxu0 0.0
  %3480 = vmatprep.subr.mxu0 0.0
  %v3481 = vand.u32 %v3032, 4294901760
  %3482 = vmatpush1.msra.mxu0 %v3481
  %3483 = vmatprep.subr.mxu0 0.0
  %3484 = vmatpush2.msra.mxu0 0.0
  %3485 = vmatprep.subr.mxu0 0.0
  %3486 = vmatpush2.msra.mxu0 0.0
  %3487 = vmatprep.subr.mxu0 0.0
  %3488 = vmatpush2.msra.mxu0 0.0
  %3489 = vmatprep.subr.mxu0 0.0
  %3490 = vmatpush2.msra.mxu0 0.0
  %3491 = vmatprep.subr.mxu0 0.0
  %3492 = vmatpush2.msra.mxu0 0.0
  %3493 = vmatprep.subr.mxu0 0.0
  %3494 = vmatpush2.msra.mxu0 0.0
  %3495 = vmatprep.subr.mxu0 0.0
  %3496 = vmatpush2.msra.mxu0 0.0
  %3497 = vmatprep.subr.mxu0 0.0
  %3498 = vmatpush2.msra.mxu0 0.0
  %3499 = vmatprep.subr.mxu0 0.0
  %3500 = vmatpush2.msra.mxu0 0.0
  %3501 = vmatprep.subr.mxu0 0.0
  %3502 = vmatpush2.msra.mxu0 0.0
  %3503 = vmatprep.subr.mxu0 0.0
  %3504 = vmatpush2.msra.mxu0 0.0
  %3505 = vmatprep.subr.mxu0 0.0
  %3506 = vmatpush2.msra.mxu0 0.0
  %3507 = vmatprep.subr.mxu0 0.0
  %3508 = vmatpush2.msra.mxu0 0.0
  %3509 = vmatprep.subr.mxu0 0.0
  %3510 = vmatpush2.msra.mxu0 0.0
  %3511 = vmatprep.subr.mxu0 0.0
  %3512 = vmatpush2.msra.mxu0 0.0
  %3513 = vmatprep.subr.mxu0 0.0
  %3514 = vmatpush2.msra.mxu0 0.0
  %3515 = vmatprep.mubr.f32.mxu0 0.0
  %v3516 = vand.u32 %v3034, 4294901760
  %3517 = vmatmul.mubr.f32.gmra.mxu0 %v3516
  %v3518 = vpop.f32.mrf.mxu0
  %v3519 = vadd.f32 %v3441, %v3518
  %v3520 = vpop.f32.mrf.mxu0
  %3521 = vmatprep.mubr.f32.mxu0 0.0
  %v3522 = vand.u32 %v3037, 4294901760
  %3523 = vmatmul.mubr.f32.gmra.mxu0 %v3522
  %v3524 = vpop.f32.mrf.mxu0
  %v3525 = vadd.f32 %v3447, %v3524
  %v3526 = vpop.f32.mrf.mxu0
  %3527 = vdwg.mxu0
  %3528 = vset.pattern.permute.xlu0 10
  %3529 = vperm.xlu0 %3528, %v1337
  %v3530 = vpop.permute.xlu0 %3529
  %3532 = vset.pattern.permute.xlu0 10
  %3533 = vperm.xlu0 %3532, %v1338
  %v3534 = vpop.permute.xlu0 %3533
  %v3536 = vmul.f32 %v3519, %v3530
  %v3537 = vmul.f32 %v3525, %v3534
  %3538 = vset.pattern.permute.xlu0 11
  %3539 = vperm.xlu0 %3538, %v1337
  %v3540 = vpop.permute.xlu0 %3539
  %3542 = vset.pattern.permute.xlu0 11
  %3543 = vperm.xlu0 %3542, %v1338
  %v3544 = vpop.permute.xlu0 %3543
  %v3546 = vadd.f32 %v3536, %v3540
  %v3547 = vadd.f32 %v3537, %v3544
  %vm3548 = vcmp.gt.f32.partialorder %v3546, 0.0
  %vm3549 = vcmp.gt.f32.partialorder %v3547, 0.0
  %v3550 = vmul.f32 %v3546, 1.442695
  %v3551 = vpow.pop %v3550
  %v3552 = vmul.f32 %v3547, 1.442695
  %v3553 = vpow.pop %v3552
  %v3554 = vsub.f32 %v3551, 1.0
  %v3555 = vsub.f32 %v3553, 1.0
  %v3556 = vmul.f32 %v3554, 1.6732632
  %v3557 = vmul.f32 %v3555, 1.6732632
  %v3558 = vsel %vm3548, %v3546, %v3556
  %v3559 = vsel %vm3549, %v3547, %v3557
  %v3560 = vmul.f32 %v3558, 1.050701
  %v3561 = vmul.f32 %v3559, 1.050701
  %3562 = vxpose.xlu0.b32.start [1/16] %v3560, 128
  %3563 = vxpose.xlu0.b32.cont [2/16] %v3561, 128
  %3564 = vxpose.xlu0.b32.cont [3/16] 0.0, 128
  %3565 = vxpose.xlu0.b32.cont [4/16] 0.0, 128
  %3566 = vxpose.xlu0.b32.cont [5/16] 0.0, 128
  %3567 = vxpose.xlu0.b32.cont [6/16] 0.0, 128
  %3568 = vxpose.xlu0.b32.cont [7/16] 0.0, 128
  %3569 = vxpose.xlu0.b32.cont [8/16] 0.0, 128
  %3570 = vxpose.xlu0.b32.cont [9/16] 0.0, 128
  %3571 = vxpose.xlu0.b32.cont [10/16] 0.0, 128
  %3572 = vxpose.xlu0.b32.cont [11/16] 0.0, 128
  %3573 = vxpose.xlu0.b32.cont [12/16] 0.0, 128
  %3574 = vxpose.xlu0.b32.cont [13/16] 0.0, 128
  %3575 = vxpose.xlu0.b32.cont [14/16] 0.0, 128
  %3576 = vxpose.xlu0.b32.cont [15/16] 0.0, 128
  %3577 = vxpose.xlu0.b32.end [16/16] 0.0, 128
  %v3578 = vpop.trf.xlu0
  %v3579 = vpop.trf.xlu0
  %v3580 = vpop.trf.xlu0
  %v3581 = vpop.trf.xlu0
  %v3582 = vpop.trf.xlu0
  %v3583 = vpop.trf.xlu0
  %v3584 = vpop.trf.xlu0
  %v3585 = vpop.trf.xlu0
  %v3586 = vpop.trf.xlu0
  %v3587 = vpop.trf.xlu0
  %v3588 = vpop.trf.xlu0
  %v3589 = vpop.trf.xlu0
  %v3590 = vpop.trf.xlu0
  %v3591 = vpop.trf.xlu0
  %v3592 = vpop.trf.xlu0
  %v3593 = vpop.trf.xlu0
  %v3595 = vsel %vm664, %v3578, 0
  %v3598 = vsel %vm664, %v3579, 0
  %3600 = vmatprep.subr.mxu0 0.0
  %3601 = vmatpush1.msra.mxu0 0.0
  %3602 = vmatprep.subr.mxu0 0.0
  %3603 = vmatpush1.msra.mxu0 0.0
  %3604 = vmatprep.subr.mxu0 0.0
  %3605 = vmatpush1.msra.mxu0 0.0
  %3606 = vmatprep.subr.mxu0 0.0
  %3607 = vmatpush1.msra.mxu0 0.0
  %3608 = vmatprep.subr.mxu0 0.0
  %3609 = vmatpush1.msra.mxu0 0.0
  %3610 = vmatprep.subr.mxu0 0.0
  %3611 = vmatpush1.msra.mxu0 0.0
  %3612 = vmatprep.subr.mxu0 0.0
  %3613 = vmatpush1.msra.mxu0 0.0
  %3614 = vmatprep.subr.mxu0 0.0
  %3615 = vmatpush1.msra.mxu0 0.0
  %3616 = vmatprep.subr.mxu0 0.0
  %3617 = vmatpush1.msra.mxu0 0.0
  %3618 = vmatprep.subr.mxu0 0.0
  %3619 = vmatpush1.msra.mxu0 0.0
  %3620 = vmatprep.subr.mxu0 0.0
  %3621 = vmatpush1.msra.mxu0 0.0
  %3622 = vmatprep.subr.mxu0 0.0
  %3623 = vmatpush1.msra.mxu0 0.0
  %3624 = vmatprep.subr.mxu0 0.0
  %3625 = vmatpush1.msra.mxu0 0.0
  %3626 = vmatprep.subr.mxu0 0.0
  %3627 = vmatpush1.msra.mxu0 0.0
  %3628 = vmatprep.subr.mxu0 0.0
  %v3629 = vand.u32 %v1343, 4294901760
  %3630 = vmatpush1.msra.mxu0 %v3629
  %3631 = vmatprep.subr.mxu0 0.0
  %v3632 = vand.u32 %v1342, 4294901760
  %3633 = vmatpush1.msra.mxu0 %v3632
  %3634 = vmatprep.subr.mxu0 0.0
  %3635 = vmatpush2.msra.mxu0 0.0
  %3636 = vmatprep.subr.mxu0 0.0
  %3637 = vmatpush2.msra.mxu0 0.0
  %3638 = vmatprep.subr.mxu0 0.0
  %3639 = vmatpush2.msra.mxu0 0.0
  %3640 = vmatprep.subr.mxu0 0.0
  %3641 = vmatpush2.msra.mxu0 0.0
  %3642 = vmatprep.subr.mxu0 0.0
  %3643 = vmatpush2.msra.mxu0 0.0
  %3644 = vmatprep.subr.mxu0 0.0
  %3645 = vmatpush2.msra.mxu0 0.0
  %3646 = vmatprep.subr.mxu0 0.0
  %3647 = vmatpush2.msra.mxu0 0.0
  %3648 = vmatprep.subr.mxu0 0.0
  %3649 = vmatpush2.msra.mxu0 0.0
  %3650 = vmatprep.subr.mxu0 0.0
  %3651 = vmatpush2.msra.mxu0 0.0
  %3652 = vmatprep.subr.mxu0 0.0
  %3653 = vmatpush2.msra.mxu0 0.0
  %3654 = vmatprep.subr.mxu0 0.0
  %3655 = vmatpush2.msra.mxu0 0.0
  %3656 = vmatprep.subr.mxu0 0.0
  %3657 = vmatpush2.msra.mxu0 0.0
  %3658 = vmatprep.subr.mxu0 0.0
  %3659 = vmatpush2.msra.mxu0 0.0
  %3660 = vmatprep.subr.mxu0 0.0
  %3661 = vmatpush2.msra.mxu0 0.0
  %3662 = vmatprep.subr.mxu0 0.0
  %3663 = vmatpush2.msra.mxu0 0.0
  %3664 = vmatprep.subr.mxu0 0.0
  %3665 = vmatpush2.msra.mxu0 0.0
  %3666 = vmatprep.mubr.f32.mxu0 0.0
  %v3667 = vand.u32 %v3595, 4294901760
  %v3668 = vsub.f32 %v3595, %v3667
  %v3669 = vand.u32 %v3668, 4294901760
  %v3670 = vsub.f32 %v3668, %v3669
  %v3671 = vand.u32 %v3670, 4294901760
  %3672 = vmatmul.mubr.f32.gmra.mxu0 %v3671
  %v3673 = vpop.f32.mrf.mxu0
  %v3674 = vadd.f32 0.0, %v3673
  %v3675 = vpop.f32.mrf.mxu0
  %3676 = vmatprep.mubr.f32.mxu0 0.0
  %v3677 = vand.u32 %v3598, 4294901760
  %v3678 = vsub.f32 %v3598, %v3677
  %v3679 = vand.u32 %v3678, 4294901760
  %v3680 = vsub.f32 %v3678, %v3679
  %v3681 = vand.u32 %v3680, 4294901760
  %3682 = vmatmul.mubr.f32.gmra.mxu0 %v3681
  %v3683 = vpop.f32.mrf.mxu0
  %v3684 = vadd.f32 0.0, %v3683
  %v3685 = vpop.f32.mrf.mxu0
  %3686 = vdwg.mxu0
  %3687 = vmatprep.subr.mxu0 0.0
  %3688 = vmatpush1.msra.mxu0 0.0
  %3689 = vmatprep.subr.mxu0 0.0
  %3690 = vmatpush1.msra.mxu0 0.0
  %3691 = vmatprep.subr.mxu0 0.0
  %3692 = vmatpush1.msra.mxu0 0.0
  %3693 = vmatprep.subr.mxu0 0.0
  %3694 = vmatpush1.msra.mxu0 0.0
  %3695 = vmatprep.subr.mxu0 0.0
  %3696 = vmatpush1.msra.mxu0 0.0
  %3697 = vmatprep.subr.mxu0 0.0
  %3698 = vmatpush1.msra.mxu0 0.0
  %3699 = vmatprep.subr.mxu0 0.0
  %3700 = vmatpush1.msra.mxu0 0.0
  %3701 = vmatprep.subr.mxu0 0.0
  %3702 = vmatpush1.msra.mxu0 0.0
  %3703 = vmatprep.subr.mxu0 0.0
  %3704 = vmatpush1.msra.mxu0 0.0
  %3705 = vmatprep.subr.mxu0 0.0
  %3706 = vmatpush1.msra.mxu0 0.0
  %3707 = vmatprep.subr.mxu0 0.0
  %3708 = vmatpush1.msra.mxu0 0.0
  %3709 = vmatprep.subr.mxu0 0.0
  %3710 = vmatpush1.msra.mxu0 0.0
  %3711 = vmatprep.subr.mxu0 0.0
  %3712 = vmatpush1.msra.mxu0 0.0
  %3713 = vmatprep.subr.mxu0 0.0
  %3714 = vmatpush1.msra.mxu0 0.0
  %3715 = vmatprep.subr.mxu0 0.0
  %v3716 = vand.u32 %v1343, 4294901760
  %v3717 = vsub.f32 %v1343, %v3716
  %v3718 = vand.u32 %v3717, 4294901760
  %v3719 = vsub.f32 %v3717, %v3718
  %v3720 = vand.u32 %v3719, 4294901760
  %3721 = vmatpush1.msra.mxu0 %v3720
  %3722 = vmatprep.subr.mxu0 0.0
  %v3723 = vand.u32 %v1342, 4294901760
  %v3724 = vsub.f32 %v1342, %v3723
  %v3725 = vand.u32 %v3724, 4294901760
  %v3726 = vsub.f32 %v3724, %v3725
  %v3727 = vand.u32 %v3726, 4294901760
  %3728 = vmatpush1.msra.mxu0 %v3727
  %3729 = vmatprep.subr.mxu0 0.0
  %3730 = vmatpush2.msra.mxu0 0.0
  %3731 = vmatprep.subr.mxu0 0.0
  %3732 = vmatpush2.msra.mxu0 0.0
  %3733 = vmatprep.subr.mxu0 0.0
  %3734 = vmatpush2.msra.mxu0 0.0
  %3735 = vmatprep.subr.mxu0 0.0
  %3736 = vmatpush2.msra.mxu0 0.0
  %3737 = vmatprep.subr.mxu0 0.0
  %3738 = vmatpush2.msra.mxu0 0.0
  %3739 = vmatprep.subr.mxu0 0.0
  %3740 = vmatpush2.msra.mxu0 0.0
  %3741 = vmatprep.subr.mxu0 0.0
  %3742 = vmatpush2.msra.mxu0 0.0
  %3743 = vmatprep.subr.mxu0 0.0
  %3744 = vmatpush2.msra.mxu0 0.0
  %3745 = vmatprep.subr.mxu0 0.0
  %3746 = vmatpush2.msra.mxu0 0.0
  %3747 = vmatprep.subr.mxu0 0.0
  %3748 = vmatpush2.msra.mxu0 0.0
  %3749 = vmatprep.subr.mxu0 0.0
  %3750 = vmatpush2.msra.mxu0 0.0
  %3751 = vmatprep.subr.mxu0 0.0
  %3752 = vmatpush2.msra.mxu0 0.0
  %3753 = vmatprep.subr.mxu0 0.0
  %3754 = vmatpush2.msra.mxu0 0.0
  %3755 = vmatprep.subr.mxu0 0.0
  %3756 = vmatpush2.msra.mxu0 0.0
  %3757 = vmatprep.subr.mxu0 0.0
  %3758 = vmatpush2.msra.mxu0 0.0
  %3759 = vmatprep.subr.mxu0 0.0
  %3760 = vmatpush2.msra.mxu0 0.0
  %3761 = vmatprep.mubr.f32.mxu0 0.0
  %v3762 = vand.u32 %v3595, 4294901760
  %3763 = vmatmul.mubr.f32.gmra.mxu0 %v3762
  %v3764 = vpop.f32.mrf.mxu0
  %v3765 = vadd.f32 %v3674, %v3764
  %v3766 = vpop.f32.mrf.mxu0
  %3767 = vmatprep.mubr.f32.mxu0 0.0
  %v3768 = vand.u32 %v3598, 4294901760
  %3769 = vmatmul.mubr.f32.gmra.mxu0 %v3768
  %v3770 = vpop.f32.mrf.mxu0
  %v3771 = vadd.f32 %v3684, %v3770
  %v3772 = vpop.f32.mrf.mxu0
  %3773 = vdwg.mxu0
  %3774 = vmatprep.subr.mxu0 0.0
  %3775 = vmatpush1.msra.mxu0 0.0
  %3776 = vmatprep.subr.mxu0 0.0
  %3777 = vmatpush1.msra.mxu0 0.0
  %3778 = vmatprep.subr.mxu0 0.0
  %3779 = vmatpush1.msra.mxu0 0.0
  %3780 = vmatprep.subr.mxu0 0.0
  %3781 = vmatpush1.msra.mxu0 0.0
  %3782 = vmatprep.subr.mxu0 0.0
  %3783 = vmatpush1.msra.mxu0 0.0
  %3784 = vmatprep.subr.mxu0 0.0
  %3785 = vmatpush1.msra.mxu0 0.0
  %3786 = vmatprep.subr.mxu0 0.0
  %3787 = vmatpush1.msra.mxu0 0.0
  %3788 = vmatprep.subr.mxu0 0.0
  %3789 = vmatpush1.msra.mxu0 0.0
  %3790 = vmatprep.subr.mxu0 0.0
  %3791 = vmatpush1.msra.mxu0 0.0
  %3792 = vmatprep.subr.mxu0 0.0
  %3793 = vmatpush1.msra.mxu0 0.0
  %3794 = vmatprep.subr.mxu0 0.0
  %3795 = vmatpush1.msra.mxu0 0.0
  %3796 = vmatprep.subr.mxu0 0.0
  %3797 = vmatpush1.msra.mxu0 0.0
  %3798 = vmatprep.subr.mxu0 0.0
  %3799 = vmatpush1.msra.mxu0 0.0
  %3800 = vmatprep.subr.mxu0 0.0
  %3801 = vmatpush1.msra.mxu0 0.0
  %3802 = vmatprep.subr.mxu0 0.0
  %v3803 = vand.u32 %v1343, 4294901760
  %v3804 = vsub.f32 %v1343, %v3803
  %3805 = vmatpush1.msra.mxu0 %v3804
  %3806 = vmatprep.subr.mxu0 0.0
  %v3807 = vand.u32 %v1342, 4294901760
  %v3808 = vsub.f32 %v1342, %v3807
  %3809 = vmatpush1.msra.mxu0 %v3808
  %3810 = vmatprep.subr.mxu0 0.0
  %3811 = vmatpush2.msra.mxu0 0.0
  %3812 = vmatprep.subr.mxu0 0.0
  %3813 = vmatpush2.msra.mxu0 0.0
  %3814 = vmatprep.subr.mxu0 0.0
  %3815 = vmatpush2.msra.mxu0 0.0
  %3816 = vmatprep.subr.mxu0 0.0
  %3817 = vmatpush2.msra.mxu0 0.0
  %3818 = vmatprep.subr.mxu0 0.0
  %3819 = vmatpush2.msra.mxu0 0.0
  %3820 = vmatprep.subr.mxu0 0.0
  %3821 = vmatpush2.msra.mxu0 0.0
  %3822 = vmatprep.subr.mxu0 0.0
  %3823 = vmatpush2.msra.mxu0 0.0
  %3824 = vmatprep.subr.mxu0 0.0
  %3825 = vmatpush2.msra.mxu0 0.0
  %3826 = vmatprep.subr.mxu0 0.0
  %3827 = vmatpush2.msra.mxu0 0.0
  %3828 = vmatprep.subr.mxu0 0.0
  %3829 = vmatpush2.msra.mxu0 0.0
  %3830 = vmatprep.subr.mxu0 0.0
  %3831 = vmatpush2.msra.mxu0 0.0
  %3832 = vmatprep.subr.mxu0 0.0
  %3833 = vmatpush2.msra.mxu0 0.0
  %3834 = vmatprep.subr.mxu0 0.0
  %3835 = vmatpush2.msra.mxu0 0.0
  %3836 = vmatprep.subr.mxu0 0.0
  %3837 = vmatpush2.msra.mxu0 0.0
  %3838 = vmatprep.subr.mxu0 0.0
  %3839 = vmatpush2.msra.mxu0 0.0
  %3840 = vmatprep.subr.mxu0 0.0
  %3841 = vmatpush2.msra.mxu0 0.0
  %3842 = vmatprep.mubr.f32.mxu0 0.0
  %v3843 = vand.u32 %v3595, 4294901760
  %v3844 = vsub.f32 %v3595, %v3843
  %3845 = vmatmul.mubr.f32.gmra.mxu0 %v3844
  %v3846 = vpop.f32.mrf.mxu0
  %v3847 = vadd.f32 %v3765, %v3846
  %v3848 = vpop.f32.mrf.mxu0
  %3849 = vmatprep.mubr.f32.mxu0 0.0
  %v3850 = vand.u32 %v3598, 4294901760
  %v3851 = vsub.f32 %v3598, %v3850
  %3852 = vmatmul.mubr.f32.gmra.mxu0 %v3851
  %v3853 = vpop.f32.mrf.mxu0
  %v3854 = vadd.f32 %v3771, %v3853
  %v3855 = vpop.f32.mrf.mxu0
  %3856 = vdwg.mxu0
  %3857 = vmatprep.subr.mxu0 0.0
  %3858 = vmatpush1.msra.mxu0 0.0
  %3859 = vmatprep.subr.mxu0 0.0
  %3860 = vmatpush1.msra.mxu0 0.0
  %3861 = vmatprep.subr.mxu0 0.0
  %3862 = vmatpush1.msra.mxu0 0.0
  %3863 = vmatprep.subr.mxu0 0.0
  %3864 = vmatpush1.msra.mxu0 0.0
  %3865 = vmatprep.subr.mxu0 0.0
  %3866 = vmatpush1.msra.mxu0 0.0
  %3867 = vmatprep.subr.mxu0 0.0
  %3868 = vmatpush1.msra.mxu0 0.0
  %3869 = vmatprep.subr.mxu0 0.0
  %3870 = vmatpush1.msra.mxu0 0.0
  %3871 = vmatprep.subr.mxu0 0.0
  %3872 = vmatpush1.msra.mxu0 0.0
  %3873 = vmatprep.subr.mxu0 0.0
  %3874 = vmatpush1.msra.mxu0 0.0
  %3875 = vmatprep.subr.mxu0 0.0
  %3876 = vmatpush1.msra.mxu0 0.0
  %3877 = vmatprep.subr.mxu0 0.0
  %3878 = vmatpush1.msra.mxu0 0.0
  %3879 = vmatprep.subr.mxu0 0.0
  %3880 = vmatpush1.msra.mxu0 0.0
  %3881 = vmatprep.subr.mxu0 0.0
  %3882 = vmatpush1.msra.mxu0 0.0
  %3883 = vmatprep.subr.mxu0 0.0
  %3884 = vmatpush1.msra.mxu0 0.0
  %3885 = vmatprep.subr.mxu0 0.0
  %v3886 = vand.u32 %v1343, 4294901760
  %3887 = vmatpush1.msra.mxu0 %v3886
  %3888 = vmatprep.subr.mxu0 0.0
  %v3889 = vand.u32 %v1342, 4294901760
  %3890 = vmatpush1.msra.mxu0 %v3889
  %3891 = vmatprep.subr.mxu0 0.0
  %3892 = vmatpush2.msra.mxu0 0.0
  %3893 = vmatprep.subr.mxu0 0.0
  %3894 = vmatpush2.msra.mxu0 0.0
  %3895 = vmatprep.subr.mxu0 0.0
  %3896 = vmatpush2.msra.mxu0 0.0
  %3897 = vmatprep.subr.mxu0 0.0
  %3898 = vmatpush2.msra.mxu0 0.0
  %3899 = vmatprep.subr.mxu0 0.0
  %3900 = vmatpush2.msra.mxu0 0.0
  %3901 = vmatprep.subr.mxu0 0.0
  %3902 = vmatpush2.msra.mxu0 0.0
  %3903 = vmatprep.subr.mxu0 0.0
  %3904 = vmatpush2.msra.mxu0 0.0
  %3905 = vmatprep.subr.mxu0 0.0
  %3906 = vmatpush2.msra.mxu0 0.0
  %3907 = vmatprep.subr.mxu0 0.0
  %3908 = vmatpush2.msra.mxu0 0.0
  %3909 = vmatprep.subr.mxu0 0.0
  %3910 = vmatpush2.msra.mxu0 0.0
  %3911 = vmatprep.subr.mxu0 0.0
  %3912 = vmatpush2.msra.mxu0 0.0
  %3913 = vmatprep.subr.mxu0 0.0
  %3914 = vmatpush2.msra.mxu0 0.0
  %3915 = vmatprep.subr.mxu0 0.0
  %3916 = vmatpush2.msra.mxu0 0.0
  %3917 = vmatprep.subr.mxu0 0.0
  %3918 = vmatpush2.msra.mxu0 0.0
  %3919 = vmatprep.subr.mxu0 0.0
  %3920 = vmatpush2.msra.mxu0 0.0
  %3921 = vmatprep.subr.mxu0 0.0
  %3922 = vmatpush2.msra.mxu0 0.0
  %3923 = vmatprep.mubr.f32.mxu0 0.0
  %v3924 = vand.u32 %v3595, 4294901760
  %v3925 = vsub.f32 %v3595, %v3924
  %v3926 = vand.u32 %v3925, 4294901760
  %3927 = vmatmul.mubr.f32.gmra.mxu0 %v3926
  %v3928 = vpop.f32.mrf.mxu0
  %v3929 = vadd.f32 %v3847, %v3928
  %v3930 = vpop.f32.mrf.mxu0
  %3931 = vmatprep.mubr.f32.mxu0 0.0
  %v3932 = vand.u32 %v3598, 4294901760
  %v3933 = vsub.f32 %v3598, %v3932
  %v3934 = vand.u32 %v3933, 4294901760
  %3935 = vmatmul.mubr.f32.gmra.mxu0 %v3934
  %v3936 = vpop.f32.mrf.mxu0
  %v3937 = vadd.f32 %v3854, %v3936
  %v3938 = vpop.f32.mrf.mxu0
  %3939 = vdwg.mxu0
  %3940 = vmatprep.subr.mxu0 0.0
  %3941 = vmatpush1.msra.mxu0 0.0
  %3942 = vmatprep.subr.mxu0 0.0
  %3943 = vmatpush1.msra.mxu0 0.0
  %3944 = vmatprep.subr.mxu0 0.0
  %3945 = vmatpush1.msra.mxu0 0.0
  %3946 = vmatprep.subr.mxu0 0.0
  %3947 = vmatpush1.msra.mxu0 0.0
  %3948 = vmatprep.subr.mxu0 0.0
  %3949 = vmatpush1.msra.mxu0 0.0
  %3950 = vmatprep.subr.mxu0 0.0
  %3951 = vmatpush1.msra.mxu0 0.0
  %3952 = vmatprep.subr.mxu0 0.0
  %3953 = vmatpush1.msra.mxu0 0.0
  %3954 = vmatprep.subr.mxu0 0.0
  %3955 = vmatpush1.msra.mxu0 0.0
  %3956 = vmatprep.subr.mxu0 0.0
  %3957 = vmatpush1.msra.mxu0 0.0
  %3958 = vmatprep.subr.mxu0 0.0
  %3959 = vmatpush1.msra.mxu0 0.0
  %3960 = vmatprep.subr.mxu0 0.0
  %3961 = vmatpush1.msra.mxu0 0.0
  %3962 = vmatprep.subr.mxu0 0.0
  %3963 = vmatpush1.msra.mxu0 0.0
  %3964 = vmatprep.subr.mxu0 0.0
  %3965 = vmatpush1.msra.mxu0 0.0
  %3966 = vmatprep.subr.mxu0 0.0
  %3967 = vmatpush1.msra.mxu0 0.0
  %3968 = vmatprep.subr.mxu0 0.0
  %v3969 = vand.u32 %v1343, 4294901760
  %v3970 = vsub.f32 %v1343, %v3969
  %v3971 = vand.u32 %v3970, 4294901760
  %3972 = vmatpush1.msra.mxu0 %v3971
  %3973 = vmatprep.subr.mxu0 0.0
  %v3974 = vand.u32 %v1342, 4294901760
  %v3975 = vsub.f32 %v1342, %v3974
  %v3976 = vand.u32 %v3975, 4294901760
  %3977 = vmatpush1.msra.mxu0 %v3976
  %3978 = vmatprep.subr.mxu0 0.0
  %3979 = vmatpush2.msra.mxu0 0.0
  %3980 = vmatprep.subr.mxu0 0.0
  %3981 = vmatpush2.msra.mxu0 0.0
  %3982 = vmatprep.subr.mxu0 0.0
  %3983 = vmatpush2.msra.mxu0 0.0
  %3984 = vmatprep.subr.mxu0 0.0
  %3985 = vmatpush2.msra.mxu0 0.0
  %3986 = vmatprep.subr.mxu0 0.0
  %3987 = vmatpush2.msra.mxu0 0.0
  %3988 = vmatprep.subr.mxu0 0.0
  %3989 = vmatpush2.msra.mxu0 0.0
  %3990 = vmatprep.subr.mxu0 0.0
  %3991 = vmatpush2.msra.mxu0 0.0
  %3992 = vmatprep.subr.mxu0 0.0
  %3993 = vmatpush2.msra.mxu0 0.0
  %3994 = vmatprep.subr.mxu0 0.0
  %3995 = vmatpush2.msra.mxu0 0.0
  %3996 = vmatprep.subr.mxu0 0.0
  %3997 = vmatpush2.msra.mxu0 0.0
  %3998 = vmatprep.subr.mxu0 0.0
  %3999 = vmatpush2.msra.mxu0 0.0
  %4000 = vmatprep.subr.mxu0 0.0
  %4001 = vmatpush2.msra.mxu0 0.0
  %4002 = vmatprep.subr.mxu0 0.0
  %4003 = vmatpush2.msra.mxu0 0.0
  %4004 = vmatprep.subr.mxu0 0.0
  %4005 = vmatpush2.msra.mxu0 0.0
  %4006 = vmatprep.subr.mxu0 0.0
  %4007 = vmatpush2.msra.mxu0 0.0
  %4008 = vmatprep.subr.mxu0 0.0
  %4009 = vmatpush2.msra.mxu0 0.0
  %4010 = vmatprep.mubr.f32.mxu0 0.0
  %v4011 = vand.u32 %v3595, 4294901760
  %4012 = vmatmul.mubr.f32.gmra.mxu0 %v4011
  %v4013 = vpop.f32.mrf.mxu0
  %v4014 = vadd.f32 %v3929, %v4013
  %v4015 = vpop.f32.mrf.mxu0
  %4016 = vmatprep.mubr.f32.mxu0 0.0
  %v4017 = vand.u32 %v3598, 4294901760
  %4018 = vmatmul.mubr.f32.gmra.mxu0 %v4017
  %v4019 = vpop.f32.mrf.mxu0
  %v4020 = vadd.f32 %v3937, %v4019
  %v4021 = vpop.f32.mrf.mxu0
  %4022 = vdwg.mxu0
  %4023 = vmatprep.subr.mxu0 0.0
  %4024 = vmatpush1.msra.mxu0 0.0
  %4025 = vmatprep.subr.mxu0 0.0
  %4026 = vmatpush1.msra.mxu0 0.0
  %4027 = vmatprep.subr.mxu0 0.0
  %4028 = vmatpush1.msra.mxu0 0.0
  %4029 = vmatprep.subr.mxu0 0.0
  %4030 = vmatpush1.msra.mxu0 0.0
  %4031 = vmatprep.subr.mxu0 0.0
  %4032 = vmatpush1.msra.mxu0 0.0
  %4033 = vmatprep.subr.mxu0 0.0
  %4034 = vmatpush1.msra.mxu0 0.0
  %4035 = vmatprep.subr.mxu0 0.0
  %4036 = vmatpush1.msra.mxu0 0.0
  %4037 = vmatprep.subr.mxu0 0.0
  %4038 = vmatpush1.msra.mxu0 0.0
  %4039 = vmatprep.subr.mxu0 0.0
  %4040 = vmatpush1.msra.mxu0 0.0
  %4041 = vmatprep.subr.mxu0 0.0
  %4042 = vmatpush1.msra.mxu0 0.0
  %4043 = vmatprep.subr.mxu0 0.0
  %4044 = vmatpush1.msra.mxu0 0.0
  %4045 = vmatprep.subr.mxu0 0.0
  %4046 = vmatpush1.msra.mxu0 0.0
  %4047 = vmatprep.subr.mxu0 0.0
  %4048 = vmatpush1.msra.mxu0 0.0
  %4049 = vmatprep.subr.mxu0 0.0
  %4050 = vmatpush1.msra.mxu0 0.0
  %4051 = vmatprep.subr.mxu0 0.0
  %v4052 = vand.u32 %v1343, 4294901760
  %4053 = vmatpush1.msra.mxu0 %v4052
  %4054 = vmatprep.subr.mxu0 0.0
  %v4055 = vand.u32 %v1342, 4294901760
  %4056 = vmatpush1.msra.mxu0 %v4055
  %4057 = vmatprep.subr.mxu0 0.0
  %4058 = vmatpush2.msra.mxu0 0.0
  %4059 = vmatprep.subr.mxu0 0.0
  %4060 = vmatpush2.msra.mxu0 0.0
  %4061 = vmatprep.subr.mxu0 0.0
  %4062 = vmatpush2.msra.mxu0 0.0
  %4063 = vmatprep.subr.mxu0 0.0
  %4064 = vmatpush2.msra.mxu0 0.0
  %4065 = vmatprep.subr.mxu0 0.0
  %4066 = vmatpush2.msra.mxu0 0.0
  %4067 = vmatprep.subr.mxu0 0.0
  %4068 = vmatpush2.msra.mxu0 0.0
  %4069 = vmatprep.subr.mxu0 0.0
  %4070 = vmatpush2.msra.mxu0 0.0
  %4071 = vmatprep.subr.mxu0 0.0
  %4072 = vmatpush2.msra.mxu0 0.0
  %4073 = vmatprep.subr.mxu0 0.0
  %4074 = vmatpush2.msra.mxu0 0.0
  %4075 = vmatprep.subr.mxu0 0.0
  %4076 = vmatpush2.msra.mxu0 0.0
  %4077 = vmatprep.subr.mxu0 0.0
  %4078 = vmatpush2.msra.mxu0 0.0
  %4079 = vmatprep.subr.mxu0 0.0
  %4080 = vmatpush2.msra.mxu0 0.0
  %4081 = vmatprep.subr.mxu0 0.0
  %4082 = vmatpush2.msra.mxu0 0.0
  %4083 = vmatprep.subr.mxu0 0.0
  %4084 = vmatpush2.msra.mxu0 0.0
  %4085 = vmatprep.subr.mxu0 0.0
  %4086 = vmatpush2.msra.mxu0 0.0
  %4087 = vmatprep.subr.mxu0 0.0
  %4088 = vmatpush2.msra.mxu0 0.0
  %4089 = vmatprep.mubr.f32.mxu0 0.0
  %v4090 = vand.u32 %v3595, 4294901760
  %4091 = vmatmul.mubr.f32.gmra.mxu0 %v4090
  %v4092 = vpop.f32.mrf.mxu0
  %v4093 = vadd.f32 %v4014, %v4092
  %v4094 = vpop.f32.mrf.mxu0
  %4095 = vmatprep.mubr.f32.mxu0 0.0
  %v4096 = vand.u32 %v3598, 4294901760
  %4097 = vmatmul.mubr.f32.gmra.mxu0 %v4096
  %v4098 = vpop.f32.mrf.mxu0
  %v4099 = vadd.f32 %v4020, %v4098
  %v4100 = vpop.f32.mrf.mxu0
  %4101 = vdwg.mxu0
  %v4103 = vsel %vm664, %v2454, 0
  %v4106 = vsel %vm664, %v2455, 0
  %4108 = vmatprep.subr.mxu0 0.0
  %4109 = vmatpush1.msra.mxu0 0.0
  %4110 = vmatprep.subr.mxu0 0.0
  %4111 = vmatpush1.msra.mxu0 0.0
  %4112 = vmatprep.subr.mxu0 0.0
  %4113 = vmatpush1.msra.mxu0 0.0
  %4114 = vmatprep.subr.mxu0 0.0
  %4115 = vmatpush1.msra.mxu0 0.0
  %4116 = vmatprep.subr.mxu0 0.0
  %4117 = vmatpush1.msra.mxu0 0.0
  %4118 = vmatprep.subr.mxu0 0.0
  %4119 = vmatpush1.msra.mxu0 0.0
  %4120 = vmatprep.subr.mxu0 0.0
  %4121 = vmatpush1.msra.mxu0 0.0
  %4122 = vmatprep.subr.mxu0 0.0
  %4123 = vmatpush1.msra.mxu0 0.0
  %4124 = vmatprep.subr.mxu0 0.0
  %4125 = vmatpush1.msra.mxu0 0.0
  %4126 = vmatprep.subr.mxu0 0.0
  %4127 = vmatpush1.msra.mxu0 0.0
  %4128 = vmatprep.subr.mxu0 0.0
  %4129 = vmatpush1.msra.mxu0 0.0
  %4130 = vmatprep.subr.mxu0 0.0
  %4131 = vmatpush1.msra.mxu0 0.0
  %4132 = vmatprep.subr.mxu0 0.0
  %4133 = vmatpush1.msra.mxu0 0.0
  %4134 = vmatprep.subr.mxu0 0.0
  %4135 = vmatpush1.msra.mxu0 0.0
  %4136 = vmatprep.subr.mxu0 0.0
  %v4137 = vand.u32 %v1341, 4294901760
  %4138 = vmatpush1.msra.mxu0 %v4137
  %4139 = vmatprep.subr.mxu0 0.0
  %v4140 = vand.u32 %v1340, 4294901760
  %4141 = vmatpush1.msra.mxu0 %v4140
  %4142 = vmatprep.subr.mxu0 0.0
  %4143 = vmatpush2.msra.mxu0 0.0
  %4144 = vmatprep.subr.mxu0 0.0
  %4145 = vmatpush2.msra.mxu0 0.0
  %4146 = vmatprep.subr.mxu0 0.0
  %4147 = vmatpush2.msra.mxu0 0.0
  %4148 = vmatprep.subr.mxu0 0.0
  %4149 = vmatpush2.msra.mxu0 0.0
  %4150 = vmatprep.subr.mxu0 0.0
  %4151 = vmatpush2.msra.mxu0 0.0
  %4152 = vmatprep.subr.mxu0 0.0
  %4153 = vmatpush2.msra.mxu0 0.0
  %4154 = vmatprep.subr.mxu0 0.0
  %4155 = vmatpush2.msra.mxu0 0.0
  %4156 = vmatprep.subr.mxu0 0.0
  %4157 = vmatpush2.msra.mxu0 0.0
  %4158 = vmatprep.subr.mxu0 0.0
  %4159 = vmatpush2.msra.mxu0 0.0
  %4160 = vmatprep.subr.mxu0 0.0
  %4161 = vmatpush2.msra.mxu0 0.0
  %4162 = vmatprep.subr.mxu0 0.0
  %4163 = vmatpush2.msra.mxu0 0.0
  %4164 = vmatprep.subr.mxu0 0.0
  %4165 = vmatpush2.msra.mxu0 0.0
  %4166 = vmatprep.subr.mxu0 0.0
  %4167 = vmatpush2.msra.mxu0 0.0
  %4168 = vmatprep.subr.mxu0 0.0
  %4169 = vmatpush2.msra.mxu0 0.0
  %4170 = vmatprep.subr.mxu0 0.0
  %4171 = vmatpush2.msra.mxu0 0.0
  %4172 = vmatprep.subr.mxu0 0.0
  %4173 = vmatpush2.msra.mxu0 0.0
  %4174 = vmatprep.mubr.f32.mxu0 0.0
  %v4175 = vand.u32 %v4103, 4294901760
  %v4176 = vsub.f32 %v4103, %v4175
  %v4177 = vand.u32 %v4176, 4294901760
  %v4178 = vsub.f32 %v4176, %v4177
  %v4179 = vand.u32 %v4178, 4294901760
  %4180 = vmatmul.mubr.f32.gmra.mxu0 %v4179
  %v4181 = vpop.f32.mrf.mxu0
  %v4182 = vadd.f32 %v4093, %v4181
  %v4183 = vpop.f32.mrf.mxu0
  %4184 = vmatprep.mubr.f32.mxu0 0.0
  %v4185 = vand.u32 %v4106, 4294901760
  %v4186 = vsub.f32 %v4106, %v4185
  %v4187 = vand.u32 %v4186, 4294901760
  %v4188 = vsub.f32 %v4186, %v4187
  %v4189 = vand.u32 %v4188, 4294901760
  %4190 = vmatmul.mubr.f32.gmra.mxu0 %v4189
  %v4191 = vpop.f32.mrf.mxu0
  %v4192 = vadd.f32 %v4099, %v4191
  %v4193 = vpop.f32.mrf.mxu0
  %4194 = vdwg.mxu0
  %4195 = vmatprep.subr.mxu0 0.0
  %4196 = vmatpush1.msra.mxu0 0.0
  %4197 = vmatprep.subr.mxu0 0.0
  %4198 = vmatpush1.msra.mxu0 0.0
  %4199 = vmatprep.subr.mxu0 0.0
  %4200 = vmatpush1.msra.mxu0 0.0
  %4201 = vmatprep.subr.mxu0 0.0
  %4202 = vmatpush1.msra.mxu0 0.0
  %4203 = vmatprep.subr.mxu0 0.0
  %4204 = vmatpush1.msra.mxu0 0.0
  %4205 = vmatprep.subr.mxu0 0.0
  %4206 = vmatpush1.msra.mxu0 0.0
  %4207 = vmatprep.subr.mxu0 0.0
  %4208 = vmatpush1.msra.mxu0 0.0
  %4209 = vmatprep.subr.mxu0 0.0
  %4210 = vmatpush1.msra.mxu0 0.0
  %4211 = vmatprep.subr.mxu0 0.0
  %4212 = vmatpush1.msra.mxu0 0.0
  %4213 = vmatprep.subr.mxu0 0.0
  %4214 = vmatpush1.msra.mxu0 0.0
  %4215 = vmatprep.subr.mxu0 0.0
  %4216 = vmatpush1.msra.mxu0 0.0
  %4217 = vmatprep.subr.mxu0 0.0
  %4218 = vmatpush1.msra.mxu0 0.0
  %4219 = vmatprep.subr.mxu0 0.0
  %4220 = vmatpush1.msra.mxu0 0.0
  %4221 = vmatprep.subr.mxu0 0.0
  %4222 = vmatpush1.msra.mxu0 0.0
  %4223 = vmatprep.subr.mxu0 0.0
  %v4224 = vand.u32 %v1341, 4294901760
  %v4225 = vsub.f32 %v1341, %v4224
  %v4226 = vand.u32 %v4225, 4294901760
  %v4227 = vsub.f32 %v4225, %v4226
  %v4228 = vand.u32 %v4227, 4294901760
  %4229 = vmatpush1.msra.mxu0 %v4228
  %4230 = vmatprep.subr.mxu0 0.0
  %v4231 = vand.u32 %v1340, 4294901760
  %v4232 = vsub.f32 %v1340, %v4231
  %v4233 = vand.u32 %v4232, 4294901760
  %v4234 = vsub.f32 %v4232, %v4233
  %v4235 = vand.u32 %v4234, 4294901760
  %4236 = vmatpush1.msra.mxu0 %v4235
  %4237 = vmatprep.subr.mxu0 0.0
  %4238 = vmatpush2.msra.mxu0 0.0
  %4239 = vmatprep.subr.mxu0 0.0
  %4240 = vmatpush2.msra.mxu0 0.0
  %4241 = vmatprep.subr.mxu0 0.0
  %4242 = vmatpush2.msra.mxu0 0.0
  %4243 = vmatprep.subr.mxu0 0.0
  %4244 = vmatpush2.msra.mxu0 0.0
  %4245 = vmatprep.subr.mxu0 0.0
  %4246 = vmatpush2.msra.mxu0 0.0
  %4247 = vmatprep.subr.mxu0 0.0
  %4248 = vmatpush2.msra.mxu0 0.0
  %4249 = vmatprep.subr.mxu0 0.0
  %4250 = vmatpush2.msra.mxu0 0.0
  %4251 = vmatprep.subr.mxu0 0.0
  %4252 = vmatpush2.msra.mxu0 0.0
  %4253 = vmatprep.subr.mxu0 0.0
  %4254 = vmatpush2.msra.mxu0 0.0
  %4255 = vmatprep.subr.mxu0 0.0
  %4256 = vmatpush2.msra.mxu0 0.0
  %4257 = vmatprep.subr.mxu0 0.0
  %4258 = vmatpush2.msra.mxu0 0.0
  %4259 = vmatprep.subr.mxu0 0.0
  %4260 = vmatpush2.msra.mxu0 0.0
  %4261 = vmatprep.subr.mxu0 0.0
  %4262 = vmatpush2.msra.mxu0 0.0
  %4263 = vmatprep.subr.mxu0 0.0
  %4264 = vmatpush2.msra.mxu0 0.0
  %4265 = vmatprep.subr.mxu0 0.0
  %4266 = vmatpush2.msra.mxu0 0.0
  %4267 = vmatprep.subr.mxu0 0.0
  %4268 = vmatpush2.msra.mxu0 0.0
  %4269 = vmatprep.mubr.f32.mxu0 0.0
  %v4270 = vand.u32 %v4103, 4294901760
  %4271 = vmatmul.mubr.f32.gmra.mxu0 %v4270
  %v4272 = vpop.f32.mrf.mxu0
  %v4273 = vadd.f32 %v4182, %v4272
  %v4274 = vpop.f32.mrf.mxu0
  %4275 = vmatprep.mubr.f32.mxu0 0.0
  %v4276 = vand.u32 %v4106, 4294901760
  %4277 = vmatmul.mubr.f32.gmra.mxu0 %v4276
  %v4278 = vpop.f32.mrf.mxu0
  %v4279 = vadd.f32 %v4192, %v4278
  %v4280 = vpop.f32.mrf.mxu0
  %4281 = vdwg.mxu0
  %4282 = vmatprep.subr.mxu0 0.0
  %4283 = vmatpush1.msra.mxu0 0.0
  %4284 = vmatprep.subr.mxu0 0.0
  %4285 = vmatpush1.msra.mxu0 0.0
  %4286 = vmatprep.subr.mxu0 0.0
  %4287 = vmatpush1.msra.mxu0 0.0
  %4288 = vmatprep.subr.mxu0 0.0
  %4289 = vmatpush1.msra.mxu0 0.0
  %4290 = vmatprep.subr.mxu0 0.0
  %4291 = vmatpush1.msra.mxu0 0.0
  %4292 = vmatprep.subr.mxu0 0.0
  %4293 = vmatpush1.msra.mxu0 0.0
  %4294 = vmatprep.subr.mxu0 0.0
  %4295 = vmatpush1.msra.mxu0 0.0
  %4296 = vmatprep.subr.mxu0 0.0
  %4297 = vmatpush1.msra.mxu0 0.0
  %4298 = vmatprep.subr.mxu0 0.0
  %4299 = vmatpush1.msra.mxu0 0.0
  %4300 = vmatprep.subr.mxu0 0.0
  %4301 = vmatpush1.msra.mxu0 0.0
  %4302 = vmatprep.subr.mxu0 0.0
  %4303 = vmatpush1.msra.mxu0 0.0
  %4304 = vmatprep.subr.mxu0 0.0
  %4305 = vmatpush1.msra.mxu0 0.0
  %4306 = vmatprep.subr.mxu0 0.0
  %4307 = vmatpush1.msra.mxu0 0.0
  %4308 = vmatprep.subr.mxu0 0.0
  %4309 = vmatpush1.msra.mxu0 0.0
  %4310 = vmatprep.subr.mxu0 0.0
  %v4311 = vand.u32 %v1341, 4294901760
  %v4312 = vsub.f32 %v1341, %v4311
  %4313 = vmatpush1.msra.mxu0 %v4312
  %4314 = vmatprep.subr.mxu0 0.0
  %v4315 = vand.u32 %v1340, 4294901760
  %v4316 = vsub.f32 %v1340, %v4315
  %4317 = vmatpush1.msra.mxu0 %v4316
  %4318 = vmatprep.subr.mxu0 0.0
  %4319 = vmatpush2.msra.mxu0 0.0
  %4320 = vmatprep.subr.mxu0 0.0
  %4321 = vmatpush2.msra.mxu0 0.0
  %4322 = vmatprep.subr.mxu0 0.0
  %4323 = vmatpush2.msra.mxu0 0.0
  %4324 = vmatprep.subr.mxu0 0.0
  %4325 = vmatpush2.msra.mxu0 0.0
  %4326 = vmatprep.subr.mxu0 0.0
  %4327 = vmatpush2.msra.mxu0 0.0
  %4328 = vmatprep.subr.mxu0 0.0
  %4329 = vmatpush2.msra.mxu0 0.0
  %4330 = vmatprep.subr.mxu0 0.0
  %4331 = vmatpush2.msra.mxu0 0.0
  %4332 = vmatprep.subr.mxu0 0.0
  %4333 = vmatpush2.msra.mxu0 0.0
  %4334 = vmatprep.subr.mxu0 0.0
  %4335 = vmatpush2.msra.mxu0 0.0
  %4336 = vmatprep.subr.mxu0 0.0
  %4337 = vmatpush2.msra.mxu0 0.0
  %4338 = vmatprep.subr.mxu0 0.0
  %4339 = vmatpush2.msra.mxu0 0.0
  %4340 = vmatprep.subr.mxu0 0.0
  %4341 = vmatpush2.msra.mxu0 0.0
  %4342 = vmatprep.subr.mxu0 0.0
  %4343 = vmatpush2.msra.mxu0 0.0
  %4344 = vmatprep.subr.mxu0 0.0
  %4345 = vmatpush2.msra.mxu0 0.0
  %4346 = vmatprep.subr.mxu0 0.0
  %4347 = vmatpush2.msra.mxu0 0.0
  %4348 = vmatprep.subr.mxu0 0.0
  %4349 = vmatpush2.msra.mxu0 0.0
  %4350 = vmatprep.mubr.f32.mxu0 0.0
  %v4351 = vand.u32 %v4103, 4294901760
  %v4352 = vsub.f32 %v4103, %v4351
  %4353 = vmatmul.mubr.f32.gmra.mxu0 %v4352
  %v4354 = vpop.f32.mrf.mxu0
  %v4355 = vadd.f32 %v4273, %v4354
  %v4356 = vpop.f32.mrf.mxu0
  %4357 = vmatprep.mubr.f32.mxu0 0.0
  %v4358 = vand.u32 %v4106, 4294901760
  %v4359 = vsub.f32 %v4106, %v4358
  %4360 = vmatmul.mubr.f32.gmra.mxu0 %v4359
  %v4361 = vpop.f32.mrf.mxu0
  %v4362 = vadd.f32 %v4279, %v4361
  %v4363 = vpop.f32.mrf.mxu0
  %4364 = vdwg.mxu0
  %4365 = vmatprep.subr.mxu0 0.0
  %4366 = vmatpush1.msra.mxu0 0.0
  %4367 = vmatprep.subr.mxu0 0.0
  %4368 = vmatpush1.msra.mxu0 0.0
  %4369 = vmatprep.subr.mxu0 0.0
  %4370 = vmatpush1.msra.mxu0 0.0
  %4371 = vmatprep.subr.mxu0 0.0
  %4372 = vmatpush1.msra.mxu0 0.0
  %4373 = vmatprep.subr.mxu0 0.0
  %4374 = vmatpush1.msra.mxu0 0.0
  %4375 = vmatprep.subr.mxu0 0.0
  %4376 = vmatpush1.msra.mxu0 0.0
  %4377 = vmatprep.subr.mxu0 0.0
  %4378 = vmatpush1.msra.mxu0 0.0
  %4379 = vmatprep.subr.mxu0 0.0
  %4380 = vmatpush1.msra.mxu0 0.0
  %4381 = vmatprep.subr.mxu0 0.0
  %4382 = vmatpush1.msra.mxu0 0.0
  %4383 = vmatprep.subr.mxu0 0.0
  %4384 = vmatpush1.msra.mxu0 0.0
  %4385 = vmatprep.subr.mxu0 0.0
  %4386 = vmatpush1.msra.mxu0 0.0
  %4387 = vmatprep.subr.mxu0 0.0
  %4388 = vmatpush1.msra.mxu0 0.0
  %4389 = vmatprep.subr.mxu0 0.0
  %4390 = vmatpush1.msra.mxu0 0.0
  %4391 = vmatprep.subr.mxu0 0.0
  %4392 = vmatpush1.msra.mxu0 0.0
  %4393 = vmatprep.subr.mxu0 0.0
  %v4394 = vand.u32 %v1341, 4294901760
  %4395 = vmatpush1.msra.mxu0 %v4394
  %4396 = vmatprep.subr.mxu0 0.0
  %v4397 = vand.u32 %v1340, 4294901760
  %4398 = vmatpush1.msra.mxu0 %v4397
  %4399 = vmatprep.subr.mxu0 0.0
  %4400 = vmatpush2.msra.mxu0 0.0
  %4401 = vmatprep.subr.mxu0 0.0
  %4402 = vmatpush2.msra.mxu0 0.0
  %4403 = vmatprep.subr.mxu0 0.0
  %4404 = vmatpush2.msra.mxu0 0.0
  %4405 = vmatprep.subr.mxu0 0.0
  %4406 = vmatpush2.msra.mxu0 0.0
  %4407 = vmatprep.subr.mxu0 0.0
  %4408 = vmatpush2.msra.mxu0 0.0
  %4409 = vmatprep.subr.mxu0 0.0
  %4410 = vmatpush2.msra.mxu0 0.0
  %4411 = vmatprep.subr.mxu0 0.0
  %4412 = vmatpush2.msra.mxu0 0.0
  %4413 = vmatprep.subr.mxu0 0.0
  %4414 = vmatpush2.msra.mxu0 0.0
  %4415 = vmatprep.subr.mxu0 0.0
  %4416 = vmatpush2.msra.mxu0 0.0
  %4417 = vmatprep.subr.mxu0 0.0
  %4418 = vmatpush2.msra.mxu0 0.0
  %4419 = vmatprep.subr.mxu0 0.0
  %4420 = vmatpush2.msra.mxu0 0.0
  %4421 = vmatprep.subr.mxu0 0.0
  %4422 = vmatpush2.msra.mxu0 0.0
  %4423 = vmatprep.subr.mxu0 0.0
  %4424 = vmatpush2.msra.mxu0 0.0
  %4425 = vmatprep.subr.mxu0 0.0
  %4426 = vmatpush2.msra.mxu0 0.0
  %4427 = vmatprep.subr.mxu0 0.0
  %4428 = vmatpush2.msra.mxu0 0.0
  %4429 = vmatprep.subr.mxu0 0.0
  %4430 = vmatpush2.msra.mxu0 0.0
  %4431 = vmatprep.mubr.f32.mxu0 0.0
  %v4432 = vand.u32 %v4103, 4294901760
  %v4433 = vsub.f32 %v4103, %v4432
  %v4434 = vand.u32 %v4433, 4294901760
  %4435 = vmatmul.mubr.f32.gmra.mxu0 %v4434
  %v4436 = vpop.f32.mrf.mxu0
  %v4437 = vadd.f32 %v4355, %v4436
  %v4438 = vpop.f32.mrf.mxu0
  %4439 = vmatprep.mubr.f32.mxu0 0.0
  %v4440 = vand.u32 %v4106, 4294901760
  %v4441 = vsub.f32 %v4106, %v4440
  %v4442 = vand.u32 %v4441, 4294901760
  %4443 = vmatmul.mubr.f32.gmra.mxu0 %v4442
  %v4444 = vpop.f32.mrf.mxu0
  %v4445 = vadd.f32 %v4362, %v4444
  %v4446 = vpop.f32.mrf.mxu0
  %4447 = vdwg.mxu0
  %4448 = vmatprep.subr.mxu0 0.0
  %4449 = vmatpush1.msra.mxu0 0.0
  %4450 = vmatprep.subr.mxu0 0.0
  %4451 = vmatpush1.msra.mxu0 0.0
  %4452 = vmatprep.subr.mxu0 0.0
  %4453 = vmatpush1.msra.mxu0 0.0
  %4454 = vmatprep.subr.mxu0 0.0
  %4455 = vmatpush1.msra.mxu0 0.0
  %4456 = vmatprep.subr.mxu0 0.0
  %4457 = vmatpush1.msra.mxu0 0.0
  %4458 = vmatprep.subr.mxu0 0.0
  %4459 = vmatpush1.msra.mxu0 0.0
  %4460 = vmatprep.subr.mxu0 0.0
  %4461 = vmatpush1.msra.mxu0 0.0
  %4462 = vmatprep.subr.mxu0 0.0
  %4463 = vmatpush1.msra.mxu0 0.0
  %4464 = vmatprep.subr.mxu0 0.0
  %4465 = vmatpush1.msra.mxu0 0.0
  %4466 = vmatprep.subr.mxu0 0.0
  %4467 = vmatpush1.msra.mxu0 0.0
  %4468 = vmatprep.subr.mxu0 0.0
  %4469 = vmatpush1.msra.mxu0 0.0
  %4470 = vmatprep.subr.mxu0 0.0
  %4471 = vmatpush1.msra.mxu0 0.0
  %4472 = vmatprep.subr.mxu0 0.0
  %4473 = vmatpush1.msra.mxu0 0.0
  %4474 = vmatprep.subr.mxu0 0.0
  %4475 = vmatpush1.msra.mxu0 0.0
  %4476 = vmatprep.subr.mxu0 0.0
  %v4477 = vand.u32 %v1341, 4294901760
  %v4478 = vsub.f32 %v1341, %v4477
  %v4479 = vand.u32 %v4478, 4294901760
  %4480 = vmatpush1.msra.mxu0 %v4479
  %4481 = vmatprep.subr.mxu0 0.0
  %v4482 = vand.u32 %v1340, 4294901760
  %v4483 = vsub.f32 %v1340, %v4482
  %v4484 = vand.u32 %v4483, 4294901760
  %4485 = vmatpush1.msra.mxu0 %v4484
  %4486 = vmatprep.subr.mxu0 0.0
  %4487 = vmatpush2.msra.mxu0 0.0
  %4488 = vmatprep.subr.mxu0 0.0
  %4489 = vmatpush2.msra.mxu0 0.0
  %4490 = vmatprep.subr.mxu0 0.0
  %4491 = vmatpush2.msra.mxu0 0.0
  %4492 = vmatprep.subr.mxu0 0.0
  %4493 = vmatpush2.msra.mxu0 0.0
  %4494 = vmatprep.subr.mxu0 0.0
  %4495 = vmatpush2.msra.mxu0 0.0
  %4496 = vmatprep.subr.mxu0 0.0
  %4497 = vmatpush2.msra.mxu0 0.0
  %4498 = vmatprep.subr.mxu0 0.0
  %4499 = vmatpush2.msra.mxu0 0.0
  %4500 = vmatprep.subr.mxu0 0.0
  %4501 = vmatpush2.msra.mxu0 0.0
  %4502 = vmatprep.subr.mxu0 0.0
  %4503 = vmatpush2.msra.mxu0 0.0
  %4504 = vmatprep.subr.mxu0 0.0
  %4505 = vmatpush2.msra.mxu0 0.0
  %4506 = vmatprep.subr.mxu0 0.0
  %4507 = vmatpush2.msra.mxu0 0.0
  %4508 = vmatprep.subr.mxu0 0.0
  %4509 = vmatpush2.msra.mxu0 0.0
  %4510 = vmatprep.subr.mxu0 0.0
  %4511 = vmatpush2.msra.mxu0 0.0
  %4512 = vmatprep.subr.mxu0 0.0
  %4513 = vmatpush2.msra.mxu0 0.0
  %4514 = vmatprep.subr.mxu0 0.0
  %4515 = vmatpush2.msra.mxu0 0.0
  %4516 = vmatprep.subr.mxu0 0.0
  %4517 = vmatpush2.msra.mxu0 0.0
  %4518 = vmatprep.mubr.f32.mxu0 0.0
  %v4519 = vand.u32 %v4103, 4294901760
  %4520 = vmatmul.mubr.f32.gmra.mxu0 %v4519
  %v4521 = vpop.f32.mrf.mxu0
  %v4522 = vadd.f32 %v4437, %v4521
  %v4523 = vpop.f32.mrf.mxu0
  %4524 = vmatprep.mubr.f32.mxu0 0.0
  %v4525 = vand.u32 %v4106, 4294901760
  %4526 = vmatmul.mubr.f32.gmra.mxu0 %v4525
  %v4527 = vpop.f32.mrf.mxu0
  %v4528 = vadd.f32 %v4445, %v4527
  %v4529 = vpop.f32.mrf.mxu0
  %4530 = vdwg.mxu0
  %4531 = vmatprep.subr.mxu0 0.0
  %4532 = vmatpush1.msra.mxu0 0.0
  %4533 = vmatprep.subr.mxu0 0.0
  %4534 = vmatpush1.msra.mxu0 0.0
  %4535 = vmatprep.subr.mxu0 0.0
  %4536 = vmatpush1.msra.mxu0 0.0
  %4537 = vmatprep.subr.mxu0 0.0
  %4538 = vmatpush1.msra.mxu0 0.0
  %4539 = vmatprep.subr.mxu0 0.0
  %4540 = vmatpush1.msra.mxu0 0.0
  %4541 = vmatprep.subr.mxu0 0.0
  %4542 = vmatpush1.msra.mxu0 0.0
  %4543 = vmatprep.subr.mxu0 0.0
  %4544 = vmatpush1.msra.mxu0 0.0
  %4545 = vmatprep.subr.mxu0 0.0
  %4546 = vmatpush1.msra.mxu0 0.0
  %4547 = vmatprep.subr.mxu0 0.0
  %4548 = vmatpush1.msra.mxu0 0.0
  %4549 = vmatprep.subr.mxu0 0.0
  %4550 = vmatpush1.msra.mxu0 0.0
  %4551 = vmatprep.subr.mxu0 0.0
  %4552 = vmatpush1.msra.mxu0 0.0
  %4553 = vmatprep.subr.mxu0 0.0
  %4554 = vmatpush1.msra.mxu0 0.0
  %4555 = vmatprep.subr.mxu0 0.0
  %4556 = vmatpush1.msra.mxu0 0.0
  %4557 = vmatprep.subr.mxu0 0.0
  %4558 = vmatpush1.msra.mxu0 0.0
  %4559 = vmatprep.subr.mxu0 0.0
  %v4560 = vand.u32 %v1341, 4294901760
  %4561 = vmatpush1.msra.mxu0 %v4560
  %4562 = vmatprep.subr.mxu0 0.0
  %v4563 = vand.u32 %v1340, 4294901760
  %4564 = vmatpush1.msra.mxu0 %v4563
  %4565 = vmatprep.subr.mxu0 0.0
  %4566 = vmatpush2.msra.mxu0 0.0
  %4567 = vmatprep.subr.mxu0 0.0
  %4568 = vmatpush2.msra.mxu0 0.0
  %4569 = vmatprep.subr.mxu0 0.0
  %4570 = vmatpush2.msra.mxu0 0.0
  %4571 = vmatprep.subr.mxu0 0.0
  %4572 = vmatpush2.msra.mxu0 0.0
  %4573 = vmatprep.subr.mxu0 0.0
  %4574 = vmatpush2.msra.mxu0 0.0
  %4575 = vmatprep.subr.mxu0 0.0
  %4576 = vmatpush2.msra.mxu0 0.0
  %4577 = vmatprep.subr.mxu0 0.0
  %4578 = vmatpush2.msra.mxu0 0.0
  %4579 = vmatprep.subr.mxu0 0.0
  %4580 = vmatpush2.msra.mxu0 0.0
  %4581 = vmatprep.subr.mxu0 0.0
  %4582 = vmatpush2.msra.mxu0 0.0
  %4583 = vmatprep.subr.mxu0 0.0
  %4584 = vmatpush2.msra.mxu0 0.0
  %4585 = vmatprep.subr.mxu0 0.0
  %4586 = vmatpush2.msra.mxu0 0.0
  %4587 = vmatprep.subr.mxu0 0.0
  %4588 = vmatpush2.msra.mxu0 0.0
  %4589 = vmatprep.subr.mxu0 0.0
  %4590 = vmatpush2.msra.mxu0 0.0
  %4591 = vmatprep.subr.mxu0 0.0
  %4592 = vmatpush2.msra.mxu0 0.0
  %4593 = vmatprep.subr.mxu0 0.0
  %4594 = vmatpush2.msra.mxu0 0.0
  %4595 = vmatprep.subr.mxu0 0.0
  %4596 = vmatpush2.msra.mxu0 0.0
  %4597 = vmatprep.mubr.f32.mxu0 0.0
  %v4598 = vand.u32 %v4103, 4294901760
  %4599 = vmatmul.mubr.f32.gmra.mxu0 %v4598
  %v4600 = vpop.f32.mrf.mxu0
  %v4601 = vadd.f32 %v4522, %v4600
  %v4602 = vpop.f32.mrf.mxu0
  %4603 = vmatprep.mubr.f32.mxu0 0.0
  %v4604 = vand.u32 %v4106, 4294901760
  %4605 = vmatmul.mubr.f32.gmra.mxu0 %v4604
  %v4606 = vpop.f32.mrf.mxu0
  %v4607 = vadd.f32 %v4528, %v4606
  %v4608 = vpop.f32.mrf.mxu0
  %4609 = vdwg.mxu0
  %v4611 = vlaneseq
  %v4612 = vshrl.u32 %v4611, 7
  %v4613 = vsub.s32 0, %v4612
  %v4614 = vrot.slane %v1344, %v4613
  %v4616 = vadd.f32 %v4601, %v4614
  %v4617 = vadd.f32 %v4607, %v4614
  %v4618 = vmul.f32 %v4616, %v1877
  %v4619 = vmul.f32 %v4617, %v1877
  %v4620 = vtanh.pop %v4618
  %v4621 = vtanh.pop %v4619
  %s4622 = scalar_lea.vmem %s5, 32
  %v4623 = vld [vmem:[%s4622] sm:$0xff]
  %v4624 = vld [vmem:[%s4622 + $0x8] sm:$0xff]
  %4625 = vrot.lane.b32.xlu0 %v1289, 112
  %v4626 = vpop.permute.xlu0 %4625
  %4627 = vrot.lane.b32.xlu0 %v1290, 112
  %v4628 = vpop.permute.xlu0 %4627
  %v4629 = vsel %vm664, %v4626, 0
  %v4631 = vsel %vm664, %v4628, 0
  %4633 = vmatprep.subr.mxu0 0.0
  %4634 = vmatpush1.msra.mxu0 0.0
  %4635 = vmatprep.subr.mxu0 0.0
  %4636 = vmatpush1.msra.mxu0 0.0
  %4637 = vmatprep.subr.mxu0 0.0
  %4638 = vmatpush1.msra.mxu0 0.0
  %4639 = vmatprep.subr.mxu0 0.0
  %4640 = vmatpush1.msra.mxu0 0.0
  %4641 = vmatprep.subr.mxu0 0.0
  %4642 = vmatpush1.msra.mxu0 0.0
  %4643 = vmatprep.subr.mxu0 0.0
  %4644 = vmatpush1.msra.mxu0 0.0
  %4645 = vmatprep.subr.mxu0 0.0
  %4646 = vmatpush1.msra.mxu0 0.0
  %4647 = vmatprep.subr.mxu0 0.0
  %4648 = vmatpush1.msra.mxu0 0.0
  %4649 = vmatprep.subr.mxu0 0.0
  %4650 = vmatpush1.msra.mxu0 0.0
  %4651 = vmatprep.subr.mxu0 0.0
  %4652 = vmatpush1.msra.mxu0 0.0
  %4653 = vmatprep.subr.mxu0 0.0
  %4654 = vmatpush1.msra.mxu0 0.0
  %4655 = vmatprep.subr.mxu0 0.0
  %4656 = vmatpush1.msra.mxu0 0.0
  %4657 = vmatprep.subr.mxu0 0.0
  %4658 = vmatpush1.msra.mxu0 0.0
  %4659 = vmatprep.subr.mxu0 0.0
  %4660 = vmatpush1.msra.mxu0 0.0
  %4661 = vmatprep.subr.mxu0 0.0
  %v4662 = vand.u32 %v4624, 4294901760
  %4663 = vmatpush1.msra.mxu0 %v4662
  %4664 = vmatprep.subr.mxu0 0.0
  %v4665 = vand.u32 %v4623, 4294901760
  %4666 = vmatpush1.msra.mxu0 %v4665
  %4667 = vmatprep.subr.mxu0 0.0
  %4668 = vmatpush2.msra.mxu0 0.0
  %4669 = vmatprep.subr.mxu0 0.0
  %4670 = vmatpush2.msra.mxu0 0.0
  %4671 = vmatprep.subr.mxu0 0.0
  %4672 = vmatpush2.msra.mxu0 0.0
  %4673 = vmatprep.subr.mxu0 0.0
  %4674 = vmatpush2.msra.mxu0 0.0
  %4675 = vmatprep.subr.mxu0 0.0
  %4676 = vmatpush2.msra.mxu0 0.0
  %4677 = vmatprep.subr.mxu0 0.0
  %4678 = vmatpush2.msra.mxu0 0.0
  %4679 = vmatprep.subr.mxu0 0.0
  %4680 = vmatpush2.msra.mxu0 0.0
  %4681 = vmatprep.subr.mxu0 0.0
  %4682 = vmatpush2.msra.mxu0 0.0
  %4683 = vmatprep.subr.mxu0 0.0
  %4684 = vmatpush2.msra.mxu0 0.0
  %4685 = vmatprep.subr.mxu0 0.0
  %4686 = vmatpush2.msra.mxu0 0.0
  %4687 = vmatprep.subr.mxu0 0.0
  %4688 = vmatpush2.msra.mxu0 0.0
  %4689 = vmatprep.subr.mxu0 0.0
  %4690 = vmatpush2.msra.mxu0 0.0
  %4691 = vmatprep.subr.mxu0 0.0
  %4692 = vmatpush2.msra.mxu0 0.0
  %4693 = vmatprep.subr.mxu0 0.0
  %4694 = vmatpush2.msra.mxu0 0.0
  %4695 = vmatprep.subr.mxu0 0.0
  %4696 = vmatpush2.msra.mxu0 0.0
  %4697 = vmatprep.subr.mxu0 0.0
  %4698 = vmatpush2.msra.mxu0 0.0
  %4699 = vmatprep.mubr.f32.mxu0 0.0
  %v4700 = vand.u32 %v4629, 4294901760
  %v4701 = vsub.f32 %v4629, %v4700
  %v4702 = vand.u32 %v4701, 4294901760
  %v4703 = vsub.f32 %v4701, %v4702
  %v4704 = vand.u32 %v4703, 4294901760
  %4705 = vmatmul.mubr.f32.gmra.mxu0 %v4704
  %v4706 = vpop.f32.mrf.mxu0
  %v4707 = vadd.f32 0.0, %v4706
  %v4708 = vpop.f32.mrf.mxu0
  %4709 = vmatprep.mubr.f32.mxu0 0.0
  %v4710 = vand.u32 %v4631, 4294901760
  %v4711 = vsub.f32 %v4631, %v4710
  %v4712 = vand.u32 %v4711, 4294901760
  %v4713 = vsub.f32 %v4711, %v4712
  %v4714 = vand.u32 %v4713, 4294901760
  %4715 = vmatmul.mubr.f32.gmra.mxu0 %v4714
  %v4716 = vpop.f32.mrf.mxu0
  %v4717 = vadd.f32 0.0, %v4716
  %v4718 = vpop.f32.mrf.mxu0
  %4719 = vdwg.mxu0
  %4720 = vmatprep.subr.mxu0 0.0
  %4721 = vmatpush1.msra.mxu0 0.0
  %4722 = vmatprep.subr.mxu0 0.0
  %4723 = vmatpush1.msra.mxu0 0.0
  %4724 = vmatprep.subr.mxu0 0.0
  %4725 = vmatpush1.msra.mxu0 0.0
  %4726 = vmatprep.subr.mxu0 0.0
  %4727 = vmatpush1.msra.mxu0 0.0
  %4728 = vmatprep.subr.mxu0 0.0
  %4729 = vmatpush1.msra.mxu0 0.0
  %4730 = vmatprep.subr.mxu0 0.0
  %4731 = vmatpush1.msra.mxu0 0.0
  %4732 = vmatprep.subr.mxu0 0.0
  %4733 = vmatpush1.msra.mxu0 0.0
  %4734 = vmatprep.subr.mxu0 0.0
  %4735 = vmatpush1.msra.mxu0 0.0
  %4736 = vmatprep.subr.mxu0 0.0
  %4737 = vmatpush1.msra.mxu0 0.0
  %4738 = vmatprep.subr.mxu0 0.0
  %4739 = vmatpush1.msra.mxu0 0.0
  %4740 = vmatprep.subr.mxu0 0.0
  %4741 = vmatpush1.msra.mxu0 0.0
  %4742 = vmatprep.subr.mxu0 0.0
  %4743 = vmatpush1.msra.mxu0 0.0
  %4744 = vmatprep.subr.mxu0 0.0
  %4745 = vmatpush1.msra.mxu0 0.0
  %4746 = vmatprep.subr.mxu0 0.0
  %4747 = vmatpush1.msra.mxu0 0.0
  %4748 = vmatprep.subr.mxu0 0.0
  %v4749 = vand.u32 %v4624, 4294901760
  %v4750 = vsub.f32 %v4624, %v4749
  %v4751 = vand.u32 %v4750, 4294901760
  %v4752 = vsub.f32 %v4750, %v4751
  %v4753 = vand.u32 %v4752, 4294901760
  %4754 = vmatpush1.msra.mxu0 %v4753
  %4755 = vmatprep.subr.mxu0 0.0
  %v4756 = vand.u32 %v4623, 4294901760
  %v4757 = vsub.f32 %v4623, %v4756
  %v4758 = vand.u32 %v4757, 4294901760
  %v4759 = vsub.f32 %v4757, %v4758
  %v4760 = vand.u32 %v4759, 4294901760
  %4761 = vmatpush1.msra.mxu0 %v4760
  %4762 = vmatprep.subr.mxu0 0.0
  %4763 = vmatpush2.msra.mxu0 0.0
  %4764 = vmatprep.subr.mxu0 0.0
  %4765 = vmatpush2.msra.mxu0 0.0
  %4766 = vmatprep.subr.mxu0 0.0
  %4767 = vmatpush2.msra.mxu0 0.0
  %4768 = vmatprep.subr.mxu0 0.0
  %4769 = vmatpush2.msra.mxu0 0.0
  %4770 = vmatprep.subr.mxu0 0.0
  %4771 = vmatpush2.msra.mxu0 0.0
  %4772 = vmatprep.subr.mxu0 0.0
  %4773 = vmatpush2.msra.mxu0 0.0
  %4774 = vmatprep.subr.mxu0 0.0
  %4775 = vmatpush2.msra.mxu0 0.0
  %4776 = vmatprep.subr.mxu0 0.0
  %4777 = vmatpush2.msra.mxu0 0.0
  %4778 = vmatprep.subr.mxu0 0.0
  %4779 = vmatpush2.msra.mxu0 0.0
  %4780 = vmatprep.subr.mxu0 0.0
  %4781 = vmatpush2.msra.mxu0 0.0
  %4782 = vmatprep.subr.mxu0 0.0
  %4783 = vmatpush2.msra.mxu0 0.0
  %4784 = vmatprep.subr.mxu0 0.0
  %4785 = vmatpush2.msra.mxu0 0.0
  %4786 = vmatprep.subr.mxu0 0.0
  %4787 = vmatpush2.msra.mxu0 0.0
  %4788 = vmatprep.subr.mxu0 0.0
  %4789 = vmatpush2.msra.mxu0 0.0
  %4790 = vmatprep.subr.mxu0 0.0
  %4791 = vmatpush2.msra.mxu0 0.0
  %4792 = vmatprep.subr.mxu0 0.0
  %4793 = vmatpush2.msra.mxu0 0.0
  %4794 = vmatprep.mubr.f32.mxu0 0.0
  %v4795 = vand.u32 %v4629, 4294901760
  %4796 = vmatmul.mubr.f32.gmra.mxu0 %v4795
  %v4797 = vpop.f32.mrf.mxu0
  %v4798 = vadd.f32 %v4707, %v4797
  %v4799 = vpop.f32.mrf.mxu0
  %4800 = vmatprep.mubr.f32.mxu0 0.0
  %v4801 = vand.u32 %v4631, 4294901760
  %4802 = vmatmul.mubr.f32.gmra.mxu0 %v4801
  %v4803 = vpop.f32.mrf.mxu0
  %v4804 = vadd.f32 %v4717, %v4803
  %v4805 = vpop.f32.mrf.mxu0
  %4806 = vdwg.mxu0
  %4807 = vmatprep.subr.mxu0 0.0
  %4808 = vmatpush1.msra.mxu0 0.0
  %4809 = vmatprep.subr.mxu0 0.0
  %4810 = vmatpush1.msra.mxu0 0.0
  %4811 = vmatprep.subr.mxu0 0.0
  %4812 = vmatpush1.msra.mxu0 0.0
  %4813 = vmatprep.subr.mxu0 0.0
  %4814 = vmatpush1.msra.mxu0 0.0
  %4815 = vmatprep.subr.mxu0 0.0
  %4816 = vmatpush1.msra.mxu0 0.0
  %4817 = vmatprep.subr.mxu0 0.0
  %4818 = vmatpush1.msra.mxu0 0.0
  %4819 = vmatprep.subr.mxu0 0.0
  %4820 = vmatpush1.msra.mxu0 0.0
  %4821 = vmatprep.subr.mxu0 0.0
  %4822 = vmatpush1.msra.mxu0 0.0
  %4823 = vmatprep.subr.mxu0 0.0
  %4824 = vmatpush1.msra.mxu0 0.0
  %4825 = vmatprep.subr.mxu0 0.0
  %4826 = vmatpush1.msra.mxu0 0.0
  %4827 = vmatprep.subr.mxu0 0.0
  %4828 = vmatpush1.msra.mxu0 0.0
  %4829 = vmatprep.subr.mxu0 0.0
  %4830 = vmatpush1.msra.mxu0 0.0
  %4831 = vmatprep.subr.mxu0 0.0
  %4832 = vmatpush1.msra.mxu0 0.0
  %4833 = vmatprep.subr.mxu0 0.0
  %4834 = vmatpush1.msra.mxu0 0.0
  %4835 = vmatprep.subr.mxu0 0.0
  %v4836 = vand.u32 %v4624, 4294901760
  %v4837 = vsub.f32 %v4624, %v4836
  %4838 = vmatpush1.msra.mxu0 %v4837
  %4839 = vmatprep.subr.mxu0 0.0
  %v4840 = vand.u32 %v4623, 4294901760
  %v4841 = vsub.f32 %v4623, %v4840
  %4842 = vmatpush1.msra.mxu0 %v4841
  %4843 = vmatprep.subr.mxu0 0.0
  %4844 = vmatpush2.msra.mxu0 0.0
  %4845 = vmatprep.subr.mxu0 0.0
  %4846 = vmatpush2.msra.mxu0 0.0
  %4847 = vmatprep.subr.mxu0 0.0
  %4848 = vmatpush2.msra.mxu0 0.0
  %4849 = vmatprep.subr.mxu0 0.0
  %4850 = vmatpush2.msra.mxu0 0.0
  %4851 = vmatprep.subr.mxu0 0.0
  %4852 = vmatpush2.msra.mxu0 0.0
  %4853 = vmatprep.subr.mxu0 0.0
  %4854 = vmatpush2.msra.mxu0 0.0
  %4855 = vmatprep.subr.mxu0 0.0
  %4856 = vmatpush2.msra.mxu0 0.0
  %4857 = vmatprep.subr.mxu0 0.0
  %4858 = vmatpush2.msra.mxu0 0.0
  %4859 = vmatprep.subr.mxu0 0.0
  %4860 = vmatpush2.msra.mxu0 0.0
  %4861 = vmatprep.subr.mxu0 0.0
  %4862 = vmatpush2.msra.mxu0 0.0
  %4863 = vmatprep.subr.mxu0 0.0
  %4864 = vmatpush2.msra.mxu0 0.0
  %4865 = vmatprep.subr.mxu0 0.0
  %4866 = vmatpush2.msra.mxu0 0.0
  %4867 = vmatprep.subr.mxu0 0.0
  %4868 = vmatpush2.msra.mxu0 0.0
  %4869 = vmatprep.subr.mxu0 0.0
  %4870 = vmatpush2.msra.mxu0 0.0
  %4871 = vmatprep.subr.mxu0 0.0
  %4872 = vmatpush2.msra.mxu0 0.0
  %4873 = vmatprep.subr.mxu0 0.0
  %4874 = vmatpush2.msra.mxu0 0.0
  %4875 = vmatprep.mubr.f32.mxu0 0.0
  %v4876 = vand.u32 %v4629, 4294901760
  %v4877 = vsub.f32 %v4629, %v4876
  %4878 = vmatmul.mubr.f32.gmra.mxu0 %v4877
  %v4879 = vpop.f32.mrf.mxu0
  %v4880 = vadd.f32 %v4798, %v4879
  %v4881 = vpop.f32.mrf.mxu0
  %4882 = vmatprep.mubr.f32.mxu0 0.0
  %v4883 = vand.u32 %v4631, 4294901760
  %v4884 = vsub.f32 %v4631, %v4883
  %4885 = vmatmul.mubr.f32.gmra.mxu0 %v4884
  %v4886 = vpop.f32.mrf.mxu0
  %v4887 = vadd.f32 %v4804, %v4886
  %v4888 = vpop.f32.mrf.mxu0
  %4889 = vdwg.mxu0
  %4890 = vmatprep.subr.mxu0 0.0
  %4891 = vmatpush1.msra.mxu0 0.0
  %4892 = vmatprep.subr.mxu0 0.0
  %4893 = vmatpush1.msra.mxu0 0.0
  %4894 = vmatprep.subr.mxu0 0.0
  %4895 = vmatpush1.msra.mxu0 0.0
  %4896 = vmatprep.subr.mxu0 0.0
  %4897 = vmatpush1.msra.mxu0 0.0
  %4898 = vmatprep.subr.mxu0 0.0
  %4899 = vmatpush1.msra.mxu0 0.0
  %4900 = vmatprep.subr.mxu0 0.0
  %4901 = vmatpush1.msra.mxu0 0.0
  %4902 = vmatprep.subr.mxu0 0.0
  %4903 = vmatpush1.msra.mxu0 0.0
  %4904 = vmatprep.subr.mxu0 0.0
  %4905 = vmatpush1.msra.mxu0 0.0
  %4906 = vmatprep.subr.mxu0 0.0
  %4907 = vmatpush1.msra.mxu0 0.0
  %4908 = vmatprep.subr.mxu0 0.0
  %4909 = vmatpush1.msra.mxu0 0.0
  %4910 = vmatprep.subr.mxu0 0.0
  %4911 = vmatpush1.msra.mxu0 0.0
  %4912 = vmatprep.subr.mxu0 0.0
  %4913 = vmatpush1.msra.mxu0 0.0
  %4914 = vmatprep.subr.mxu0 0.0
  %4915 = vmatpush1.msra.mxu0 0.0
  %4916 = vmatprep.subr.mxu0 0.0
  %4917 = vmatpush1.msra.mxu0 0.0
  %4918 = vmatprep.subr.mxu0 0.0
  %v4919 = vand.u32 %v4624, 4294901760
  %4920 = vmatpush1.msra.mxu0 %v4919
  %4921 = vmatprep.subr.mxu0 0.0
  %v4922 = vand.u32 %v4623, 4294901760
  %4923 = vmatpush1.msra.mxu0 %v4922
  %4924 = vmatprep.subr.mxu0 0.0
  %4925 = vmatpush2.msra.mxu0 0.0
  %4926 = vmatprep.subr.mxu0 0.0
  %4927 = vmatpush2.msra.mxu0 0.0
  %4928 = vmatprep.subr.mxu0 0.0
  %4929 = vmatpush2.msra.mxu0 0.0
  %4930 = vmatprep.subr.mxu0 0.0
  %4931 = vmatpush2.msra.mxu0 0.0
  %4932 = vmatprep.subr.mxu0 0.0
  %4933 = vmatpush2.msra.mxu0 0.0
  %4934 = vmatprep.subr.mxu0 0.0
  %4935 = vmatpush2.msra.mxu0 0.0
  %4936 = vmatprep.subr.mxu0 0.0
  %4937 = vmatpush2.msra.mxu0 0.0
  %4938 = vmatprep.subr.mxu0 0.0
  %4939 = vmatpush2.msra.mxu0 0.0
  %4940 = vmatprep.subr.mxu0 0.0
  %4941 = vmatpush2.msra.mxu0 0.0
  %4942 = vmatprep.subr.mxu0 0.0
  %4943 = vmatpush2.msra.mxu0 0.0
  %4944 = vmatprep.subr.mxu0 0.0
  %4945 = vmatpush2.msra.mxu0 0.0
  %4946 = vmatprep.subr.mxu0 0.0
  %4947 = vmatpush2.msra.mxu0 0.0
  %4948 = vmatprep.subr.mxu0 0.0
  %4949 = vmatpush2.msra.mxu0 0.0
  %4950 = vmatprep.subr.mxu0 0.0
  %4951 = vmatpush2.msra.mxu0 0.0
  %4952 = vmatprep.subr.mxu0 0.0
  %4953 = vmatpush2.msra.mxu0 0.0
  %4954 = vmatprep.subr.mxu0 0.0
  %4955 = vmatpush2.msra.mxu0 0.0
  %4956 = vmatprep.mubr.f32.mxu0 0.0
  %v4957 = vand.u32 %v4629, 4294901760
  %v4958 = vsub.f32 %v4629, %v4957
  %v4959 = vand.u32 %v4958, 4294901760
  %4960 = vmatmul.mubr.f32.gmra.mxu0 %v4959
  %v4961 = vpop.f32.mrf.mxu0
  %v4962 = vadd.f32 %v4880, %v4961
  %v4963 = vpop.f32.mrf.mxu0
  %4964 = vmatprep.mubr.f32.mxu0 0.0
  %v4965 = vand.u32 %v4631, 4294901760
  %v4966 = vsub.f32 %v4631, %v4965
  %v4967 = vand.u32 %v4966, 4294901760
  %4968 = vmatmul.mubr.f32.gmra.mxu0 %v4967
  %v4969 = vpop.f32.mrf.mxu0
  %v4970 = vadd.f32 %v4887, %v4969
  %v4971 = vpop.f32.mrf.mxu0
  %4972 = vdwg.mxu0
  %4973 = vmatprep.subr.mxu0 0.0
  %4974 = vmatpush1.msra.mxu0 0.0
  %4975 = vmatprep.subr.mxu0 0.0
  %4976 = vmatpush1.msra.mxu0 0.0
  %4977 = vmatprep.subr.mxu0 0.0
  %4978 = vmatpush1.msra.mxu0 0.0
  %4979 = vmatprep.subr.mxu0 0.0
  %4980 = vmatpush1.msra.mxu0 0.0
  %4981 = vmatprep.subr.mxu0 0.0
  %4982 = vmatpush1.msra.mxu0 0.0
  %4983 = vmatprep.subr.mxu0 0.0
  %4984 = vmatpush1.msra.mxu0 0.0
  %4985 = vmatprep.subr.mxu0 0.0
  %4986 = vmatpush1.msra.mxu0 0.0
  %4987 = vmatprep.subr.mxu0 0.0
  %4988 = vmatpush1.msra.mxu0 0.0
  %4989 = vmatprep.subr.mxu0 0.0
  %4990 = vmatpush1.msra.mxu0 0.0
  %4991 = vmatprep.subr.mxu0 0.0
  %4992 = vmatpush1.msra.mxu0 0.0
  %4993 = vmatprep.subr.mxu0 0.0
  %4994 = vmatpush1.msra.mxu0 0.0
  %4995 = vmatprep.subr.mxu0 0.0
  %4996 = vmatpush1.msra.mxu0 0.0
  %4997 = vmatprep.subr.mxu0 0.0
  %4998 = vmatpush1.msra.mxu0 0.0
  %4999 = vmatprep.subr.mxu0 0.0
  %5000 = vmatpush1.msra.mxu0 0.0
  %5001 = vmatprep.subr.mxu0 0.0
  %v5002 = vand.u32 %v4624, 4294901760
  %v5003 = vsub.f32 %v4624, %v5002
  %v5004 = vand.u32 %v5003, 4294901760
  %5005 = vmatpush1.msra.mxu0 %v5004
  %5006 = vmatprep.subr.mxu0 0.0
  %v5007 = vand.u32 %v4623, 4294901760
  %v5008 = vsub.f32 %v4623, %v5007
  %v5009 = vand.u32 %v5008, 4294901760
  %5010 = vmatpush1.msra.mxu0 %v5009
  %5011 = vmatprep.subr.mxu0 0.0
  %5012 = vmatpush2.msra.mxu0 0.0
  %5013 = vmatprep.subr.mxu0 0.0
  %5014 = vmatpush2.msra.mxu0 0.0
  %5015 = vmatprep.subr.mxu0 0.0
  %5016 = vmatpush2.msra.mxu0 0.0
  %5017 = vmatprep.subr.mxu0 0.0
  %5018 = vmatpush2.msra.mxu0 0.0
  %5019 = vmatprep.subr.mxu0 0.0
  %5020 = vmatpush2.msra.mxu0 0.0
  %5021 = vmatprep.subr.mxu0 0.0
  %5022 = vmatpush2.msra.mxu0 0.0
  %5023 = vmatprep.subr.mxu0 0.0
  %5024 = vmatpush2.msra.mxu0 0.0
  %5025 = vmatprep.subr.mxu0 0.0
  %5026 = vmatpush2.msra.mxu0 0.0
  %5027 = vmatprep.subr.mxu0 0.0
  %5028 = vmatpush2.msra.mxu0 0.0
  %5029 = vmatprep.subr.mxu0 0.0
  %5030 = vmatpush2.msra.mxu0 0.0
  %5031 = vmatprep.subr.mxu0 0.0
  %5032 = vmatpush2.msra.mxu0 0.0
  %5033 = vmatprep.subr.mxu0 0.0
  %5034 = vmatpush2.msra.mxu0 0.0
  %5035 = vmatprep.subr.mxu0 0.0
  %5036 = vmatpush2.msra.mxu0 0.0
  %5037 = vmatprep.subr.mxu0 0.0
  %5038 = vmatpush2.msra.mxu0 0.0
  %5039 = vmatprep.subr.mxu0 0.0
  %5040 = vmatpush2.msra.mxu0 0.0
  %5041 = vmatprep.subr.mxu0 0.0
  %5042 = vmatpush2.msra.mxu0 0.0
  %5043 = vmatprep.mubr.f32.mxu0 0.0
  %v5044 = vand.u32 %v4629, 4294901760
  %5045 = vmatmul.mubr.f32.gmra.mxu0 %v5044
  %v5046 = vpop.f32.mrf.mxu0
  %v5047 = vadd.f32 %v4962, %v5046
  %v5048 = vpop.f32.mrf.mxu0
  %5049 = vmatprep.mubr.f32.mxu0 0.0
  %v5050 = vand.u32 %v4631, 4294901760
  %5051 = vmatmul.mubr.f32.gmra.mxu0 %v5050
  %v5052 = vpop.f32.mrf.mxu0
  %v5053 = vadd.f32 %v4970, %v5052
  %v5054 = vpop.f32.mrf.mxu0
  %5055 = vdwg.mxu0
  %5056 = vmatprep.subr.mxu0 0.0
  %5057 = vmatpush1.msra.mxu0 0.0
  %5058 = vmatprep.subr.mxu0 0.0
  %5059 = vmatpush1.msra.mxu0 0.0
  %5060 = vmatprep.subr.mxu0 0.0
  %5061 = vmatpush1.msra.mxu0 0.0
  %5062 = vmatprep.subr.mxu0 0.0
  %5063 = vmatpush1.msra.mxu0 0.0
  %5064 = vmatprep.subr.mxu0 0.0
  %5065 = vmatpush1.msra.mxu0 0.0
  %5066 = vmatprep.subr.mxu0 0.0
  %5067 = vmatpush1.msra.mxu0 0.0
  %5068 = vmatprep.subr.mxu0 0.0
  %5069 = vmatpush1.msra.mxu0 0.0
  %5070 = vmatprep.subr.mxu0 0.0
  %5071 = vmatpush1.msra.mxu0 0.0
  %5072 = vmatprep.subr.mxu0 0.0
  %5073 = vmatpush1.msra.mxu0 0.0
  %5074 = vmatprep.subr.mxu0 0.0
  %5075 = vmatpush1.msra.mxu0 0.0
  %5076 = vmatprep.subr.mxu0 0.0
  %5077 = vmatpush1.msra.mxu0 0.0
  %5078 = vmatprep.subr.mxu0 0.0
  %5079 = vmatpush1.msra.mxu0 0.0
  %5080 = vmatprep.subr.mxu0 0.0
  %5081 = vmatpush1.msra.mxu0 0.0
  %5082 = vmatprep.subr.mxu0 0.0
  %5083 = vmatpush1.msra.mxu0 0.0
  %5084 = vmatprep.subr.mxu0 0.0
  %v5085 = vand.u32 %v4624, 4294901760
  %5086 = vmatpush1.msra.mxu0 %v5085
  %5087 = vmatprep.subr.mxu0 0.0
  %v5088 = vand.u32 %v4623, 4294901760
  %5089 = vmatpush1.msra.mxu0 %v5088
  %5090 = vmatprep.subr.mxu0 0.0
  %5091 = vmatpush2.msra.mxu0 0.0
  %5092 = vmatprep.subr.mxu0 0.0
  %5093 = vmatpush2.msra.mxu0 0.0
  %5094 = vmatprep.subr.mxu0 0.0
  %5095 = vmatpush2.msra.mxu0 0.0
  %5096 = vmatprep.subr.mxu0 0.0
  %5097 = vmatpush2.msra.mxu0 0.0
  %5098 = vmatprep.subr.mxu0 0.0
  %5099 = vmatpush2.msra.mxu0 0.0
  %5100 = vmatprep.subr.mxu0 0.0
  %5101 = vmatpush2.msra.mxu0 0.0
  %5102 = vmatprep.subr.mxu0 0.0
  %5103 = vmatpush2.msra.mxu0 0.0
  %5104 = vmatprep.subr.mxu0 0.0
  %5105 = vmatpush2.msra.mxu0 0.0
  %5106 = vmatprep.subr.mxu0 0.0
  %5107 = vmatpush2.msra.mxu0 0.0
  %5108 = vmatprep.subr.mxu0 0.0
  %5109 = vmatpush2.msra.mxu0 0.0
  %5110 = vmatprep.subr.mxu0 0.0
  %5111 = vmatpush2.msra.mxu0 0.0
  %5112 = vmatprep.subr.mxu0 0.0
  %5113 = vmatpush2.msra.mxu0 0.0
  %5114 = vmatprep.subr.mxu0 0.0
  %5115 = vmatpush2.msra.mxu0 0.0
  %5116 = vmatprep.subr.mxu0 0.0
  %5117 = vmatpush2.msra.mxu0 0.0
  %5118 = vmatprep.subr.mxu0 0.0
  %5119 = vmatpush2.msra.mxu0 0.0
  %5120 = vmatprep.subr.mxu0 0.0
  %5121 = vmatpush2.msra.mxu0 0.0
  %5122 = vmatprep.mubr.f32.mxu0 0.0
  %v5123 = vand.u32 %v4629, 4294901760
  %5124 = vmatmul.mubr.f32.gmra.mxu0 %v5123
  %v5125 = vpop.f32.mrf.mxu0
  %v5126 = vadd.f32 %v5047, %v5125
  %v5127 = vpop.f32.mrf.mxu0
  %5128 = vmatprep.mubr.f32.mxu0 0.0
  %v5129 = vand.u32 %v4631, 4294901760
  %5130 = vmatmul.mubr.f32.gmra.mxu0 %v5129
  %v5131 = vpop.f32.mrf.mxu0
  %v5132 = vadd.f32 %v5053, %v5131
  %v5133 = vpop.f32.mrf.mxu0
  %5134 = vdwg.mxu0
  %5135 = vset.pattern.permute.xlu0 12
  %5136 = vperm.xlu0 %5135, %v1337
  %v5137 = vpop.permute.xlu0 %5136
  %5139 = vset.pattern.permute.xlu0 12
  %5140 = vperm.xlu0 %5139, %v1338
  %v5141 = vpop.permute.xlu0 %5140
  %v5143 = vmul.f32 %v5126, %v5137
  %v5144 = vmul.f32 %v5132, %v5141
  %5145 = vset.pattern.permute.xlu0 13
  %5146 = vperm.xlu0 %5145, %v1337
  %v5147 = vpop.permute.xlu0 %5146
  %5149 = vset.pattern.permute.xlu0 13
  %5150 = vperm.xlu0 %5149, %v1338
  %v5151 = vpop.permute.xlu0 %5150
  %v5153 = vadd.f32 %v5143, %v5147
  %v5154 = vadd.f32 %v5144, %v5151
  %v5155 = vmul.f32 %v5153, %v1877
  %v5156 = vmul.f32 %v5154, %v1877
  %v5157 = vtanh.pop %v5155
  %v5158 = vtanh.pop %v5156
  %v5159 = vmul.f32 %v5157, %v1885
  %v5160 = vmul.f32 %v5158, %v1885
  %5161 = vset.pattern.permute.xlu0 14
  %5162 = vperm.xlu0 %5161, %v1337
  %v5163 = vpop.permute.xlu0 %5162
  %5165 = vset.pattern.permute.xlu0 14
  %5166 = vperm.xlu0 %5165, %v1338
  %v5167 = vpop.permute.xlu0 %5166
  %v5169 = vmul.f32 %v5159, %v5163
  %v5170 = vmul.f32 %v5160, %v5167
  %5171 = vset.pattern.permute.xlu0 15
  %5172 = vperm.xlu0 %5171, %v1337
  %v5173 = vpop.permute.xlu0 %5172
  %5175 = vset.pattern.permute.xlu0 15
  %5176 = vperm.xlu0 %5175, %v1338
  %v5177 = vpop.permute.xlu0 %5176
  %v5179 = vadd.f32 %v5169, %v5173
  %v5180 = vadd.f32 %v5170, %v5177
  %s5181 = scalar_lea.vmem %s6, 16
  %v5182 = vld [vmem:[%s5181] sm:$0xff]
  %v5184 = vsel %vm59, %v5179, 0
  %v5187 = vsel %vm59, %v5180, 0
  %5189 = vmatprep.subr.mxu0 0.0
  %5190 = vmatpush1.msra.mxu0 0.0
  %5191 = vmatprep.subr.mxu0 0.0
  %5192 = vmatpush1.msra.mxu0 0.0
  %5193 = vmatprep.subr.mxu0 0.0
  %5194 = vmatpush1.msra.mxu0 0.0
  %5195 = vmatprep.subr.mxu0 0.0
  %5196 = vmatpush1.msra.mxu0 0.0
  %5197 = vmatprep.subr.mxu0 0.0
  %5198 = vmatpush1.msra.mxu0 0.0
  %5199 = vmatprep.subr.mxu0 0.0
  %5200 = vmatpush1.msra.mxu0 0.0
  %5201 = vmatprep.subr.mxu0 0.0
  %5202 = vmatpush1.msra.mxu0 0.0
  %5203 = vmatprep.subr.mxu0 0.0
  %5204 = vmatpush1.msra.mxu0 0.0
  %5205 = vmatprep.subr.mxu0 0.0
  %5206 = vmatpush1.msra.mxu0 0.0
  %5207 = vmatprep.subr.mxu0 0.0
  %5208 = vmatpush1.msra.mxu0 0.0
  %5209 = vmatprep.subr.mxu0 0.0
  %5210 = vmatpush1.msra.mxu0 0.0
  %5211 = vmatprep.subr.mxu0 0.0
  %5212 = vmatpush1.msra.mxu0 0.0
  %5213 = vmatprep.subr.mxu0 0.0
  %5214 = vmatpush1.msra.mxu0 0.0
  %5215 = vmatprep.subr.mxu0 0.0
  %5216 = vmatpush1.msra.mxu0 0.0
  %5217 = vmatprep.subr.mxu0 0.0
  %5218 = vmatpush1.msra.mxu0 0.0
  %5219 = vmatprep.subr.mxu0 0.0
  %v5220 = vand.u32 %v5182, 4294901760
  %5221 = vmatpush1.msra.mxu0 %v5220
  %5222 = vmatprep.subr.mxu0 0.0
  %5223 = vmatpush2.msra.mxu0 0.0
  %5224 = vmatprep.subr.mxu0 0.0
  %5225 = vmatpush2.msra.mxu0 0.0
  %5226 = vmatprep.subr.mxu0 0.0
  %5227 = vmatpush2.msra.mxu0 0.0
  %5228 = vmatprep.subr.mxu0 0.0
  %5229 = vmatpush2.msra.mxu0 0.0
  %5230 = vmatprep.subr.mxu0 0.0
  %5231 = vmatpush2.msra.mxu0 0.0
  %5232 = vmatprep.subr.mxu0 0.0
  %5233 = vmatpush2.msra.mxu0 0.0
  %5234 = vmatprep.subr.mxu0 0.0
  %5235 = vmatpush2.msra.mxu0 0.0
  %5236 = vmatprep.subr.mxu0 0.0
  %5237 = vmatpush2.msra.mxu0 0.0
  %5238 = vmatprep.subr.mxu0 0.0
  %5239 = vmatpush2.msra.mxu0 0.0
  %5240 = vmatprep.subr.mxu0 0.0
  %5241 = vmatpush2.msra.mxu0 0.0
  %5242 = vmatprep.subr.mxu0 0.0
  %5243 = vmatpush2.msra.mxu0 0.0
  %5244 = vmatprep.subr.mxu0 0.0
  %5245 = vmatpush2.msra.mxu0 0.0
  %5246 = vmatprep.subr.mxu0 0.0
  %5247 = vmatpush2.msra.mxu0 0.0
  %5248 = vmatprep.subr.mxu0 0.0
  %5249 = vmatpush2.msra.mxu0 0.0
  %5250 = vmatprep.subr.mxu0 0.0
  %5251 = vmatpush2.msra.mxu0 0.0
  %5252 = vmatprep.subr.mxu0 0.0
  %5253 = vmatpush2.msra.mxu0 0.0
  %5254 = vmatprep.mubr.f32.mxu0 0.0
  %v5255 = vand.u32 %v5184, 4294901760
  %v5256 = vsub.f32 %v5184, %v5255
  %v5257 = vand.u32 %v5256, 4294901760
  %v5258 = vsub.f32 %v5256, %v5257
  %v5259 = vand.u32 %v5258, 4294901760
  %5260 = vmatmul.mubr.f32.gmra.mxu0 %v5259
  %v5261 = vpop.f32.mrf.mxu0
  %v5262 = vadd.f32 0.0, %v5261
  %v5263 = vpop.f32.mrf.mxu0
  %5264 = vmatprep.mubr.f32.mxu0 0.0
  %v5265 = vand.u32 %v5187, 4294901760
  %v5266 = vsub.f32 %v5187, %v5265
  %v5267 = vand.u32 %v5266, 4294901760
  %v5268 = vsub.f32 %v5266, %v5267
  %v5269 = vand.u32 %v5268, 4294901760
  %5270 = vmatmul.mubr.f32.gmra.mxu0 %v5269
  %v5271 = vpop.f32.mrf.mxu0
  %v5272 = vadd.f32 0.0, %v5271
  %v5273 = vpop.f32.mrf.mxu0
  %5274 = vdwg.mxu0
  %5275 = vmatprep.subr.mxu0 0.0
  %5276 = vmatpush1.msra.mxu0 0.0
  %5277 = vmatprep.subr.mxu0 0.0
  %5278 = vmatpush1.msra.mxu0 0.0
  %5279 = vmatprep.subr.mxu0 0.0
  %5280 = vmatpush1.msra.mxu0 0.0
  %5281 = vmatprep.subr.mxu0 0.0
  %5282 = vmatpush1.msra.mxu0 0.0
  %5283 = vmatprep.subr.mxu0 0.0
  %5284 = vmatpush1.msra.mxu0 0.0
  %5285 = vmatprep.subr.mxu0 0.0
  %5286 = vmatpush1.msra.mxu0 0.0
  %5287 = vmatprep.subr.mxu0 0.0
  %5288 = vmatpush1.msra.mxu0 0.0
  %5289 = vmatprep.subr.mxu0 0.0
  %5290 = vmatpush1.msra.mxu0 0.0
  %5291 = vmatprep.subr.mxu0 0.0
  %5292 = vmatpush1.msra.mxu0 0.0
  %5293 = vmatprep.subr.mxu0 0.0
  %5294 = vmatpush1.msra.mxu0 0.0
  %5295 = vmatprep.subr.mxu0 0.0
  %5296 = vmatpush1.msra.mxu0 0.0
  %5297 = vmatprep.subr.mxu0 0.0
  %5298 = vmatpush1.msra.mxu0 0.0
  %5299 = vmatprep.subr.mxu0 0.0
  %5300 = vmatpush1.msra.mxu0 0.0
  %5301 = vmatprep.subr.mxu0 0.0
  %5302 = vmatpush1.msra.mxu0 0.0
  %5303 = vmatprep.subr.mxu0 0.0
  %5304 = vmatpush1.msra.mxu0 0.0
  %5305 = vmatprep.subr.mxu0 0.0
  %v5306 = vand.u32 %v5182, 4294901760
  %v5307 = vsub.f32 %v5182, %v5306
  %v5308 = vand.u32 %v5307, 4294901760
  %v5309 = vsub.f32 %v5307, %v5308
  %v5310 = vand.u32 %v5309, 4294901760
  %5311 = vmatpush1.msra.mxu0 %v5310
  %5312 = vmatprep.subr.mxu0 0.0
  %5313 = vmatpush2.msra.mxu0 0.0
  %5314 = vmatprep.subr.mxu0 0.0
  %5315 = vmatpush2.msra.mxu0 0.0
  %5316 = vmatprep.subr.mxu0 0.0
  %5317 = vmatpush2.msra.mxu0 0.0
  %5318 = vmatprep.subr.mxu0 0.0
  %5319 = vmatpush2.msra.mxu0 0.0
  %5320 = vmatprep.subr.mxu0 0.0
  %5321 = vmatpush2.msra.mxu0 0.0
  %5322 = vmatprep.subr.mxu0 0.0
  %5323 = vmatpush2.msra.mxu0 0.0
  %5324 = vmatprep.subr.mxu0 0.0
  %5325 = vmatpush2.msra.mxu0 0.0
  %5326 = vmatprep.subr.mxu0 0.0
  %5327 = vmatpush2.msra.mxu0 0.0
  %5328 = vmatprep.subr.mxu0 0.0
  %5329 = vmatpush2.msra.mxu0 0.0
  %5330 = vmatprep.subr.mxu0 0.0
  %5331 = vmatpush2.msra.mxu0 0.0
  %5332 = vmatprep.subr.mxu0 0.0
  %5333 = vmatpush2.msra.mxu0 0.0
  %5334 = vmatprep.subr.mxu0 0.0
  %5335 = vmatpush2.msra.mxu0 0.0
  %5336 = vmatprep.subr.mxu0 0.0
  %5337 = vmatpush2.msra.mxu0 0.0
  %5338 = vmatprep.subr.mxu0 0.0
  %5339 = vmatpush2.msra.mxu0 0.0
  %5340 = vmatprep.subr.mxu0 0.0
  %5341 = vmatpush2.msra.mxu0 0.0
  %5342 = vmatprep.subr.mxu0 0.0
  %5343 = vmatpush2.msra.mxu0 0.0
  %5344 = vmatprep.mubr.f32.mxu0 0.0
  %v5345 = vand.u32 %v5184, 4294901760
  %5346 = vmatmul.mubr.f32.gmra.mxu0 %v5345
  %v5347 = vpop.f32.mrf.mxu0
  %v5348 = vadd.f32 %v5262, %v5347
  %v5349 = vpop.f32.mrf.mxu0
  %5350 = vmatprep.mubr.f32.mxu0 0.0
  %v5351 = vand.u32 %v5187, 4294901760
  %5352 = vmatmul.mubr.f32.gmra.mxu0 %v5351
  %v5353 = vpop.f32.mrf.mxu0
  %v5354 = vadd.f32 %v5272, %v5353
  %v5355 = vpop.f32.mrf.mxu0
  %5356 = vdwg.mxu0
  %5357 = vmatprep.subr.mxu0 0.0
  %5358 = vmatpush1.msra.mxu0 0.0
  %5359 = vmatprep.subr.mxu0 0.0
  %5360 = vmatpush1.msra.mxu0 0.0
  %5361 = vmatprep.subr.mxu0 0.0
  %5362 = vmatpush1.msra.mxu0 0.0
  %5363 = vmatprep.subr.mxu0 0.0
  %5364 = vmatpush1.msra.mxu0 0.0
  %5365 = vmatprep.subr.mxu0 0.0
  %5366 = vmatpush1.msra.mxu0 0.0
  %5367 = vmatprep.subr.mxu0 0.0
  %5368 = vmatpush1.msra.mxu0 0.0
  %5369 = vmatprep.subr.mxu0 0.0
  %5370 = vmatpush1.msra.mxu0 0.0
  %5371 = vmatprep.subr.mxu0 0.0
  %5372 = vmatpush1.msra.mxu0 0.0
  %5373 = vmatprep.subr.mxu0 0.0
  %5374 = vmatpush1.msra.mxu0 0.0
  %5375 = vmatprep.subr.mxu0 0.0
  %5376 = vmatpush1.msra.mxu0 0.0
  %5377 = vmatprep.subr.mxu0 0.0
  %5378 = vmatpush1.msra.mxu0 0.0
  %5379 = vmatprep.subr.mxu0 0.0
  %5380 = vmatpush1.msra.mxu0 0.0
  %5381 = vmatprep.subr.mxu0 0.0
  %5382 = vmatpush1.msra.mxu0 0.0
  %5383 = vmatprep.subr.mxu0 0.0
  %5384 = vmatpush1.msra.mxu0 0.0
  %5385 = vmatprep.subr.mxu0 0.0
  %5386 = vmatpush1.msra.mxu0 0.0
  %5387 = vmatprep.subr.mxu0 0.0
  %v5388 = vand.u32 %v5182, 4294901760
  %v5389 = vsub.f32 %v5182, %v5388
  %5390 = vmatpush1.msra.mxu0 %v5389
  %5391 = vmatprep.subr.mxu0 0.0
  %5392 = vmatpush2.msra.mxu0 0.0
  %5393 = vmatprep.subr.mxu0 0.0
  %5394 = vmatpush2.msra.mxu0 0.0
  %5395 = vmatprep.subr.mxu0 0.0
  %5396 = vmatpush2.msra.mxu0 0.0
  %5397 = vmatprep.subr.mxu0 0.0
  %5398 = vmatpush2.msra.mxu0 0.0
  %5399 = vmatprep.subr.mxu0 0.0
  %5400 = vmatpush2.msra.mxu0 0.0
  %5401 = vmatprep.subr.mxu0 0.0
  %5402 = vmatpush2.msra.mxu0 0.0
  %5403 = vmatprep.subr.mxu0 0.0
  %5404 = vmatpush2.msra.mxu0 0.0
  %5405 = vmatprep.subr.mxu0 0.0
  %5406 = vmatpush2.msra.mxu0 0.0
  %5407 = vmatprep.subr.mxu0 0.0
  %5408 = vmatpush2.msra.mxu0 0.0
  %5409 = vmatprep.subr.mxu0 0.0
  %5410 = vmatpush2.msra.mxu0 0.0
  %5411 = vmatprep.subr.mxu0 0.0
  %5412 = vmatpush2.msra.mxu0 0.0
  %5413 = vmatprep.subr.mxu0 0.0
  %5414 = vmatpush2.msra.mxu0 0.0
  %5415 = vmatprep.subr.mxu0 0.0
  %5416 = vmatpush2.msra.mxu0 0.0
  %5417 = vmatprep.subr.mxu0 0.0
  %5418 = vmatpush2.msra.mxu0 0.0
  %5419 = vmatprep.subr.mxu0 0.0
  %5420 = vmatpush2.msra.mxu0 0.0
  %5421 = vmatprep.subr.mxu0 0.0
  %5422 = vmatpush2.msra.mxu0 0.0
  %5423 = vmatprep.mubr.f32.mxu0 0.0
  %v5424 = vand.u32 %v5184, 4294901760
  %v5425 = vsub.f32 %v5184, %v5424
  %5426 = vmatmul.mubr.f32.gmra.mxu0 %v5425
  %v5427 = vpop.f32.mrf.mxu0
  %v5428 = vadd.f32 %v5348, %v5427
  %v5429 = vpop.f32.mrf.mxu0
  %5430 = vmatprep.mubr.f32.mxu0 0.0
  %v5431 = vand.u32 %v5187, 4294901760
  %v5432 = vsub.f32 %v5187, %v5431
  %5433 = vmatmul.mubr.f32.gmra.mxu0 %v5432
  %v5434 = vpop.f32.mrf.mxu0
  %v5435 = vadd.f32 %v5354, %v5434
  %v5436 = vpop.f32.mrf.mxu0
  %5437 = vdwg.mxu0
  %5438 = vmatprep.subr.mxu0 0.0
  %5439 = vmatpush1.msra.mxu0 0.0
  %5440 = vmatprep.subr.mxu0 0.0
  %5441 = vmatpush1.msra.mxu0 0.0
  %5442 = vmatprep.subr.mxu0 0.0
  %5443 = vmatpush1.msra.mxu0 0.0
  %5444 = vmatprep.subr.mxu0 0.0
  %5445 = vmatpush1.msra.mxu0 0.0
  %5446 = vmatprep.subr.mxu0 0.0
  %5447 = vmatpush1.msra.mxu0 0.0
  %5448 = vmatprep.subr.mxu0 0.0
  %5449 = vmatpush1.msra.mxu0 0.0
  %5450 = vmatprep.subr.mxu0 0.0
  %5451 = vmatpush1.msra.mxu0 0.0
  %5452 = vmatprep.subr.mxu0 0.0
  %5453 = vmatpush1.msra.mxu0 0.0
  %5454 = vmatprep.subr.mxu0 0.0
  %5455 = vmatpush1.msra.mxu0 0.0
  %5456 = vmatprep.subr.mxu0 0.0
  %5457 = vmatpush1.msra.mxu0 0.0
  %5458 = vmatprep.subr.mxu0 0.0
  %5459 = vmatpush1.msra.mxu0 0.0
  %5460 = vmatprep.subr.mxu0 0.0
  %5461 = vmatpush1.msra.mxu0 0.0
  %5462 = vmatprep.subr.mxu0 0.0
  %5463 = vmatpush1.msra.mxu0 0.0
  %5464 = vmatprep.subr.mxu0 0.0
  %5465 = vmatpush1.msra.mxu0 0.0
  %5466 = vmatprep.subr.mxu0 0.0
  %5467 = vmatpush1.msra.mxu0 0.0
  %5468 = vmatprep.subr.mxu0 0.0
  %v5469 = vand.u32 %v5182, 4294901760
  %5470 = vmatpush1.msra.mxu0 %v5469
  %5471 = vmatprep.subr.mxu0 0.0
  %5472 = vmatpush2.msra.mxu0 0.0
  %5473 = vmatprep.subr.mxu0 0.0
  %5474 = vmatpush2.msra.mxu0 0.0
  %5475 = vmatprep.subr.mxu0 0.0
  %5476 = vmatpush2.msra.mxu0 0.0
  %5477 = vmatprep.subr.mxu0 0.0
  %5478 = vmatpush2.msra.mxu0 0.0
  %5479 = vmatprep.subr.mxu0 0.0
  %5480 = vmatpush2.msra.mxu0 0.0
  %5481 = vmatprep.subr.mxu0 0.0
  %5482 = vmatpush2.msra.mxu0 0.0
  %5483 = vmatprep.subr.mxu0 0.0
  %5484 = vmatpush2.msra.mxu0 0.0
  %5485 = vmatprep.subr.mxu0 0.0
  %5486 = vmatpush2.msra.mxu0 0.0
  %5487 = vmatprep.subr.mxu0 0.0
  %5488 = vmatpush2.msra.mxu0 0.0
  %5489 = vmatprep.subr.mxu0 0.0
  %5490 = vmatpush2.msra.mxu0 0.0
  %5491 = vmatprep.subr.mxu0 0.0
  %5492 = vmatpush2.msra.mxu0 0.0
  %5493 = vmatprep.subr.mxu0 0.0
  %5494 = vmatpush2.msra.mxu0 0.0
  %5495 = vmatprep.subr.mxu0 0.0
  %5496 = vmatpush2.msra.mxu0 0.0
  %5497 = vmatprep.subr.mxu0 0.0
  %5498 = vmatpush2.msra.mxu0 0.0
  %5499 = vmatprep.subr.mxu0 0.0
  %5500 = vmatpush2.msra.mxu0 0.0
  %5501 = vmatprep.subr.mxu0 0.0
  %5502 = vmatpush2.msra.mxu0 0.0
  %5503 = vmatprep.mubr.f32.mxu0 0.0
  %v5504 = vand.u32 %v5184, 4294901760
  %v5505 = vsub.f32 %v5184, %v5504
  %v5506 = vand.u32 %v5505, 4294901760
  %5507 = vmatmul.mubr.f32.gmra.mxu0 %v5506
  %v5508 = vpop.f32.mrf.mxu0
  %v5509 = vadd.f32 %v5428, %v5508
  %v5510 = vpop.f32.mrf.mxu0
  %5511 = vmatprep.mubr.f32.mxu0 0.0
  %v5512 = vand.u32 %v5187, 4294901760
  %v5513 = vsub.f32 %v5187, %v5512
  %v5514 = vand.u32 %v5513, 4294901760
  %5515 = vmatmul.mubr.f32.gmra.mxu0 %v5514
  %v5516 = vpop.f32.mrf.mxu0
  %v5517 = vadd.f32 %v5435, %v5516
  %v5518 = vpop.f32.mrf.mxu0
  %5519 = vdwg.mxu0
  %5520 = vmatprep.subr.mxu0 0.0
  %5521 = vmatpush1.msra.mxu0 0.0
  %5522 = vmatprep.subr.mxu0 0.0
  %5523 = vmatpush1.msra.mxu0 0.0
  %5524 = vmatprep.subr.mxu0 0.0
  %5525 = vmatpush1.msra.mxu0 0.0
  %5526 = vmatprep.subr.mxu0 0.0
  %5527 = vmatpush1.msra.mxu0 0.0
  %5528 = vmatprep.subr.mxu0 0.0
  %5529 = vmatpush1.msra.mxu0 0.0
  %5530 = vmatprep.subr.mxu0 0.0
  %5531 = vmatpush1.msra.mxu0 0.0
  %5532 = vmatprep.subr.mxu0 0.0
  %5533 = vmatpush1.msra.mxu0 0.0
  %5534 = vmatprep.subr.mxu0 0.0
  %5535 = vmatpush1.msra.mxu0 0.0
  %5536 = vmatprep.subr.mxu0 0.0
  %5537 = vmatpush1.msra.mxu0 0.0
  %5538 = vmatprep.subr.mxu0 0.0
  %5539 = vmatpush1.msra.mxu0 0.0
  %5540 = vmatprep.subr.mxu0 0.0
  %5541 = vmatpush1.msra.mxu0 0.0
  %5542 = vmatprep.subr.mxu0 0.0
  %5543 = vmatpush1.msra.mxu0 0.0
  %5544 = vmatprep.subr.mxu0 0.0
  %5545 = vmatpush1.msra.mxu0 0.0
  %5546 = vmatprep.subr.mxu0 0.0
  %5547 = vmatpush1.msra.mxu0 0.0
  %5548 = vmatprep.subr.mxu0 0.0
  %5549 = vmatpush1.msra.mxu0 0.0
  %5550 = vmatprep.subr.mxu0 0.0
  %v5551 = vand.u32 %v5182, 4294901760
  %v5552 = vsub.f32 %v5182, %v5551
  %v5553 = vand.u32 %v5552, 4294901760
  %5554 = vmatpush1.msra.mxu0 %v5553
  %5555 = vmatprep.subr.mxu0 0.0
  %5556 = vmatpush2.msra.mxu0 0.0
  %5557 = vmatprep.subr.mxu0 0.0
  %5558 = vmatpush2.msra.mxu0 0.0
  %5559 = vmatprep.subr.mxu0 0.0
  %5560 = vmatpush2.msra.mxu0 0.0
  %5561 = vmatprep.subr.mxu0 0.0
  %5562 = vmatpush2.msra.mxu0 0.0
  %5563 = vmatprep.subr.mxu0 0.0
  %5564 = vmatpush2.msra.mxu0 0.0
  %5565 = vmatprep.subr.mxu0 0.0
  %5566 = vmatpush2.msra.mxu0 0.0
  %5567 = vmatprep.subr.mxu0 0.0
  %5568 = vmatpush2.msra.mxu0 0.0
  %5569 = vmatprep.subr.mxu0 0.0
  %5570 = vmatpush2.msra.mxu0 0.0
  %5571 = vmatprep.subr.mxu0 0.0
  %5572 = vmatpush2.msra.mxu0 0.0
  %5573 = vmatprep.subr.mxu0 0.0
  %5574 = vmatpush2.msra.mxu0 0.0
  %5575 = vmatprep.subr.mxu0 0.0
  %5576 = vmatpush2.msra.mxu0 0.0
  %5577 = vmatprep.subr.mxu0 0.0
  %5578 = vmatpush2.msra.mxu0 0.0
  %5579 = vmatprep.subr.mxu0 0.0
  %5580 = vmatpush2.msra.mxu0 0.0
  %5581 = vmatprep.subr.mxu0 0.0
  %5582 = vmatpush2.msra.mxu0 0.0
  %5583 = vmatprep.subr.mxu0 0.0
  %5584 = vmatpush2.msra.mxu0 0.0
  %5585 = vmatprep.subr.mxu0 0.0
  %5586 = vmatpush2.msra.mxu0 0.0
  %5587 = vmatprep.mubr.f32.mxu0 0.0
  %v5588 = vand.u32 %v5184, 4294901760
  %5589 = vmatmul.mubr.f32.gmra.mxu0 %v5588
  %v5590 = vpop.f32.mrf.mxu0
  %v5591 = vadd.f32 %v5509, %v5590
  %v5592 = vpop.f32.mrf.mxu0
  %5593 = vmatprep.mubr.f32.mxu0 0.0
  %v5594 = vand.u32 %v5187, 4294901760
  %5595 = vmatmul.mubr.f32.gmra.mxu0 %v5594
  %v5596 = vpop.f32.mrf.mxu0
  %v5597 = vadd.f32 %v5517, %v5596
  %v5598 = vpop.f32.mrf.mxu0
  %5599 = vdwg.mxu0
  %5600 = vmatprep.subr.mxu0 0.0
  %5601 = vmatpush1.msra.mxu0 0.0
  %5602 = vmatprep.subr.mxu0 0.0
  %5603 = vmatpush1.msra.mxu0 0.0
  %5604 = vmatprep.subr.mxu0 0.0
  %5605 = vmatpush1.msra.mxu0 0.0
  %5606 = vmatprep.subr.mxu0 0.0
  %5607 = vmatpush1.msra.mxu0 0.0
  %5608 = vmatprep.subr.mxu0 0.0
  %5609 = vmatpush1.msra.mxu0 0.0
  %5610 = vmatprep.subr.mxu0 0.0
  %5611 = vmatpush1.msra.mxu0 0.0
  %5612 = vmatprep.subr.mxu0 0.0
  %5613 = vmatpush1.msra.mxu0 0.0
  %5614 = vmatprep.subr.mxu0 0.0
  %5615 = vmatpush1.msra.mxu0 0.0
  %5616 = vmatprep.subr.mxu0 0.0
  %5617 = vmatpush1.msra.mxu0 0.0
  %5618 = vmatprep.subr.mxu0 0.0
  %5619 = vmatpush1.msra.mxu0 0.0
  %5620 = vmatprep.subr.mxu0 0.0
  %5621 = vmatpush1.msra.mxu0 0.0
  %5622 = vmatprep.subr.mxu0 0.0
  %5623 = vmatpush1.msra.mxu0 0.0
  %5624 = vmatprep.subr.mxu0 0.0
  %5625 = vmatpush1.msra.mxu0 0.0
  %5626 = vmatprep.subr.mxu0 0.0
  %5627 = vmatpush1.msra.mxu0 0.0
  %5628 = vmatprep.subr.mxu0 0.0
  %5629 = vmatpush1.msra.mxu0 0.0
  %5630 = vmatprep.subr.mxu0 0.0
  %v5631 = vand.u32 %v5182, 4294901760
  %5632 = vmatpush1.msra.mxu0 %v5631
  %5633 = vmatprep.subr.mxu0 0.0
  %5634 = vmatpush2.msra.mxu0 0.0
  %5635 = vmatprep.subr.mxu0 0.0
  %5636 = vmatpush2.msra.mxu0 0.0
  %5637 = vmatprep.subr.mxu0 0.0
  %5638 = vmatpush2.msra.mxu0 0.0
  %5639 = vmatprep.subr.mxu0 0.0
  %5640 = vmatpush2.msra.mxu0 0.0
  %5641 = vmatprep.subr.mxu0 0.0
  %5642 = vmatpush2.msra.mxu0 0.0
  %5643 = vmatprep.subr.mxu0 0.0
  %5644 = vmatpush2.msra.mxu0 0.0
  %5645 = vmatprep.subr.mxu0 0.0
  %5646 = vmatpush2.msra.mxu0 0.0
  %5647 = vmatprep.subr.mxu0 0.0
  %5648 = vmatpush2.msra.mxu0 0.0
  %5649 = vmatprep.subr.mxu0 0.0
  %5650 = vmatpush2.msra.mxu0 0.0
  %5651 = vmatprep.subr.mxu0 0.0
  %5652 = vmatpush2.msra.mxu0 0.0
  %5653 = vmatprep.subr.mxu0 0.0
  %5654 = vmatpush2.msra.mxu0 0.0
  %5655 = vmatprep.subr.mxu0 0.0
  %5656 = vmatpush2.msra.mxu0 0.0
  %5657 = vmatprep.subr.mxu0 0.0
  %5658 = vmatpush2.msra.mxu0 0.0
  %5659 = vmatprep.subr.mxu0 0.0
  %5660 = vmatpush2.msra.mxu0 0.0
  %5661 = vmatprep.subr.mxu0 0.0
  %5662 = vmatpush2.msra.mxu0 0.0
  %5663 = vmatprep.subr.mxu0 0.0
  %5664 = vmatpush2.msra.mxu0 0.0
  %5665 = vmatprep.mubr.f32.mxu0 0.0
  %v5666 = vand.u32 %v5184, 4294901760
  %5667 = vmatmul.mubr.f32.gmra.mxu0 %v5666
  %v5668 = vpop.f32.mrf.mxu0
  %v5669 = vadd.f32 %v5591, %v5668
  %v5670 = vpop.f32.mrf.mxu0
  %5671 = vmatprep.mubr.f32.mxu0 0.0
  %v5672 = vand.u32 %v5187, 4294901760
  %5673 = vmatmul.mubr.f32.gmra.mxu0 %v5672
  %v5674 = vpop.f32.mrf.mxu0
  %v5675 = vadd.f32 %v5597, %v5674
  %v5676 = vpop.f32.mrf.mxu0
  %5677 = vdwg.mxu0
  %5678 = vset.pattern.permute.xlu0 16
  %5679 = vperm.xlu0 %5678, %v1337
  %v5680 = vpop.permute.xlu0 %5679
  %5682 = vset.pattern.permute.xlu0 16
  %5683 = vperm.xlu0 %5682, %v1338
  %v5684 = vpop.permute.xlu0 %5683
  %v5686 = vmul.f32 %v5669, %v5680
  %v5687 = vmul.f32 %v5675, %v5684
  %5688 = vset.pattern.permute.xlu0 17
  %5689 = vperm.xlu0 %5688, %v1337
  %v5690 = vpop.permute.xlu0 %5689
  %5692 = vset.pattern.permute.xlu0 17
  %5693 = vperm.xlu0 %5692, %v1338
  %v5694 = vpop.permute.xlu0 %5693
  %v5696 = vadd.f32 %v5686, %v5690
  %v5697 = vadd.f32 %v5687, %v5694
  %vm5698 = vcmp.gt.f32.partialorder %v5696, 0.0
  %vm5699 = vcmp.gt.f32.partialorder %v5697, 0.0
  %v5700 = vmul.f32 %v5696, 1.442695
  %v5701 = vpow.pop %v5700
  %v5702 = vmul.f32 %v5697, 1.442695
  %v5703 = vpow.pop %v5702
  %v5704 = vsub.f32 %v5701, 1.0
  %v5705 = vsub.f32 %v5703, 1.0
  %v5706 = vmul.f32 %v5704, 1.6732632
  %v5707 = vmul.f32 %v5705, 1.6732632
  %v5708 = vsel %vm5698, %v5696, %v5706
  %v5709 = vsel %vm5699, %v5697, %v5707
  %v5710 = vmul.f32 %v5708, 1.050701
  %v5711 = vmul.f32 %v5709, 1.050701
  %5712 = vxpose.xlu0.b32.start [1/16] %v5710, 128
  %5713 = vxpose.xlu0.b32.cont [2/16] %v5711, 128
  %5714 = vxpose.xlu0.b32.cont [3/16] 0.0, 128
  %5715 = vxpose.xlu0.b32.cont [4/16] 0.0, 128
  %5716 = vxpose.xlu0.b32.cont [5/16] 0.0, 128
  %5717 = vxpose.xlu0.b32.cont [6/16] 0.0, 128
  %5718 = vxpose.xlu0.b32.cont [7/16] 0.0, 128
  %5719 = vxpose.xlu0.b32.cont [8/16] 0.0, 128
  %5720 = vxpose.xlu0.b32.cont [9/16] 0.0, 128
  %5721 = vxpose.xlu0.b32.cont [10/16] 0.0, 128
  %5722 = vxpose.xlu0.b32.cont [11/16] 0.0, 128
  %5723 = vxpose.xlu0.b32.cont [12/16] 0.0, 128
  %5724 = vxpose.xlu0.b32.cont [13/16] 0.0, 128
  %5725 = vxpose.xlu0.b32.cont [14/16] 0.0, 128
  %5726 = vxpose.xlu0.b32.cont [15/16] 0.0, 128
  %5727 = vxpose.xlu0.b32.end [16/16] 0.0, 128
  %v5728 = vpop.trf.xlu0
  %v5729 = vpop.trf.xlu0
  %v5730 = vpop.trf.xlu0
  %v5731 = vpop.trf.xlu0
  %v5732 = vpop.trf.xlu0
  %v5733 = vpop.trf.xlu0
  %v5734 = vpop.trf.xlu0
  %v5735 = vpop.trf.xlu0
  %v5736 = vpop.trf.xlu0
  %v5737 = vpop.trf.xlu0
  %v5738 = vpop.trf.xlu0
  %v5739 = vpop.trf.xlu0
  %v5740 = vpop.trf.xlu0
  %v5741 = vpop.trf.xlu0
  %v5742 = vpop.trf.xlu0
  %v5743 = vpop.trf.xlu0
  %s5744 = scalar_lea.vmem %s5, 48
  %v5745 = vld [vmem:[%s5744] sm:$0xff]
  %v5746 = vld [vmem:[%s5744 + $0x8] sm:$0xff]
  %5747 = vrot.lane.b32.xlu0 %v1321, 112
  %v5748 = vpop.permute.xlu0 %5747
  %5749 = vrot.lane.b32.xlu0 %v1322, 112
  %v5750 = vpop.permute.xlu0 %5749
  %v5751 = vsel %vm664, %v5748, 0
  %v5753 = vsel %vm664, %v5750, 0
  %5755 = vmatprep.subr.mxu0 0.0
  %5756 = vmatpush1.msra.mxu0 0.0
  %5757 = vmatprep.subr.mxu0 0.0
  %5758 = vmatpush1.msra.mxu0 0.0
  %5759 = vmatprep.subr.mxu0 0.0
  %5760 = vmatpush1.msra.mxu0 0.0
  %5761 = vmatprep.subr.mxu0 0.0
  %5762 = vmatpush1.msra.mxu0 0.0
  %5763 = vmatprep.subr.mxu0 0.0
  %5764 = vmatpush1.msra.mxu0 0.0
  %5765 = vmatprep.subr.mxu0 0.0
  %5766 = vmatpush1.msra.mxu0 0.0
  %5767 = vmatprep.subr.mxu0 0.0
  %5768 = vmatpush1.msra.mxu0 0.0
  %5769 = vmatprep.subr.mxu0 0.0
  %5770 = vmatpush1.msra.mxu0 0.0
  %5771 = vmatprep.subr.mxu0 0.0
  %5772 = vmatpush1.msra.mxu0 0.0
  %5773 = vmatprep.subr.mxu0 0.0
  %5774 = vmatpush1.msra.mxu0 0.0
  %5775 = vmatprep.subr.mxu0 0.0
  %5776 = vmatpush1.msra.mxu0 0.0
  %5777 = vmatprep.subr.mxu0 0.0
  %5778 = vmatpush1.msra.mxu0 0.0
  %5779 = vmatprep.subr.mxu0 0.0
  %5780 = vmatpush1.msra.mxu0 0.0
  %5781 = vmatprep.subr.mxu0 0.0
  %5782 = vmatpush1.msra.mxu0 0.0
  %5783 = vmatprep.subr.mxu0 0.0
  %v5784 = vand.u32 %v5746, 4294901760
  %5785 = vmatpush1.msra.mxu0 %v5784
  %5786 = vmatprep.subr.mxu0 0.0
  %v5787 = vand.u32 %v5745, 4294901760
  %5788 = vmatpush1.msra.mxu0 %v5787
  %5789 = vmatprep.subr.mxu0 0.0
  %5790 = vmatpush2.msra.mxu0 0.0
  %5791 = vmatprep.subr.mxu0 0.0
  %5792 = vmatpush2.msra.mxu0 0.0
  %5793 = vmatprep.subr.mxu0 0.0
  %5794 = vmatpush2.msra.mxu0 0.0
  %5795 = vmatprep.subr.mxu0 0.0
  %5796 = vmatpush2.msra.mxu0 0.0
  %5797 = vmatprep.subr.mxu0 0.0
  %5798 = vmatpush2.msra.mxu0 0.0
  %5799 = vmatprep.subr.mxu0 0.0
  %5800 = vmatpush2.msra.mxu0 0.0
  %5801 = vmatprep.subr.mxu0 0.0
  %5802 = vmatpush2.msra.mxu0 0.0
  %5803 = vmatprep.subr.mxu0 0.0
  %5804 = vmatpush2.msra.mxu0 0.0
  %5805 = vmatprep.subr.mxu0 0.0
  %5806 = vmatpush2.msra.mxu0 0.0
  %5807 = vmatprep.subr.mxu0 0.0
  %5808 = vmatpush2.msra.mxu0 0.0
  %5809 = vmatprep.subr.mxu0 0.0
  %5810 = vmatpush2.msra.mxu0 0.0
  %5811 = vmatprep.subr.mxu0 0.0
  %5812 = vmatpush2.msra.mxu0 0.0
  %5813 = vmatprep.subr.mxu0 0.0
  %5814 = vmatpush2.msra.mxu0 0.0
  %5815 = vmatprep.subr.mxu0 0.0
  %5816 = vmatpush2.msra.mxu0 0.0
  %5817 = vmatprep.subr.mxu0 0.0
  %5818 = vmatpush2.msra.mxu0 0.0
  %5819 = vmatprep.subr.mxu0 0.0
  %5820 = vmatpush2.msra.mxu0 0.0
  %5821 = vmatprep.mubr.f32.mxu0 0.0
  %v5822 = vand.u32 %v5751, 4294901760
  %v5823 = vsub.f32 %v5751, %v5822
  %v5824 = vand.u32 %v5823, 4294901760
  %v5825 = vsub.f32 %v5823, %v5824
  %v5826 = vand.u32 %v5825, 4294901760
  %5827 = vmatmul.mubr.f32.gmra.mxu0 %v5826
  %v5828 = vpop.f32.mrf.mxu0
  %v5829 = vadd.f32 0.0, %v5828
  %v5830 = vpop.f32.mrf.mxu0
  %5831 = vmatprep.mubr.f32.mxu0 0.0
  %v5832 = vand.u32 %v5753, 4294901760
  %v5833 = vsub.f32 %v5753, %v5832
  %v5834 = vand.u32 %v5833, 4294901760
  %v5835 = vsub.f32 %v5833, %v5834
  %v5836 = vand.u32 %v5835, 4294901760
  %5837 = vmatmul.mubr.f32.gmra.mxu0 %v5836
  %v5838 = vpop.f32.mrf.mxu0
  %v5839 = vadd.f32 0.0, %v5838
  %v5840 = vpop.f32.mrf.mxu0
  %5841 = vdwg.mxu0
  %5842 = vmatprep.subr.mxu0 0.0
  %5843 = vmatpush1.msra.mxu0 0.0
  %5844 = vmatprep.subr.mxu0 0.0
  %5845 = vmatpush1.msra.mxu0 0.0
  %5846 = vmatprep.subr.mxu0 0.0
  %5847 = vmatpush1.msra.mxu0 0.0
  %5848 = vmatprep.subr.mxu0 0.0
  %5849 = vmatpush1.msra.mxu0 0.0
  %5850 = vmatprep.subr.mxu0 0.0
  %5851 = vmatpush1.msra.mxu0 0.0
  %5852 = vmatprep.subr.mxu0 0.0
  %5853 = vmatpush1.msra.mxu0 0.0
  %5854 = vmatprep.subr.mxu0 0.0
  %5855 = vmatpush1.msra.mxu0 0.0
  %5856 = vmatprep.subr.mxu0 0.0
  %5857 = vmatpush1.msra.mxu0 0.0
  %5858 = vmatprep.subr.mxu0 0.0
  %5859 = vmatpush1.msra.mxu0 0.0
  %5860 = vmatprep.subr.mxu0 0.0
  %5861 = vmatpush1.msra.mxu0 0.0
  %5862 = vmatprep.subr.mxu0 0.0
  %5863 = vmatpush1.msra.mxu0 0.0
  %5864 = vmatprep.subr.mxu0 0.0
  %5865 = vmatpush1.msra.mxu0 0.0
  %5866 = vmatprep.subr.mxu0 0.0
  %5867 = vmatpush1.msra.mxu0 0.0
  %5868 = vmatprep.subr.mxu0 0.0
  %5869 = vmatpush1.msra.mxu0 0.0
  %5870 = vmatprep.subr.mxu0 0.0
  %v5871 = vand.u32 %v5746, 4294901760
  %v5872 = vsub.f32 %v5746, %v5871
  %v5873 = vand.u32 %v5872, 4294901760
  %v5874 = vsub.f32 %v5872, %v5873
  %v5875 = vand.u32 %v5874, 4294901760
  %5876 = vmatpush1.msra.mxu0 %v5875
  %5877 = vmatprep.subr.mxu0 0.0
  %v5878 = vand.u32 %v5745, 4294901760
  %v5879 = vsub.f32 %v5745, %v5878
  %v5880 = vand.u32 %v5879, 4294901760
  %v5881 = vsub.f32 %v5879, %v5880
  %v5882 = vand.u32 %v5881, 4294901760
  %5883 = vmatpush1.msra.mxu0 %v5882
  %5884 = vmatprep.subr.mxu0 0.0
  %5885 = vmatpush2.msra.mxu0 0.0
  %5886 = vmatprep.subr.mxu0 0.0
  %5887 = vmatpush2.msra.mxu0 0.0
  %5888 = vmatprep.subr.mxu0 0.0
  %5889 = vmatpush2.msra.mxu0 0.0
  %5890 = vmatprep.subr.mxu0 0.0
  %5891 = vmatpush2.msra.mxu0 0.0
  %5892 = vmatprep.subr.mxu0 0.0
  %5893 = vmatpush2.msra.mxu0 0.0
  %5894 = vmatprep.subr.mxu0 0.0
  %5895 = vmatpush2.msra.mxu0 0.0
  %5896 = vmatprep.subr.mxu0 0.0
  %5897 = vmatpush2.msra.mxu0 0.0
  %5898 = vmatprep.subr.mxu0 0.0
  %5899 = vmatpush2.msra.mxu0 0.0
  %5900 = vmatprep.subr.mxu0 0.0
  %5901 = vmatpush2.msra.mxu0 0.0
  %5902 = vmatprep.subr.mxu0 0.0
  %5903 = vmatpush2.msra.mxu0 0.0
  %5904 = vmatprep.subr.mxu0 0.0
  %5905 = vmatpush2.msra.mxu0 0.0
  %5906 = vmatprep.subr.mxu0 0.0
  %5907 = vmatpush2.msra.mxu0 0.0
  %5908 = vmatprep.subr.mxu0 0.0
  %5909 = vmatpush2.msra.mxu0 0.0
  %5910 = vmatprep.subr.mxu0 0.0
  %5911 = vmatpush2.msra.mxu0 0.0
  %5912 = vmatprep.subr.mxu0 0.0
  %5913 = vmatpush2.msra.mxu0 0.0
  %5914 = vmatprep.subr.mxu0 0.0
  %5915 = vmatpush2.msra.mxu0 0.0
  %5916 = vmatprep.mubr.f32.mxu0 0.0
  %v5917 = vand.u32 %v5751, 4294901760
  %5918 = vmatmul.mubr.f32.gmra.mxu0 %v5917
  %v5919 = vpop.f32.mrf.mxu0
  %v5920 = vadd.f32 %v5829, %v5919
  %v5921 = vpop.f32.mrf.mxu0
  %5922 = vmatprep.mubr.f32.mxu0 0.0
  %v5923 = vand.u32 %v5753, 4294901760
  %5924 = vmatmul.mubr.f32.gmra.mxu0 %v5923
  %v5925 = vpop.f32.mrf.mxu0
  %v5926 = vadd.f32 %v5839, %v5925
  %v5927 = vpop.f32.mrf.mxu0
  %5928 = vdwg.mxu0
  %5929 = vmatprep.subr.mxu0 0.0
  %5930 = vmatpush1.msra.mxu0 0.0
  %5931 = vmatprep.subr.mxu0 0.0
  %5932 = vmatpush1.msra.mxu0 0.0
  %5933 = vmatprep.subr.mxu0 0.0
  %5934 = vmatpush1.msra.mxu0 0.0
  %5935 = vmatprep.subr.mxu0 0.0
  %5936 = vmatpush1.msra.mxu0 0.0
  %5937 = vmatprep.subr.mxu0 0.0
  %5938 = vmatpush1.msra.mxu0 0.0
  %5939 = vmatprep.subr.mxu0 0.0
  %5940 = vmatpush1.msra.mxu0 0.0
  %5941 = vmatprep.subr.mxu0 0.0
  %5942 = vmatpush1.msra.mxu0 0.0
  %5943 = vmatprep.subr.mxu0 0.0
  %5944 = vmatpush1.msra.mxu0 0.0
  %5945 = vmatprep.subr.mxu0 0.0
  %5946 = vmatpush1.msra.mxu0 0.0
  %5947 = vmatprep.subr.mxu0 0.0
  %5948 = vmatpush1.msra.mxu0 0.0
  %5949 = vmatprep.subr.mxu0 0.0
  %5950 = vmatpush1.msra.mxu0 0.0
  %5951 = vmatprep.subr.mxu0 0.0
  %5952 = vmatpush1.msra.mxu0 0.0
  %5953 = vmatprep.subr.mxu0 0.0
  %5954 = vmatpush1.msra.mxu0 0.0
  %5955 = vmatprep.subr.mxu0 0.0
  %5956 = vmatpush1.msra.mxu0 0.0
  %5957 = vmatprep.subr.mxu0 0.0
  %v5958 = vand.u32 %v5746, 4294901760
  %v5959 = vsub.f32 %v5746, %v5958
  %5960 = vmatpush1.msra.mxu0 %v5959
  %5961 = vmatprep.subr.mxu0 0.0
  %v5962 = vand.u32 %v5745, 4294901760
  %v5963 = vsub.f32 %v5745, %v5962
  %5964 = vmatpush1.msra.mxu0 %v5963
  %5965 = vmatprep.subr.mxu0 0.0
  %5966 = vmatpush2.msra.mxu0 0.0
  %5967 = vmatprep.subr.mxu0 0.0
  %5968 = vmatpush2.msra.mxu0 0.0
  %5969 = vmatprep.subr.mxu0 0.0
  %5970 = vmatpush2.msra.mxu0 0.0
  %5971 = vmatprep.subr.mxu0 0.0
  %5972 = vmatpush2.msra.mxu0 0.0
  %5973 = vmatprep.subr.mxu0 0.0
  %5974 = vmatpush2.msra.mxu0 0.0
  %5975 = vmatprep.subr.mxu0 0.0
  %5976 = vmatpush2.msra.mxu0 0.0
  %5977 = vmatprep.subr.mxu0 0.0
  %5978 = vmatpush2.msra.mxu0 0.0
  %5979 = vmatprep.subr.mxu0 0.0
  %5980 = vmatpush2.msra.mxu0 0.0
  %5981 = vmatprep.subr.mxu0 0.0
  %5982 = vmatpush2.msra.mxu0 0.0
  %5983 = vmatprep.subr.mxu0 0.0
  %5984 = vmatpush2.msra.mxu0 0.0
  %5985 = vmatprep.subr.mxu0 0.0
  %5986 = vmatpush2.msra.mxu0 0.0
  %5987 = vmatprep.subr.mxu0 0.0
  %5988 = vmatpush2.msra.mxu0 0.0
  %5989 = vmatprep.subr.mxu0 0.0
  %5990 = vmatpush2.msra.mxu0 0.0
  %5991 = vmatprep.subr.mxu0 0.0
  %5992 = vmatpush2.msra.mxu0 0.0
  %5993 = vmatprep.subr.mxu0 0.0
  %5994 = vmatpush2.msra.mxu0 0.0
  %5995 = vmatprep.subr.mxu0 0.0
  %5996 = vmatpush2.msra.mxu0 0.0
  %5997 = vmatprep.mubr.f32.mxu0 0.0
  %v5998 = vand.u32 %v5751, 4294901760
  %v5999 = vsub.f32 %v5751, %v5998
  %6000 = vmatmul.mubr.f32.gmra.mxu0 %v5999
  %v6001 = vpop.f32.mrf.mxu0
  %v6002 = vadd.f32 %v5920, %v6001
  %v6003 = vpop.f32.mrf.mxu0
  %6004 = vmatprep.mubr.f32.mxu0 0.0
  %v6005 = vand.u32 %v5753, 4294901760
  %v6006 = vsub.f32 %v5753, %v6005
  %6007 = vmatmul.mubr.f32.gmra.mxu0 %v6006
  %v6008 = vpop.f32.mrf.mxu0
  %v6009 = vadd.f32 %v5926, %v6008
  %v6010 = vpop.f32.mrf.mxu0
  %6011 = vdwg.mxu0
  %6012 = vmatprep.subr.mxu0 0.0
  %6013 = vmatpush1.msra.mxu0 0.0
  %6014 = vmatprep.subr.mxu0 0.0
  %6015 = vmatpush1.msra.mxu0 0.0
  %6016 = vmatprep.subr.mxu0 0.0
  %6017 = vmatpush1.msra.mxu0 0.0
  %6018 = vmatprep.subr.mxu0 0.0
  %6019 = vmatpush1.msra.mxu0 0.0
  %6020 = vmatprep.subr.mxu0 0.0
  %6021 = vmatpush1.msra.mxu0 0.0
  %6022 = vmatprep.subr.mxu0 0.0
  %6023 = vmatpush1.msra.mxu0 0.0
  %6024 = vmatprep.subr.mxu0 0.0
  %6025 = vmatpush1.msra.mxu0 0.0
  %6026 = vmatprep.subr.mxu0 0.0
  %6027 = vmatpush1.msra.mxu0 0.0
  %6028 = vmatprep.subr.mxu0 0.0
  %6029 = vmatpush1.msra.mxu0 0.0
  %6030 = vmatprep.subr.mxu0 0.0
  %6031 = vmatpush1.msra.mxu0 0.0
  %6032 = vmatprep.subr.mxu0 0.0
  %6033 = vmatpush1.msra.mxu0 0.0
  %6034 = vmatprep.subr.mxu0 0.0
  %6035 = vmatpush1.msra.mxu0 0.0
  %6036 = vmatprep.subr.mxu0 0.0
  %6037 = vmatpush1.msra.mxu0 0.0
  %6038 = vmatprep.subr.mxu0 0.0
  %6039 = vmatpush1.msra.mxu0 0.0
  %6040 = vmatprep.subr.mxu0 0.0
  %v6041 = vand.u32 %v5746, 4294901760
  %6042 = vmatpush1.msra.mxu0 %v6041
  %6043 = vmatprep.subr.mxu0 0.0
  %v6044 = vand.u32 %v5745, 4294901760
  %6045 = vmatpush1.msra.mxu0 %v6044
  %6046 = vmatprep.subr.mxu0 0.0
  %6047 = vmatpush2.msra.mxu0 0.0
  %6048 = vmatprep.subr.mxu0 0.0
  %6049 = vmatpush2.msra.mxu0 0.0
  %6050 = vmatprep.subr.mxu0 0.0
  %6051 = vmatpush2.msra.mxu0 0.0
  %6052 = vmatprep.subr.mxu0 0.0
  %6053 = vmatpush2.msra.mxu0 0.0
  %6054 = vmatprep.subr.mxu0 0.0
  %6055 = vmatpush2.msra.mxu0 0.0
  %6056 = vmatprep.subr.mxu0 0.0
  %6057 = vmatpush2.msra.mxu0 0.0
  %6058 = vmatprep.subr.mxu0 0.0
  %6059 = vmatpush2.msra.mxu0 0.0
  %6060 = vmatprep.subr.mxu0 0.0
  %6061 = vmatpush2.msra.mxu0 0.0
  %6062 = vmatprep.subr.mxu0 0.0
  %6063 = vmatpush2.msra.mxu0 0.0
  %6064 = vmatprep.subr.mxu0 0.0
  %6065 = vmatpush2.msra.mxu0 0.0
  %6066 = vmatprep.subr.mxu0 0.0
  %6067 = vmatpush2.msra.mxu0 0.0
  %6068 = vmatprep.subr.mxu0 0.0
  %6069 = vmatpush2.msra.mxu0 0.0
  %6070 = vmatprep.subr.mxu0 0.0
  %6071 = vmatpush2.msra.mxu0 0.0
  %6072 = vmatprep.subr.mxu0 0.0
  %6073 = vmatpush2.msra.mxu0 0.0
  %6074 = vmatprep.subr.mxu0 0.0
  %6075 = vmatpush2.msra.mxu0 0.0
  %6076 = vmatprep.subr.mxu0 0.0
  %6077 = vmatpush2.msra.mxu0 0.0
  %6078 = vmatprep.mubr.f32.mxu0 0.0
  %v6079 = vand.u32 %v5751, 4294901760
  %v6080 = vsub.f32 %v5751, %v6079
  %v6081 = vand.u32 %v6080, 4294901760
  %6082 = vmatmul.mubr.f32.gmra.mxu0 %v6081
  %v6083 = vpop.f32.mrf.mxu0
  %v6084 = vadd.f32 %v6002, %v6083
  %v6085 = vpop.f32.mrf.mxu0
  %6086 = vmatprep.mubr.f32.mxu0 0.0
  %v6087 = vand.u32 %v5753, 4294901760
  %v6088 = vsub.f32 %v5753, %v6087
  %v6089 = vand.u32 %v6088, 4294901760
  %6090 = vmatmul.mubr.f32.gmra.mxu0 %v6089
  %v6091 = vpop.f32.mrf.mxu0
  %v6092 = vadd.f32 %v6009, %v6091
  %v6093 = vpop.f32.mrf.mxu0
  %6094 = vdwg.mxu0
  %6095 = vmatprep.subr.mxu0 0.0
  %6096 = vmatpush1.msra.mxu0 0.0
  %6097 = vmatprep.subr.mxu0 0.0
  %6098 = vmatpush1.msra.mxu0 0.0
  %6099 = vmatprep.subr.mxu0 0.0
  %6100 = vmatpush1.msra.mxu0 0.0
  %6101 = vmatprep.subr.mxu0 0.0
  %6102 = vmatpush1.msra.mxu0 0.0
  %6103 = vmatprep.subr.mxu0 0.0
  %6104 = vmatpush1.msra.mxu0 0.0
  %6105 = vmatprep.subr.mxu0 0.0
  %6106 = vmatpush1.msra.mxu0 0.0
  %6107 = vmatprep.subr.mxu0 0.0
  %6108 = vmatpush1.msra.mxu0 0.0
  %6109 = vmatprep.subr.mxu0 0.0
  %6110 = vmatpush1.msra.mxu0 0.0
  %6111 = vmatprep.subr.mxu0 0.0
  %6112 = vmatpush1.msra.mxu0 0.0
  %6113 = vmatprep.subr.mxu0 0.0
  %6114 = vmatpush1.msra.mxu0 0.0
  %6115 = vmatprep.subr.mxu0 0.0
  %6116 = vmatpush1.msra.mxu0 0.0
  %6117 = vmatprep.subr.mxu0 0.0
  %6118 = vmatpush1.msra.mxu0 0.0
  %6119 = vmatprep.subr.mxu0 0.0
  %6120 = vmatpush1.msra.mxu0 0.0
  %6121 = vmatprep.subr.mxu0 0.0
  %6122 = vmatpush1.msra.mxu0 0.0
  %6123 = vmatprep.subr.mxu0 0.0
  %v6124 = vand.u32 %v5746, 4294901760
  %v6125 = vsub.f32 %v5746, %v6124
  %v6126 = vand.u32 %v6125, 4294901760
  %6127 = vmatpush1.msra.mxu0 %v6126
  %6128 = vmatprep.subr.mxu0 0.0
  %v6129 = vand.u32 %v5745, 4294901760
  %v6130 = vsub.f32 %v5745, %v6129
  %v6131 = vand.u32 %v6130, 4294901760
  %6132 = vmatpush1.msra.mxu0 %v6131
  %6133 = vmatprep.subr.mxu0 0.0
  %6134 = vmatpush2.msra.mxu0 0.0
  %6135 = vmatprep.subr.mxu0 0.0
  %6136 = vmatpush2.msra.mxu0 0.0
  %6137 = vmatprep.subr.mxu0 0.0
  %6138 = vmatpush2.msra.mxu0 0.0
  %6139 = vmatprep.subr.mxu0 0.0
  %6140 = vmatpush2.msra.mxu0 0.0
  %6141 = vmatprep.subr.mxu0 0.0
  %6142 = vmatpush2.msra.mxu0 0.0
  %6143 = vmatprep.subr.mxu0 0.0
  %6144 = vmatpush2.msra.mxu0 0.0
  %6145 = vmatprep.subr.mxu0 0.0
  %6146 = vmatpush2.msra.mxu0 0.0
  %6147 = vmatprep.subr.mxu0 0.0
  %6148 = vmatpush2.msra.mxu0 0.0
  %6149 = vmatprep.subr.mxu0 0.0
  %6150 = vmatpush2.msra.mxu0 0.0
  %6151 = vmatprep.subr.mxu0 0.0
  %6152 = vmatpush2.msra.mxu0 0.0
  %6153 = vmatprep.subr.mxu0 0.0
  %6154 = vmatpush2.msra.mxu0 0.0
  %6155 = vmatprep.subr.mxu0 0.0
  %6156 = vmatpush2.msra.mxu0 0.0
  %6157 = vmatprep.subr.mxu0 0.0
  %6158 = vmatpush2.msra.mxu0 0.0
  %6159 = vmatprep.subr.mxu0 0.0
  %6160 = vmatpush2.msra.mxu0 0.0
  %6161 = vmatprep.subr.mxu0 0.0
  %6162 = vmatpush2.msra.mxu0 0.0
  %6163 = vmatprep.subr.mxu0 0.0
  %6164 = vmatpush2.msra.mxu0 0.0
  %6165 = vmatprep.mubr.f32.mxu0 0.0
  %v6166 = vand.u32 %v5751, 4294901760
  %6167 = vmatmul.mubr.f32.gmra.mxu0 %v6166
  %v6168 = vpop.f32.mrf.mxu0
  %v6169 = vadd.f32 %v6084, %v6168
  %v6170 = vpop.f32.mrf.mxu0
  %6171 = vmatprep.mubr.f32.mxu0 0.0
  %v6172 = vand.u32 %v5753, 4294901760
  %6173 = vmatmul.mubr.f32.gmra.mxu0 %v6172
  %v6174 = vpop.f32.mrf.mxu0
  %v6175 = vadd.f32 %v6092, %v6174
  %v6176 = vpop.f32.mrf.mxu0
  %6177 = vdwg.mxu0
  %6178 = vmatprep.subr.mxu0 0.0
  %6179 = vmatpush1.msra.mxu0 0.0
  %6180 = vmatprep.subr.mxu0 0.0
  %6181 = vmatpush1.msra.mxu0 0.0
  %6182 = vmatprep.subr.mxu0 0.0
  %6183 = vmatpush1.msra.mxu0 0.0
  %6184 = vmatprep.subr.mxu0 0.0
  %6185 = vmatpush1.msra.mxu0 0.0
  %6186 = vmatprep.subr.mxu0 0.0
  %6187 = vmatpush1.msra.mxu0 0.0
  %6188 = vmatprep.subr.mxu0 0.0
  %6189 = vmatpush1.msra.mxu0 0.0
  %6190 = vmatprep.subr.mxu0 0.0
  %6191 = vmatpush1.msra.mxu0 0.0
  %6192 = vmatprep.subr.mxu0 0.0
  %6193 = vmatpush1.msra.mxu0 0.0
  %6194 = vmatprep.subr.mxu0 0.0
  %6195 = vmatpush1.msra.mxu0 0.0
  %6196 = vmatprep.subr.mxu0 0.0
  %6197 = vmatpush1.msra.mxu0 0.0
  %6198 = vmatprep.subr.mxu0 0.0
  %6199 = vmatpush1.msra.mxu0 0.0
  %6200 = vmatprep.subr.mxu0 0.0
  %6201 = vmatpush1.msra.mxu0 0.0
  %6202 = vmatprep.subr.mxu0 0.0
  %6203 = vmatpush1.msra.mxu0 0.0
  %6204 = vmatprep.subr.mxu0 0.0
  %6205 = vmatpush1.msra.mxu0 0.0
  %6206 = vmatprep.subr.mxu0 0.0
  %v6207 = vand.u32 %v5746, 4294901760
  %6208 = vmatpush1.msra.mxu0 %v6207
  %6209 = vmatprep.subr.mxu0 0.0
  %v6210 = vand.u32 %v5745, 4294901760
  %6211 = vmatpush1.msra.mxu0 %v6210
  %6212 = vmatprep.subr.mxu0 0.0
  %6213 = vmatpush2.msra.mxu0 0.0
  %6214 = vmatprep.subr.mxu0 0.0
  %6215 = vmatpush2.msra.mxu0 0.0
  %6216 = vmatprep.subr.mxu0 0.0
  %6217 = vmatpush2.msra.mxu0 0.0
  %6218 = vmatprep.subr.mxu0 0.0
  %6219 = vmatpush2.msra.mxu0 0.0
  %6220 = vmatprep.subr.mxu0 0.0
  %6221 = vmatpush2.msra.mxu0 0.0
  %6222 = vmatprep.subr.mxu0 0.0
  %6223 = vmatpush2.msra.mxu0 0.0
  %6224 = vmatprep.subr.mxu0 0.0
  %6225 = vmatpush2.msra.mxu0 0.0
  %6226 = vmatprep.subr.mxu0 0.0
  %6227 = vmatpush2.msra.mxu0 0.0
  %6228 = vmatprep.subr.mxu0 0.0
  %6229 = vmatpush2.msra.mxu0 0.0
  %6230 = vmatprep.subr.mxu0 0.0
  %6231 = vmatpush2.msra.mxu0 0.0
  %6232 = vmatprep.subr.mxu0 0.0
  %6233 = vmatpush2.msra.mxu0 0.0
  %6234 = vmatprep.subr.mxu0 0.0
  %6235 = vmatpush2.msra.mxu0 0.0
  %6236 = vmatprep.subr.mxu0 0.0
  %6237 = vmatpush2.msra.mxu0 0.0
  %6238 = vmatprep.subr.mxu0 0.0
  %6239 = vmatpush2.msra.mxu0 0.0
  %6240 = vmatprep.subr.mxu0 0.0
  %6241 = vmatpush2.msra.mxu0 0.0
  %6242 = vmatprep.subr.mxu0 0.0
  %6243 = vmatpush2.msra.mxu0 0.0
  %6244 = vmatprep.mubr.f32.mxu0 0.0
  %v6245 = vand.u32 %v5751, 4294901760
  %6246 = vmatmul.mubr.f32.gmra.mxu0 %v6245
  %v6247 = vpop.f32.mrf.mxu0
  %v6248 = vadd.f32 %v6169, %v6247
  %v6249 = vpop.f32.mrf.mxu0
  %6250 = vmatprep.mubr.f32.mxu0 0.0
  %v6251 = vand.u32 %v5753, 4294901760
  %6252 = vmatmul.mubr.f32.gmra.mxu0 %v6251
  %v6253 = vpop.f32.mrf.mxu0
  %v6254 = vadd.f32 %v6175, %v6253
  %v6255 = vpop.f32.mrf.mxu0
  %6256 = vdwg.mxu0
  %6257 = vset.pattern.permute.xlu0 18
  %6258 = vperm.xlu0 %6257, %v1337
  %v6259 = vpop.permute.xlu0 %6258
  %6261 = vset.pattern.permute.xlu0 18
  %6262 = vperm.xlu0 %6261, %v1338
  %v6263 = vpop.permute.xlu0 %6262
  %v6265 = vmul.f32 %v6248, %v6259
  %v6266 = vmul.f32 %v6254, %v6263
  %6267 = vset.pattern.permute.xlu0 19
  %6268 = vperm.xlu0 %6267, %v1337
  %v6269 = vpop.permute.xlu0 %6268
  %6271 = vset.pattern.permute.xlu0 19
  %6272 = vperm.xlu0 %6271, %v1338
  %v6273 = vpop.permute.xlu0 %6272
  %v6275 = vadd.f32 %v6265, %v6269
  %v6276 = vadd.f32 %v6266, %v6273
  %v6277 = vmul.f32 %v6275, %v1877
  %v6278 = vmul.f32 %v6276, %v1877
  %v6279 = vtanh.pop %v6277
  %v6280 = vtanh.pop %v6278
  %v6281 = vmul.f32 %v6279, %v3008
  %v6282 = vmul.f32 %v6280, %v3008
  %6283 = vset.pattern.permute.xlu0 20
  %6284 = vperm.xlu0 %6283, %v1337
  %v6285 = vpop.permute.xlu0 %6284
  %6287 = vset.pattern.permute.xlu0 20
  %6288 = vperm.xlu0 %6287, %v1338
  %v6289 = vpop.permute.xlu0 %6288
  %v6291 = vmul.f32 %v6281, %v6285
  %v6292 = vmul.f32 %v6282, %v6289
  %6293 = vset.pattern.permute.xlu0 21
  %6294 = vperm.xlu0 %6293, %v1337
  %v6295 = vpop.permute.xlu0 %6294
  %6297 = vset.pattern.permute.xlu0 21
  %6298 = vperm.xlu0 %6297, %v1338
  %v6299 = vpop.permute.xlu0 %6298
  %v6301 = vadd.f32 %v6291, %v6295
  %v6302 = vadd.f32 %v6292, %v6299
  %s6303 = scalar_lea.vmem %s6, 24
  %v6304 = vld [vmem:[%s6303] sm:$0xff]
  %v6306 = vsel %vm59, %v6301, 0
  %v6309 = vsel %vm59, %v6302, 0
  %6311 = vmatprep.subr.mxu0 0.0
  %6312 = vmatpush1.msra.mxu0 0.0
  %6313 = vmatprep.subr.mxu0 0.0
  %6314 = vmatpush1.msra.mxu0 0.0
  %6315 = vmatprep.subr.mxu0 0.0
  %6316 = vmatpush1.msra.mxu0 0.0
  %6317 = vmatprep.subr.mxu0 0.0
  %6318 = vmatpush1.msra.mxu0 0.0
  %6319 = vmatprep.subr.mxu0 0.0
  %6320 = vmatpush1.msra.mxu0 0.0
  %6321 = vmatprep.subr.mxu0 0.0
  %6322 = vmatpush1.msra.mxu0 0.0
  %6323 = vmatprep.subr.mxu0 0.0
  %6324 = vmatpush1.msra.mxu0 0.0
  %6325 = vmatprep.subr.mxu0 0.0
  %6326 = vmatpush1.msra.mxu0 0.0
  %6327 = vmatprep.subr.mxu0 0.0
  %6328 = vmatpush1.msra.mxu0 0.0
  %6329 = vmatprep.subr.mxu0 0.0
  %6330 = vmatpush1.msra.mxu0 0.0
  %6331 = vmatprep.subr.mxu0 0.0
  %6332 = vmatpush1.msra.mxu0 0.0
  %6333 = vmatprep.subr.mxu0 0.0
  %6334 = vmatpush1.msra.mxu0 0.0
  %6335 = vmatprep.subr.mxu0 0.0
  %6336 = vmatpush1.msra.mxu0 0.0
  %6337 = vmatprep.subr.mxu0 0.0
  %6338 = vmatpush1.msra.mxu0 0.0
  %6339 = vmatprep.subr.mxu0 0.0
  %6340 = vmatpush1.msra.mxu0 0.0
  %6341 = vmatprep.subr.mxu0 0.0
  %v6342 = vand.u32 %v6304, 4294901760
  %6343 = vmatpush1.msra.mxu0 %v6342
  %6344 = vmatprep.subr.mxu0 0.0
  %6345 = vmatpush2.msra.mxu0 0.0
  %6346 = vmatprep.subr.mxu0 0.0
  %6347 = vmatpush2.msra.mxu0 0.0
  %6348 = vmatprep.subr.mxu0 0.0
  %6349 = vmatpush2.msra.mxu0 0.0
  %6350 = vmatprep.subr.mxu0 0.0
  %6351 = vmatpush2.msra.mxu0 0.0
  %6352 = vmatprep.subr.mxu0 0.0
  %6353 = vmatpush2.msra.mxu0 0.0
  %6354 = vmatprep.subr.mxu0 0.0
  %6355 = vmatpush2.msra.mxu0 0.0
  %6356 = vmatprep.subr.mxu0 0.0
  %6357 = vmatpush2.msra.mxu0 0.0
  %6358 = vmatprep.subr.mxu0 0.0
  %6359 = vmatpush2.msra.mxu0 0.0
  %6360 = vmatprep.subr.mxu0 0.0
  %6361 = vmatpush2.msra.mxu0 0.0
  %6362 = vmatprep.subr.mxu0 0.0
  %6363 = vmatpush2.msra.mxu0 0.0
  %6364 = vmatprep.subr.mxu0 0.0
  %6365 = vmatpush2.msra.mxu0 0.0
  %6366 = vmatprep.subr.mxu0 0.0
  %6367 = vmatpush2.msra.mxu0 0.0
  %6368 = vmatprep.subr.mxu0 0.0
  %6369 = vmatpush2.msra.mxu0 0.0
  %6370 = vmatprep.subr.mxu0 0.0
  %6371 = vmatpush2.msra.mxu0 0.0
  %6372 = vmatprep.subr.mxu0 0.0
  %6373 = vmatpush2.msra.mxu0 0.0
  %6374 = vmatprep.subr.mxu0 0.0
  %6375 = vmatpush2.msra.mxu0 0.0
  %6376 = vmatprep.mubr.f32.mxu0 0.0
  %v6377 = vand.u32 %v6306, 4294901760
  %v6378 = vsub.f32 %v6306, %v6377
  %v6379 = vand.u32 %v6378, 4294901760
  %v6380 = vsub.f32 %v6378, %v6379
  %v6381 = vand.u32 %v6380, 4294901760
  %6382 = vmatmul.mubr.f32.gmra.mxu0 %v6381
  %v6383 = vpop.f32.mrf.mxu0
  %v6384 = vadd.f32 0.0, %v6383
  %v6385 = vpop.f32.mrf.mxu0
  %6386 = vmatprep.mubr.f32.mxu0 0.0
  %v6387 = vand.u32 %v6309, 4294901760
  %v6388 = vsub.f32 %v6309, %v6387
  %v6389 = vand.u32 %v6388, 4294901760
  %v6390 = vsub.f32 %v6388, %v6389
  %v6391 = vand.u32 %v6390, 4294901760
  %6392 = vmatmul.mubr.f32.gmra.mxu0 %v6391
  %v6393 = vpop.f32.mrf.mxu0
  %v6394 = vadd.f32 0.0, %v6393
  %v6395 = vpop.f32.mrf.mxu0
  %6396 = vdwg.mxu0
  %6397 = vmatprep.subr.mxu0 0.0
  %6398 = vmatpush1.msra.mxu0 0.0
  %6399 = vmatprep.subr.mxu0 0.0
  %6400 = vmatpush1.msra.mxu0 0.0
  %6401 = vmatprep.subr.mxu0 0.0
  %6402 = vmatpush1.msra.mxu0 0.0
  %6403 = vmatprep.subr.mxu0 0.0
  %6404 = vmatpush1.msra.mxu0 0.0
  %6405 = vmatprep.subr.mxu0 0.0
  %6406 = vmatpush1.msra.mxu0 0.0
  %6407 = vmatprep.subr.mxu0 0.0
  %6408 = vmatpush1.msra.mxu0 0.0
  %6409 = vmatprep.subr.mxu0 0.0
  %6410 = vmatpush1.msra.mxu0 0.0
  %6411 = vmatprep.subr.mxu0 0.0
  %6412 = vmatpush1.msra.mxu0 0.0
  %6413 = vmatprep.subr.mxu0 0.0
  %6414 = vmatpush1.msra.mxu0 0.0
  %6415 = vmatprep.subr.mxu0 0.0
  %6416 = vmatpush1.msra.mxu0 0.0
  %6417 = vmatprep.subr.mxu0 0.0
  %6418 = vmatpush1.msra.mxu0 0.0
  %6419 = vmatprep.subr.mxu0 0.0
  %6420 = vmatpush1.msra.mxu0 0.0
  %6421 = vmatprep.subr.mxu0 0.0
  %6422 = vmatpush1.msra.mxu0 0.0
  %6423 = vmatprep.subr.mxu0 0.0
  %6424 = vmatpush1.msra.mxu0 0.0
  %6425 = vmatprep.subr.mxu0 0.0
  %6426 = vmatpush1.msra.mxu0 0.0
  %6427 = vmatprep.subr.mxu0 0.0
  %v6428 = vand.u32 %v6304, 4294901760
  %v6429 = vsub.f32 %v6304, %v6428
  %v6430 = vand.u32 %v6429, 4294901760
  %v6431 = vsub.f32 %v6429, %v6430
  %v6432 = vand.u32 %v6431, 4294901760
  %6433 = vmatpush1.msra.mxu0 %v6432
  %6434 = vmatprep.subr.mxu0 0.0
  %6435 = vmatpush2.msra.mxu0 0.0
  %6436 = vmatprep.subr.mxu0 0.0
  %6437 = vmatpush2.msra.mxu0 0.0
  %6438 = vmatprep.subr.mxu0 0.0
  %6439 = vmatpush2.msra.mxu0 0.0
  %6440 = vmatprep.subr.mxu0 0.0
  %6441 = vmatpush2.msra.mxu0 0.0
  %6442 = vmatprep.subr.mxu0 0.0
  %6443 = vmatpush2.msra.mxu0 0.0
  %6444 = vmatprep.subr.mxu0 0.0
  %6445 = vmatpush2.msra.mxu0 0.0
  %6446 = vmatprep.subr.mxu0 0.0
  %6447 = vmatpush2.msra.mxu0 0.0
  %6448 = vmatprep.subr.mxu0 0.0
  %6449 = vmatpush2.msra.mxu0 0.0
  %6450 = vmatprep.subr.mxu0 0.0
  %6451 = vmatpush2.msra.mxu0 0.0
  %6452 = vmatprep.subr.mxu0 0.0
  %6453 = vmatpush2.msra.mxu0 0.0
  %6454 = vmatprep.subr.mxu0 0.0
  %6455 = vmatpush2.msra.mxu0 0.0
  %6456 = vmatprep.subr.mxu0 0.0
  %6457 = vmatpush2.msra.mxu0 0.0
  %6458 = vmatprep.subr.mxu0 0.0
  %6459 = vmatpush2.msra.mxu0 0.0
  %6460 = vmatprep.subr.mxu0 0.0
  %6461 = vmatpush2.msra.mxu0 0.0
  %6462 = vmatprep.subr.mxu0 0.0
  %6463 = vmatpush2.msra.mxu0 0.0
  %6464 = vmatprep.subr.mxu0 0.0
  %6465 = vmatpush2.msra.mxu0 0.0
  %6466 = vmatprep.mubr.f32.mxu0 0.0
  %v6467 = vand.u32 %v6306, 4294901760
  %6468 = vmatmul.mubr.f32.gmra.mxu0 %v6467
  %v6469 = vpop.f32.mrf.mxu0
  %v6470 = vadd.f32 %v6384, %v6469
  %v6471 = vpop.f32.mrf.mxu0
  %6472 = vmatprep.mubr.f32.mxu0 0.0
  %v6473 = vand.u32 %v6309, 4294901760
  %6474 = vmatmul.mubr.f32.gmra.mxu0 %v6473
  %v6475 = vpop.f32.mrf.mxu0
  %v6476 = vadd.f32 %v6394, %v6475
  %v6477 = vpop.f32.mrf.mxu0
  %6478 = vdwg.mxu0
  %6479 = vmatprep.subr.mxu0 0.0
  %6480 = vmatpush1.msra.mxu0 0.0
  %6481 = vmatprep.subr.mxu0 0.0
  %6482 = vmatpush1.msra.mxu0 0.0
  %6483 = vmatprep.subr.mxu0 0.0
  %6484 = vmatpush1.msra.mxu0 0.0
  %6485 = vmatprep.subr.mxu0 0.0
  %6486 = vmatpush1.msra.mxu0 0.0
  %6487 = vmatprep.subr.mxu0 0.0
  %6488 = vmatpush1.msra.mxu0 0.0
  %6489 = vmatprep.subr.mxu0 0.0
  %6490 = vmatpush1.msra.mxu0 0.0
  %6491 = vmatprep.subr.mxu0 0.0
  %6492 = vmatpush1.msra.mxu0 0.0
  %6493 = vmatprep.subr.mxu0 0.0
  %6494 = vmatpush1.msra.mxu0 0.0
  %6495 = vmatprep.subr.mxu0 0.0
  %6496 = vmatpush1.msra.mxu0 0.0
  %6497 = vmatprep.subr.mxu0 0.0
  %6498 = vmatpush1.msra.mxu0 0.0
  %6499 = vmatprep.subr.mxu0 0.0
  %6500 = vmatpush1.msra.mxu0 0.0
  %6501 = vmatprep.subr.mxu0 0.0
  %6502 = vmatpush1.msra.mxu0 0.0
  %6503 = vmatprep.subr.mxu0 0.0
  %6504 = vmatpush1.msra.mxu0 0.0
  %6505 = vmatprep.subr.mxu0 0.0
  %6506 = vmatpush1.msra.mxu0 0.0
  %6507 = vmatprep.subr.mxu0 0.0
  %6508 = vmatpush1.msra.mxu0 0.0
  %6509 = vmatprep.subr.mxu0 0.0
  %v6510 = vand.u32 %v6304, 4294901760
  %v6511 = vsub.f32 %v6304, %v6510
  %6512 = vmatpush1.msra.mxu0 %v6511
  %6513 = vmatprep.subr.mxu0 0.0
  %6514 = vmatpush2.msra.mxu0 0.0
  %6515 = vmatprep.subr.mxu0 0.0
  %6516 = vmatpush2.msra.mxu0 0.0
  %6517 = vmatprep.subr.mxu0 0.0
  %6518 = vmatpush2.msra.mxu0 0.0
  %6519 = vmatprep.subr.mxu0 0.0
  %6520 = vmatpush2.msra.mxu0 0.0
  %6521 = vmatprep.subr.mxu0 0.0
  %6522 = vmatpush2.msra.mxu0 0.0
  %6523 = vmatprep.subr.mxu0 0.0
  %6524 = vmatpush2.msra.mxu0 0.0
  %6525 = vmatprep.subr.mxu0 0.0
  %6526 = vmatpush2.msra.mxu0 0.0
  %6527 = vmatprep.subr.mxu0 0.0
  %6528 = vmatpush2.msra.mxu0 0.0
  %6529 = vmatprep.subr.mxu0 0.0
  %6530 = vmatpush2.msra.mxu0 0.0
  %6531 = vmatprep.subr.mxu0 0.0
  %6532 = vmatpush2.msra.mxu0 0.0
  %6533 = vmatprep.subr.mxu0 0.0
  %6534 = vmatpush2.msra.mxu0 0.0
  %6535 = vmatprep.subr.mxu0 0.0
  %6536 = vmatpush2.msra.mxu0 0.0
  %6537 = vmatprep.subr.mxu0 0.0
  %6538 = vmatpush2.msra.mxu0 0.0
  %6539 = vmatprep.subr.mxu0 0.0
  %6540 = vmatpush2.msra.mxu0 0.0
  %6541 = vmatprep.subr.mxu0 0.0
  %6542 = vmatpush2.msra.mxu0 0.0
  %6543 = vmatprep.subr.mxu0 0.0
  %6544 = vmatpush2.msra.mxu0 0.0
  %6545 = vmatprep.mubr.f32.mxu0 0.0
  %v6546 = vand.u32 %v6306, 4294901760
  %v6547 = vsub.f32 %v6306, %v6546
  %6548 = vmatmul.mubr.f32.gmra.mxu0 %v6547
  %v6549 = vpop.f32.mrf.mxu0
  %v6550 = vadd.f32 %v6470, %v6549
  %v6551 = vpop.f32.mrf.mxu0
  %6552 = vmatprep.mubr.f32.mxu0 0.0
  %v6553 = vand.u32 %v6309, 4294901760
  %v6554 = vsub.f32 %v6309, %v6553
  %6555 = vmatmul.mubr.f32.gmra.mxu0 %v6554
  %v6556 = vpop.f32.mrf.mxu0
  %v6557 = vadd.f32 %v6476, %v6556
  %v6558 = vpop.f32.mrf.mxu0
  %6559 = vdwg.mxu0
  %6560 = vmatprep.subr.mxu0 0.0
  %6561 = vmatpush1.msra.mxu0 0.0
  %6562 = vmatprep.subr.mxu0 0.0
  %6563 = vmatpush1.msra.mxu0 0.0
  %6564 = vmatprep.subr.mxu0 0.0
  %6565 = vmatpush1.msra.mxu0 0.0
  %6566 = vmatprep.subr.mxu0 0.0
  %6567 = vmatpush1.msra.mxu0 0.0
  %6568 = vmatprep.subr.mxu0 0.0
  %6569 = vmatpush1.msra.mxu0 0.0
  %6570 = vmatprep.subr.mxu0 0.0
  %6571 = vmatpush1.msra.mxu0 0.0
  %6572 = vmatprep.subr.mxu0 0.0
  %6573 = vmatpush1.msra.mxu0 0.0
  %6574 = vmatprep.subr.mxu0 0.0
  %6575 = vmatpush1.msra.mxu0 0.0
  %6576 = vmatprep.subr.mxu0 0.0
  %6577 = vmatpush1.msra.mxu0 0.0
  %6578 = vmatprep.subr.mxu0 0.0
  %6579 = vmatpush1.msra.mxu0 0.0
  %6580 = vmatprep.subr.mxu0 0.0
  %6581 = vmatpush1.msra.mxu0 0.0
  %6582 = vmatprep.subr.mxu0 0.0
  %6583 = vmatpush1.msra.mxu0 0.0
  %6584 = vmatprep.subr.mxu0 0.0
  %6585 = vmatpush1.msra.mxu0 0.0
  %6586 = vmatprep.subr.mxu0 0.0
  %6587 = vmatpush1.msra.mxu0 0.0
  %6588 = vmatprep.subr.mxu0 0.0
  %6589 = vmatpush1.msra.mxu0 0.0
  %6590 = vmatprep.subr.mxu0 0.0
  %v6591 = vand.u32 %v6304, 4294901760
  %6592 = vmatpush1.msra.mxu0 %v6591
  %6593 = vmatprep.subr.mxu0 0.0
  %6594 = vmatpush2.msra.mxu0 0.0
  %6595 = vmatprep.subr.mxu0 0.0
  %6596 = vmatpush2.msra.mxu0 0.0
  %6597 = vmatprep.subr.mxu0 0.0
  %6598 = vmatpush2.msra.mxu0 0.0
  %6599 = vmatprep.subr.mxu0 0.0
  %6600 = vmatpush2.msra.mxu0 0.0
  %6601 = vmatprep.subr.mxu0 0.0
  %6602 = vmatpush2.msra.mxu0 0.0
  %6603 = vmatprep.subr.mxu0 0.0
  %6604 = vmatpush2.msra.mxu0 0.0
  %6605 = vmatprep.subr.mxu0 0.0
  %6606 = vmatpush2.msra.mxu0 0.0
  %6607 = vmatprep.subr.mxu0 0.0
  %6608 = vmatpush2.msra.mxu0 0.0
  %6609 = vmatprep.subr.mxu0 0.0
  %6610 = vmatpush2.msra.mxu0 0.0
  %6611 = vmatprep.subr.mxu0 0.0
  %6612 = vmatpush2.msra.mxu0 0.0
  %6613 = vmatprep.subr.mxu0 0.0
  %6614 = vmatpush2.msra.mxu0 0.0
  %6615 = vmatprep.subr.mxu0 0.0
  %6616 = vmatpush2.msra.mxu0 0.0
  %6617 = vmatprep.subr.mxu0 0.0
  %6618 = vmatpush2.msra.mxu0 0.0
  %6619 = vmatprep.subr.mxu0 0.0
  %6620 = vmatpush2.msra.mxu0 0.0
  %6621 = vmatprep.subr.mxu0 0.0
  %6622 = vmatpush2.msra.mxu0 0.0
  %6623 = vmatprep.subr.mxu0 0.0
  %6624 = vmatpush2.msra.mxu0 0.0
  %6625 = vmatprep.mubr.f32.mxu0 0.0
  %v6626 = vand.u32 %v6306, 4294901760
  %v6627 = vsub.f32 %v6306, %v6626
  %v6628 = vand.u32 %v6627, 4294901760
  %6629 = vmatmul.mubr.f32.gmra.mxu0 %v6628
  %v6630 = vpop.f32.mrf.mxu0
  %v6631 = vadd.f32 %v6550, %v6630
  %v6632 = vpop.f32.mrf.mxu0
  %6633 = vmatprep.mubr.f32.mxu0 0.0
  %v6634 = vand.u32 %v6309, 4294901760
  %v6635 = vsub.f32 %v6309, %v6634
  %v6636 = vand.u32 %v6635, 4294901760
  %6637 = vmatmul.mubr.f32.gmra.mxu0 %v6636
  %v6638 = vpop.f32.mrf.mxu0
  %v6639 = vadd.f32 %v6557, %v6638
  %v6640 = vpop.f32.mrf.mxu0
  %6641 = vdwg.mxu0
  %6642 = vmatprep.subr.mxu0 0.0
  %6643 = vmatpush1.msra.mxu0 0.0
  %6644 = vmatprep.subr.mxu0 0.0
  %6645 = vmatpush1.msra.mxu0 0.0
  %6646 = vmatprep.subr.mxu0 0.0
  %6647 = vmatpush1.msra.mxu0 0.0
  %6648 = vmatprep.subr.mxu0 0.0
  %6649 = vmatpush1.msra.mxu0 0.0
  %6650 = vmatprep.subr.mxu0 0.0
  %6651 = vmatpush1.msra.mxu0 0.0
  %6652 = vmatprep.subr.mxu0 0.0
  %6653 = vmatpush1.msra.mxu0 0.0
  %6654 = vmatprep.subr.mxu0 0.0
  %6655 = vmatpush1.msra.mxu0 0.0
  %6656 = vmatprep.subr.mxu0 0.0
  %6657 = vmatpush1.msra.mxu0 0.0
  %6658 = vmatprep.subr.mxu0 0.0
  %6659 = vmatpush1.msra.mxu0 0.0
  %6660 = vmatprep.subr.mxu0 0.0
  %6661 = vmatpush1.msra.mxu0 0.0
  %6662 = vmatprep.subr.mxu0 0.0
  %6663 = vmatpush1.msra.mxu0 0.0
  %6664 = vmatprep.subr.mxu0 0.0
  %6665 = vmatpush1.msra.mxu0 0.0
  %6666 = vmatprep.subr.mxu0 0.0
  %6667 = vmatpush1.msra.mxu0 0.0
  %6668 = vmatprep.subr.mxu0 0.0
  %6669 = vmatpush1.msra.mxu0 0.0
  %6670 = vmatprep.subr.mxu0 0.0
  %6671 = vmatpush1.msra.mxu0 0.0
  %6672 = vmatprep.subr.mxu0 0.0
  %v6673 = vand.u32 %v6304, 4294901760
  %v6674 = vsub.f32 %v6304, %v6673
  %v6675 = vand.u32 %v6674, 4294901760
  %6676 = vmatpush1.msra.mxu0 %v6675
  %6677 = vmatprep.subr.mxu0 0.0
  %6678 = vmatpush2.msra.mxu0 0.0
  %6679 = vmatprep.subr.mxu0 0.0
  %6680 = vmatpush2.msra.mxu0 0.0
  %6681 = vmatprep.subr.mxu0 0.0
  %6682 = vmatpush2.msra.mxu0 0.0
  %6683 = vmatprep.subr.mxu0 0.0
  %6684 = vmatpush2.msra.mxu0 0.0
  %6685 = vmatprep.subr.mxu0 0.0
  %6686 = vmatpush2.msra.mxu0 0.0
  %6687 = vmatprep.subr.mxu0 0.0
  %6688 = vmatpush2.msra.mxu0 0.0
  %6689 = vmatprep.subr.mxu0 0.0
  %6690 = vmatpush2.msra.mxu0 0.0
  %6691 = vmatprep.subr.mxu0 0.0
  %6692 = vmatpush2.msra.mxu0 0.0
  %6693 = vmatprep.subr.mxu0 0.0
  %6694 = vmatpush2.msra.mxu0 0.0
  %6695 = vmatprep.subr.mxu0 0.0
  %6696 = vmatpush2.msra.mxu0 0.0
  %6697 = vmatprep.subr.mxu0 0.0
  %6698 = vmatpush2.msra.mxu0 0.0
  %6699 = vmatprep.subr.mxu0 0.0
  %6700 = vmatpush2.msra.mxu0 0.0
  %6701 = vmatprep.subr.mxu0 0.0
  %6702 = vmatpush2.msra.mxu0 0.0
  %6703 = vmatprep.subr.mxu0 0.0
  %6704 = vmatpush2.msra.mxu0 0.0
  %6705 = vmatprep.subr.mxu0 0.0
  %6706 = vmatpush2.msra.mxu0 0.0
  %6707 = vmatprep.subr.mxu0 0.0
  %6708 = vmatpush2.msra.mxu0 0.0
  %6709 = vmatprep.mubr.f32.mxu0 0.0
  %v6710 = vand.u32 %v6306, 4294901760
  %6711 = vmatmul.mubr.f32.gmra.mxu0 %v6710
  %v6712 = vpop.f32.mrf.mxu0
  %v6713 = vadd.f32 %v6631, %v6712
  %v6714 = vpop.f32.mrf.mxu0
  %6715 = vmatprep.mubr.f32.mxu0 0.0
  %v6716 = vand.u32 %v6309, 4294901760
  %6717 = vmatmul.mubr.f32.gmra.mxu0 %v6716
  %v6718 = vpop.f32.mrf.mxu0
  %v6719 = vadd.f32 %v6639, %v6718
  %v6720 = vpop.f32.mrf.mxu0
  %6721 = vdwg.mxu0
  %6722 = vmatprep.subr.mxu0 0.0
  %6723 = vmatpush1.msra.mxu0 0.0
  %6724 = vmatprep.subr.mxu0 0.0
  %6725 = vmatpush1.msra.mxu0 0.0
  %6726 = vmatprep.subr.mxu0 0.0
  %6727 = vmatpush1.msra.mxu0 0.0
  %6728 = vmatprep.subr.mxu0 0.0
  %6729 = vmatpush1.msra.mxu0 0.0
  %6730 = vmatprep.subr.mxu0 0.0
  %6731 = vmatpush1.msra.mxu0 0.0
  %6732 = vmatprep.subr.mxu0 0.0
  %6733 = vmatpush1.msra.mxu0 0.0
  %6734 = vmatprep.subr.mxu0 0.0
  %6735 = vmatpush1.msra.mxu0 0.0
  %6736 = vmatprep.subr.mxu0 0.0
  %6737 = vmatpush1.msra.mxu0 0.0
  %6738 = vmatprep.subr.mxu0 0.0
  %6739 = vmatpush1.msra.mxu0 0.0
  %6740 = vmatprep.subr.mxu0 0.0
  %6741 = vmatpush1.msra.mxu0 0.0
  %6742 = vmatprep.subr.mxu0 0.0
  %6743 = vmatpush1.msra.mxu0 0.0
  %6744 = vmatprep.subr.mxu0 0.0
  %6745 = vmatpush1.msra.mxu0 0.0
  %6746 = vmatprep.subr.mxu0 0.0
  %6747 = vmatpush1.msra.mxu0 0.0
  %6748 = vmatprep.subr.mxu0 0.0
  %6749 = vmatpush1.msra.mxu0 0.0
  %6750 = vmatprep.subr.mxu0 0.0
  %6751 = vmatpush1.msra.mxu0 0.0
  %6752 = vmatprep.subr.mxu0 0.0
  %v6753 = vand.u32 %v6304, 4294901760
  %6754 = vmatpush1.msra.mxu0 %v6753
  %6755 = vmatprep.subr.mxu0 0.0
  %6756 = vmatpush2.msra.mxu0 0.0
  %6757 = vmatprep.subr.mxu0 0.0
  %6758 = vmatpush2.msra.mxu0 0.0
  %6759 = vmatprep.subr.mxu0 0.0
  %6760 = vmatpush2.msra.mxu0 0.0
  %6761 = vmatprep.subr.mxu0 0.0
  %6762 = vmatpush2.msra.mxu0 0.0
  %6763 = vmatprep.subr.mxu0 0.0
  %6764 = vmatpush2.msra.mxu0 0.0
  %6765 = vmatprep.subr.mxu0 0.0
  %6766 = vmatpush2.msra.mxu0 0.0
  %6767 = vmatprep.subr.mxu0 0.0
  %6768 = vmatpush2.msra.mxu0 0.0
  %6769 = vmatprep.subr.mxu0 0.0
  %6770 = vmatpush2.msra.mxu0 0.0
  %6771 = vmatprep.subr.mxu0 0.0
  %6772 = vmatpush2.msra.mxu0 0.0
  %6773 = vmatprep.subr.mxu0 0.0
  %6774 = vmatpush2.msra.mxu0 0.0
  %6775 = vmatprep.subr.mxu0 0.0
  %6776 = vmatpush2.msra.mxu0 0.0
  %6777 = vmatprep.subr.mxu0 0.0
  %6778 = vmatpush2.msra.mxu0 0.0
  %6779 = vmatprep.subr.mxu0 0.0
  %6780 = vmatpush2.msra.mxu0 0.0
  %6781 = vmatprep.subr.mxu0 0.0
  %6782 = vmatpush2.msra.mxu0 0.0
  %6783 = vmatprep.subr.mxu0 0.0
  %6784 = vmatpush2.msra.mxu0 0.0
  %6785 = vmatprep.subr.mxu0 0.0
  %6786 = vmatpush2.msra.mxu0 0.0
  %6787 = vmatprep.mubr.f32.mxu0 0.0
  %v6788 = vand.u32 %v6306, 4294901760
  %6789 = vmatmul.mubr.f32.gmra.mxu0 %v6788
  %v6790 = vpop.f32.mrf.mxu0
  %v6791 = vadd.f32 %v6713, %v6790
  %v6792 = vpop.f32.mrf.mxu0
  %6793 = vmatprep.mubr.f32.mxu0 0.0
  %v6794 = vand.u32 %v6309, 4294901760
  %6795 = vmatmul.mubr.f32.gmra.mxu0 %v6794
  %v6796 = vpop.f32.mrf.mxu0
  %v6797 = vadd.f32 %v6719, %v6796
  %v6798 = vpop.f32.mrf.mxu0
  %6799 = vdwg.mxu0
  %6800 = vset.pattern.permute.xlu0 22
  %6801 = vperm.xlu0 %6800, %v1337
  %v6802 = vpop.permute.xlu0 %6801
  %6804 = vset.pattern.permute.xlu0 22
  %6805 = vperm.xlu0 %6804, %v1338
  %v6806 = vpop.permute.xlu0 %6805
  %v6808 = vmul.f32 %v6791, %v6802
  %v6809 = vmul.f32 %v6797, %v6806
  %6810 = vset.pattern.permute.xlu0 23
  %6811 = vperm.xlu0 %6810, %v1337
  %v6812 = vpop.permute.xlu0 %6811
  %6814 = vset.pattern.permute.xlu0 23
  %6815 = vperm.xlu0 %6814, %v1338
  %v6816 = vpop.permute.xlu0 %6815
  %v6818 = vadd.f32 %v6808, %v6812
  %v6819 = vadd.f32 %v6809, %v6816
  %vm6820 = vcmp.gt.f32.partialorder %v6818, 0.0
  %vm6821 = vcmp.gt.f32.partialorder %v6819, 0.0
  %v6822 = vmul.f32 %v6818, 1.442695
  %v6823 = vpow.pop %v6822
  %v6824 = vmul.f32 %v6819, 1.442695
  %v6825 = vpow.pop %v6824
  %v6826 = vsub.f32 %v6823, 1.0
  %v6827 = vsub.f32 %v6825, 1.0
  %v6828 = vmul.f32 %v6826, 1.6732632
  %v6829 = vmul.f32 %v6827, 1.6732632
  %v6830 = vsel %vm6820, %v6818, %v6828
  %v6831 = vsel %vm6821, %v6819, %v6829
  %v6832 = vmul.f32 %v6830, 1.050701
  %v6833 = vmul.f32 %v6831, 1.050701
  %6834 = vxpose.xlu0.b32.start [1/16] %v6832, 128
  %6835 = vxpose.xlu0.b32.cont [2/16] %v6833, 128
  %6836 = vxpose.xlu0.b32.cont [3/16] 0.0, 128
  %6837 = vxpose.xlu0.b32.cont [4/16] 0.0, 128
  %6838 = vxpose.xlu0.b32.cont [5/16] 0.0, 128
  %6839 = vxpose.xlu0.b32.cont [6/16] 0.0, 128
  %6840 = vxpose.xlu0.b32.cont [7/16] 0.0, 128
  %6841 = vxpose.xlu0.b32.cont [8/16] 0.0, 128
  %6842 = vxpose.xlu0.b32.cont [9/16] 0.0, 128
  %6843 = vxpose.xlu0.b32.cont [10/16] 0.0, 128
  %6844 = vxpose.xlu0.b32.cont [11/16] 0.0, 128
  %6845 = vxpose.xlu0.b32.cont [12/16] 0.0, 128
  %6846 = vxpose.xlu0.b32.cont [13/16] 0.0, 128
  %6847 = vxpose.xlu0.b32.cont [14/16] 0.0, 128
  %6848 = vxpose.xlu0.b32.cont [15/16] 0.0, 128
  %6849 = vxpose.xlu0.b32.end [16/16] 0.0, 128
  %v6850 = vpop.trf.xlu0
  %v6851 = vpop.trf.xlu0
  %v6852 = vpop.trf.xlu0
  %v6853 = vpop.trf.xlu0
  %v6854 = vpop.trf.xlu0
  %v6855 = vpop.trf.xlu0
  %v6856 = vpop.trf.xlu0
  %v6857 = vpop.trf.xlu0
  %v6858 = vpop.trf.xlu0
  %v6859 = vpop.trf.xlu0
  %v6860 = vpop.trf.xlu0
  %v6861 = vpop.trf.xlu0
  %v6862 = vpop.trf.xlu0
  %v6863 = vpop.trf.xlu0
  %v6864 = vpop.trf.xlu0
  %v6865 = vpop.trf.xlu0
  %6868 = vrot.lane.b32.xlu0 %v1342, 120
  %v6869 = vpop.permute.xlu0 %6868
  %6870 = vrot.lane.b32.xlu0 %v1343, 120
  %v6871 = vpop.permute.xlu0 %6870
  %v6875 = vsel %vm664, %v6850, 0
  %v6878 = vsel %vm664, %v6851, 0
  %6880 = vmatprep.subr.mxu0 0.0
  %6881 = vmatpush1.msra.mxu0 0.0
  %6882 = vmatprep.subr.mxu0 0.0
  %6883 = vmatpush1.msra.mxu0 0.0
  %6884 = vmatprep.subr.mxu0 0.0
  %6885 = vmatpush1.msra.mxu0 0.0
  %6886 = vmatprep.subr.mxu0 0.0
  %6887 = vmatpush1.msra.mxu0 0.0
  %6888 = vmatprep.subr.mxu0 0.0
  %6889 = vmatpush1.msra.mxu0 0.0
  %6890 = vmatprep.subr.mxu0 0.0
  %6891 = vmatpush1.msra.mxu0 0.0
  %6892 = vmatprep.subr.mxu0 0.0
  %6893 = vmatpush1.msra.mxu0 0.0
  %6894 = vmatprep.subr.mxu0 0.0
  %6895 = vmatpush1.msra.mxu0 0.0
  %6896 = vmatprep.subr.mxu0 0.0
  %6897 = vmatpush1.msra.mxu0 0.0
  %6898 = vmatprep.subr.mxu0 0.0
  %6899 = vmatpush1.msra.mxu0 0.0
  %6900 = vmatprep.subr.mxu0 0.0
  %6901 = vmatpush1.msra.mxu0 0.0
  %6902 = vmatprep.subr.mxu0 0.0
  %6903 = vmatpush1.msra.mxu0 0.0
  %6904 = vmatprep.subr.mxu0 0.0
  %6905 = vmatpush1.msra.mxu0 0.0
  %6906 = vmatprep.subr.mxu0 0.0
  %6907 = vmatpush1.msra.mxu0 0.0
  %6908 = vmatprep.subr.mxu0 0.0
  %v6909 = vand.u32 %v6871, 4294901760
  %6910 = vmatpush1.msra.mxu0 %v6909
  %6911 = vmatprep.subr.mxu0 0.0
  %v6912 = vand.u32 %v6869, 4294901760
  %6913 = vmatpush1.msra.mxu0 %v6912
  %6914 = vmatprep.subr.mxu0 0.0
  %6915 = vmatpush2.msra.mxu0 0.0
  %6916 = vmatprep.subr.mxu0 0.0
  %6917 = vmatpush2.msra.mxu0 0.0
  %6918 = vmatprep.subr.mxu0 0.0
  %6919 = vmatpush2.msra.mxu0 0.0
  %6920 = vmatprep.subr.mxu0 0.0
  %6921 = vmatpush2.msra.mxu0 0.0
  %6922 = vmatprep.subr.mxu0 0.0
  %6923 = vmatpush2.msra.mxu0 0.0
  %6924 = vmatprep.subr.mxu0 0.0
  %6925 = vmatpush2.msra.mxu0 0.0
  %6926 = vmatprep.subr.mxu0 0.0
  %6927 = vmatpush2.msra.mxu0 0.0
  %6928 = vmatprep.subr.mxu0 0.0
  %6929 = vmatpush2.msra.mxu0 0.0
  %6930 = vmatprep.subr.mxu0 0.0
  %6931 = vmatpush2.msra.mxu0 0.0
  %6932 = vmatprep.subr.mxu0 0.0
  %6933 = vmatpush2.msra.mxu0 0.0
  %6934 = vmatprep.subr.mxu0 0.0
  %6935 = vmatpush2.msra.mxu0 0.0
  %6936 = vmatprep.subr.mxu0 0.0
  %6937 = vmatpush2.msra.mxu0 0.0
  %6938 = vmatprep.subr.mxu0 0.0
  %6939 = vmatpush2.msra.mxu0 0.0
  %6940 = vmatprep.subr.mxu0 0.0
  %6941 = vmatpush2.msra.mxu0 0.0
  %6942 = vmatprep.subr.mxu0 0.0
  %6943 = vmatpush2.msra.mxu0 0.0
  %6944 = vmatprep.subr.mxu0 0.0
  %6945 = vmatpush2.msra.mxu0 0.0
  %6946 = vmatprep.mubr.f32.mxu0 0.0
  %v6947 = vand.u32 %v6875, 4294901760
  %v6948 = vsub.f32 %v6875, %v6947
  %v6949 = vand.u32 %v6948, 4294901760
  %v6950 = vsub.f32 %v6948, %v6949
  %v6951 = vand.u32 %v6950, 4294901760
  %6952 = vmatmul.mubr.f32.gmra.mxu0 %v6951
  %v6953 = vpop.f32.mrf.mxu0
  %v6954 = vadd.f32 0.0, %v6953
  %v6955 = vpop.f32.mrf.mxu0
  %6956 = vmatprep.mubr.f32.mxu0 0.0
  %v6957 = vand.u32 %v6878, 4294901760
  %v6958 = vsub.f32 %v6878, %v6957
  %v6959 = vand.u32 %v6958, 4294901760
  %v6960 = vsub.f32 %v6958, %v6959
  %v6961 = vand.u32 %v6960, 4294901760
  %6962 = vmatmul.mubr.f32.gmra.mxu0 %v6961
  %v6963 = vpop.f32.mrf.mxu0
  %v6964 = vadd.f32 0.0, %v6963
  %v6965 = vpop.f32.mrf.mxu0
  %6966 = vdwg.mxu0
  %6967 = vmatprep.subr.mxu0 0.0
  %6968 = vmatpush1.msra.mxu0 0.0
  %6969 = vmatprep.subr.mxu0 0.0
  %6970 = vmatpush1.msra.mxu0 0.0
  %6971 = vmatprep.subr.mxu0 0.0
  %6972 = vmatpush1.msra.mxu0 0.0
  %6973 = vmatprep.subr.mxu0 0.0
  %6974 = vmatpush1.msra.mxu0 0.0
  %6975 = vmatprep.subr.mxu0 0.0
  %6976 = vmatpush1.msra.mxu0 0.0
  %6977 = vmatprep.subr.mxu0 0.0
  %6978 = vmatpush1.msra.mxu0 0.0
  %6979 = vmatprep.subr.mxu0 0.0
  %6980 = vmatpush1.msra.mxu0 0.0
  %6981 = vmatprep.subr.mxu0 0.0
  %6982 = vmatpush1.msra.mxu0 0.0
  %6983 = vmatprep.subr.mxu0 0.0
  %6984 = vmatpush1.msra.mxu0 0.0
  %6985 = vmatprep.subr.mxu0 0.0
  %6986 = vmatpush1.msra.mxu0 0.0
  %6987 = vmatprep.subr.mxu0 0.0
  %6988 = vmatpush1.msra.mxu0 0.0
  %6989 = vmatprep.subr.mxu0 0.0
  %6990 = vmatpush1.msra.mxu0 0.0
  %6991 = vmatprep.subr.mxu0 0.0
  %6992 = vmatpush1.msra.mxu0 0.0
  %6993 = vmatprep.subr.mxu0 0.0
  %6994 = vmatpush1.msra.mxu0 0.0
  %6995 = vmatprep.subr.mxu0 0.0
  %v6996 = vand.u32 %v6871, 4294901760
  %v6997 = vsub.f32 %v6871, %v6996
  %v6998 = vand.u32 %v6997, 4294901760
  %v6999 = vsub.f32 %v6997, %v6998
  %v7000 = vand.u32 %v6999, 4294901760
  %7001 = vmatpush1.msra.mxu0 %v7000
  %7002 = vmatprep.subr.mxu0 0.0
  %v7003 = vand.u32 %v6869, 4294901760
  %v7004 = vsub.f32 %v6869, %v7003
  %v7005 = vand.u32 %v7004, 4294901760
  %v7006 = vsub.f32 %v7004, %v7005
  %v7007 = vand.u32 %v7006, 4294901760
  %7008 = vmatpush1.msra.mxu0 %v7007
  %7009 = vmatprep.subr.mxu0 0.0
  %7010 = vmatpush2.msra.mxu0 0.0
  %7011 = vmatprep.subr.mxu0 0.0
  %7012 = vmatpush2.msra.mxu0 0.0
  %7013 = vmatprep.subr.mxu0 0.0
  %7014 = vmatpush2.msra.mxu0 0.0
  %7015 = vmatprep.subr.mxu0 0.0
  %7016 = vmatpush2.msra.mxu0 0.0
  %7017 = vmatprep.subr.mxu0 0.0
  %7018 = vmatpush2.msra.mxu0 0.0
  %7019 = vmatprep.subr.mxu0 0.0
  %7020 = vmatpush2.msra.mxu0 0.0
  %7021 = vmatprep.subr.mxu0 0.0
  %7022 = vmatpush2.msra.mxu0 0.0
  %7023 = vmatprep.subr.mxu0 0.0
  %7024 = vmatpush2.msra.mxu0 0.0
  %7025 = vmatprep.subr.mxu0 0.0
  %7026 = vmatpush2.msra.mxu0 0.0
  %7027 = vmatprep.subr.mxu0 0.0
  %7028 = vmatpush2.msra.mxu0 0.0
  %7029 = vmatprep.subr.mxu0 0.0
  %7030 = vmatpush2.msra.mxu0 0.0
  %7031 = vmatprep.subr.mxu0 0.0
  %7032 = vmatpush2.msra.mxu0 0.0
  %7033 = vmatprep.subr.mxu0 0.0
  %7034 = vmatpush2.msra.mxu0 0.0
  %7035 = vmatprep.subr.mxu0 0.0
  %7036 = vmatpush2.msra.mxu0 0.0
  %7037 = vmatprep.subr.mxu0 0.0
  %7038 = vmatpush2.msra.mxu0 0.0
  %7039 = vmatprep.subr.mxu0 0.0
  %7040 = vmatpush2.msra.mxu0 0.0
  %7041 = vmatprep.mubr.f32.mxu0 0.0
  %v7042 = vand.u32 %v6875, 4294901760
  %7043 = vmatmul.mubr.f32.gmra.mxu0 %v7042
  %v7044 = vpop.f32.mrf.mxu0
  %v7045 = vadd.f32 %v6954, %v7044
  %v7046 = vpop.f32.mrf.mxu0
  %7047 = vmatprep.mubr.f32.mxu0 0.0
  %v7048 = vand.u32 %v6878, 4294901760
  %7049 = vmatmul.mubr.f32.gmra.mxu0 %v7048
  %v7050 = vpop.f32.mrf.mxu0
  %v7051 = vadd.f32 %v6964, %v7050
  %v7052 = vpop.f32.mrf.mxu0
  %7053 = vdwg.mxu0
  %7054 = vmatprep.subr.mxu0 0.0
  %7055 = vmatpush1.msra.mxu0 0.0
  %7056 = vmatprep.subr.mxu0 0.0
  %7057 = vmatpush1.msra.mxu0 0.0
  %7058 = vmatprep.subr.mxu0 0.0
  %7059 = vmatpush1.msra.mxu0 0.0
  %7060 = vmatprep.subr.mxu0 0.0
  %7061 = vmatpush1.msra.mxu0 0.0
  %7062 = vmatprep.subr.mxu0 0.0
  %7063 = vmatpush1.msra.mxu0 0.0
  %7064 = vmatprep.subr.mxu0 0.0
  %7065 = vmatpush1.msra.mxu0 0.0
  %7066 = vmatprep.subr.mxu0 0.0
  %7067 = vmatpush1.msra.mxu0 0.0
  %7068 = vmatprep.subr.mxu0 0.0
  %7069 = vmatpush1.msra.mxu0 0.0
  %7070 = vmatprep.subr.mxu0 0.0
  %7071 = vmatpush1.msra.mxu0 0.0
  %7072 = vmatprep.subr.mxu0 0.0
  %7073 = vmatpush1.msra.mxu0 0.0
  %7074 = vmatprep.subr.mxu0 0.0
  %7075 = vmatpush1.msra.mxu0 0.0
  %7076 = vmatprep.subr.mxu0 0.0
  %7077 = vmatpush1.msra.mxu0 0.0
  %7078 = vmatprep.subr.mxu0 0.0
  %7079 = vmatpush1.msra.mxu0 0.0
  %7080 = vmatprep.subr.mxu0 0.0
  %7081 = vmatpush1.msra.mxu0 0.0
  %7082 = vmatprep.subr.mxu0 0.0
  %v7083 = vand.u32 %v6871, 4294901760
  %v7084 = vsub.f32 %v6871, %v7083
  %7085 = vmatpush1.msra.mxu0 %v7084
  %7086 = vmatprep.subr.mxu0 0.0
  %v7087 = vand.u32 %v6869, 4294901760
  %v7088 = vsub.f32 %v6869, %v7087
  %7089 = vmatpush1.msra.mxu0 %v7088
  %7090 = vmatprep.subr.mxu0 0.0
  %7091 = vmatpush2.msra.mxu0 0.0
  %7092 = vmatprep.subr.mxu0 0.0
  %7093 = vmatpush2.msra.mxu0 0.0
  %7094 = vmatprep.subr.mxu0 0.0
  %7095 = vmatpush2.msra.mxu0 0.0
  %7096 = vmatprep.subr.mxu0 0.0
  %7097 = vmatpush2.msra.mxu0 0.0
  %7098 = vmatprep.subr.mxu0 0.0
  %7099 = vmatpush2.msra.mxu0 0.0
  %7100 = vmatprep.subr.mxu0 0.0
  %7101 = vmatpush2.msra.mxu0 0.0
  %7102 = vmatprep.subr.mxu0 0.0
  %7103 = vmatpush2.msra.mxu0 0.0
  %7104 = vmatprep.subr.mxu0 0.0
  %7105 = vmatpush2.msra.mxu0 0.0
  %7106 = vmatprep.subr.mxu0 0.0
  %7107 = vmatpush2.msra.mxu0 0.0
  %7108 = vmatprep.subr.mxu0 0.0
  %7109 = vmatpush2.msra.mxu0 0.0
  %7110 = vmatprep.subr.mxu0 0.0
  %7111 = vmatpush2.msra.mxu0 0.0
  %7112 = vmatprep.subr.mxu0 0.0
  %7113 = vmatpush2.msra.mxu0 0.0
  %7114 = vmatprep.subr.mxu0 0.0
  %7115 = vmatpush2.msra.mxu0 0.0
  %7116 = vmatprep.subr.mxu0 0.0
  %7117 = vmatpush2.msra.mxu0 0.0
  %7118 = vmatprep.subr.mxu0 0.0
  %7119 = vmatpush2.msra.mxu0 0.0
  %7120 = vmatprep.subr.mxu0 0.0
  %7121 = vmatpush2.msra.mxu0 0.0
  %7122 = vmatprep.mubr.f32.mxu0 0.0
  %v7123 = vand.u32 %v6875, 4294901760
  %v7124 = vsub.f32 %v6875, %v7123
  %7125 = vmatmul.mubr.f32.gmra.mxu0 %v7124
  %v7126 = vpop.f32.mrf.mxu0
  %v7127 = vadd.f32 %v7045, %v7126
  %v7128 = vpop.f32.mrf.mxu0
  %7129 = vmatprep.mubr.f32.mxu0 0.0
  %v7130 = vand.u32 %v6878, 4294901760
  %v7131 = vsub.f32 %v6878, %v7130
  %7132 = vmatmul.mubr.f32.gmra.mxu0 %v7131
  %v7133 = vpop.f32.mrf.mxu0
  %v7134 = vadd.f32 %v7051, %v7133
  %v7135 = vpop.f32.mrf.mxu0
  %7136 = vdwg.mxu0
  %7137 = vmatprep.subr.mxu0 0.0
  %7138 = vmatpush1.msra.mxu0 0.0
  %7139 = vmatprep.subr.mxu0 0.0
  %7140 = vmatpush1.msra.mxu0 0.0
  %7141 = vmatprep.subr.mxu0 0.0
  %7142 = vmatpush1.msra.mxu0 0.0
  %7143 = vmatprep.subr.mxu0 0.0
  %7144 = vmatpush1.msra.mxu0 0.0
  %7145 = vmatprep.subr.mxu0 0.0
  %7146 = vmatpush1.msra.mxu0 0.0
  %7147 = vmatprep.subr.mxu0 0.0
  %7148 = vmatpush1.msra.mxu0 0.0
  %7149 = vmatprep.subr.mxu0 0.0
  %7150 = vmatpush1.msra.mxu0 0.0
  %7151 = vmatprep.subr.mxu0 0.0
  %7152 = vmatpush1.msra.mxu0 0.0
  %7153 = vmatprep.subr.mxu0 0.0
  %7154 = vmatpush1.msra.mxu0 0.0
  %7155 = vmatprep.subr.mxu0 0.0
  %7156 = vmatpush1.msra.mxu0 0.0
  %7157 = vmatprep.subr.mxu0 0.0
  %7158 = vmatpush1.msra.mxu0 0.0
  %7159 = vmatprep.subr.mxu0 0.0
  %7160 = vmatpush1.msra.mxu0 0.0
  %7161 = vmatprep.subr.mxu0 0.0
  %7162 = vmatpush1.msra.mxu0 0.0
  %7163 = vmatprep.subr.mxu0 0.0
  %7164 = vmatpush1.msra.mxu0 0.0
  %7165 = vmatprep.subr.mxu0 0.0
  %v7166 = vand.u32 %v6871, 4294901760
  %7167 = vmatpush1.msra.mxu0 %v7166
  %7168 = vmatprep.subr.mxu0 0.0
  %v7169 = vand.u32 %v6869, 4294901760
  %7170 = vmatpush1.msra.mxu0 %v7169
  %7171 = vmatprep.subr.mxu0 0.0
  %7172 = vmatpush2.msra.mxu0 0.0
  %7173 = vmatprep.subr.mxu0 0.0
  %7174 = vmatpush2.msra.mxu0 0.0
  %7175 = vmatprep.subr.mxu0 0.0
  %7176 = vmatpush2.msra.mxu0 0.0
  %7177 = vmatprep.subr.mxu0 0.0
  %7178 = vmatpush2.msra.mxu0 0.0
  %7179 = vmatprep.subr.mxu0 0.0
  %7180 = vmatpush2.msra.mxu0 0.0
  %7181 = vmatprep.subr.mxu0 0.0
  %7182 = vmatpush2.msra.mxu0 0.0
  %7183 = vmatprep.subr.mxu0 0.0
  %7184 = vmatpush2.msra.mxu0 0.0
  %7185 = vmatprep.subr.mxu0 0.0
  %7186 = vmatpush2.msra.mxu0 0.0
  %7187 = vmatprep.subr.mxu0 0.0
  %7188 = vmatpush2.msra.mxu0 0.0
  %7189 = vmatprep.subr.mxu0 0.0
  %7190 = vmatpush2.msra.mxu0 0.0
  %7191 = vmatprep.subr.mxu0 0.0
  %7192 = vmatpush2.msra.mxu0 0.0
  %7193 = vmatprep.subr.mxu0 0.0
  %7194 = vmatpush2.msra.mxu0 0.0
  %7195 = vmatprep.subr.mxu0 0.0
  %7196 = vmatpush2.msra.mxu0 0.0
  %7197 = vmatprep.subr.mxu0 0.0
  %7198 = vmatpush2.msra.mxu0 0.0
  %7199 = vmatprep.subr.mxu0 0.0
  %7200 = vmatpush2.msra.mxu0 0.0
  %7201 = vmatprep.subr.mxu0 0.0
  %7202 = vmatpush2.msra.mxu0 0.0
  %7203 = vmatprep.mubr.f32.mxu0 0.0
  %v7204 = vand.u32 %v6875, 4294901760
  %v7205 = vsub.f32 %v6875, %v7204
  %v7206 = vand.u32 %v7205, 4294901760
  %7207 = vmatmul.mubr.f32.gmra.mxu0 %v7206
  %v7208 = vpop.f32.mrf.mxu0
  %v7209 = vadd.f32 %v7127, %v7208
  %v7210 = vpop.f32.mrf.mxu0
  %7211 = vmatprep.mubr.f32.mxu0 0.0
  %v7212 = vand.u32 %v6878, 4294901760
  %v7213 = vsub.f32 %v6878, %v7212
  %v7214 = vand.u32 %v7213, 4294901760
  %7215 = vmatmul.mubr.f32.gmra.mxu0 %v7214
  %v7216 = vpop.f32.mrf.mxu0
  %v7217 = vadd.f32 %v7134, %v7216
  %v7218 = vpop.f32.mrf.mxu0
  %7219 = vdwg.mxu0
  %7220 = vmatprep.subr.mxu0 0.0
  %7221 = vmatpush1.msra.mxu0 0.0
  %7222 = vmatprep.subr.mxu0 0.0
  %7223 = vmatpush1.msra.mxu0 0.0
  %7224 = vmatprep.subr.mxu0 0.0
  %7225 = vmatpush1.msra.mxu0 0.0
  %7226 = vmatprep.subr.mxu0 0.0
  %7227 = vmatpush1.msra.mxu0 0.0
  %7228 = vmatprep.subr.mxu0 0.0
  %7229 = vmatpush1.msra.mxu0 0.0
  %7230 = vmatprep.subr.mxu0 0.0
  %7231 = vmatpush1.msra.mxu0 0.0
  %7232 = vmatprep.subr.mxu0 0.0
  %7233 = vmatpush1.msra.mxu0 0.0
  %7234 = vmatprep.subr.mxu0 0.0
  %7235 = vmatpush1.msra.mxu0 0.0
  %7236 = vmatprep.subr.mxu0 0.0
  %7237 = vmatpush1.msra.mxu0 0.0
  %7238 = vmatprep.subr.mxu0 0.0
  %7239 = vmatpush1.msra.mxu0 0.0
  %7240 = vmatprep.subr.mxu0 0.0
  %7241 = vmatpush1.msra.mxu0 0.0
  %7242 = vmatprep.subr.mxu0 0.0
  %7243 = vmatpush1.msra.mxu0 0.0
  %7244 = vmatprep.subr.mxu0 0.0
  %7245 = vmatpush1.msra.mxu0 0.0
  %7246 = vmatprep.subr.mxu0 0.0
  %7247 = vmatpush1.msra.mxu0 0.0
  %7248 = vmatprep.subr.mxu0 0.0
  %v7249 = vand.u32 %v6871, 4294901760
  %v7250 = vsub.f32 %v6871, %v7249
  %v7251 = vand.u32 %v7250, 4294901760
  %7252 = vmatpush1.msra.mxu0 %v7251
  %7253 = vmatprep.subr.mxu0 0.0
  %v7254 = vand.u32 %v6869, 4294901760
  %v7255 = vsub.f32 %v6869, %v7254
  %v7256 = vand.u32 %v7255, 4294901760
  %7257 = vmatpush1.msra.mxu0 %v7256
  %7258 = vmatprep.subr.mxu0 0.0
  %7259 = vmatpush2.msra.mxu0 0.0
  %7260 = vmatprep.subr.mxu0 0.0
  %7261 = vmatpush2.msra.mxu0 0.0
  %7262 = vmatprep.subr.mxu0 0.0
  %7263 = vmatpush2.msra.mxu0 0.0
  %7264 = vmatprep.subr.mxu0 0.0
  %7265 = vmatpush2.msra.mxu0 0.0
  %7266 = vmatprep.subr.mxu0 0.0
  %7267 = vmatpush2.msra.mxu0 0.0
  %7268 = vmatprep.subr.mxu0 0.0
  %7269 = vmatpush2.msra.mxu0 0.0
  %7270 = vmatprep.subr.mxu0 0.0
  %7271 = vmatpush2.msra.mxu0 0.0
  %7272 = vmatprep.subr.mxu0 0.0
  %7273 = vmatpush2.msra.mxu0 0.0
  %7274 = vmatprep.subr.mxu0 0.0
  %7275 = vmatpush2.msra.mxu0 0.0
  %7276 = vmatprep.subr.mxu0 0.0
  %7277 = vmatpush2.msra.mxu0 0.0
  %7278 = vmatprep.subr.mxu0 0.0
  %7279 = vmatpush2.msra.mxu0 0.0
  %7280 = vmatprep.subr.mxu0 0.0
  %7281 = vmatpush2.msra.mxu0 0.0
  %7282 = vmatprep.subr.mxu0 0.0
  %7283 = vmatpush2.msra.mxu0 0.0
  %7284 = vmatprep.subr.mxu0 0.0
  %7285 = vmatpush2.msra.mxu0 0.0
  %7286 = vmatprep.subr.mxu0 0.0
  %7287 = vmatpush2.msra.mxu0 0.0
  %7288 = vmatprep.subr.mxu0 0.0
  %7289 = vmatpush2.msra.mxu0 0.0
  %7290 = vmatprep.mubr.f32.mxu0 0.0
  %v7291 = vand.u32 %v6875, 4294901760
  %7292 = vmatmul.mubr.f32.gmra.mxu0 %v7291
  %v7293 = vpop.f32.mrf.mxu0
  %v7294 = vadd.f32 %v7209, %v7293
  %v7295 = vpop.f32.mrf.mxu0
  %7296 = vmatprep.mubr.f32.mxu0 0.0
  %v7297 = vand.u32 %v6878, 4294901760
  %7298 = vmatmul.mubr.f32.gmra.mxu0 %v7297
  %v7299 = vpop.f32.mrf.mxu0
  %v7300 = vadd.f32 %v7217, %v7299
  %v7301 = vpop.f32.mrf.mxu0
  %7302 = vdwg.mxu0
  %7303 = vmatprep.subr.mxu0 0.0
  %7304 = vmatpush1.msra.mxu0 0.0
  %7305 = vmatprep.subr.mxu0 0.0
  %7306 = vmatpush1.msra.mxu0 0.0
  %7307 = vmatprep.subr.mxu0 0.0
  %7308 = vmatpush1.msra.mxu0 0.0
  %7309 = vmatprep.subr.mxu0 0.0
  %7310 = vmatpush1.msra.mxu0 0.0
  %7311 = vmatprep.subr.mxu0 0.0
  %7312 = vmatpush1.msra.mxu0 0.0
  %7313 = vmatprep.subr.mxu0 0.0
  %7314 = vmatpush1.msra.mxu0 0.0
  %7315 = vmatprep.subr.mxu0 0.0
  %7316 = vmatpush1.msra.mxu0 0.0
  %7317 = vmatprep.subr.mxu0 0.0
  %7318 = vmatpush1.msra.mxu0 0.0
  %7319 = vmatprep.subr.mxu0 0.0
  %7320 = vmatpush1.msra.mxu0 0.0
  %7321 = vmatprep.subr.mxu0 0.0
  %7322 = vmatpush1.msra.mxu0 0.0
  %7323 = vmatprep.subr.mxu0 0.0
  %7324 = vmatpush1.msra.mxu0 0.0
  %7325 = vmatprep.subr.mxu0 0.0
  %7326 = vmatpush1.msra.mxu0 0.0
  %7327 = vmatprep.subr.mxu0 0.0
  %7328 = vmatpush1.msra.mxu0 0.0
  %7329 = vmatprep.subr.mxu0 0.0
  %7330 = vmatpush1.msra.mxu0 0.0
  %7331 = vmatprep.subr.mxu0 0.0
  %v7332 = vand.u32 %v6871, 4294901760
  %7333 = vmatpush1.msra.mxu0 %v7332
  %7334 = vmatprep.subr.mxu0 0.0
  %v7335 = vand.u32 %v6869, 4294901760
  %7336 = vmatpush1.msra.mxu0 %v7335
  %7337 = vmatprep.subr.mxu0 0.0
  %7338 = vmatpush2.msra.mxu0 0.0
  %7339 = vmatprep.subr.mxu0 0.0
  %7340 = vmatpush2.msra.mxu0 0.0
  %7341 = vmatprep.subr.mxu0 0.0
  %7342 = vmatpush2.msra.mxu0 0.0
  %7343 = vmatprep.subr.mxu0 0.0
  %7344 = vmatpush2.msra.mxu0 0.0
  %7345 = vmatprep.subr.mxu0 0.0
  %7346 = vmatpush2.msra.mxu0 0.0
  %7347 = vmatprep.subr.mxu0 0.0
  %7348 = vmatpush2.msra.mxu0 0.0
  %7349 = vmatprep.subr.mxu0 0.0
  %7350 = vmatpush2.msra.mxu0 0.0
  %7351 = vmatprep.subr.mxu0 0.0
  %7352 = vmatpush2.msra.mxu0 0.0
  %7353 = vmatprep.subr.mxu0 0.0
  %7354 = vmatpush2.msra.mxu0 0.0
  %7355 = vmatprep.subr.mxu0 0.0
  %7356 = vmatpush2.msra.mxu0 0.0
  %7357 = vmatprep.subr.mxu0 0.0
  %7358 = vmatpush2.msra.mxu0 0.0
  %7359 = vmatprep.subr.mxu0 0.0
  %7360 = vmatpush2.msra.mxu0 0.0
  %7361 = vmatprep.subr.mxu0 0.0
  %7362 = vmatpush2.msra.mxu0 0.0
  %7363 = vmatprep.subr.mxu0 0.0
  %7364 = vmatpush2.msra.mxu0 0.0
  %7365 = vmatprep.subr.mxu0 0.0
  %7366 = vmatpush2.msra.mxu0 0.0
  %7367 = vmatprep.subr.mxu0 0.0
  %7368 = vmatpush2.msra.mxu0 0.0
  %7369 = vmatprep.mubr.f32.mxu0 0.0
  %v7370 = vand.u32 %v6875, 4294901760
  %7371 = vmatmul.mubr.f32.gmra.mxu0 %v7370
  %v7372 = vpop.f32.mrf.mxu0
  %v7373 = vadd.f32 %v7294, %v7372
  %v7374 = vpop.f32.mrf.mxu0
  %7375 = vmatprep.mubr.f32.mxu0 0.0
  %v7376 = vand.u32 %v6878, 4294901760
  %7377 = vmatmul.mubr.f32.gmra.mxu0 %v7376
  %v7378 = vpop.f32.mrf.mxu0
  %v7379 = vadd.f32 %v7300, %v7378
  %v7380 = vpop.f32.mrf.mxu0
  %7381 = vdwg.mxu0
  %7384 = vrot.lane.b32.xlu0 %v1340, 120
  %v7385 = vpop.permute.xlu0 %7384
  %7386 = vrot.lane.b32.xlu0 %v1341, 120
  %v7387 = vpop.permute.xlu0 %7386
  %v7391 = vsel %vm664, %v5728, 0
  %v7394 = vsel %vm664, %v5729, 0
  %7396 = vmatprep.subr.mxu0 0.0
  %7397 = vmatpush1.msra.mxu0 0.0
  %7398 = vmatprep.subr.mxu0 0.0
  %7399 = vmatpush1.msra.mxu0 0.0
  %7400 = vmatprep.subr.mxu0 0.0
  %7401 = vmatpush1.msra.mxu0 0.0
  %7402 = vmatprep.subr.mxu0 0.0
  %7403 = vmatpush1.msra.mxu0 0.0
  %7404 = vmatprep.subr.mxu0 0.0
  %7405 = vmatpush1.msra.mxu0 0.0
  %7406 = vmatprep.subr.mxu0 0.0
  %7407 = vmatpush1.msra.mxu0 0.0
  %7408 = vmatprep.subr.mxu0 0.0
  %7409 = vmatpush1.msra.mxu0 0.0
  %7410 = vmatprep.subr.mxu0 0.0
  %7411 = vmatpush1.msra.mxu0 0.0
  %7412 = vmatprep.subr.mxu0 0.0
  %7413 = vmatpush1.msra.mxu0 0.0
  %7414 = vmatprep.subr.mxu0 0.0
  %7415 = vmatpush1.msra.mxu0 0.0
  %7416 = vmatprep.subr.mxu0 0.0
  %7417 = vmatpush1.msra.mxu0 0.0
  %7418 = vmatprep.subr.mxu0 0.0
  %7419 = vmatpush1.msra.mxu0 0.0
  %7420 = vmatprep.subr.mxu0 0.0
  %7421 = vmatpush1.msra.mxu0 0.0
  %7422 = vmatprep.subr.mxu0 0.0
  %7423 = vmatpush1.msra.mxu0 0.0
  %7424 = vmatprep.subr.mxu0 0.0
  %v7425 = vand.u32 %v7387, 4294901760
  %7426 = vmatpush1.msra.mxu0 %v7425
  %7427 = vmatprep.subr.mxu0 0.0
  %v7428 = vand.u32 %v7385, 4294901760
  %7429 = vmatpush1.msra.mxu0 %v7428
  %7430 = vmatprep.subr.mxu0 0.0
  %7431 = vmatpush2.msra.mxu0 0.0
  %7432 = vmatprep.subr.mxu0 0.0
  %7433 = vmatpush2.msra.mxu0 0.0
  %7434 = vmatprep.subr.mxu0 0.0
  %7435 = vmatpush2.msra.mxu0 0.0
  %7436 = vmatprep.subr.mxu0 0.0
  %7437 = vmatpush2.msra.mxu0 0.0
  %7438 = vmatprep.subr.mxu0 0.0
  %7439 = vmatpush2.msra.mxu0 0.0
  %7440 = vmatprep.subr.mxu0 0.0
  %7441 = vmatpush2.msra.mxu0 0.0
  %7442 = vmatprep.subr.mxu0 0.0
  %7443 = vmatpush2.msra.mxu0 0.0
  %7444 = vmatprep.subr.mxu0 0.0
  %7445 = vmatpush2.msra.mxu0 0.0
  %7446 = vmatprep.subr.mxu0 0.0
  %7447 = vmatpush2.msra.mxu0 0.0
  %7448 = vmatprep.subr.mxu0 0.0
  %7449 = vmatpush2.msra.mxu0 0.0
  %7450 = vmatprep.subr.mxu0 0.0
  %7451 = vmatpush2.msra.mxu0 0.0
  %7452 = vmatprep.subr.mxu0 0.0
  %7453 = vmatpush2.msra.mxu0 0.0
  %7454 = vmatprep.subr.mxu0 0.0
  %7455 = vmatpush2.msra.mxu0 0.0
  %7456 = vmatprep.subr.mxu0 0.0
  %7457 = vmatpush2.msra.mxu0 0.0
  %7458 = vmatprep.subr.mxu0 0.0
  %7459 = vmatpush2.msra.mxu0 0.0
  %7460 = vmatprep.subr.mxu0 0.0
  %7461 = vmatpush2.msra.mxu0 0.0
  %7462 = vmatprep.mubr.f32.mxu0 0.0
  %v7463 = vand.u32 %v7391, 4294901760
  %v7464 = vsub.f32 %v7391, %v7463
  %v7465 = vand.u32 %v7464, 4294901760
  %v7466 = vsub.f32 %v7464, %v7465
  %v7467 = vand.u32 %v7466, 4294901760
  %7468 = vmatmul.mubr.f32.gmra.mxu0 %v7467
  %v7469 = vpop.f32.mrf.mxu0
  %v7470 = vadd.f32 %v7373, %v7469
  %v7471 = vpop.f32.mrf.mxu0
  %7472 = vmatprep.mubr.f32.mxu0 0.0
  %v7473 = vand.u32 %v7394, 4294901760
  %v7474 = vsub.f32 %v7394, %v7473
  %v7475 = vand.u32 %v7474, 4294901760
  %v7476 = vsub.f32 %v7474, %v7475
  %v7477 = vand.u32 %v7476, 4294901760
  %7478 = vmatmul.mubr.f32.gmra.mxu0 %v7477
  %v7479 = vpop.f32.mrf.mxu0
  %v7480 = vadd.f32 %v7379, %v7479
  %v7481 = vpop.f32.mrf.mxu0
  %7482 = vdwg.mxu0
  %7483 = vmatprep.subr.mxu0 0.0
  %7484 = vmatpush1.msra.mxu0 0.0
  %7485 = vmatprep.subr.mxu0 0.0
  %7486 = vmatpush1.msra.mxu0 0.0
  %7487 = vmatprep.subr.mxu0 0.0
  %7488 = vmatpush1.msra.mxu0 0.0
  %7489 = vmatprep.subr.mxu0 0.0
  %7490 = vmatpush1.msra.mxu0 0.0
  %7491 = vmatprep.subr.mxu0 0.0
  %7492 = vmatpush1.msra.mxu0 0.0
  %7493 = vmatprep.subr.mxu0 0.0
  %7494 = vmatpush1.msra.mxu0 0.0
  %7495 = vmatprep.subr.mxu0 0.0
  %7496 = vmatpush1.msra.mxu0 0.0
  %7497 = vmatprep.subr.mxu0 0.0
  %7498 = vmatpush1.msra.mxu0 0.0
  %7499 = vmatprep.subr.mxu0 0.0
  %7500 = vmatpush1.msra.mxu0 0.0
  %7501 = vmatprep.subr.mxu0 0.0
  %7502 = vmatpush1.msra.mxu0 0.0
  %7503 = vmatprep.subr.mxu0 0.0
  %7504 = vmatpush1.msra.mxu0 0.0
  %7505 = vmatprep.subr.mxu0 0.0
  %7506 = vmatpush1.msra.mxu0 0.0
  %7507 = vmatprep.subr.mxu0 0.0
  %7508 = vmatpush1.msra.mxu0 0.0
  %7509 = vmatprep.subr.mxu0 0.0
  %7510 = vmatpush1.msra.mxu0 0.0
  %7511 = vmatprep.subr.mxu0 0.0
  %v7512 = vand.u32 %v7387, 4294901760
  %v7513 = vsub.f32 %v7387, %v7512
  %v7514 = vand.u32 %v7513, 4294901760
  %v7515 = vsub.f32 %v7513, %v7514
  %v7516 = vand.u32 %v7515, 4294901760
  %7517 = vmatpush1.msra.mxu0 %v7516
  %7518 = vmatprep.subr.mxu0 0.0
  %v7519 = vand.u32 %v7385, 4294901760
  %v7520 = vsub.f32 %v7385, %v7519
  %v7521 = vand.u32 %v7520, 4294901760
  %v7522 = vsub.f32 %v7520, %v7521
  %v7523 = vand.u32 %v7522, 4294901760
  %7524 = vmatpush1.msra.mxu0 %v7523
  %7525 = vmatprep.subr.mxu0 0.0
  %7526 = vmatpush2.msra.mxu0 0.0
  %7527 = vmatprep.subr.mxu0 0.0
  %7528 = vmatpush2.msra.mxu0 0.0
  %7529 = vmatprep.subr.mxu0 0.0
  %7530 = vmatpush2.msra.mxu0 0.0
  %7531 = vmatprep.subr.mxu0 0.0
  %7532 = vmatpush2.msra.mxu0 0.0
  %7533 = vmatprep.subr.mxu0 0.0
  %7534 = vmatpush2.msra.mxu0 0.0
  %7535 = vmatprep.subr.mxu0 0.0
  %7536 = vmatpush2.msra.mxu0 0.0
  %7537 = vmatprep.subr.mxu0 0.0
  %7538 = vmatpush2.msra.mxu0 0.0
  %7539 = vmatprep.subr.mxu0 0.0
  %7540 = vmatpush2.msra.mxu0 0.0
  %7541 = vmatprep.subr.mxu0 0.0
  %7542 = vmatpush2.msra.mxu0 0.0
  %7543 = vmatprep.subr.mxu0 0.0
  %7544 = vmatpush2.msra.mxu0 0.0
  %7545 = vmatprep.subr.mxu0 0.0
  %7546 = vmatpush2.msra.mxu0 0.0
  %7547 = vmatprep.subr.mxu0 0.0
  %7548 = vmatpush2.msra.mxu0 0.0
  %7549 = vmatprep.subr.mxu0 0.0
  %7550 = vmatpush2.msra.mxu0 0.0
  %7551 = vmatprep.subr.mxu0 0.0
  %7552 = vmatpush2.msra.mxu0 0.0
  %7553 = vmatprep.subr.mxu0 0.0
  %7554 = vmatpush2.msra.mxu0 0.0
  %7555 = vmatprep.subr.mxu0 0.0
  %7556 = vmatpush2.msra.mxu0 0.0
  %7557 = vmatprep.mubr.f32.mxu0 0.0
  %v7558 = vand.u32 %v7391, 4294901760
  %7559 = vmatmul.mubr.f32.gmra.mxu0 %v7558
  %v7560 = vpop.f32.mrf.mxu0
  %v7561 = vadd.f32 %v7470, %v7560
  %v7562 = vpop.f32.mrf.mxu0
  %7563 = vmatprep.mubr.f32.mxu0 0.0
  %v7564 = vand.u32 %v7394, 4294901760
  %7565 = vmatmul.mubr.f32.gmra.mxu0 %v7564
  %v7566 = vpop.f32.mrf.mxu0
  %v7567 = vadd.f32 %v7480, %v7566
  %v7568 = vpop.f32.mrf.mxu0
  %7569 = vdwg.mxu0
  %7570 = vmatprep.subr.mxu0 0.0
  %7571 = vmatpush1.msra.mxu0 0.0
  %7572 = vmatprep.subr.mxu0 0.0
  %7573 = vmatpush1.msra.mxu0 0.0
  %7574 = vmatprep.subr.mxu0 0.0
  %7575 = vmatpush1.msra.mxu0 0.0
  %7576 = vmatprep.subr.mxu0 0.0
  %7577 = vmatpush1.msra.mxu0 0.0
  %7578 = vmatprep.subr.mxu0 0.0
  %7579 = vmatpush1.msra.mxu0 0.0
  %7580 = vmatprep.subr.mxu0 0.0
  %7581 = vmatpush1.msra.mxu0 0.0
  %7582 = vmatprep.subr.mxu0 0.0
  %7583 = vmatpush1.msra.mxu0 0.0
  %7584 = vmatprep.subr.mxu0 0.0
  %7585 = vmatpush1.msra.mxu0 0.0
  %7586 = vmatprep.subr.mxu0 0.0
  %7587 = vmatpush1.msra.mxu0 0.0
  %7588 = vmatprep.subr.mxu0 0.0
  %7589 = vmatpush1.msra.mxu0 0.0
  %7590 = vmatprep.subr.mxu0 0.0
  %7591 = vmatpush1.msra.mxu0 0.0
  %7592 = vmatprep.subr.mxu0 0.0
  %7593 = vmatpush1.msra.mxu0 0.0
  %7594 = vmatprep.subr.mxu0 0.0
  %7595 = vmatpush1.msra.mxu0 0.0
  %7596 = vmatprep.subr.mxu0 0.0
  %7597 = vmatpush1.msra.mxu0 0.0
  %7598 = vmatprep.subr.mxu0 0.0
  %v7599 = vand.u32 %v7387, 4294901760
  %v7600 = vsub.f32 %v7387, %v7599
  %7601 = vmatpush1.msra.mxu0 %v7600
  %7602 = vmatprep.subr.mxu0 0.0
  %v7603 = vand.u32 %v7385, 4294901760
  %v7604 = vsub.f32 %v7385, %v7603
  %7605 = vmatpush1.msra.mxu0 %v7604
  %7606 = vmatprep.subr.mxu0 0.0
  %7607 = vmatpush2.msra.mxu0 0.0
  %7608 = vmatprep.subr.mxu0 0.0
  %7609 = vmatpush2.msra.mxu0 0.0
  %7610 = vmatprep.subr.mxu0 0.0
  %7611 = vmatpush2.msra.mxu0 0.0
  %7612 = vmatprep.subr.mxu0 0.0
  %7613 = vmatpush2.msra.mxu0 0.0
  %7614 = vmatprep.subr.mxu0 0.0
  %7615 = vmatpush2.msra.mxu0 0.0
  %7616 = vmatprep.subr.mxu0 0.0
  %7617 = vmatpush2.msra.mxu0 0.0
  %7618 = vmatprep.subr.mxu0 0.0
  %7619 = vmatpush2.msra.mxu0 0.0
  %7620 = vmatprep.subr.mxu0 0.0
  %7621 = vmatpush2.msra.mxu0 0.0
  %7622 = vmatprep.subr.mxu0 0.0
  %7623 = vmatpush2.msra.mxu0 0.0
  %7624 = vmatprep.subr.mxu0 0.0
  %7625 = vmatpush2.msra.mxu0 0.0
  %7626 = vmatprep.subr.mxu0 0.0
  %7627 = vmatpush2.msra.mxu0 0.0
  %7628 = vmatprep.subr.mxu0 0.0
  %7629 = vmatpush2.msra.mxu0 0.0
  %7630 = vmatprep.subr.mxu0 0.0
  %7631 = vmatpush2.msra.mxu0 0.0
  %7632 = vmatprep.subr.mxu0 0.0
  %7633 = vmatpush2.msra.mxu0 0.0
  %7634 = vmatprep.subr.mxu0 0.0
  %7635 = vmatpush2.msra.mxu0 0.0
  %7636 = vmatprep.subr.mxu0 0.0
  %7637 = vmatpush2.msra.mxu0 0.0
  %7638 = vmatprep.mubr.f32.mxu0 0.0
  %v7639 = vand.u32 %v7391, 4294901760
  %v7640 = vsub.f32 %v7391, %v7639
  %7641 = vmatmul.mubr.f32.gmra.mxu0 %v7640
  %v7642 = vpop.f32.mrf.mxu0
  %v7643 = vadd.f32 %v7561, %v7642
  %v7644 = vpop.f32.mrf.mxu0
  %7645 = vmatprep.mubr.f32.mxu0 0.0
  %v7646 = vand.u32 %v7394, 4294901760
  %v7647 = vsub.f32 %v7394, %v7646
  %7648 = vmatmul.mubr.f32.gmra.mxu0 %v7647
  %v7649 = vpop.f32.mrf.mxu0
  %v7650 = vadd.f32 %v7567, %v7649
  %v7651 = vpop.f32.mrf.mxu0
  %7652 = vdwg.mxu0
  %7653 = vmatprep.subr.mxu0 0.0
  %7654 = vmatpush1.msra.mxu0 0.0
  %7655 = vmatprep.subr.mxu0 0.0
  %7656 = vmatpush1.msra.mxu0 0.0
  %7657 = vmatprep.subr.mxu0 0.0
  %7658 = vmatpush1.msra.mxu0 0.0
  %7659 = vmatprep.subr.mxu0 0.0
  %7660 = vmatpush1.msra.mxu0 0.0
  %7661 = vmatprep.subr.mxu0 0.0
  %7662 = vmatpush1.msra.mxu0 0.0
  %7663 = vmatprep.subr.mxu0 0.0
  %7664 = vmatpush1.msra.mxu0 0.0
  %7665 = vmatprep.subr.mxu0 0.0
  %7666 = vmatpush1.msra.mxu0 0.0
  %7667 = vmatprep.subr.mxu0 0.0
  %7668 = vmatpush1.msra.mxu0 0.0
  %7669 = vmatprep.subr.mxu0 0.0
  %7670 = vmatpush1.msra.mxu0 0.0
  %7671 = vmatprep.subr.mxu0 0.0
  %7672 = vmatpush1.msra.mxu0 0.0
  %7673 = vmatprep.subr.mxu0 0.0
  %7674 = vmatpush1.msra.mxu0 0.0
  %7675 = vmatprep.subr.mxu0 0.0
  %7676 = vmatpush1.msra.mxu0 0.0
  %7677 = vmatprep.subr.mxu0 0.0
  %7678 = vmatpush1.msra.mxu0 0.0
  %7679 = vmatprep.subr.mxu0 0.0
  %7680 = vmatpush1.msra.mxu0 0.0
  %7681 = vmatprep.subr.mxu0 0.0
  %v7682 = vand.u32 %v7387, 4294901760
  %7683 = vmatpush1.msra.mxu0 %v7682
  %7684 = vmatprep.subr.mxu0 0.0
  %v7685 = vand.u32 %v7385, 4294901760
  %7686 = vmatpush1.msra.mxu0 %v7685
  %7687 = vmatprep.subr.mxu0 0.0
  %7688 = vmatpush2.msra.mxu0 0.0
  %7689 = vmatprep.subr.mxu0 0.0
  %7690 = vmatpush2.msra.mxu0 0.0
  %7691 = vmatprep.subr.mxu0 0.0
  %7692 = vmatpush2.msra.mxu0 0.0
  %7693 = vmatprep.subr.mxu0 0.0
  %7694 = vmatpush2.msra.mxu0 0.0
  %7695 = vmatprep.subr.mxu0 0.0
  %7696 = vmatpush2.msra.mxu0 0.0
  %7697 = vmatprep.subr.mxu0 0.0
  %7698 = vmatpush2.msra.mxu0 0.0
  %7699 = vmatprep.subr.mxu0 0.0
  %7700 = vmatpush2.msra.mxu0 0.0
  %7701 = vmatprep.subr.mxu0 0.0
  %7702 = vmatpush2.msra.mxu0 0.0
  %7703 = vmatprep.subr.mxu0 0.0
  %7704 = vmatpush2.msra.mxu0 0.0
  %7705 = vmatprep.subr.mxu0 0.0
  %7706 = vmatpush2.msra.mxu0 0.0
  %7707 = vmatprep.subr.mxu0 0.0
  %7708 = vmatpush2.msra.mxu0 0.0
  %7709 = vmatprep.subr.mxu0 0.0
  %7710 = vmatpush2.msra.mxu0 0.0
  %7711 = vmatprep.subr.mxu0 0.0
  %7712 = vmatpush2.msra.mxu0 0.0
  %7713 = vmatprep.subr.mxu0 0.0
  %7714 = vmatpush2.msra.mxu0 0.0
  %7715 = vmatprep.subr.mxu0 0.0
  %7716 = vmatpush2.msra.mxu0 0.0
  %7717 = vmatprep.subr.mxu0 0.0
  %7718 = vmatpush2.msra.mxu0 0.0
  %7719 = vmatprep.mubr.f32.mxu0 0.0
  %v7720 = vand.u32 %v7391, 4294901760
  %v7721 = vsub.f32 %v7391, %v7720
  %v7722 = vand.u32 %v7721, 4294901760
  %7723 = vmatmul.mubr.f32.gmra.mxu0 %v7722
  %v7724 = vpop.f32.mrf.mxu0
  %v7725 = vadd.f32 %v7643, %v7724
  %v7726 = vpop.f32.mrf.mxu0
  %7727 = vmatprep.mubr.f32.mxu0 0.0
  %v7728 = vand.u32 %v7394, 4294901760
  %v7729 = vsub.f32 %v7394, %v7728
  %v7730 = vand.u32 %v7729, 4294901760
  %7731 = vmatmul.mubr.f32.gmra.mxu0 %v7730
  %v7732 = vpop.f32.mrf.mxu0
  %v7733 = vadd.f32 %v7650, %v7732
  %v7734 = vpop.f32.mrf.mxu0
  %7735 = vdwg.mxu0
  %7736 = vmatprep.subr.mxu0 0.0
  %7737 = vmatpush1.msra.mxu0 0.0
  %7738 = vmatprep.subr.mxu0 0.0
  %7739 = vmatpush1.msra.mxu0 0.0
  %7740 = vmatprep.subr.mxu0 0.0
  %7741 = vmatpush1.msra.mxu0 0.0
  %7742 = vmatprep.subr.mxu0 0.0
  %7743 = vmatpush1.msra.mxu0 0.0
  %7744 = vmatprep.subr.mxu0 0.0
  %7745 = vmatpush1.msra.mxu0 0.0
  %7746 = vmatprep.subr.mxu0 0.0
  %7747 = vmatpush1.msra.mxu0 0.0
  %7748 = vmatprep.subr.mxu0 0.0
  %7749 = vmatpush1.msra.mxu0 0.0
  %7750 = vmatprep.subr.mxu0 0.0
  %7751 = vmatpush1.msra.mxu0 0.0
  %7752 = vmatprep.subr.mxu0 0.0
  %7753 = vmatpush1.msra.mxu0 0.0
  %7754 = vmatprep.subr.mxu0 0.0
  %7755 = vmatpush1.msra.mxu0 0.0
  %7756 = vmatprep.subr.mxu0 0.0
  %7757 = vmatpush1.msra.mxu0 0.0
  %7758 = vmatprep.subr.mxu0 0.0
  %7759 = vmatpush1.msra.mxu0 0.0
  %7760 = vmatprep.subr.mxu0 0.0
  %7761 = vmatpush1.msra.mxu0 0.0
  %7762 = vmatprep.subr.mxu0 0.0
  %7763 = vmatpush1.msra.mxu0 0.0
  %7764 = vmatprep.subr.mxu0 0.0
  %v7765 = vand.u32 %v7387, 4294901760
  %v7766 = vsub.f32 %v7387, %v7765
  %v7767 = vand.u32 %v7766, 4294901760
  %7768 = vmatpush1.msra.mxu0 %v7767
  %7769 = vmatprep.subr.mxu0 0.0
  %v7770 = vand.u32 %v7385, 4294901760
  %v7771 = vsub.f32 %v7385, %v7770
  %v7772 = vand.u32 %v7771, 4294901760
  %7773 = vmatpush1.msra.mxu0 %v7772
  %7774 = vmatprep.subr.mxu0 0.0
  %7775 = vmatpush2.msra.mxu0 0.0
  %7776 = vmatprep.subr.mxu0 0.0
  %7777 = vmatpush2.msra.mxu0 0.0
  %7778 = vmatprep.subr.mxu0 0.0
  %7779 = vmatpush2.msra.mxu0 0.0
  %7780 = vmatprep.subr.mxu0 0.0
  %7781 = vmatpush2.msra.mxu0 0.0
  %7782 = vmatprep.subr.mxu0 0.0
  %7783 = vmatpush2.msra.mxu0 0.0
  %7784 = vmatprep.subr.mxu0 0.0
  %7785 = vmatpush2.msra.mxu0 0.0
  %7786 = vmatprep.subr.mxu0 0.0
  %7787 = vmatpush2.msra.mxu0 0.0
  %7788 = vmatprep.subr.mxu0 0.0
  %7789 = vmatpush2.msra.mxu0 0.0
  %7790 = vmatprep.subr.mxu0 0.0
  %7791 = vmatpush2.msra.mxu0 0.0
  %7792 = vmatprep.subr.mxu0 0.0
  %7793 = vmatpush2.msra.mxu0 0.0
  %7794 = vmatprep.subr.mxu0 0.0
  %7795 = vmatpush2.msra.mxu0 0.0
  %7796 = vmatprep.subr.mxu0 0.0
  %7797 = vmatpush2.msra.mxu0 0.0
  %7798 = vmatprep.subr.mxu0 0.0
  %7799 = vmatpush2.msra.mxu0 0.0
  %7800 = vmatprep.subr.mxu0 0.0
  %7801 = vmatpush2.msra.mxu0 0.0
  %7802 = vmatprep.subr.mxu0 0.0
  %7803 = vmatpush2.msra.mxu0 0.0
  %7804 = vmatprep.subr.mxu0 0.0
  %7805 = vmatpush2.msra.mxu0 0.0
  %7806 = vmatprep.mubr.f32.mxu0 0.0
  %v7807 = vand.u32 %v7391, 4294901760
  %7808 = vmatmul.mubr.f32.gmra.mxu0 %v7807
  %v7809 = vpop.f32.mrf.mxu0
  %v7810 = vadd.f32 %v7725, %v7809
  %v7811 = vpop.f32.mrf.mxu0
  %7812 = vmatprep.mubr.f32.mxu0 0.0
  %v7813 = vand.u32 %v7394, 4294901760
  %7814 = vmatmul.mubr.f32.gmra.mxu0 %v7813
  %v7815 = vpop.f32.mrf.mxu0
  %v7816 = vadd.f32 %v7733, %v7815
  %v7817 = vpop.f32.mrf.mxu0
  %7818 = vdwg.mxu0
  %7819 = vmatprep.subr.mxu0 0.0
  %7820 = vmatpush1.msra.mxu0 0.0
  %7821 = vmatprep.subr.mxu0 0.0
  %7822 = vmatpush1.msra.mxu0 0.0
  %7823 = vmatprep.subr.mxu0 0.0
  %7824 = vmatpush1.msra.mxu0 0.0
  %7825 = vmatprep.subr.mxu0 0.0
  %7826 = vmatpush1.msra.mxu0 0.0
  %7827 = vmatprep.subr.mxu0 0.0
  %7828 = vmatpush1.msra.mxu0 0.0
  %7829 = vmatprep.subr.mxu0 0.0
  %7830 = vmatpush1.msra.mxu0 0.0
  %7831 = vmatprep.subr.mxu0 0.0
  %7832 = vmatpush1.msra.mxu0 0.0
  %7833 = vmatprep.subr.mxu0 0.0
  %7834 = vmatpush1.msra.mxu0 0.0
  %7835 = vmatprep.subr.mxu0 0.0
  %7836 = vmatpush1.msra.mxu0 0.0
  %7837 = vmatprep.subr.mxu0 0.0
  %7838 = vmatpush1.msra.mxu0 0.0
  %7839 = vmatprep.subr.mxu0 0.0
  %7840 = vmatpush1.msra.mxu0 0.0
  %7841 = vmatprep.subr.mxu0 0.0
  %7842 = vmatpush1.msra.mxu0 0.0
  %7843 = vmatprep.subr.mxu0 0.0
  %7844 = vmatpush1.msra.mxu0 0.0
  %7845 = vmatprep.subr.mxu0 0.0
  %7846 = vmatpush1.msra.mxu0 0.0
  %7847 = vmatprep.subr.mxu0 0.0
  %v7848 = vand.u32 %v7387, 4294901760
  %7849 = vmatpush1.msra.mxu0 %v7848
  %7850 = vmatprep.subr.mxu0 0.0
  %v7851 = vand.u32 %v7385, 4294901760
  %7852 = vmatpush1.msra.mxu0 %v7851
  %7853 = vmatprep.subr.mxu0 0.0
  %7854 = vmatpush2.msra.mxu0 0.0
  %7855 = vmatprep.subr.mxu0 0.0
  %7856 = vmatpush2.msra.mxu0 0.0
  %7857 = vmatprep.subr.mxu0 0.0
  %7858 = vmatpush2.msra.mxu0 0.0
  %7859 = vmatprep.subr.mxu0 0.0
  %7860 = vmatpush2.msra.mxu0 0.0
  %7861 = vmatprep.subr.mxu0 0.0
  %7862 = vmatpush2.msra.mxu0 0.0
  %7863 = vmatprep.subr.mxu0 0.0
  %7864 = vmatpush2.msra.mxu0 0.0
  %7865 = vmatprep.subr.mxu0 0.0
  %7866 = vmatpush2.msra.mxu0 0.0
  %7867 = vmatprep.subr.mxu0 0.0
  %7868 = vmatpush2.msra.mxu0 0.0
  %7869 = vmatprep.subr.mxu0 0.0
  %7870 = vmatpush2.msra.mxu0 0.0
  %7871 = vmatprep.subr.mxu0 0.0
  %7872 = vmatpush2.msra.mxu0 0.0
  %7873 = vmatprep.subr.mxu0 0.0
  %7874 = vmatpush2.msra.mxu0 0.0
  %7875 = vmatprep.subr.mxu0 0.0
  %7876 = vmatpush2.msra.mxu0 0.0
  %7877 = vmatprep.subr.mxu0 0.0
  %7878 = vmatpush2.msra.mxu0 0.0
  %7879 = vmatprep.subr.mxu0 0.0
  %7880 = vmatpush2.msra.mxu0 0.0
  %7881 = vmatprep.subr.mxu0 0.0
  %7882 = vmatpush2.msra.mxu0 0.0
  %7883 = vmatprep.subr.mxu0 0.0
  %7884 = vmatpush2.msra.mxu0 0.0
  %7885 = vmatprep.mubr.f32.mxu0 0.0
  %v7886 = vand.u32 %v7391, 4294901760
  %7887 = vmatmul.mubr.f32.gmra.mxu0 %v7886
  %v7888 = vpop.f32.mrf.mxu0
  %v7889 = vadd.f32 %v7810, %v7888
  %v7890 = vpop.f32.mrf.mxu0
  %7891 = vmatprep.mubr.f32.mxu0 0.0
  %v7892 = vand.u32 %v7394, 4294901760
  %7893 = vmatmul.mubr.f32.gmra.mxu0 %v7892
  %v7894 = vpop.f32.mrf.mxu0
  %v7895 = vadd.f32 %v7816, %v7894
  %v7896 = vpop.f32.mrf.mxu0
  %7897 = vdwg.mxu0
  %7898 = vrot.lane.b32.xlu0 %v4614, 120
  %v7899 = vpop.permute.xlu0 %7898
  %v7901 = vadd.f32 %v7889, %v7899
  %v7902 = vadd.f32 %v7895, %v7899
  %v7903 = vmul.f32 %v7901, %v1877
  %v7904 = vmul.f32 %v7902, %v1877
  %v7905 = vtanh.pop %v7903
  %v7906 = vtanh.pop %v7904
  %v7907 = vld [vmem:[%s11] sm:$0xff]
  %v7908 = vld [vmem:[%s11 + $0x8] sm:$0xff]
  %v7909 = vld [vmem:[%s11 + $0x10] sm:$0xff]
  %v7910 = vld [vmem:[%s11 + $0x18] sm:$0xff]
  %v7911 = vld [vmem:[%s11 + $0x20] sm:$0xff]
  %v7912 = vld [vmem:[%s11 + $0x28] sm:$0xff]
  %v7913 = vld [vmem:[%s11 + $0x30] sm:$0xff]
  %v7914 = vld [vmem:[%s11 + $0x38] sm:$0xff]
  %v7915 = vld [vmem:[%s12] sm:$0xff]
  %v7916 = vld [vmem:[%s12 + $0x8] sm:$0xff]
  %v7917 = vld [vmem:[%s12 + $0x10] sm:$0xff]
  %v7918 = vld [vmem:[%s12 + $0x18] sm:$0xff]
  %v7919 = vld [vmem:[%s12 + $0x20] sm:$0xff]
  %v7920 = vld [vmem:[%s12 + $0x28] sm:$0xff]
  %v7921 = vld [vmem:[%s12 + $0x30] sm:$0xff]
  %v7922 = vld [vmem:[%s12 + $0x38] sm:$0xff]
  %v7923 = vld [vmem:[%s13] sm:$0xff]
  %v7924 = vlaneseq
  %v7925 = vshrl.u32 %v7924, 7
  %v7926 = vsub.s32 0, %v7925
  %v7927 = vrot.slane %v4620, %v7926
  %7929 = vbcast.lane.b32.xlu0 %v7927, 256
  %v7930 = vpop.permute.xlu0 %7929
  %v7931 = vlaneseq
  %v7932 = vshrl.u32 %v7931, 7
  %v7933 = vsub.s32 1, %v7932
  %v7934 = vrot.slane %v4620, %v7933
  %7936 = vbcast.lane.b32.xlu0 %v7934, 256
  %v7937 = vpop.permute.xlu0 %7936
  %v7938 = vlaneseq
  %v7939 = vshrl.u32 %v7938, 7
  %v7940 = vsub.s32 2, %v7939
  %v7941 = vrot.slane %v4620, %v7940
  %7943 = vbcast.lane.b32.xlu0 %v7941, 256
  %v7944 = vpop.permute.xlu0 %7943
  %v7945 = vlaneseq
  %v7946 = vshrl.u32 %v7945, 7
  %v7947 = vsub.s32 3, %v7946
  %v7948 = vrot.slane %v4620, %v7947
  %7950 = vbcast.lane.b32.xlu0 %v7948, 256
  %v7951 = vpop.permute.xlu0 %7950
  %v7952 = vlaneseq
  %v7953 = vshrl.u32 %v7952, 7
  %v7954 = vsub.s32 4, %v7953
  %v7955 = vrot.slane %v4620, %v7954
  %7957 = vbcast.lane.b32.xlu0 %v7955, 256
  %v7958 = vpop.permute.xlu0 %7957
  %v7959 = vlaneseq
  %v7960 = vshrl.u32 %v7959, 7
  %v7961 = vsub.s32 5, %v7960
  %v7962 = vrot.slane %v4620, %v7961
  %7964 = vbcast.lane.b32.xlu0 %v7962, 256
  %v7965 = vpop.permute.xlu0 %7964
  %v7966 = vlaneseq
  %v7967 = vshrl.u32 %v7966, 7
  %v7968 = vsub.s32 6, %v7967
  %v7969 = vrot.slane %v4620, %v7968
  %7971 = vbcast.lane.b32.xlu0 %v7969, 256
  %v7972 = vpop.permute.xlu0 %7971
  %v7973 = vlaneseq
  %v7974 = vshrl.u32 %v7973, 7
  %v7975 = vsub.s32 7, %v7974
  %v7976 = vrot.slane %v4620, %v7975
  %7978 = vbcast.lane.b32.xlu0 %v7976, 256
  %v7979 = vpop.permute.xlu0 %7978
  %v7980 = vmul.f32 %v7930, %v7907
  %v7981 = vmul.f32 %v7937, %v7908
  %v7982 = vmul.f32 %v7944, %v7909
  %v7983 = vmul.f32 %v7951, %v7910
  %v7984 = vmul.f32 %v7958, %v7911
  %v7985 = vmul.f32 %v7965, %v7912
  %v7986 = vmul.f32 %v7972, %v7913
  %v7987 = vmul.f32 %v7979, %v7914
  %vm7988 = vcmask 15360
  %v7989 = vsel %vm7988, %v7980, 0.0
  %v7990 = vrot.slane %v7989, 4
  %v7991 = vadd.f32 %v7989, %v7990
  %v7992 = vrot.slane %v7991, 2
  %v7993 = vadd.f32 %v7991, %v7992
  %v7994 = vrot.slane %v7993, 1
  %v7995 = vadd.f32 %v7993, %v7994
  %v7996 = vsel %vm7988, %v7981, 0.0
  %v7997 = vrot.slane %v7996, 4
  %v7998 = vadd.f32 %v7996, %v7997
  %v7999 = vrot.slane %v7998, 2
  %v8000 = vadd.f32 %v7998, %v7999
  %v8001 = vrot.slane %v8000, 1
  %v8002 = vadd.f32 %v8000, %v8001
  %v8003 = vsel %vm7988, %v7982, 0.0
  %v8004 = vrot.slane %v8003, 4
  %v8005 = vadd.f32 %v8003, %v8004
  %v8006 = vrot.slane %v8005, 2
  %v8007 = vadd.f32 %v8005, %v8006
  %v8008 = vrot.slane %v8007, 1
  %v8009 = vadd.f32 %v8007, %v8008
  %v8010 = vsel %vm7988, %v7983, 0.0
  %v8011 = vrot.slane %v8010, 4
  %v8012 = vadd.f32 %v8010, %v8011
  %v8013 = vrot.slane %v8012, 2
  %v8014 = vadd.f32 %v8012, %v8013
  %v8015 = vrot.slane %v8014, 1
  %v8016 = vadd.f32 %v8014, %v8015
  %v8017 = vsel %vm7988, %v7984, 0.0
  %v8018 = vrot.slane %v8017, 4
  %v8019 = vadd.f32 %v8017, %v8018
  %v8020 = vrot.slane %v8019, 2
  %v8021 = vadd.f32 %v8019, %v8020
  %v8022 = vrot.slane %v8021, 1
  %v8023 = vadd.f32 %v8021, %v8022
  %v8024 = vsel %vm7988, %v7985, 0.0
  %v8025 = vrot.slane %v8024, 4
  %v8026 = vadd.f32 %v8024, %v8025
  %v8027 = vrot.slane %v8026, 2
  %v8028 = vadd.f32 %v8026, %v8027
  %v8029 = vrot.slane %v8028, 1
  %v8030 = vadd.f32 %v8028, %v8029
  %v8031 = vsel %vm7988, %v7986, 0.0
  %v8032 = vrot.slane %v8031, 4
  %v8033 = vadd.f32 %v8031, %v8032
  %v8034 = vrot.slane %v8033, 2
  %v8035 = vadd.f32 %v8033, %v8034
  %v8036 = vrot.slane %v8035, 1
  %v8037 = vadd.f32 %v8035, %v8036
  %v8038 = vsel %vm7988, %v7987, 0.0
  %v8039 = vrot.slane %v8038, 4
  %v8040 = vadd.f32 %v8038, %v8039
  %v8041 = vrot.slane %v8040, 2
  %v8042 = vadd.f32 %v8040, %v8041
  %v8043 = vrot.slane %v8042, 1
  %v8044 = vadd.f32 %v8042, %v8043
  %v8045 = vlaneseq
  %v8046 = vshrl.u32 %v8045, 7
  %v8047 = vsub.s32 0, %v8046
  %v8048 = vrot.slane %v7905, %v8047
  %8050 = vbcast.lane.b32.xlu0 %v8048, 256
  %v8051 = vpop.permute.xlu0 %8050
  %v8052 = vlaneseq
  %v8053 = vshrl.u32 %v8052, 7
  %v8054 = vsub.s32 1, %v8053
  %v8055 = vrot.slane %v7905, %v8054
  %8057 = vbcast.lane.b32.xlu0 %v8055, 256
  %v8058 = vpop.permute.xlu0 %8057
  %v8059 = vlaneseq
  %v8060 = vshrl.u32 %v8059, 7
  %v8061 = vsub.s32 2, %v8060
  %v8062 = vrot.slane %v7905, %v8061
  %8064 = vbcast.lane.b32.xlu0 %v8062, 256
  %v8065 = vpop.permute.xlu0 %8064
  %v8066 = vlaneseq
  %v8067 = vshrl.u32 %v8066, 7
  %v8068 = vsub.s32 3, %v8067
  %v8069 = vrot.slane %v7905, %v8068
  %8071 = vbcast.lane.b32.xlu0 %v8069, 256
  %v8072 = vpop.permute.xlu0 %8071
  %v8073 = vlaneseq
  %v8074 = vshrl.u32 %v8073, 7
  %v8075 = vsub.s32 4, %v8074
  %v8076 = vrot.slane %v7905, %v8075
  %8078 = vbcast.lane.b32.xlu0 %v8076, 256
  %v8079 = vpop.permute.xlu0 %8078
  %v8080 = vlaneseq
  %v8081 = vshrl.u32 %v8080, 7
  %v8082 = vsub.s32 5, %v8081
  %v8083 = vrot.slane %v7905, %v8082
  %8085 = vbcast.lane.b32.xlu0 %v8083, 256
  %v8086 = vpop.permute.xlu0 %8085
  %v8087 = vlaneseq
  %v8088 = vshrl.u32 %v8087, 7
  %v8089 = vsub.s32 6, %v8088
  %v8090 = vrot.slane %v7905, %v8089
  %8092 = vbcast.lane.b32.xlu0 %v8090, 256
  %v8093 = vpop.permute.xlu0 %8092
  %v8094 = vlaneseq
  %v8095 = vshrl.u32 %v8094, 7
  %v8096 = vsub.s32 7, %v8095
  %v8097 = vrot.slane %v7905, %v8096
  %8099 = vbcast.lane.b32.xlu0 %v8097, 256
  %v8100 = vpop.permute.xlu0 %8099
  %v8101 = vmul.f32 %v8051, %v7915
  %v8102 = vmul.f32 %v8058, %v7916
  %v8103 = vmul.f32 %v8065, %v7917
  %v8104 = vmul.f32 %v8072, %v7918
  %v8105 = vmul.f32 %v8079, %v7919
  %v8106 = vmul.f32 %v8086, %v7920
  %v8107 = vmul.f32 %v8093, %v7921
  %v8108 = vmul.f32 %v8100, %v7922
  %v8109 = vsel %vm7988, %v8101, 0.0
  %v8110 = vrot.slane %v8109, 4
  %v8111 = vadd.f32 %v8109, %v8110
  %v8112 = vrot.slane %v8111, 2
  %v8113 = vadd.f32 %v8111, %v8112
  %v8114 = vrot.slane %v8113, 1
  %v8115 = vadd.f32 %v8113, %v8114
  %v8116 = vsel %vm7988, %v8102, 0.0
  %v8117 = vrot.slane %v8116, 4
  %v8118 = vadd.f32 %v8116, %v8117
  %v8119 = vrot.slane %v8118, 2
  %v8120 = vadd.f32 %v8118, %v8119
  %v8121 = vrot.slane %v8120, 1
  %v8122 = vadd.f32 %v8120, %v8121
  %v8123 = vsel %vm7988, %v8103, 0.0
  %v8124 = vrot.slane %v8123, 4
  %v8125 = vadd.f32 %v8123, %v8124
  %v8126 = vrot.slane %v8125, 2
  %v8127 = vadd.f32 %v8125, %v8126
  %v8128 = vrot.slane %v8127, 1
  %v8129 = vadd.f32 %v8127, %v8128
  %v8130 = vsel %vm7988, %v8104, 0.0
  %v8131 = vrot.slane %v8130, 4
  %v8132 = vadd.f32 %v8130, %v8131
  %v8133 = vrot.slane %v8132, 2
  %v8134 = vadd.f32 %v8132, %v8133
  %v8135 = vrot.slane %v8134, 1
  %v8136 = vadd.f32 %v8134, %v8135
  %v8137 = vsel %vm7988, %v8105, 0.0
  %v8138 = vrot.slane %v8137, 4
  %v8139 = vadd.f32 %v8137, %v8138
  %v8140 = vrot.slane %v8139, 2
  %v8141 = vadd.f32 %v8139, %v8140
  %v8142 = vrot.slane %v8141, 1
  %v8143 = vadd.f32 %v8141, %v8142
  %v8144 = vsel %vm7988, %v8106, 0.0
  %v8145 = vrot.slane %v8144, 4
  %v8146 = vadd.f32 %v8144, %v8145
  %v8147 = vrot.slane %v8146, 2
  %v8148 = vadd.f32 %v8146, %v8147
  %v8149 = vrot.slane %v8148, 1
  %v8150 = vadd.f32 %v8148, %v8149
  %v8151 = vsel %vm7988, %v8107, 0.0
  %v8152 = vrot.slane %v8151, 4
  %v8153 = vadd.f32 %v8151, %v8152
  %v8154 = vrot.slane %v8153, 2
  %v8155 = vadd.f32 %v8153, %v8154
  %v8156 = vrot.slane %v8155, 1
  %v8157 = vadd.f32 %v8155, %v8156
  %v8158 = vsel %vm7988, %v8108, 0.0
  %v8159 = vrot.slane %v8158, 4
  %v8160 = vadd.f32 %v8158, %v8159
  %v8161 = vrot.slane %v8160, 2
  %v8162 = vadd.f32 %v8160, %v8161
  %v8163 = vrot.slane %v8162, 1
  %v8164 = vadd.f32 %v8162, %v8163
  %v8165 = vadd.f32 %v7995, %v8115
  %v8166 = vadd.f32 %v8002, %v8122
  %v8167 = vadd.f32 %v8009, %v8129
  %v8168 = vadd.f32 %v8016, %v8136
  %v8169 = vadd.f32 %v8023, %v8143
  %v8170 = vadd.f32 %v8030, %v8150
  %v8171 = vadd.f32 %v8037, %v8157
  %v8172 = vadd.f32 %v8044, %v8164
  %v8174 = vrot.slane %v7923, 1
  %v8175 = vrot.slane %v7923, 2
  %v8176 = vrot.slane %v7923, 3
  %v8177 = vrot.slane %v7923, 4
  %v8178 = vrot.slane %v7923, 5
  %v8179 = vrot.slane %v7923, 6
  %v8180 = vrot.slane %v7923, 7
  %v8189 = vadd.f32 %v8165, %v7923
  %v8190 = vadd.f32 %v8166, %v8174
  %v8191 = vadd.f32 %v8167, %v8175
  %v8192 = vadd.f32 %v8168, %v8176
  %v8193 = vadd.f32 %v8169, %v8177
  %v8194 = vadd.f32 %v8170, %v8178
  %v8195 = vadd.f32 %v8171, %v8179
  %v8196 = vadd.f32 %v8172, %v8180
  %v8205 = vrot.slane %v8190, 7
  %vm8206 = vcmask 1041409
  %v8207 = vsel %vm8206, %v8205, %v8189
  %v8208 = vrot.slane %v8191, 6
  %vm8209 = vcmask 1042434
  %v8210 = vsel %vm8209, %v8208, %v8207
  %v8211 = vrot.slane %v8192, 5
  %vm8212 = vcmask 1043459
  %v8213 = vsel %vm8212, %v8211, %v8210
  %v8214 = vrot.slane %v8193, 4
  %vm8215 = vcmask 1044484
  %v8216 = vsel %vm8215, %v8214, %v8213
  %v8217 = vrot.slane %v8194, 3
  %vm8218 = vcmask 1045509
  %v8219 = vsel %vm8218, %v8217, %v8216
  %v8220 = vrot.slane %v8195, 2
  %vm8221 = vcmask 1046534
  %v8222 = vsel %vm8221, %v8220, %v8219
  %v8223 = vrot.slane %v8196, 1
  %vm8224 = vcmask 1047559
  %v8225 = vsel %vm8224, %v8223, %v8222
  %8227 = vst.msk [vmem:[%s14] sm:$0xff] %vm7988, %v8225
  %v8228 = vlaneseq
  %v8229 = vshrl.u32 %v8228, 7
  %v8230 = vsub.s32 0, %v8229
  %v8231 = vrot.slane %v4621, %v8230
  %8233 = vbcast.lane.b32.xlu0 %v8231, 256
  %v8234 = vpop.permute.xlu0 %8233
  %v8235 = vlaneseq
  %v8236 = vshrl.u32 %v8235, 7
  %v8237 = vsub.s32 1, %v8236
  %v8238 = vrot.slane %v4621, %v8237
  %8240 = vbcast.lane.b32.xlu0 %v8238, 256
  %v8241 = vpop.permute.xlu0 %8240
  %v8242 = vlaneseq
  %v8243 = vshrl.u32 %v8242, 7
  %v8244 = vsub.s32 2, %v8243
  %v8245 = vrot.slane %v4621, %v8244
  %8247 = vbcast.lane.b32.xlu0 %v8245, 256
  %v8248 = vpop.permute.xlu0 %8247
  %v8249 = vlaneseq
  %v8250 = vshrl.u32 %v8249, 7
  %v8251 = vsub.s32 3, %v8250
  %v8252 = vrot.slane %v4621, %v8251
  %8254 = vbcast.lane.b32.xlu0 %v8252, 256
  %v8255 = vpop.permute.xlu0 %8254
  %v8256 = vlaneseq
  %v8257 = vshrl.u32 %v8256, 7
  %v8258 = vsub.s32 4, %v8257
  %v8259 = vrot.slane %v4621, %v8258
  %8261 = vbcast.lane.b32.xlu0 %v8259, 256
  %v8262 = vpop.permute.xlu0 %8261
  %v8263 = vlaneseq
  %v8264 = vshrl.u32 %v8263, 7
  %v8265 = vsub.s32 5, %v8264
  %v8266 = vrot.slane %v4621, %v8265
  %8268 = vbcast.lane.b32.xlu0 %v8266, 256
  %v8269 = vpop.permute.xlu0 %8268
  %v8270 = vlaneseq
  %v8271 = vshrl.u32 %v8270, 7
  %v8272 = vsub.s32 6, %v8271
  %v8273 = vrot.slane %v4621, %v8272
  %8275 = vbcast.lane.b32.xlu0 %v8273, 256
  %v8276 = vpop.permute.xlu0 %8275
  %v8277 = vlaneseq
  %v8278 = vshrl.u32 %v8277, 7
  %v8279 = vsub.s32 7, %v8278
  %v8280 = vrot.slane %v4621, %v8279
  %8282 = vbcast.lane.b32.xlu0 %v8280, 256
  %v8283 = vpop.permute.xlu0 %8282
  %v8284 = vmul.f32 %v8234, %v7907
  %v8285 = vmul.f32 %v8241, %v7908
  %v8286 = vmul.f32 %v8248, %v7909
  %v8287 = vmul.f32 %v8255, %v7910
  %v8288 = vmul.f32 %v8262, %v7911
  %v8289 = vmul.f32 %v8269, %v7912
  %v8290 = vmul.f32 %v8276, %v7913
  %v8291 = vmul.f32 %v8283, %v7914
  %v8292 = vsel %vm7988, %v8284, 0.0
  %v8293 = vrot.slane %v8292, 4
  %v8294 = vadd.f32 %v8292, %v8293
  %v8295 = vrot.slane %v8294, 2
  %v8296 = vadd.f32 %v8294, %v8295
  %v8297 = vrot.slane %v8296, 1
  %v8298 = vadd.f32 %v8296, %v8297
  %v8299 = vsel %vm7988, %v8285, 0.0
  %v8300 = vrot.slane %v8299, 4
  %v8301 = vadd.f32 %v8299, %v8300
  %v8302 = vrot.slane %v8301, 2
  %v8303 = vadd.f32 %v8301, %v8302
  %v8304 = vrot.slane %v8303, 1
  %v8305 = vadd.f32 %v8303, %v8304
  %v8306 = vsel %vm7988, %v8286, 0.0
  %v8307 = vrot.slane %v8306, 4
  %v8308 = vadd.f32 %v8306, %v8307
  %v8309 = vrot.slane %v8308, 2
  %v8310 = vadd.f32 %v8308, %v8309
  %v8311 = vrot.slane %v8310, 1
  %v8312 = vadd.f32 %v8310, %v8311
  %v8313 = vsel %vm7988, %v8287, 0.0
  %v8314 = vrot.slane %v8313, 4
  %v8315 = vadd.f32 %v8313, %v8314
  %v8316 = vrot.slane %v8315, 2
  %v8317 = vadd.f32 %v8315, %v8316
  %v8318 = vrot.slane %v8317, 1
  %v8319 = vadd.f32 %v8317, %v8318
  %v8320 = vsel %vm7988, %v8288, 0.0
  %v8321 = vrot.slane %v8320, 4
  %v8322 = vadd.f32 %v8320, %v8321
  %v8323 = vrot.slane %v8322, 2
  %v8324 = vadd.f32 %v8322, %v8323
  %v8325 = vrot.slane %v8324, 1
  %v8326 = vadd.f32 %v8324, %v8325
  %v8327 = vsel %vm7988, %v8289, 0.0
  %v8328 = vrot.slane %v8327, 4
  %v8329 = vadd.f32 %v8327, %v8328
  %v8330 = vrot.slane %v8329, 2
  %v8331 = vadd.f32 %v8329, %v8330
  %v8332 = vrot.slane %v8331, 1
  %v8333 = vadd.f32 %v8331, %v8332
  %v8334 = vsel %vm7988, %v8290, 0.0
  %v8335 = vrot.slane %v8334, 4
  %v8336 = vadd.f32 %v8334, %v8335
  %v8337 = vrot.slane %v8336, 2
  %v8338 = vadd.f32 %v8336, %v8337
  %v8339 = vrot.slane %v8338, 1
  %v8340 = vadd.f32 %v8338, %v8339
  %v8341 = vsel %vm7988, %v8291, 0.0
  %v8342 = vrot.slane %v8341, 4
  %v8343 = vadd.f32 %v8341, %v8342
  %v8344 = vrot.slane %v8343, 2
  %v8345 = vadd.f32 %v8343, %v8344
  %v8346 = vrot.slane %v8345, 1
  %v8347 = vadd.f32 %v8345, %v8346
  %v8348 = vlaneseq
  %v8349 = vshrl.u32 %v8348, 7
  %v8350 = vsub.s32 0, %v8349
  %v8351 = vrot.slane %v7906, %v8350
  %8353 = vbcast.lane.b32.xlu0 %v8351, 256
  %v8354 = vpop.permute.xlu0 %8353
  %v8355 = vlaneseq
  %v8356 = vshrl.u32 %v8355, 7
  %v8357 = vsub.s32 1, %v8356
  %v8358 = vrot.slane %v7906, %v8357
  %8360 = vbcast.lane.b32.xlu0 %v8358, 256
  %v8361 = vpop.permute.xlu0 %8360
  %v8362 = vlaneseq
  %v8363 = vshrl.u32 %v8362, 7
  %v8364 = vsub.s32 2, %v8363
  %v8365 = vrot.slane %v7906, %v8364
  %8367 = vbcast.lane.b32.xlu0 %v8365, 256
  %v8368 = vpop.permute.xlu0 %8367
  %v8369 = vlaneseq
  %v8370 = vshrl.u32 %v8369, 7
  %v8371 = vsub.s32 3, %v8370
  %v8372 = vrot.slane %v7906, %v8371
  %8374 = vbcast.lane.b32.xlu0 %v8372, 256
  %v8375 = vpop.permute.xlu0 %8374
  %v8376 = vlaneseq
  %v8377 = vshrl.u32 %v8376, 7
  %v8378 = vsub.s32 4, %v8377
  %v8379 = vrot.slane %v7906, %v8378
  %8381 = vbcast.lane.b32.xlu0 %v8379, 256
  %v8382 = vpop.permute.xlu0 %8381
  %v8383 = vlaneseq
  %v8384 = vshrl.u32 %v8383, 7
  %v8385 = vsub.s32 5, %v8384
  %v8386 = vrot.slane %v7906, %v8385
  %8388 = vbcast.lane.b32.xlu0 %v8386, 256
  %v8389 = vpop.permute.xlu0 %8388
  %v8390 = vlaneseq
  %v8391 = vshrl.u32 %v8390, 7
  %v8392 = vsub.s32 6, %v8391
  %v8393 = vrot.slane %v7906, %v8392
  %8395 = vbcast.lane.b32.xlu0 %v8393, 256
  %v8396 = vpop.permute.xlu0 %8395
  %v8397 = vlaneseq
  %v8398 = vshrl.u32 %v8397, 7
  %v8399 = vsub.s32 7, %v8398
  %v8400 = vrot.slane %v7906, %v8399
  %8402 = vbcast.lane.b32.xlu0 %v8400, 256
  %v8403 = vpop.permute.xlu0 %8402
  %v8404 = vmul.f32 %v8354, %v7915
  %v8405 = vmul.f32 %v8361, %v7916
  %v8406 = vmul.f32 %v8368, %v7917
  %v8407 = vmul.f32 %v8375, %v7918
  %v8408 = vmul.f32 %v8382, %v7919
  %v8409 = vmul.f32 %v8389, %v7920
  %v8410 = vmul.f32 %v8396, %v7921
  %v8411 = vmul.f32 %v8403, %v7922
  %v8412 = vsel %vm7988, %v8404, 0.0
  %v8413 = vrot.slane %v8412, 4
  %v8414 = vadd.f32 %v8412, %v8413
  %v8415 = vrot.slane %v8414, 2
  %v8416 = vadd.f32 %v8414, %v8415
  %v8417 = vrot.slane %v8416, 1
  %v8418 = vadd.f32 %v8416, %v8417
  %v8419 = vsel %vm7988, %v8405, 0.0
  %v8420 = vrot.slane %v8419, 4
  %v8421 = vadd.f32 %v8419, %v8420
  %v8422 = vrot.slane %v8421, 2
  %v8423 = vadd.f32 %v8421, %v8422
  %v8424 = vrot.slane %v8423, 1
  %v8425 = vadd.f32 %v8423, %v8424
  %v8426 = vsel %vm7988, %v8406, 0.0
  %v8427 = vrot.slane %v8426, 4
  %v8428 = vadd.f32 %v8426, %v8427
  %v8429 = vrot.slane %v8428, 2
  %v8430 = vadd.f32 %v8428, %v8429
  %v8431 = vrot.slane %v8430, 1
  %v8432 = vadd.f32 %v8430, %v8431
  %v8433 = vsel %vm7988, %v8407, 0.0
  %v8434 = vrot.slane %v8433, 4
  %v8435 = vadd.f32 %v8433, %v8434
  %v8436 = vrot.slane %v8435, 2
  %v8437 = vadd.f32 %v8435, %v8436
  %v8438 = vrot.slane %v8437, 1
  %v8439 = vadd.f32 %v8437, %v8438
  %v8440 = vsel %vm7988, %v8408, 0.0
  %v8441 = vrot.slane %v8440, 4
  %v8442 = vadd.f32 %v8440, %v8441
  %v8443 = vrot.slane %v8442, 2
  %v8444 = vadd.f32 %v8442, %v8443
  %v8445 = vrot.slane %v8444, 1
  %v8446 = vadd.f32 %v8444, %v8445
  %v8447 = vsel %vm7988, %v8409, 0.0
  %v8448 = vrot.slane %v8447, 4
  %v8449 = vadd.f32 %v8447, %v8448
  %v8450 = vrot.slane %v8449, 2
  %v8451 = vadd.f32 %v8449, %v8450
  %v8452 = vrot.slane %v8451, 1
  %v8453 = vadd.f32 %v8451, %v8452
  %v8454 = vsel %vm7988, %v8410, 0.0
  %v8455 = vrot.slane %v8454, 4
  %v8456 = vadd.f32 %v8454, %v8455
  %v8457 = vrot.slane %v8456, 2
  %v8458 = vadd.f32 %v8456, %v8457
  %v8459 = vrot.slane %v8458, 1
  %v8460 = vadd.f32 %v8458, %v8459
  %v8461 = vsel %vm7988, %v8411, 0.0
  %v8462 = vrot.slane %v8461, 4
  %v8463 = vadd.f32 %v8461, %v8462
  %v8464 = vrot.slane %v8463, 2
  %v8465 = vadd.f32 %v8463, %v8464
  %v8466 = vrot.slane %v8465, 1
  %v8467 = vadd.f32 %v8465, %v8466
  %v8468 = vadd.f32 %v8298, %v8418
  %v8469 = vadd.f32 %v8305, %v8425
  %v8470 = vadd.f32 %v8312, %v8432
  %v8471 = vadd.f32 %v8319, %v8439
  %v8472 = vadd.f32 %v8326, %v8446
  %v8473 = vadd.f32 %v8333, %v8453
  %v8474 = vadd.f32 %v8340, %v8460
  %v8475 = vadd.f32 %v8347, %v8467
  %v8476 = vadd.f32 %v8468, %v7923
  %v8477 = vadd.f32 %v8469, %v8174
  %v8478 = vadd.f32 %v8470, %v8175
  %v8479 = vadd.f32 %v8471, %v8176
  %v8480 = vadd.f32 %v8472, %v8177
  %v8481 = vadd.f32 %v8473, %v8178
  %v8482 = vadd.f32 %v8474, %v8179
  %v8483 = vadd.f32 %v8475, %v8180
  %v8492 = vrot.slane %v8477, 7
  %v8493 = vsel %vm8206, %v8492, %v8476
  %v8494 = vrot.slane %v8478, 6
  %v8495 = vsel %vm8209, %v8494, %v8493
  %v8496 = vrot.slane %v8479, 5
  %v8497 = vsel %vm8212, %v8496, %v8495
  %v8498 = vrot.slane %v8480, 4
  %v8499 = vsel %vm8215, %v8498, %v8497
  %v8500 = vrot.slane %v8481, 3
  %v8501 = vsel %vm8218, %v8500, %v8499
  %v8502 = vrot.slane %v8482, 2
  %v8503 = vsel %vm8221, %v8502, %v8501
  %v8504 = vrot.slane %v8483, 1
  %v8505 = vsel %vm8224, %v8504, %v8503
  %s8507 = scalar_lea.vmem %s14, 8
  %8508 = vst.msk [vmem:[%s8507] sm:$0xff] %vm7988, %v8505
  // Predicated region
  $region58: #{forward_pallas.1} parent=0 // pred_check
    _
  $region59: #{forward_pallas.1} parent=0 // pred_check_branch
    %8510 = sbr.rel (0) target = $region61
  $region60: #{forward_pallas.1} parent=0 // pred_region
    _
  $region61: #{forward_pallas.1} parent=0 // pred_fallthru
    _
  // Predicated region
  $region62: #{forward_pallas.1} parent=0 // pred_check
    _
  $region63: #{forward_pallas.1} parent=0 // pred_check_branch
    %8512 = sbr.rel (0) target = $region65
  $region64: #{forward_pallas.1} parent=0 // pred_region
    _
  $region65: #{forward_pallas.1} parent=0 // pred_fallthru
    _

</llo_original>
